<compile_context>
chip_gen: v7x
topology: tpu7x:2x2x1
jax: 0.10.0
libtpu: 0.0.40
codegen_flags: <defaults>
</compile_context>

<pallas_src>
import jax
import jax.numpy as jnp
from jax.experimental import pallas as pl
from jax.experimental.pallas import tpu as pltpu


def _linear_kernel(x_ref, wt_ref, b_ref, o_ref, acc_ref):
    """One (tm, tn) output tile, accumulating partial products over the K axis."""
    k = pl.program_id(2)

    # x tile: (tm, tk), wT tile: (tk, tn) -> standard MXU contraction, f32 acc.
    part = jnp.dot(x_ref[...], wt_ref[...], preferred_element_type=jnp.float32)

    @pl.when(k == 0)
    def _first():
        acc_ref[...] = part           # direct write: no zero-init round trip

    @pl.when(k > 0)
    def _accumulate():
        acc_ref[...] += part

    @pl.when(k == pl.num_programs(2) - 1)
    def _finalize():
        # Bias added exactly once, then single cast to the output dtype.
        out = acc_ref[...] + b_ref[...].astype(jnp.float32)
        o_ref[...] = out.astype(o_ref.dtype)


def _round_up(x, m):
    return ((x + m - 1) // m) * m


def _sublane_multiple(dtype):
    """Sublane alignment for a dtype: 8 (32-bit), 16 (16-bit), 32 (8-bit)."""
    itemsize = jnp.dtype(dtype).itemsize
    return 8 * max(1, 4 // itemsize)


def _vmem_cap_bytes():
    try:
        return int(pltpu.get_tpu_info().vmem_capacity_bytes)
    except Exception:  # pragma: no cover - conservative fallback (v7x per-TC size)
        return 64 * 1024 * 1024


def linear_pallas(x, w, b, *, tm=512, tn=1024, tk=512,
                  w_is_transposed=False, out_dtype=None):
    """Forward of nn.Linear: y = x @ w.T + b.

    x : (M, K) activations (pass in the storage dtype you want the MXU to use;
        bf16 halves activation DMA, accumulation stays f32).
    w : (N, K) weight in PyTorch layout, or (K, N) if w_is_transposed=True.
        Store weights pre-transposed / in bf16 in real models to avoid the
        per-call transpose & cast HBM passes.
    b : (N,) bias.
    """
    M, K = x.shape
    if w_is_transposed:
        K2, N = w.shape
    else:
        N, K2 = w.shape
    assert K == K2 and b.shape == (N,)

    if out_dtype is None:
        out_dtype = x.dtype

    # Tiny problems: Pallas per-grid-step overhead dominates; use plain XLA.
    if 2 * M * N * K < (1 << 20):
        wT = w if w_is_transposed else w.T
        y = jnp.dot(x.astype(jnp.float32), wT.astype(jnp.float32),
                    preferred_element_type=jnp.float32)
        return (y + b.astype(jnp.float32)).astype(out_dtype)

    # Consume the weight in (K, N) layout so the inner-loop dot needs no XLU
    # transpose.  One-time cost here; cache/store transposed weights in real use.
    wT = w if w_is_transposed else w.T

    # Shrink tiles to the problem while staying sublane/lane aligned
    # (sublane multiple depends on packed dtype: 8 f32, 16 bf16, 32 for 8-bit).
    sub = max(_sublane_multiple(x.dtype), _sublane_multiple(out_dtype))
    tm = _round_up(min(tm, _round_up(M, sub)), sub)
    tn = _round_up(min(tn, _round_up(N, 128)), 128)
    tk = _round_up(min(tk, _round_up(K, 128)), 128)

    # Only K needs zero-padding (padded K would contaminate the accumulator);
    # partial M / N edge blocks are masked by Pallas, no padded HBM copies.
    Kp = _round_up(K, tk)
    if Kp != K:
        x = jnp.pad(x, ((0, 0), (0, Kp - K)))
        wT = jnp.pad(wT, ((0, Kp - K), (0, 0)))

    grid = (pl.cdiv(M, tm), pl.cdiv(N, tn), Kp // tk)

    b2d = b.reshape(1, N).astype(jnp.float32)

    # Explicit scoped-VMEM budget: enough for double-buffered tiles + acc,
    # >= 32 MiB (v5e default is only 16 MiB), capped below physical VMEM
    # (64 MiB per TC on v7x, 128 MiB on v5e/v6e).
    xb = jnp.dtype(x.dtype).itemsize
    wb = jnp.dtype(wT.dtype).itemsize
    ob = jnp.dtype(out_dtype).itemsize
    vmem_needed = (2 * tm * tk * xb + 2 * tk * tn * wb + 2 * tm * tn * ob
                   + tm * tn * 4 + 2 * tn * 4)
    cap = _vmem_cap_bytes()
    vmem_limit = int(min(max(vmem_needed + (8 << 20), 32 << 20), cap * 9 // 10))

    # Advisory cost: account for reuse (x streamed grid_j times, wT grid_i times).
    grid_i, grid_j = grid[0], grid[1]
    bytes_accessed = int(
        x.size * xb * grid_j
        + wT.size * wb * grid_i
        + M * N * ob
        + b2d.size * 4 * grid_i
    )

    out = pl.pallas_call(
        _linear_kernel,
        out_shape=jax.ShapeDtypeStruct((M, N), out_dtype),
        grid_spec=pltpu.PrefetchScalarGridSpec(
            num_scalar_prefetch=0,
            grid=grid,
            in_specs=[
                pl.BlockSpec((tm, tk), lambda i, j, k: (i, k)),   # x
                pl.BlockSpec((tk, tn), lambda i, j, k: (k, j)),   # w^T (K, N)
                pl.BlockSpec((1, tn), lambda i, j, k: (0, j)),    # bias
            ],
            out_specs=pl.BlockSpec((tm, tn), lambda i, j, k: (i, j)),
            scratch_shapes=[pltpu.VMEM((tm, tn), jnp.float32)],
        ),
        compiler_params=pltpu.CompilerParams(
            dimension_semantics=("parallel", "parallel", "arbitrary"),
            vmem_limit_bytes=vmem_limit,
        ),
        cost_estimate=pl.CostEstimate(
            flops=2 * M * N * Kp,
            transcendentals=0,
            bytes_accessed=bytes_accessed,
        ),
    )(x, wT, b2d)

    return out


if __name__ == "__main__":
    key = jax.random.PRNGKey(0)
    kx, kw, kb, kx2, kw2, kb2, kx3, kw3, kb3 = jax.random.split(key, 9)

    # (1) Pallas path, f32: multi-step K accumulation + partial M/N edge blocks
    #     (640 = 512 + 128, 1536 = 1024 + 512) without any wrapper-side padding.
    M, K, N = 640, 1024, 1536
    x = jax.random.normal(kx, (M, K), dtype=jnp.float32)
    W = jax.random.normal(kw, (N, K), dtype=jnp.float32) * (K ** -0.5)
    b = jax.random.normal(kb, (N,), dtype=jnp.float32) * 0.1

    y = jax.block_until_ready(linear_pallas(x, W, b))
    y_ref = jnp.dot(x, W.T, precision=jax.lax.Precision.HIGHEST) + b
    assert y.shape == (M, N)
    assert jnp.allclose(y, y_ref, atol=1e-3, rtol=1e-3), "f32 Pallas mismatch"

    # (2) Pallas path, bf16 storage for x and W (no per-call casts inside the
    #     wrapper), bf16 output, f32 accumulation; also exercises K padding
    #     (320 -> 384) and the 16-row sublane rounding for bf16 (M=200 -> tm=208).
    M2, K2, N2 = 200, 320, 640
    x2_f32 = jax.random.normal(kx2, (M2, K2), dtype=jnp.float32)
    W2_f32 = jax.random.normal(kw2, (N2, K2), dtype=jnp.float32) * (K2 ** -0.5)
    b2 = jax.random.normal(kb2, (N2,), dtype=jnp.float32) * 0.1
    x2 = x2_f32.astype(jnp.bfloat16)   # "stored in bf16" params/activations
    W2 = W2_f32.astype(jnp.bfloat16)

    y2 = jax.block_until_ready(linear_pallas(x2, W2, b2))
    y2_ref = jnp.dot(x2_f32, W2_f32.T, precision=jax.lax.Precision.HIGHEST) + b2
    assert y2.shape == (M2, N2) and y2.dtype == jnp.bfloat16
    assert jnp.allclose(y2.astype(jnp.float32), y2_ref, atol=1e-1, rtol=5e-2), \
        "bf16 Pallas mismatch"

    # (3) Toy PyTorch-example shape (8, 32) -> (8, 16): XLA fallback (too small
    #     for Pallas per-step overhead to pay off).
    m3, k3, n3 = 8, 32, 16
    x3 = jax.random.normal(kx3, (m3, k3), dtype=jnp.float32)
    W3 = jax.random.normal(kw3, (n3, k3), dtype=jnp.float32) * (k3 ** -0.5)
    b3 = jax.random.normal(kb3, (n3,), dtype=jnp.float32) * 0.1
    y3 = jax.block_until_ready(linear_pallas(x3, W3, b3))
    assert jnp.allclose(y3, x3 @ W3.T + b3, atol=1e-5, rtol=1e-5), "toy mismatch"

    print("KERNEL_OK")
</pallas_src>

<mosaic_0001>
module attributes {stable_mosaic.version = 11 : i64} {
  func.func @_linear_kernel(%arg0: i32, %arg1: i32, %arg2: i32, %arg3: memref<512x512xf32, #tpu.memory_space<vmem>>, %arg4: memref<512x1024xf32, #tpu.memory_space<vmem>>, %arg5: memref<1x1024xf32, #tpu.memory_space<vmem>>, %arg6: memref<512x1024xf32, #tpu.memory_space<vmem>>, %arg7: memref<512x1024xf32, #tpu.memory_space<vmem>>) attributes {dimension_semantics = [#tpu.dimension_semantics<parallel>, #tpu.dimension_semantics<parallel>, #tpu.dimension_semantics<arbitrary>], iteration_bounds = array<i64: 2, 2, 2>, scalar_prefetch = 0 : i64, scratch_operands = 1 : i64, tpu.core_type = #tpu.core_type<tc>, window_params = [{transform_indices = @transform_0, window_bounds = array<i64: 512, 512>}, {transform_indices = @transform_1, window_bounds = array<i64: 512, 1024>}, {transform_indices = @transform_2, window_bounds = array<i64: 1, 1024>}, {transform_indices = @transform_3, window_bounds = array<i64: 512, 1024>}]} {
    %c0 = arith.constant 0 : index
    %c0_0 = arith.constant 0 : index
    %0 = vector.load %arg3[%c0, %c0_0] : memref<512x512xf32, #tpu.memory_space<vmem>>, vector<512x512xf32>
    %c0_1 = arith.constant 0 : index
    %c0_2 = arith.constant 0 : index
    %1 = vector.load %arg4[%c0_1, %c0_2] : memref<512x1024xf32, #tpu.memory_space<vmem>>, vector<512x1024xf32>
    %cst = arith.constant dense<0.000000e+00> : vector<512x1024xf32>
    %2 = tpu.matmul %0, %1, %cst {dimension_numbers = #tpu.dot_dimension_numbers<[1], [0], [0], [1], [0, 0, 1, 1], [], []>} : vector<512x512xf32>, vector<512x1024xf32>, vector<512x1024xf32> -> vector<512x1024xf32>
    %c0_i32 = arith.constant 0 : i32
    %3 = arith.cmpi eq, %arg2, %c0_i32 : i32
    %4 = arith.extui %3 : i1 to i32
    %c0_i32_3 = arith.constant 0 : i32
    %5 = arith.cmpi ne, %4, %c0_i32_3 : i32
    scf.if %5 {
      %c0_7 = arith.constant 0 : index
      %c0_8 = arith.constant 0 : index
      %12 = vector.load %arg7[%c0_7, %c0_8] : memref<512x1024xf32, #tpu.memory_space<vmem>>, vector<512x1024xf32>
      tpu.vector_store %arg7[%c0_7, %c0_8], %2 {strides = array<i32>} : memref<512x1024xf32, #tpu.memory_space<vmem>>, vector<512x1024xf32>,
    } else {
    }
    %c0_i32_4 = arith.constant 0 : i32
    %6 = arith.cmpi sgt, %arg2, %c0_i32_4 : i32
    %7 = arith.extui %6 : i1 to i32
    %c0_i32_5 = arith.constant 0 : i32
    %8 = arith.cmpi ne, %7, %c0_i32_5 : i32
    scf.if %8 {
      %c0_7 = arith.constant 0 : index
      %c0_8 = arith.constant 0 : index
      %12 = vector.load %arg7[%c0_7, %c0_8] : memref<512x1024xf32, #tpu.memory_space<vmem>>, vector<512x1024xf32>
      %13 = arith.addf %12, %2 : vector<512x1024xf32>
      %c0_9 = arith.constant 0 : index
      %c0_10 = arith.constant 0 : index
      %14 = vector.load %arg7[%c0_9, %c0_10] : memref<512x1024xf32, #tpu.memory_space<vmem>>, vector<512x1024xf32>
      tpu.vector_store %arg7[%c0_9, %c0_10], %13 {strides = array<i32>} : memref<512x1024xf32, #tpu.memory_space<vmem>>, vector<512x1024xf32>,
    } else {
    }
    %c1_i32 = arith.constant 1 : i32
    %9 = arith.cmpi eq, %arg2, %c1_i32 : i32
    %10 = arith.extui %9 : i1 to i32
    %c0_i32_6 = arith.constant 0 : i32
    %11 = arith.cmpi ne, %10, %c0_i32_6 : i32
    scf.if %11 {
      %c0_7 = arith.constant 0 : index
      %c0_8 = arith.constant 0 : index
      %12 = vector.load %arg7[%c0_7, %c0_8] : memref<512x1024xf32, #tpu.memory_space<vmem>>, vector<512x1024xf32>
      %c0_9 = arith.constant 0 : index
      %c0_10 = arith.constant 0 : index
      %13 = vector.load %arg5[%c0_9, %c0_10] : memref<1x1024xf32, #tpu.memory_space<vmem>>, vector<1x1024xf32>
      %14 = vector.broadcast %13 : vector<1x1024xf32> to vector<512x1024xf32>
      %15 = arith.addf %12, %14 : vector<512x1024xf32>
      %c0_11 = arith.constant 0 : index
      %c0_12 = arith.constant 0 : index
      %16 = vector.load %arg6[%c0_11, %c0_12] : memref<512x1024xf32, #tpu.memory_space<vmem>>, vector<512x1024xf32>
      tpu.vector_store %arg6[%c0_11, %c0_12], %15 {strides = array<i32>} : memref<512x1024xf32, #tpu.memory_space<vmem>>, vector<512x1024xf32>,
    } else {
    }
    return
  }
  func.func @transform_0(%arg0: i32, %arg1: i32, %arg2: i32) -> (i32, i32) {
    %c0_i32 = arith.constant 0 : i32
    return %arg0, %arg2 : i32, i32
  }
  func.func @transform_1(%arg0: i32, %arg1: i32, %arg2: i32) -> (i32, i32) {
    %c0_i32 = arith.constant 0 : i32
    return %arg2, %arg1 : i32, i32
  }
  func.func @transform_2(%arg0: i32, %arg1: i32, %arg2: i32) -> (i32, i32) {
    %c0_i32 = arith.constant 0 : i32
    %c0_i32_0 = arith.constant 0 : i32
    return %c0_i32, %arg1 : i32, i32
  }
  func.func @transform_3(%arg0: i32, %arg1: i32, %arg2: i32) -> (i32, i32) {
    %c0_i32 = arith.constant 0 : i32
    return %arg0, %arg1 : i32, i32
  }
}

</mosaic_0001>

<llo_original>
// kernel: tpu_custom_call.1
$region0: #{tpu_custom_call.1}
  #allocation0 [shape = 'u32[]', space=smem, size = 0x4, offset = 0x4, fixed_abs, tag = 'smem constant byte address 0x4 - core index']
  #allocation1 [shape = 'u32[144,128]{1,0:T(1,128)}', space=vmem, size = 0x12000, scoped, tag = 'internal scratch']
  #allocation2 [shape = 'f32[512,1024]{1,0:T(8,128)}', space=vmem, size = 0x200000, scoped, tag = 'scratch operand']
  %s0 = inlined_call_operand.hbm [shape: f32[640,1024], index: 0, kind: input, shape index: {}]
  %s1 = inlined_call_operand.hbm [shape: f32[1024,1536], index: 1, kind: input, shape index: {}]
  %s2 = inlined_call_operand.hbm [shape: f32[1,1536], index: 2, kind: input, shape index: {}]
  %s3 = inlined_call_operand.hbm [shape: f32[640,1536], index: 3, kind: output, shape index: {}]
  %s4 = sld [smem:[#allocation0]]
  $region69: #{tpu_custom_call.1} parent=0
    _
  %s6 = ssub.s32 1, %s4
  %s7 = scalar_select 0, %s6, %s4
  $region1: #{tpu_custom_call.1} parent=0
    #allocation3 [shape = 'u8[2097152]{0}', space=vmem, size = 0x200000, scoped, tag = 'input window, operand 0']
    #allocation4 [shape = 's32[2]{0}', space=sflag, size = 0x8, scoped, tag = 'scoped memory for tpu_custom_call.1']
    #allocation5 [shape = 's32[2]{0}', space=sflag, size = 0x8, scoped, tag = 'scoped memory for tpu_custom_call.1']
    #allocation6 [shape = 'u8[4194304]{0}', space=vmem, size = 0x400000, scoped, tag = 'input window, operand 1']
    #allocation7 [shape = 's32[2]{0}', space=sflag, size = 0x8, scoped, tag = 'scoped memory for tpu_custom_call.1']
    #allocation8 [shape = 'u8[8192]{0}', space=vmem, size = 0x2000, scoped, tag = 'input window, operand 2']
    #allocation9 [shape = 'u8[4194304]{0}', space=vmem, size = 0x400000, scoped, tag = 'output window, operand 0']
    %8 = vsyncpa [#allocation4], 0
    %s9 = scalar_lea.sflag [#allocation4], 1
    %10 = vsyncpa %s9, 0
    %11 = vsyncpa [#allocation7], 0
    %s12 = scalar_lea.sflag [#allocation7], 1
    %13 = vsyncpa %s12, 0
    %14 = vsyncpa [#allocation5], 0
    %s15 = scalar_lea.sflag [#allocation5], 1
    %16 = vsyncpa %s15, 0
    loop: start=0, step=1, limit=10
    $region2: #{tpu_custom_call.1} parent=1 // loop_pre_header
      _
    $region3: #{tpu_custom_call.1} parent=1 // loop_header
      %s18 = sphi 0, %s22
      %p19 = scmp.ge.s32.totalorder %s18, 10
      %s25 = sphi 0, %s44
      %s26 = sphi 0, %s40
      %s27 = sphi 0, %s36
      %s28 = sphi 0, %s25
      %s29 = sphi 0, %s26
      %s30 = sphi 0, %s27
      %s31 = sphi 0, %s28
      %s32 = sphi 0, %s29
      %s33 = sphi 0, %s30
      %s49 = sphi 0, %s51
      %s52 = sphi 0, %s49
      %s53 = sphi 0, %s52
      %s69 = sphi 0, %s53
      %s77 = sphi 0, %s79
      %s80 = sphi 0, %s77
      %s81 = sphi 0, %s80
      %s97 = sphi 0, %s81
      %s103 = sphi 0, %s105
      %s106 = sphi 0, %s103
      %s107 = sphi 0, %s106
      %s123 = sphi 0, %s107
      %s131 = sphi 0, %s133
      %s134 = sphi 0, %s131
      %s135 = sphi 0, %s134
      %s151 = sphi 0, %s135
    $region4: #{tpu_custom_call.1} parent=1 // loop_header_branch
      %21 = sbr.rel (%p19) target = $region8
    $region5: #{tpu_custom_call.1} parent=1 // loop_body
      %s23 = ssub.s32 %s18, 1
      %s24 = ssub.s32 %s18, 2
      %s34 = sadd.s32 1, %s27
      %p35 = scmp.ge.s32.totalorder %s34, 2
      %s36 = scalar_select %p35, 0, %s34
      %s37 = sadd.s32 1, %s26
      %s38 = scalar_select %p35, %s37, %s26
      %p39 = scmp.ge.s32.totalorder %s38, 2
      %s40 = scalar_select %p39, 0, %s38
      %s41 = sadd.s32 1, %s25
      %s42 = scalar_select %p39, %s41, %s25
      %p43 = scmp.ge.s32.totalorder %s42, 2
      %s44 = scalar_select %p43, 0, %s42
      %s45 = ssub.s32 %s25, %s44
      %s46 = ssub.s32 %s27, %s36
      %s47 = sor.u32 %s45, %s46
      %p48 = scmp.eq.s32.totalorder %s47, 0
      %s50 = sadd.s32 %s49, 1
      %s51 = scalar_select %p48, %s49, %s50
      %p54 = pneg %p48
      %p55 = scmp.eq.s32.totalorder %s18, 7
      %p56 = por %p54, %p55
      %p57 = scmp.ne.s32.totalorder %s49, %s52
      %p58 = scmp.eq.s32.totalorder %s18, 0
      %p59 = por %p57, %p58
      %p60 = scmp.ne.s32.totalorder %s49, %s52
      %p61 = scmp.eq.s32.totalorder %s23, 7
      %p62 = por %p60, %p61
      %p63 = scmp.ne.s32.totalorder %s52, %s53
      %p64 = scmp.eq.s32.totalorder %s23, 0
      %p65 = por %p63, %p64
      %p66 = scmp.ne.s32.totalorder %s52, %s53
      %p67 = scmp.eq.s32.totalorder %s24, 7
      %p68 = por %p66, %p67
      %p70 = scmp.ne.s32.totalorder %s53, %s69
      %p71 = scmp.eq.s32.totalorder %s24, 0
      %p72 = por %p70, %p71
      %s73 = ssub.s32 %s27, %s36
      %s74 = ssub.s32 %s26, %s40
      %s75 = sor.u32 %s73, %s74
      %p76 = scmp.eq.s32.totalorder %s75, 0
      %s78 = sadd.s32 %s77, 1
      %s79 = scalar_select %p76, %s77, %s78
      %p82 = pneg %p76
      %p83 = scmp.eq.s32.totalorder %s18, 7
      %p84 = por %p82, %p83
      %p85 = scmp.ne.s32.totalorder %s77, %s80
      %p86 = scmp.eq.s32.totalorder %s18, 0
      %p87 = por %p85, %p86
      %p88 = scmp.ne.s32.totalorder %s77, %s80
      %p89 = scmp.eq.s32.totalorder %s23, 7
      %p90 = por %p88, %p89
      %p91 = scmp.ne.s32.totalorder %s80, %s81
      %p92 = scmp.eq.s32.totalorder %s23, 0
      %p93 = por %p91, %p92
      %p94 = scmp.ne.s32.totalorder %s80, %s81
      %p95 = scmp.eq.s32.totalorder %s24, 7
      %p96 = por %p94, %p95
      %p98 = scmp.ne.s32.totalorder %s81, %s97
      %p99 = scmp.eq.s32.totalorder %s24, 0
      %p100 = por %p98, %p99
      %s101 = ssub.s32 %s26, %s40
      %p102 = scmp.eq.s32.totalorder %s101, 0
      %s104 = sadd.s32 %s103, 1
      %s105 = scalar_select %p102, %s103, %s104
      %p108 = pneg %p102
      %p109 = scmp.eq.s32.totalorder %s18, 7
      %p110 = por %p108, %p109
      %p111 = scmp.ne.s32.totalorder %s103, %s106
      %p112 = scmp.eq.s32.totalorder %s18, 0
      %p113 = por %p111, %p112
      %p114 = scmp.ne.s32.totalorder %s103, %s106
      %p115 = scmp.eq.s32.totalorder %s23, 7
      %p116 = por %p114, %p115
      %p117 = scmp.ne.s32.totalorder %s106, %s107
      %p118 = scmp.eq.s32.totalorder %s23, 0
      %p119 = por %p117, %p118
      %p120 = scmp.ne.s32.totalorder %s106, %s107
      %p121 = scmp.eq.s32.totalorder %s24, 7
      %p122 = por %p120, %p121
      %p124 = scmp.ne.s32.totalorder %s107, %s123
      %p125 = scmp.eq.s32.totalorder %s24, 0
      %p126 = por %p124, %p125
      %s127 = ssub.s32 %s25, %s44
      %s128 = ssub.s32 %s26, %s40
      %s129 = sor.u32 %s127, %s128
      %p130 = scmp.eq.s32.totalorder %s129, 0
      %s132 = sadd.s32 %s131, 1
      %s133 = scalar_select %p130, %s131, %s132
      %p136 = pneg %p130
      %p137 = scmp.eq.s32.totalorder %s18, 7
      %p138 = por %p136, %p137
      %p139 = scmp.ne.s32.totalorder %s131, %s134
      %p140 = scmp.eq.s32.totalorder %s18, 0
      %p141 = por %p139, %p140
      %p142 = scmp.ne.s32.totalorder %s131, %s134
      %p143 = scmp.eq.s32.totalorder %s23, 7
      %p144 = por %p142, %p143
      %p145 = scmp.ne.s32.totalorder %s134, %s135
      %p146 = scmp.eq.s32.totalorder %s23, 0
      %p147 = por %p145, %p146
      %p148 = scmp.ne.s32.totalorder %s134, %s135
      %p149 = scmp.eq.s32.totalorder %s24, 7
      %p150 = por %p148, %p149
      %p152 = scmp.ne.s32.totalorder %s135, %s151
      %p153 = scmp.eq.s32.totalorder %s24, 0
      %p154 = por %p152, %p153
      %p155 = scmp.le.s32.totalorder 1, %s18
      %p156 = scmp.lt.s32.totalorder %s18, 9
      %p157 = pnand %p155, %p156
      %p158 = pneg %p157
      // Predicated region
      $region9: #{tpu_custom_call.1} parent=5 // pred_check
        _
      $region10: #{tpu_custom_call.1} parent=5 // pred_check_branch
        %160 = sbr.rel (%p157) target = $region12
      $region11: #{tpu_custom_call.1} parent=5 // pred_region
        %s161 = ssub.s32 %s18, 1
      $region12: #{tpu_custom_call.1} parent=5 // pred_fallthru
        _
      %p162 = scmp.lt.s32.totalorder %s18, 8
      // Predicated region
      $region13: #{tpu_custom_call.1} parent=5 // pred_check
        %p163 = pneg %p162
      $region14: #{tpu_custom_call.1} parent=5 // pred_check_branch
        %165 = sbr.rel (%p163) target = $region16
      $region15: #{tpu_custom_call.1} parent=5 // pred_region
        // Predicated region
        $region17: #{tpu_custom_call.1} parent=15 // pred_check
          %p166 = pneg %p59
        $region18: #{tpu_custom_call.1} parent=15 // pred_check_branch
          %168 = sbr.rel (%p166) target = $region20
        $region19: #{tpu_custom_call.1} parent=15 // pred_region
          %s169 = sand.u32 %s49, 1
          %s170 = scalar_lea.sflag [#allocation4], %s169
          %s171 = sand.u32 %s49, 1
          %s172 = smul.addr %s171, 2048
          %s173 = scalar_lea.vmem [#allocation3], %s172
          %s174 = smul.u32 64, %s25
          %s175 = smul.u32 4, %s27
          %s176 = ssub.s32 80, %s174
          %p177 = scmp.lt.s32.totalorder %s176, 64
          %s178 = scalar_select %p177, %s176, 64
          %s179 = smul.u32 128, %s178
          %s180 = smul.u32 %s179, 4
          %s182 = ssub.s32 32768, %s180
          %183 = vsyncadd %s170, %s182
          %p184 = scmp.ne.s32.totalorder 0, %s180
          %s185 = smul.addr %s174, 8
          %s186 = sadd.s32 %s175, %s185
          %s187 = smul.addr %s186, 128
          %s188 = scalar_lea.hbm %s0, %s187
          %s189 = smul.u32 32, %s178
          %s190 = sshll.u32 %s173, 4
          %s191 = int_to_ptr.vmem [resolvable:$true] %s190
          %s192 = sshll.u32 %s189, 4
          %196 = dma.hbm_to_vmem [thread:$0]  (%p184), %s188, %s192, %s191, %s170, 1024, 512, 32
        $region20: #{tpu_custom_call.1} parent=15 // pred_fallthru
          _
        // Predicated region
        $region21: #{tpu_custom_call.1} parent=15 // pred_check
          %p197 = pneg %p87
        $region22: #{tpu_custom_call.1} parent=15 // pred_check_branch
          %199 = sbr.rel (%p197) target = $region24
        $region23: #{tpu_custom_call.1} parent=15 // pred_region
          %s200 = sand.u32 %s18, 1
          %s201 = scalar_lea.sflag [#allocation7], %s200
          %s202 = sand.u32 %s77, 1
          %s203 = smul.addr %s202, 4096
          %s204 = scalar_lea.vmem [#allocation6], %s203
          %s205 = smul.u32 64, %s27
          %s206 = smul.u32 8, %s26
          %s207 = ssub.s32 12, %s206
          %p208 = scmp.lt.s32.totalorder %s207, 8
          %s209 = scalar_select %p208, %s207, 8
          %s210 = smul.u32 8192, %s209
          %s212 = ssub.s32 65536, %s210
          %213 = vsyncadd %s201, %s212
          %p214 = scmp.ne.s32.totalorder 0, %s210
          %s215 = smul.addr %s205, 12
          %s216 = sadd.s32 %s206, %s215
          %s217 = smul.addr %s216, 128
          %s218 = scalar_lea.hbm %s1, %s217
          %s219 = smul.u32 %s209, 8
          %s220 = smul.u32 %s219, 64
          %s221 = sshll.u32 %s204, 4
          %s222 = int_to_ptr.vmem [resolvable:$true] %s221
          %s223 = sshll.u32 %s220, 4
          %227 = dma.hbm_to_vmem [thread:$0]  (%p214), %s218, %s223, %s222, %s201, 1536, 1024, %s219
        $region24: #{tpu_custom_call.1} parent=15 // pred_fallthru
          _
        // Predicated region
        $region25: #{tpu_custom_call.1} parent=15 // pred_check
          %p228 = pneg %p113
        $region26: #{tpu_custom_call.1} parent=15 // pred_check_branch
          %230 = sbr.rel (%p228) target = $region28
        $region27: #{tpu_custom_call.1} parent=15 // pred_region
          %s231 = sand.u32 %s18, 1
          %s232 = scalar_lea.sflag [#allocation7], %s231
          %s233 = sand.u32 %s103, 1
          %s234 = smul.addr %s233, 8
          %s235 = scalar_lea.vmem [#allocation8], %s234
          %s236 = smul.u32 8, %s26
          %s237 = ssub.s32 12, %s236
          %p238 = scmp.lt.s32.totalorder %s237, 8
          %s239 = scalar_select %p238, %s237, 8
          %s240 = smul.u32 16, %s239
          %s242 = ssub.s32 128, %s240
          %243 = vsyncadd %s232, %s242
          %p244 = scmp.ne.s32.totalorder 0, %s240
          %s245 = smul.addr %s236, 16
          %s246 = scalar_lea.hbm %s2, %s245
          %s247 = sshll.u32 %s239, 4
          %s248 = sshll.u32 %s235, 4
          %s249 = int_to_ptr.vmem [resolvable:$true] %s248
          %251 = dma.hbm_to_vmem [thread:$0]  (%p244), %s246, %s247, %s249, %s232
        $region28: #{tpu_custom_call.1} parent=15 // pred_fallthru
          _
      $region16: #{tpu_custom_call.1} parent=5 // pred_fallthru
        _
      %p252 = scmp.le.s32.totalorder 1, %s18
      %p253 = scmp.lt.s32.totalorder %s18, 9
      %p254 = pnand %p252, %p253
      %p255 = pneg %p254
      // Predicated region
      $region29: #{tpu_custom_call.1} parent=5 // pred_check
        _
      $region30: #{tpu_custom_call.1} parent=5 // pred_check_branch
        %257 = sbr.rel (%p254) target = $region32
      $region31: #{tpu_custom_call.1} parent=5 // pred_region
        %s258 = ssub.s32 %s18, 1
        %s259 = sand.u32 %s52, 1
        %s260 = scalar_lea.sflag [#allocation4], %s259
        %s261 = sand.u32 %s52, 1
        %s262 = smul.addr %s261, 2048
        %s263 = scalar_lea.vmem [#allocation3], %s262
        // Predicated region
        $region33: #{tpu_custom_call.1} parent=31 // pred_check
          %p264 = pneg %p65
        $region34: #{tpu_custom_call.1} parent=31 // pred_check_branch
          %266 = sbr.rel (%p264) target = $region36
        $region35: #{tpu_custom_call.1} parent=31 // pred_region
          %267 = dma.done %s260, 32768
        $region36: #{tpu_custom_call.1} parent=31 // pred_fallthru
          _
        %s268 = sand.u32 %s23, 1
        %s269 = scalar_lea.sflag [#allocation7], %s268
        %s270 = sand.u32 %s80, 1
        %s271 = smul.addr %s270, 4096
        %s272 = scalar_lea.vmem [#allocation6], %s271
        // Predicated region
        $region37: #{tpu_custom_call.1} parent=31 // pred_check
          %p273 = pneg %p93
        $region38: #{tpu_custom_call.1} parent=31 // pred_check_branch
          %275 = sbr.rel (%p273) target = $region40
        $region39: #{tpu_custom_call.1} parent=31 // pred_region
          %276 = dma.done %s269, 65536
        $region40: #{tpu_custom_call.1} parent=31 // pred_fallthru
          _
        %s277 = sand.u32 %s23, 1
        %s278 = scalar_lea.sflag [#allocation7], %s277
        %s279 = sand.u32 %s106, 1
        %s280 = smul.addr %s279, 8
        %s281 = scalar_lea.vmem [#allocation8], %s280
        // Predicated region
        $region41: #{tpu_custom_call.1} parent=31 // pred_check
          %p282 = pneg %p119
        $region42: #{tpu_custom_call.1} parent=31 // pred_check_branch
          %284 = sbr.rel (%p282) target = $region44
        $region43: #{tpu_custom_call.1} parent=31 // pred_region
          %285 = dma.done %s278, 128
        $region44: #{tpu_custom_call.1} parent=31 // pred_fallthru
          _
        %s286 = sand.u32 %s52, 1
        %s287 = scalar_lea.sflag [#allocation4], %s286
        %s288 = sand.u32 %s52, 1
        %s289 = smul.addr %s288, 2048
        %s290 = scalar_lea.vmem [#allocation3], %s289
        %p291 = pneg %p65
        %p292 = pneg %p62
        %s293 = sand.u32 %s23, 1
        %s294 = scalar_lea.sflag [#allocation7], %s293
        %s295 = sand.u32 %s80, 1
        %s296 = smul.addr %s295, 4096
        %s297 = scalar_lea.vmem [#allocation6], %s296
        %p298 = pneg %p93
        %p299 = pneg %p90
        %s300 = sand.u32 %s23, 1
        %s301 = scalar_lea.sflag [#allocation7], %s300
        %s302 = sand.u32 %s106, 1
        %s303 = smul.addr %s302, 8
        %s304 = scalar_lea.vmem [#allocation8], %s303
        %p305 = pneg %p119
        %p306 = pneg %p116
        %p307 = pneg %p147
        %p308 = pneg %p144
        %s309 = sand.u32 %s134, 1
        %s310 = scalar_lea.sflag [#allocation5], %s309
        %s311 = sand.u32 %s134, 1
        %s312 = smul.addr %s311, 4096
        %s313 = scalar_lea.vmem [#allocation9], %s312
        %s314 = smul.u32 64, %s28
        %s315 = smul.u32 4, %s30
        %s316 = ssub.s32 80, %s314
        %p317 = scmp.lt.s32.totalorder %s316, 64
        %s318 = scalar_select %p317, %s316, 64
        %s319 = smul.u32 128, %s318
        %s320 = smul.u32 %s319, 4
        %s321 = smul.u32 64, %s30
        %s322 = smul.u32 8, %s29
        %s323 = ssub.s32 12, %s322
        %p324 = scmp.lt.s32.totalorder %s323, 8
        %s325 = scalar_select %p324, %s323, 8
        %s326 = smul.u32 8192, %s325
        %s327 = smul.u32 8, %s29
        %s328 = ssub.s32 12, %s327
        %p329 = scmp.lt.s32.totalorder %s328, 8
        %s330 = scalar_select %p329, %s328, 8
        %s331 = smul.u32 16, %s330
        %s332 = smul.u32 64, %s28
        %s333 = smul.u32 8, %s29
        %s334 = ssub.s32 80, %s332
        %p335 = scmp.lt.s32.totalorder %s334, 64
        %s336 = scalar_select %p335, %s334, 64
        %s337 = smul.u32 128, %s336
        %s338 = ssub.s32 12, %s333
        %p339 = scmp.lt.s32.totalorder %s338, 8
        %s340 = scalar_select %p339, %s338, 8
        %s341 = smul.u32 %s337, %s340
        %v342 = vld [vmem:[%s263] sm:$0xff]
        %v343 = vld [vmem:[%s263 + $0x8] sm:$0xff]
        %v344 = vld [vmem:[%s263 + $0x10] sm:$0xff]
        %v345 = vld [vmem:[%s263 + $0x18] sm:$0xff]
        %v346 = vld [vmem:[%s263 + $0x20] sm:$0xff]
        %v347 = vld [vmem:[%s263 + $0x28] sm:$0xff]
        %v348 = vld [vmem:[%s263 + $0x30] sm:$0xff]
        %v349 = vld [vmem:[%s263 + $0x38] sm:$0xff]
        %v350 = vld [vmem:[%s263 + $0x40] sm:$0xff]
        %v351 = vld [vmem:[%s263 + $0x48] sm:$0xff]
        %v352 = vld [vmem:[%s263 + $0x50] sm:$0xff]
        %v353 = vld [vmem:[%s263 + $0x58] sm:$0xff]
        %v354 = vld [vmem:[%s263 + $0x60] sm:$0xff]
        %v355 = vld [vmem:[%s263 + $0x68] sm:$0xff]
        %v356 = vld [vmem:[%s263 + $0x70] sm:$0xff]
        %v357 = vld [vmem:[%s263 + $0x78] sm:$0xff]
        %v358 = vld [vmem:[%s263 + $0x80] sm:$0xff]
        %v359 = vld [vmem:[%s263 + $0x88] sm:$0xff]
        %v360 = vld [vmem:[%s263 + $0x90] sm:$0xff]
        %v361 = vld [vmem:[%s263 + $0x98] sm:$0xff]
        %v362 = vld [vmem:[%s263 + $0xa0] sm:$0xff]
        %v363 = vld [vmem:[%s263 + $0xa8] sm:$0xff]
        %v364 = vld [vmem:[%s263 + $0xb0] sm:$0xff]
        %v365 = vld [vmem:[%s263 + $0xb8] sm:$0xff]
        %v366 = vld [vmem:[%s263 + $0xc0] sm:$0xff]
        %v367 = vld [vmem:[%s263 + $0xc8] sm:$0xff]
        %v368 = vld [vmem:[%s263 + $0xd0] sm:$0xff]
        %v369 = vld [vmem:[%s263 + $0xd8] sm:$0xff]
        %v370 = vld [vmem:[%s263 + $0xe0] sm:$0xff]
        %v371 = vld [vmem:[%s263 + $0xe8] sm:$0xff]
        %v372 = vld [vmem:[%s263 + $0xf0] sm:$0xff]
        %v373 = vld [vmem:[%s263 + $0xf8] sm:$0xff]
        %v374 = vld [vmem:[%s263 + $0x100] sm:$0xff]
        %v375 = vld [vmem:[%s263 + $0x108] sm:$0xff]
        %v376 = vld [vmem:[%s263 + $0x110] sm:$0xff]
        %v377 = vld [vmem:[%s263 + $0x118] sm:$0xff]
        %v378 = vld [vmem:[%s263 + $0x120] sm:$0xff]
        %v379 = vld [vmem:[%s263 + $0x128] sm:$0xff]
        %v380 = vld [vmem:[%s263 + $0x130] sm:$0xff]
        %v381 = vld [vmem:[%s263 + $0x138] sm:$0xff]
        %v382 = vld [vmem:[%s263 + $0x140] sm:$0xff]
        %v383 = vld [vmem:[%s263 + $0x148] sm:$0xff]
        %v384 = vld [vmem:[%s263 + $0x150] sm:$0xff]
        %v385 = vld [vmem:[%s263 + $0x158] sm:$0xff]
        %v386 = vld [vmem:[%s263 + $0x160] sm:$0xff]
        %v387 = vld [vmem:[%s263 + $0x168] sm:$0xff]
        %v388 = vld [vmem:[%s263 + $0x170] sm:$0xff]
        %v389 = vld [vmem:[%s263 + $0x178] sm:$0xff]
        %v390 = vld [vmem:[%s263 + $0x180] sm:$0xff]
        %v391 = vld [vmem:[%s263 + $0x188] sm:$0xff]
        %v392 = vld [vmem:[%s263 + $0x190] sm:$0xff]
        %v393 = vld [vmem:[%s263 + $0x198] sm:$0xff]
        %v394 = vld [vmem:[%s263 + $0x1a0] sm:$0xff]
        %v395 = vld [vmem:[%s263 + $0x1a8] sm:$0xff]
        %v396 = vld [vmem:[%s263 + $0x1b0] sm:$0xff]
        %v397 = vld [vmem:[%s263 + $0x1b8] sm:$0xff]
        %v398 = vld [vmem:[%s263 + $0x1c0] sm:$0xff]
        %v399 = vld [vmem:[%s263 + $0x1c8] sm:$0xff]
        %v400 = vld [vmem:[%s263 + $0x1d0] sm:$0xff]
        %v401 = vld [vmem:[%s263 + $0x1d8] sm:$0xff]
        %v402 = vld [vmem:[%s263 + $0x1e0] sm:$0xff]
        %v403 = vld [vmem:[%s263 + $0x1e8] sm:$0xff]
        %v404 = vld [vmem:[%s263 + $0x1f0] sm:$0xff]
        %v405 = vld [vmem:[%s263 + $0x1f8] sm:$0xff]
        %v406 = vld [vmem:[%s263 + $0x200] sm:$0xff]
        %v407 = vld [vmem:[%s263 + $0x208] sm:$0xff]
        %v408 = vld [vmem:[%s263 + $0x210] sm:$0xff]
        %v409 = vld [vmem:[%s263 + $0x218] sm:$0xff]
        %v410 = vld [vmem:[%s263 + $0x220] sm:$0xff]
        %v411 = vld [vmem:[%s263 + $0x228] sm:$0xff]
        %v412 = vld [vmem:[%s263 + $0x230] sm:$0xff]
        %v413 = vld [vmem:[%s263 + $0x238] sm:$0xff]
        %v414 = vld [vmem:[%s263 + $0x240] sm:$0xff]
        %v415 = vld [vmem:[%s263 + $0x248] sm:$0xff]
        %v416 = vld [vmem:[%s263 + $0x250] sm:$0xff]
        %v417 = vld [vmem:[%s263 + $0x258] sm:$0xff]
        %v418 = vld [vmem:[%s263 + $0x260] sm:$0xff]
        %v419 = vld [vmem:[%s263 + $0x268] sm:$0xff]
        %v420 = vld [vmem:[%s263 + $0x270] sm:$0xff]
        %v421 = vld [vmem:[%s263 + $0x278] sm:$0xff]
        %v422 = vld [vmem:[%s263 + $0x280] sm:$0xff]
        %v423 = vld [vmem:[%s263 + $0x288] sm:$0xff]
        %v424 = vld [vmem:[%s263 + $0x290] sm:$0xff]
        %v425 = vld [vmem:[%s263 + $0x298] sm:$0xff]
        %v426 = vld [vmem:[%s263 + $0x2a0] sm:$0xff]
        %v427 = vld [vmem:[%s263 + $0x2a8] sm:$0xff]
        %v428 = vld [vmem:[%s263 + $0x2b0] sm:$0xff]
        %v429 = vld [vmem:[%s263 + $0x2b8] sm:$0xff]
        %v430 = vld [vmem:[%s263 + $0x2c0] sm:$0xff]
        %v431 = vld [vmem:[%s263 + $0x2c8] sm:$0xff]
        %v432 = vld [vmem:[%s263 + $0x2d0] sm:$0xff]
        %v433 = vld [vmem:[%s263 + $0x2d8] sm:$0xff]
        %v434 = vld [vmem:[%s263 + $0x2e0] sm:$0xff]
        %v435 = vld [vmem:[%s263 + $0x2e8] sm:$0xff]
        %v436 = vld [vmem:[%s263 + $0x2f0] sm:$0xff]
        %v437 = vld [vmem:[%s263 + $0x2f8] sm:$0xff]
        %v438 = vld [vmem:[%s263 + $0x300] sm:$0xff]
        %v439 = vld [vmem:[%s263 + $0x308] sm:$0xff]
        %v440 = vld [vmem:[%s263 + $0x310] sm:$0xff]
        %v441 = vld [vmem:[%s263 + $0x318] sm:$0xff]
        %v442 = vld [vmem:[%s263 + $0x320] sm:$0xff]
        %v443 = vld [vmem:[%s263 + $0x328] sm:$0xff]
        %v444 = vld [vmem:[%s263 + $0x330] sm:$0xff]
        %v445 = vld [vmem:[%s263 + $0x338] sm:$0xff]
        %v446 = vld [vmem:[%s263 + $0x340] sm:$0xff]
        %v447 = vld [vmem:[%s263 + $0x348] sm:$0xff]
        %v448 = vld [vmem:[%s263 + $0x350] sm:$0xff]
        %v449 = vld [vmem:[%s263 + $0x358] sm:$0xff]
        %v450 = vld [vmem:[%s263 + $0x360] sm:$0xff]
        %v451 = vld [vmem:[%s263 + $0x368] sm:$0xff]
        %v452 = vld [vmem:[%s263 + $0x370] sm:$0xff]
        %v453 = vld [vmem:[%s263 + $0x378] sm:$0xff]
        %v454 = vld [vmem:[%s263 + $0x380] sm:$0xff]
        %v455 = vld [vmem:[%s263 + $0x388] sm:$0xff]
        %v456 = vld [vmem:[%s263 + $0x390] sm:$0xff]
        %v457 = vld [vmem:[%s263 + $0x398] sm:$0xff]
        %v458 = vld [vmem:[%s263 + $0x3a0] sm:$0xff]
        %v459 = vld [vmem:[%s263 + $0x3a8] sm:$0xff]
        %v460 = vld [vmem:[%s263 + $0x3b0] sm:$0xff]
        %v461 = vld [vmem:[%s263 + $0x3b8] sm:$0xff]
        %v462 = vld [vmem:[%s263 + $0x3c0] sm:$0xff]
        %v463 = vld [vmem:[%s263 + $0x3c8] sm:$0xff]
        %v464 = vld [vmem:[%s263 + $0x3d0] sm:$0xff]
        %v465 = vld [vmem:[%s263 + $0x3d8] sm:$0xff]
        %v466 = vld [vmem:[%s263 + $0x3e0] sm:$0xff]
        %v467 = vld [vmem:[%s263 + $0x3e8] sm:$0xff]
        %v468 = vld [vmem:[%s263 + $0x3f0] sm:$0xff]
        %v469 = vld [vmem:[%s263 + $0x3f8] sm:$0xff]
        %v470 = vld [vmem:[%s263 + $0x400] sm:$0xff]
        %v471 = vld [vmem:[%s263 + $0x408] sm:$0xff]
        %v472 = vld [vmem:[%s263 + $0x410] sm:$0xff]
        %v473 = vld [vmem:[%s263 + $0x418] sm:$0xff]
        %v474 = vld [vmem:[%s263 + $0x420] sm:$0xff]
        %v475 = vld [vmem:[%s263 + $0x428] sm:$0xff]
        %v476 = vld [vmem:[%s263 + $0x430] sm:$0xff]
        %v477 = vld [vmem:[%s263 + $0x438] sm:$0xff]
        %v478 = vld [vmem:[%s263 + $0x440] sm:$0xff]
        %v479 = vld [vmem:[%s263 + $0x448] sm:$0xff]
        %v480 = vld [vmem:[%s263 + $0x450] sm:$0xff]
        %v481 = vld [vmem:[%s263 + $0x458] sm:$0xff]
        %v482 = vld [vmem:[%s263 + $0x460] sm:$0xff]
        %v483 = vld [vmem:[%s263 + $0x468] sm:$0xff]
        %v484 = vld [vmem:[%s263 + $0x470] sm:$0xff]
        %v485 = vld [vmem:[%s263 + $0x478] sm:$0xff]
        %v486 = vld [vmem:[%s263 + $0x480] sm:$0xff]
        %v487 = vld [vmem:[%s263 + $0x488] sm:$0xff]
        %v488 = vld [vmem:[%s263 + $0x490] sm:$0xff]
        %v489 = vld [vmem:[%s263 + $0x498] sm:$0xff]
        %v490 = vld [vmem:[%s263 + $0x4a0] sm:$0xff]
        %v491 = vld [vmem:[%s263 + $0x4a8] sm:$0xff]
        %v492 = vld [vmem:[%s263 + $0x4b0] sm:$0xff]
        %v493 = vld [vmem:[%s263 + $0x4b8] sm:$0xff]
        %v494 = vld [vmem:[%s263 + $0x4c0] sm:$0xff]
        %v495 = vld [vmem:[%s263 + $0x4c8] sm:$0xff]
        %v496 = vld [vmem:[%s263 + $0x4d0] sm:$0xff]
        %v497 = vld [vmem:[%s263 + $0x4d8] sm:$0xff]
        %v498 = vld [vmem:[%s263 + $0x4e0] sm:$0xff]
        %v499 = vld [vmem:[%s263 + $0x4e8] sm:$0xff]
        %v500 = vld [vmem:[%s263 + $0x4f0] sm:$0xff]
        %v501 = vld [vmem:[%s263 + $0x4f8] sm:$0xff]
        %v502 = vld [vmem:[%s263 + $0x500] sm:$0xff]
        %v503 = vld [vmem:[%s263 + $0x508] sm:$0xff]
        %v504 = vld [vmem:[%s263 + $0x510] sm:$0xff]
        %v505 = vld [vmem:[%s263 + $0x518] sm:$0xff]
        %v506 = vld [vmem:[%s263 + $0x520] sm:$0xff]
        %v507 = vld [vmem:[%s263 + $0x528] sm:$0xff]
        %v508 = vld [vmem:[%s263 + $0x530] sm:$0xff]
        %v509 = vld [vmem:[%s263 + $0x538] sm:$0xff]
        %v510 = vld [vmem:[%s263 + $0x540] sm:$0xff]
        %v511 = vld [vmem:[%s263 + $0x548] sm:$0xff]
        %v512 = vld [vmem:[%s263 + $0x550] sm:$0xff]
        %v513 = vld [vmem:[%s263 + $0x558] sm:$0xff]
        %v514 = vld [vmem:[%s263 + $0x560] sm:$0xff]
        %v515 = vld [vmem:[%s263 + $0x568] sm:$0xff]
        %v516 = vld [vmem:[%s263 + $0x570] sm:$0xff]
        %v517 = vld [vmem:[%s263 + $0x578] sm:$0xff]
        %v518 = vld [vmem:[%s263 + $0x580] sm:$0xff]
        %v519 = vld [vmem:[%s263 + $0x588] sm:$0xff]
        %v520 = vld [vmem:[%s263 + $0x590] sm:$0xff]
        %v521 = vld [vmem:[%s263 + $0x598] sm:$0xff]
        %v522 = vld [vmem:[%s263 + $0x5a0] sm:$0xff]
        %v523 = vld [vmem:[%s263 + $0x5a8] sm:$0xff]
        %v524 = vld [vmem:[%s263 + $0x5b0] sm:$0xff]
        %v525 = vld [vmem:[%s263 + $0x5b8] sm:$0xff]
        %v526 = vld [vmem:[%s263 + $0x5c0] sm:$0xff]
        %v527 = vld [vmem:[%s263 + $0x5c8] sm:$0xff]
        %v528 = vld [vmem:[%s263 + $0x5d0] sm:$0xff]
        %v529 = vld [vmem:[%s263 + $0x5d8] sm:$0xff]
        %v530 = vld [vmem:[%s263 + $0x5e0] sm:$0xff]
        %v531 = vld [vmem:[%s263 + $0x5e8] sm:$0xff]
        %v532 = vld [vmem:[%s263 + $0x5f0] sm:$0xff]
        %v533 = vld [vmem:[%s263 + $0x5f8] sm:$0xff]
        %v534 = vld [vmem:[%s263 + $0x600] sm:$0xff]
        %v535 = vld [vmem:[%s263 + $0x608] sm:$0xff]
        %v536 = vld [vmem:[%s263 + $0x610] sm:$0xff]
        %v537 = vld [vmem:[%s263 + $0x618] sm:$0xff]
        %v538 = vld [vmem:[%s263 + $0x620] sm:$0xff]
        %v539 = vld [vmem:[%s263 + $0x628] sm:$0xff]
        %v540 = vld [vmem:[%s263 + $0x630] sm:$0xff]
        %v541 = vld [vmem:[%s263 + $0x638] sm:$0xff]
        %v542 = vld [vmem:[%s263 + $0x640] sm:$0xff]
        %v543 = vld [vmem:[%s263 + $0x648] sm:$0xff]
        %v544 = vld [vmem:[%s263 + $0x650] sm:$0xff]
        %v545 = vld [vmem:[%s263 + $0x658] sm:$0xff]
        %v546 = vld [vmem:[%s263 + $0x660] sm:$0xff]
        %v547 = vld [vmem:[%s263 + $0x668] sm:$0xff]
        %v548 = vld [vmem:[%s263 + $0x670] sm:$0xff]
        %v549 = vld [vmem:[%s263 + $0x678] sm:$0xff]
        %v550 = vld [vmem:[%s263 + $0x680] sm:$0xff]
        %v551 = vld [vmem:[%s263 + $0x688] sm:$0xff]
        %v552 = vld [vmem:[%s263 + $0x690] sm:$0xff]
        %v553 = vld [vmem:[%s263 + $0x698] sm:$0xff]
        %v554 = vld [vmem:[%s263 + $0x6a0] sm:$0xff]
        %v555 = vld [vmem:[%s263 + $0x6a8] sm:$0xff]
        %v556 = vld [vmem:[%s263 + $0x6b0] sm:$0xff]
        %v557 = vld [vmem:[%s263 + $0x6b8] sm:$0xff]
        %v558 = vld [vmem:[%s263 + $0x6c0] sm:$0xff]
        %v559 = vld [vmem:[%s263 + $0x6c8] sm:$0xff]
        %v560 = vld [vmem:[%s263 + $0x6d0] sm:$0xff]
        %v561 = vld [vmem:[%s263 + $0x6d8] sm:$0xff]
        %v562 = vld [vmem:[%s263 + $0x6e0] sm:$0xff]
        %v563 = vld [vmem:[%s263 + $0x6e8] sm:$0xff]
        %v564 = vld [vmem:[%s263 + $0x6f0] sm:$0xff]
        %v565 = vld [vmem:[%s263 + $0x6f8] sm:$0xff]
        %v566 = vld [vmem:[%s263 + $0x700] sm:$0xff]
        %v567 = vld [vmem:[%s263 + $0x708] sm:$0xff]
        %v568 = vld [vmem:[%s263 + $0x710] sm:$0xff]
        %v569 = vld [vmem:[%s263 + $0x718] sm:$0xff]
        %v570 = vld [vmem:[%s263 + $0x720] sm:$0xff]
        %v571 = vld [vmem:[%s263 + $0x728] sm:$0xff]
        %v572 = vld [vmem:[%s263 + $0x730] sm:$0xff]
        %v573 = vld [vmem:[%s263 + $0x738] sm:$0xff]
        %v574 = vld [vmem:[%s263 + $0x740] sm:$0xff]
        %v575 = vld [vmem:[%s263 + $0x748] sm:$0xff]
        %v576 = vld [vmem:[%s263 + $0x750] sm:$0xff]
        %v577 = vld [vmem:[%s263 + $0x758] sm:$0xff]
        %v578 = vld [vmem:[%s263 + $0x760] sm:$0xff]
        %v579 = vld [vmem:[%s263 + $0x768] sm:$0xff]
        %v580 = vld [vmem:[%s263 + $0x770] sm:$0xff]
        %v581 = vld [vmem:[%s263 + $0x778] sm:$0xff]
        %v582 = vld [vmem:[%s263 + $0x780] sm:$0xff]
        %v583 = vld [vmem:[%s263 + $0x788] sm:$0xff]
        %v584 = vld [vmem:[%s263 + $0x790] sm:$0xff]
        %v585 = vld [vmem:[%s263 + $0x798] sm:$0xff]
        %v586 = vld [vmem:[%s263 + $0x7a0] sm:$0xff]
        %v587 = vld [vmem:[%s263 + $0x7a8] sm:$0xff]
        %v588 = vld [vmem:[%s263 + $0x7b0] sm:$0xff]
        %v589 = vld [vmem:[%s263 + $0x7b8] sm:$0xff]
        %v590 = vld [vmem:[%s263 + $0x7c0] sm:$0xff]
        %v591 = vld [vmem:[%s263 + $0x7c8] sm:$0xff]
        %v592 = vld [vmem:[%s263 + $0x7d0] sm:$0xff]
        %v593 = vld [vmem:[%s263 + $0x7d8] sm:$0xff]
        %v594 = vld [vmem:[%s263 + $0x7e0] sm:$0xff]
        %v595 = vld [vmem:[%s263 + $0x7e8] sm:$0xff]
        %v596 = vld [vmem:[%s263 + $0x7f0] sm:$0xff]
        %v597 = vld [vmem:[%s263 + $0x7f8] sm:$0xff]
        %v598 = vld [vmem:[%s272] sm:$0xff]
        %v599 = vld [vmem:[%s272 + $0x8] sm:$0xff]
        %v600 = vld [vmem:[%s272 + $0x10] sm:$0xff]
        %v601 = vld [vmem:[%s272 + $0x18] sm:$0xff]
        %v602 = vld [vmem:[%s272 + $0x20] sm:$0xff]
        %v603 = vld [vmem:[%s272 + $0x28] sm:$0xff]
        %v604 = vld [vmem:[%s272 + $0x30] sm:$0xff]
        %v605 = vld [vmem:[%s272 + $0x38] sm:$0xff]
        %v606 = vld [vmem:[%s272 + $0x40] sm:$0xff]
        %v607 = vld [vmem:[%s272 + $0x48] sm:$0xff]
        %v608 = vld [vmem:[%s272 + $0x50] sm:$0xff]
        %v609 = vld [vmem:[%s272 + $0x58] sm:$0xff]
        %v610 = vld [vmem:[%s272 + $0x60] sm:$0xff]
        %v611 = vld [vmem:[%s272 + $0x68] sm:$0xff]
        %v612 = vld [vmem:[%s272 + $0x70] sm:$0xff]
        %v613 = vld [vmem:[%s272 + $0x78] sm:$0xff]
        %v614 = vld [vmem:[%s272 + $0x80] sm:$0xff]
        %v615 = vld [vmem:[%s272 + $0x88] sm:$0xff]
        %v616 = vld [vmem:[%s272 + $0x90] sm:$0xff]
        %v617 = vld [vmem:[%s272 + $0x98] sm:$0xff]
        %v618 = vld [vmem:[%s272 + $0xa0] sm:$0xff]
        %v619 = vld [vmem:[%s272 + $0xa8] sm:$0xff]
        %v620 = vld [vmem:[%s272 + $0xb0] sm:$0xff]
        %v621 = vld [vmem:[%s272 + $0xb8] sm:$0xff]
        %v622 = vld [vmem:[%s272 + $0xc0] sm:$0xff]
        %v623 = vld [vmem:[%s272 + $0xc8] sm:$0xff]
        %v624 = vld [vmem:[%s272 + $0xd0] sm:$0xff]
        %v625 = vld [vmem:[%s272 + $0xd8] sm:$0xff]
        %v626 = vld [vmem:[%s272 + $0xe0] sm:$0xff]
        %v627 = vld [vmem:[%s272 + $0xe8] sm:$0xff]
        %v628 = vld [vmem:[%s272 + $0xf0] sm:$0xff]
        %v629 = vld [vmem:[%s272 + $0xf8] sm:$0xff]
        %v630 = vld [vmem:[%s272 + $0x100] sm:$0xff]
        %v631 = vld [vmem:[%s272 + $0x108] sm:$0xff]
        %v632 = vld [vmem:[%s272 + $0x110] sm:$0xff]
        %v633 = vld [vmem:[%s272 + $0x118] sm:$0xff]
        %v634 = vld [vmem:[%s272 + $0x120] sm:$0xff]
        %v635 = vld [vmem:[%s272 + $0x128] sm:$0xff]
        %v636 = vld [vmem:[%s272 + $0x130] sm:$0xff]
        %v637 = vld [vmem:[%s272 + $0x138] sm:$0xff]
        %v638 = vld [vmem:[%s272 + $0x140] sm:$0xff]
        %v639 = vld [vmem:[%s272 + $0x148] sm:$0xff]
        %v640 = vld [vmem:[%s272 + $0x150] sm:$0xff]
        %v641 = vld [vmem:[%s272 + $0x158] sm:$0xff]
        %v642 = vld [vmem:[%s272 + $0x160] sm:$0xff]
        %v643 = vld [vmem:[%s272 + $0x168] sm:$0xff]
        %v644 = vld [vmem:[%s272 + $0x170] sm:$0xff]
        %v645 = vld [vmem:[%s272 + $0x178] sm:$0xff]
        %v646 = vld [vmem:[%s272 + $0x180] sm:$0xff]
        %v647 = vld [vmem:[%s272 + $0x188] sm:$0xff]
        %v648 = vld [vmem:[%s272 + $0x190] sm:$0xff]
        %v649 = vld [vmem:[%s272 + $0x198] sm:$0xff]
        %v650 = vld [vmem:[%s272 + $0x1a0] sm:$0xff]
        %v651 = vld [vmem:[%s272 + $0x1a8] sm:$0xff]
        %v652 = vld [vmem:[%s272 + $0x1b0] sm:$0xff]
        %v653 = vld [vmem:[%s272 + $0x1b8] sm:$0xff]
        %v654 = vld [vmem:[%s272 + $0x1c0] sm:$0xff]
        %v655 = vld [vmem:[%s272 + $0x1c8] sm:$0xff]
        %v656 = vld [vmem:[%s272 + $0x1d0] sm:$0xff]
        %v657 = vld [vmem:[%s272 + $0x1d8] sm:$0xff]
        %v658 = vld [vmem:[%s272 + $0x1e0] sm:$0xff]
        %v659 = vld [vmem:[%s272 + $0x1e8] sm:$0xff]
        %v660 = vld [vmem:[%s272 + $0x1f0] sm:$0xff]
        %v661 = vld [vmem:[%s272 + $0x1f8] sm:$0xff]
        %v662 = vld [vmem:[%s272 + $0x200] sm:$0xff]
        %v663 = vld [vmem:[%s272 + $0x208] sm:$0xff]
        %v664 = vld [vmem:[%s272 + $0x210] sm:$0xff]
        %v665 = vld [vmem:[%s272 + $0x218] sm:$0xff]
        %v666 = vld [vmem:[%s272 + $0x220] sm:$0xff]
        %v667 = vld [vmem:[%s272 + $0x228] sm:$0xff]
        %v668 = vld [vmem:[%s272 + $0x230] sm:$0xff]
        %v669 = vld [vmem:[%s272 + $0x238] sm:$0xff]
        %v670 = vld [vmem:[%s272 + $0x240] sm:$0xff]
        %v671 = vld [vmem:[%s272 + $0x248] sm:$0xff]
        %v672 = vld [vmem:[%s272 + $0x250] sm:$0xff]
        %v673 = vld [vmem:[%s272 + $0x258] sm:$0xff]
        %v674 = vld [vmem:[%s272 + $0x260] sm:$0xff]
        %v675 = vld [vmem:[%s272 + $0x268] sm:$0xff]
        %v676 = vld [vmem:[%s272 + $0x270] sm:$0xff]
        %v677 = vld [vmem:[%s272 + $0x278] sm:$0xff]
        %v678 = vld [vmem:[%s272 + $0x280] sm:$0xff]
        %v679 = vld [vmem:[%s272 + $0x288] sm:$0xff]
        %v680 = vld [vmem:[%s272 + $0x290] sm:$0xff]
        %v681 = vld [vmem:[%s272 + $0x298] sm:$0xff]
        %v682 = vld [vmem:[%s272 + $0x2a0] sm:$0xff]
        %v683 = vld [vmem:[%s272 + $0x2a8] sm:$0xff]
        %v684 = vld [vmem:[%s272 + $0x2b0] sm:$0xff]
        %v685 = vld [vmem:[%s272 + $0x2b8] sm:$0xff]
        %v686 = vld [vmem:[%s272 + $0x2c0] sm:$0xff]
        %v687 = vld [vmem:[%s272 + $0x2c8] sm:$0xff]
        %v688 = vld [vmem:[%s272 + $0x2d0] sm:$0xff]
        %v689 = vld [vmem:[%s272 + $0x2d8] sm:$0xff]
        %v690 = vld [vmem:[%s272 + $0x2e0] sm:$0xff]
        %v691 = vld [vmem:[%s272 + $0x2e8] sm:$0xff]
        %v692 = vld [vmem:[%s272 + $0x2f0] sm:$0xff]
        %v693 = vld [vmem:[%s272 + $0x2f8] sm:$0xff]
        %v694 = vld [vmem:[%s272 + $0x300] sm:$0xff]
        %v695 = vld [vmem:[%s272 + $0x308] sm:$0xff]
        %v696 = vld [vmem:[%s272 + $0x310] sm:$0xff]
        %v697 = vld [vmem:[%s272 + $0x318] sm:$0xff]
        %v698 = vld [vmem:[%s272 + $0x320] sm:$0xff]
        %v699 = vld [vmem:[%s272 + $0x328] sm:$0xff]
        %v700 = vld [vmem:[%s272 + $0x330] sm:$0xff]
        %v701 = vld [vmem:[%s272 + $0x338] sm:$0xff]
        %v702 = vld [vmem:[%s272 + $0x340] sm:$0xff]
        %v703 = vld [vmem:[%s272 + $0x348] sm:$0xff]
        %v704 = vld [vmem:[%s272 + $0x350] sm:$0xff]
        %v705 = vld [vmem:[%s272 + $0x358] sm:$0xff]
        %v706 = vld [vmem:[%s272 + $0x360] sm:$0xff]
        %v707 = vld [vmem:[%s272 + $0x368] sm:$0xff]
        %v708 = vld [vmem:[%s272 + $0x370] sm:$0xff]
        %v709 = vld [vmem:[%s272 + $0x378] sm:$0xff]
        %v710 = vld [vmem:[%s272 + $0x380] sm:$0xff]
        %v711 = vld [vmem:[%s272 + $0x388] sm:$0xff]
        %v712 = vld [vmem:[%s272 + $0x390] sm:$0xff]
        %v713 = vld [vmem:[%s272 + $0x398] sm:$0xff]
        %v714 = vld [vmem:[%s272 + $0x3a0] sm:$0xff]
        %v715 = vld [vmem:[%s272 + $0x3a8] sm:$0xff]
        %v716 = vld [vmem:[%s272 + $0x3b0] sm:$0xff]
        %v717 = vld [vmem:[%s272 + $0x3b8] sm:$0xff]
        %v718 = vld [vmem:[%s272 + $0x3c0] sm:$0xff]
        %v719 = vld [vmem:[%s272 + $0x3c8] sm:$0xff]
        %v720 = vld [vmem:[%s272 + $0x3d0] sm:$0xff]
        %v721 = vld [vmem:[%s272 + $0x3d8] sm:$0xff]
        %v722 = vld [vmem:[%s272 + $0x3e0] sm:$0xff]
        %v723 = vld [vmem:[%s272 + $0x3e8] sm:$0xff]
        %v724 = vld [vmem:[%s272 + $0x3f0] sm:$0xff]
        %v725 = vld [vmem:[%s272 + $0x3f8] sm:$0xff]
        %v726 = vld [vmem:[%s272 + $0x400] sm:$0xff]
        %v727 = vld [vmem:[%s272 + $0x408] sm:$0xff]
        %v728 = vld [vmem:[%s272 + $0x410] sm:$0xff]
        %v729 = vld [vmem:[%s272 + $0x418] sm:$0xff]
        %v730 = vld [vmem:[%s272 + $0x420] sm:$0xff]
        %v731 = vld [vmem:[%s272 + $0x428] sm:$0xff]
        %v732 = vld [vmem:[%s272 + $0x430] sm:$0xff]
        %v733 = vld [vmem:[%s272 + $0x438] sm:$0xff]
        %v734 = vld [vmem:[%s272 + $0x440] sm:$0xff]
        %v735 = vld [vmem:[%s272 + $0x448] sm:$0xff]
        %v736 = vld [vmem:[%s272 + $0x450] sm:$0xff]
        %v737 = vld [vmem:[%s272 + $0x458] sm:$0xff]
        %v738 = vld [vmem:[%s272 + $0x460] sm:$0xff]
        %v739 = vld [vmem:[%s272 + $0x468] sm:$0xff]
        %v740 = vld [vmem:[%s272 + $0x470] sm:$0xff]
        %v741 = vld [vmem:[%s272 + $0x478] sm:$0xff]
        %v742 = vld [vmem:[%s272 + $0x480] sm:$0xff]
        %v743 = vld [vmem:[%s272 + $0x488] sm:$0xff]
        %v744 = vld [vmem:[%s272 + $0x490] sm:$0xff]
        %v745 = vld [vmem:[%s272 + $0x498] sm:$0xff]
        %v746 = vld [vmem:[%s272 + $0x4a0] sm:$0xff]
        %v747 = vld [vmem:[%s272 + $0x4a8] sm:$0xff]
        %v748 = vld [vmem:[%s272 + $0x4b0] sm:$0xff]
        %v749 = vld [vmem:[%s272 + $0x4b8] sm:$0xff]
        %v750 = vld [vmem:[%s272 + $0x4c0] sm:$0xff]
        %v751 = vld [vmem:[%s272 + $0x4c8] sm:$0xff]
        %v752 = vld [vmem:[%s272 + $0x4d0] sm:$0xff]
        %v753 = vld [vmem:[%s272 + $0x4d8] sm:$0xff]
        %v754 = vld [vmem:[%s272 + $0x4e0] sm:$0xff]
        %v755 = vld [vmem:[%s272 + $0x4e8] sm:$0xff]
        %v756 = vld [vmem:[%s272 + $0x4f0] sm:$0xff]
        %v757 = vld [vmem:[%s272 + $0x4f8] sm:$0xff]
        %v758 = vld [vmem:[%s272 + $0x500] sm:$0xff]
        %v759 = vld [vmem:[%s272 + $0x508] sm:$0xff]
        %v760 = vld [vmem:[%s272 + $0x510] sm:$0xff]
        %v761 = vld [vmem:[%s272 + $0x518] sm:$0xff]
        %v762 = vld [vmem:[%s272 + $0x520] sm:$0xff]
        %v763 = vld [vmem:[%s272 + $0x528] sm:$0xff]
        %v764 = vld [vmem:[%s272 + $0x530] sm:$0xff]
        %v765 = vld [vmem:[%s272 + $0x538] sm:$0xff]
        %v766 = vld [vmem:[%s272 + $0x540] sm:$0xff]
        %v767 = vld [vmem:[%s272 + $0x548] sm:$0xff]
        %v768 = vld [vmem:[%s272 + $0x550] sm:$0xff]
        %v769 = vld [vmem:[%s272 + $0x558] sm:$0xff]
        %v770 = vld [vmem:[%s272 + $0x560] sm:$0xff]
        %v771 = vld [vmem:[%s272 + $0x568] sm:$0xff]
        %v772 = vld [vmem:[%s272 + $0x570] sm:$0xff]
        %v773 = vld [vmem:[%s272 + $0x578] sm:$0xff]
        %v774 = vld [vmem:[%s272 + $0x580] sm:$0xff]
        %v775 = vld [vmem:[%s272 + $0x588] sm:$0xff]
        %v776 = vld [vmem:[%s272 + $0x590] sm:$0xff]
        %v777 = vld [vmem:[%s272 + $0x598] sm:$0xff]
        %v778 = vld [vmem:[%s272 + $0x5a0] sm:$0xff]
        %v779 = vld [vmem:[%s272 + $0x5a8] sm:$0xff]
        %v780 = vld [vmem:[%s272 + $0x5b0] sm:$0xff]
        %v781 = vld [vmem:[%s272 + $0x5b8] sm:$0xff]
        %v782 = vld [vmem:[%s272 + $0x5c0] sm:$0xff]
        %v783 = vld [vmem:[%s272 + $0x5c8] sm:$0xff]
        %v784 = vld [vmem:[%s272 + $0x5d0] sm:$0xff]
        %v785 = vld [vmem:[%s272 + $0x5d8] sm:$0xff]
        %v786 = vld [vmem:[%s272 + $0x5e0] sm:$0xff]
        %v787 = vld [vmem:[%s272 + $0x5e8] sm:$0xff]
        %v788 = vld [vmem:[%s272 + $0x5f0] sm:$0xff]
        %v789 = vld [vmem:[%s272 + $0x5f8] sm:$0xff]
        %v790 = vld [vmem:[%s272 + $0x600] sm:$0xff]
        %v791 = vld [vmem:[%s272 + $0x608] sm:$0xff]
        %v792 = vld [vmem:[%s272 + $0x610] sm:$0xff]
        %v793 = vld [vmem:[%s272 + $0x618] sm:$0xff]
        %v794 = vld [vmem:[%s272 + $0x620] sm:$0xff]
        %v795 = vld [vmem:[%s272 + $0x628] sm:$0xff]
        %v796 = vld [vmem:[%s272 + $0x630] sm:$0xff]
        %v797 = vld [vmem:[%s272 + $0x638] sm:$0xff]
        %v798 = vld [vmem:[%s272 + $0x640] sm:$0xff]
        %v799 = vld [vmem:[%s272 + $0x648] sm:$0xff]
        %v800 = vld [vmem:[%s272 + $0x650] sm:$0xff]
        %v801 = vld [vmem:[%s272 + $0x658] sm:$0xff]
        %v802 = vld [vmem:[%s272 + $0x660] sm:$0xff]
        %v803 = vld [vmem:[%s272 + $0x668] sm:$0xff]
        %v804 = vld [vmem:[%s272 + $0x670] sm:$0xff]
        %v805 = vld [vmem:[%s272 + $0x678] sm:$0xff]
        %v806 = vld [vmem:[%s272 + $0x680] sm:$0xff]
        %v807 = vld [vmem:[%s272 + $0x688] sm:$0xff]
        %v808 = vld [vmem:[%s272 + $0x690] sm:$0xff]
        %v809 = vld [vmem:[%s272 + $0x698] sm:$0xff]
        %v810 = vld [vmem:[%s272 + $0x6a0] sm:$0xff]
        %v811 = vld [vmem:[%s272 + $0x6a8] sm:$0xff]
        %v812 = vld [vmem:[%s272 + $0x6b0] sm:$0xff]
        %v813 = vld [vmem:[%s272 + $0x6b8] sm:$0xff]
        %v814 = vld [vmem:[%s272 + $0x6c0] sm:$0xff]
        %v815 = vld [vmem:[%s272 + $0x6c8] sm:$0xff]
        %v816 = vld [vmem:[%s272 + $0x6d0] sm:$0xff]
        %v817 = vld [vmem:[%s272 + $0x6d8] sm:$0xff]
        %v818 = vld [vmem:[%s272 + $0x6e0] sm:$0xff]
        %v819 = vld [vmem:[%s272 + $0x6e8] sm:$0xff]
        %v820 = vld [vmem:[%s272 + $0x6f0] sm:$0xff]
        %v821 = vld [vmem:[%s272 + $0x6f8] sm:$0xff]
        %v822 = vld [vmem:[%s272 + $0x700] sm:$0xff]
        %v823 = vld [vmem:[%s272 + $0x708] sm:$0xff]
        %v824 = vld [vmem:[%s272 + $0x710] sm:$0xff]
        %v825 = vld [vmem:[%s272 + $0x718] sm:$0xff]
        %v826 = vld [vmem:[%s272 + $0x720] sm:$0xff]
        %v827 = vld [vmem:[%s272 + $0x728] sm:$0xff]
        %v828 = vld [vmem:[%s272 + $0x730] sm:$0xff]
        %v829 = vld [vmem:[%s272 + $0x738] sm:$0xff]
        %v830 = vld [vmem:[%s272 + $0x740] sm:$0xff]
        %v831 = vld [vmem:[%s272 + $0x748] sm:$0xff]
        %v832 = vld [vmem:[%s272 + $0x750] sm:$0xff]
        %v833 = vld [vmem:[%s272 + $0x758] sm:$0xff]
        %v834 = vld [vmem:[%s272 + $0x760] sm:$0xff]
        %v835 = vld [vmem:[%s272 + $0x768] sm:$0xff]
        %v836 = vld [vmem:[%s272 + $0x770] sm:$0xff]
        %v837 = vld [vmem:[%s272 + $0x778] sm:$0xff]
        %v838 = vld [vmem:[%s272 + $0x780] sm:$0xff]
        %v839 = vld [vmem:[%s272 + $0x788] sm:$0xff]
        %v840 = vld [vmem:[%s272 + $0x790] sm:$0xff]
        %v841 = vld [vmem:[%s272 + $0x798] sm:$0xff]
        %v842 = vld [vmem:[%s272 + $0x7a0] sm:$0xff]
        %v843 = vld [vmem:[%s272 + $0x7a8] sm:$0xff]
        %v844 = vld [vmem:[%s272 + $0x7b0] sm:$0xff]
        %v845 = vld [vmem:[%s272 + $0x7b8] sm:$0xff]
        %v846 = vld [vmem:[%s272 + $0x7c0] sm:$0xff]
        %v847 = vld [vmem:[%s272 + $0x7c8] sm:$0xff]
        %v848 = vld [vmem:[%s272 + $0x7d0] sm:$0xff]
        %v849 = vld [vmem:[%s272 + $0x7d8] sm:$0xff]
        %v850 = vld [vmem:[%s272 + $0x7e0] sm:$0xff]
        %v851 = vld [vmem:[%s272 + $0x7e8] sm:$0xff]
        %v852 = vld [vmem:[%s272 + $0x7f0] sm:$0xff]
        %v853 = vld [vmem:[%s272 + $0x7f8] sm:$0xff]
        %v854 = vld [vmem:[%s272 + $0x800] sm:$0xff]
        %v855 = vld [vmem:[%s272 + $0x808] sm:$0xff]
        %v856 = vld [vmem:[%s272 + $0x810] sm:$0xff]
        %v857 = vld [vmem:[%s272 + $0x818] sm:$0xff]
        %v858 = vld [vmem:[%s272 + $0x820] sm:$0xff]
        %v859 = vld [vmem:[%s272 + $0x828] sm:$0xff]
        %v860 = vld [vmem:[%s272 + $0x830] sm:$0xff]
        %v861 = vld [vmem:[%s272 + $0x838] sm:$0xff]
        %v862 = vld [vmem:[%s272 + $0x840] sm:$0xff]
        %v863 = vld [vmem:[%s272 + $0x848] sm:$0xff]
        %v864 = vld [vmem:[%s272 + $0x850] sm:$0xff]
        %v865 = vld [vmem:[%s272 + $0x858] sm:$0xff]
        %v866 = vld [vmem:[%s272 + $0x860] sm:$0xff]
        %v867 = vld [vmem:[%s272 + $0x868] sm:$0xff]
        %v868 = vld [vmem:[%s272 + $0x870] sm:$0xff]
        %v869 = vld [vmem:[%s272 + $0x878] sm:$0xff]
        %v870 = vld [vmem:[%s272 + $0x880] sm:$0xff]
        %v871 = vld [vmem:[%s272 + $0x888] sm:$0xff]
        %v872 = vld [vmem:[%s272 + $0x890] sm:$0xff]
        %v873 = vld [vmem:[%s272 + $0x898] sm:$0xff]
        %v874 = vld [vmem:[%s272 + $0x8a0] sm:$0xff]
        %v875 = vld [vmem:[%s272 + $0x8a8] sm:$0xff]
        %v876 = vld [vmem:[%s272 + $0x8b0] sm:$0xff]
        %v877 = vld [vmem:[%s272 + $0x8b8] sm:$0xff]
        %v878 = vld [vmem:[%s272 + $0x8c0] sm:$0xff]
        %v879 = vld [vmem:[%s272 + $0x8c8] sm:$0xff]
        %v880 = vld [vmem:[%s272 + $0x8d0] sm:$0xff]
        %v881 = vld [vmem:[%s272 + $0x8d8] sm:$0xff]
        %v882 = vld [vmem:[%s272 + $0x8e0] sm:$0xff]
        %v883 = vld [vmem:[%s272 + $0x8e8] sm:$0xff]
        %v884 = vld [vmem:[%s272 + $0x8f0] sm:$0xff]
        %v885 = vld [vmem:[%s272 + $0x8f8] sm:$0xff]
        %v886 = vld [vmem:[%s272 + $0x900] sm:$0xff]
        %v887 = vld [vmem:[%s272 + $0x908] sm:$0xff]
        %v888 = vld [vmem:[%s272 + $0x910] sm:$0xff]
        %v889 = vld [vmem:[%s272 + $0x918] sm:$0xff]
        %v890 = vld [vmem:[%s272 + $0x920] sm:$0xff]
        %v891 = vld [vmem:[%s272 + $0x928] sm:$0xff]
        %v892 = vld [vmem:[%s272 + $0x930] sm:$0xff]
        %v893 = vld [vmem:[%s272 + $0x938] sm:$0xff]
        %v894 = vld [vmem:[%s272 + $0x940] sm:$0xff]
        %v895 = vld [vmem:[%s272 + $0x948] sm:$0xff]
        %v896 = vld [vmem:[%s272 + $0x950] sm:$0xff]
        %v897 = vld [vmem:[%s272 + $0x958] sm:$0xff]
        %v898 = vld [vmem:[%s272 + $0x960] sm:$0xff]
        %v899 = vld [vmem:[%s272 + $0x968] sm:$0xff]
        %v900 = vld [vmem:[%s272 + $0x970] sm:$0xff]
        %v901 = vld [vmem:[%s272 + $0x978] sm:$0xff]
        %v902 = vld [vmem:[%s272 + $0x980] sm:$0xff]
        %v903 = vld [vmem:[%s272 + $0x988] sm:$0xff]
        %v904 = vld [vmem:[%s272 + $0x990] sm:$0xff]
        %v905 = vld [vmem:[%s272 + $0x998] sm:$0xff]
        %v906 = vld [vmem:[%s272 + $0x9a0] sm:$0xff]
        %v907 = vld [vmem:[%s272 + $0x9a8] sm:$0xff]
        %v908 = vld [vmem:[%s272 + $0x9b0] sm:$0xff]
        %v909 = vld [vmem:[%s272 + $0x9b8] sm:$0xff]
        %v910 = vld [vmem:[%s272 + $0x9c0] sm:$0xff]
        %v911 = vld [vmem:[%s272 + $0x9c8] sm:$0xff]
        %v912 = vld [vmem:[%s272 + $0x9d0] sm:$0xff]
        %v913 = vld [vmem:[%s272 + $0x9d8] sm:$0xff]
        %v914 = vld [vmem:[%s272 + $0x9e0] sm:$0xff]
        %v915 = vld [vmem:[%s272 + $0x9e8] sm:$0xff]
        %v916 = vld [vmem:[%s272 + $0x9f0] sm:$0xff]
        %v917 = vld [vmem:[%s272 + $0x9f8] sm:$0xff]
        %v918 = vld [vmem:[%s272 + $0xa00] sm:$0xff]
        %v919 = vld [vmem:[%s272 + $0xa08] sm:$0xff]
        %v920 = vld [vmem:[%s272 + $0xa10] sm:$0xff]
        %v921 = vld [vmem:[%s272 + $0xa18] sm:$0xff]
        %v922 = vld [vmem:[%s272 + $0xa20] sm:$0xff]
        %v923 = vld [vmem:[%s272 + $0xa28] sm:$0xff]
        %v924 = vld [vmem:[%s272 + $0xa30] sm:$0xff]
        %v925 = vld [vmem:[%s272 + $0xa38] sm:$0xff]
        %v926 = vld [vmem:[%s272 + $0xa40] sm:$0xff]
        %v927 = vld [vmem:[%s272 + $0xa48] sm:$0xff]
        %v928 = vld [vmem:[%s272 + $0xa50] sm:$0xff]
        %v929 = vld [vmem:[%s272 + $0xa58] sm:$0xff]
        %v930 = vld [vmem:[%s272 + $0xa60] sm:$0xff]
        %v931 = vld [vmem:[%s272 + $0xa68] sm:$0xff]
        %v932 = vld [vmem:[%s272 + $0xa70] sm:$0xff]
        %v933 = vld [vmem:[%s272 + $0xa78] sm:$0xff]
        %v934 = vld [vmem:[%s272 + $0xa80] sm:$0xff]
        %v935 = vld [vmem:[%s272 + $0xa88] sm:$0xff]
        %v936 = vld [vmem:[%s272 + $0xa90] sm:$0xff]
        %v937 = vld [vmem:[%s272 + $0xa98] sm:$0xff]
        %v938 = vld [vmem:[%s272 + $0xaa0] sm:$0xff]
        %v939 = vld [vmem:[%s272 + $0xaa8] sm:$0xff]
        %v940 = vld [vmem:[%s272 + $0xab0] sm:$0xff]
        %v941 = vld [vmem:[%s272 + $0xab8] sm:$0xff]
        %v942 = vld [vmem:[%s272 + $0xac0] sm:$0xff]
        %v943 = vld [vmem:[%s272 + $0xac8] sm:$0xff]
        %v944 = vld [vmem:[%s272 + $0xad0] sm:$0xff]
        %v945 = vld [vmem:[%s272 + $0xad8] sm:$0xff]
        %v946 = vld [vmem:[%s272 + $0xae0] sm:$0xff]
        %v947 = vld [vmem:[%s272 + $0xae8] sm:$0xff]
        %v948 = vld [vmem:[%s272 + $0xaf0] sm:$0xff]
        %v949 = vld [vmem:[%s272 + $0xaf8] sm:$0xff]
        %v950 = vld [vmem:[%s272 + $0xb00] sm:$0xff]
        %v951 = vld [vmem:[%s272 + $0xb08] sm:$0xff]
        %v952 = vld [vmem:[%s272 + $0xb10] sm:$0xff]
        %v953 = vld [vmem:[%s272 + $0xb18] sm:$0xff]
        %v954 = vld [vmem:[%s272 + $0xb20] sm:$0xff]
        %v955 = vld [vmem:[%s272 + $0xb28] sm:$0xff]
        %v956 = vld [vmem:[%s272 + $0xb30] sm:$0xff]
        %v957 = vld [vmem:[%s272 + $0xb38] sm:$0xff]
        %v958 = vld [vmem:[%s272 + $0xb40] sm:$0xff]
        %v959 = vld [vmem:[%s272 + $0xb48] sm:$0xff]
        %v960 = vld [vmem:[%s272 + $0xb50] sm:$0xff]
        %v961 = vld [vmem:[%s272 + $0xb58] sm:$0xff]
        %v962 = vld [vmem:[%s272 + $0xb60] sm:$0xff]
        %v963 = vld [vmem:[%s272 + $0xb68] sm:$0xff]
        %v964 = vld [vmem:[%s272 + $0xb70] sm:$0xff]
        %v965 = vld [vmem:[%s272 + $0xb78] sm:$0xff]
        %v966 = vld [vmem:[%s272 + $0xb80] sm:$0xff]
        %v967 = vld [vmem:[%s272 + $0xb88] sm:$0xff]
        %v968 = vld [vmem:[%s272 + $0xb90] sm:$0xff]
        %v969 = vld [vmem:[%s272 + $0xb98] sm:$0xff]
        %v970 = vld [vmem:[%s272 + $0xba0] sm:$0xff]
        %v971 = vld [vmem:[%s272 + $0xba8] sm:$0xff]
        %v972 = vld [vmem:[%s272 + $0xbb0] sm:$0xff]
        %v973 = vld [vmem:[%s272 + $0xbb8] sm:$0xff]
        %v974 = vld [vmem:[%s272 + $0xbc0] sm:$0xff]
        %v975 = vld [vmem:[%s272 + $0xbc8] sm:$0xff]
        %v976 = vld [vmem:[%s272 + $0xbd0] sm:$0xff]
        %v977 = vld [vmem:[%s272 + $0xbd8] sm:$0xff]
        %v978 = vld [vmem:[%s272 + $0xbe0] sm:$0xff]
        %v979 = vld [vmem:[%s272 + $0xbe8] sm:$0xff]
        %v980 = vld [vmem:[%s272 + $0xbf0] sm:$0xff]
        %v981 = vld [vmem:[%s272 + $0xbf8] sm:$0xff]
        %v982 = vld [vmem:[%s272 + $0xc00] sm:$0xff]
        %v983 = vld [vmem:[%s272 + $0xc08] sm:$0xff]
        %v984 = vld [vmem:[%s272 + $0xc10] sm:$0xff]
        %v985 = vld [vmem:[%s272 + $0xc18] sm:$0xff]
        %v986 = vld [vmem:[%s272 + $0xc20] sm:$0xff]
        %v987 = vld [vmem:[%s272 + $0xc28] sm:$0xff]
        %v988 = vld [vmem:[%s272 + $0xc30] sm:$0xff]
        %v989 = vld [vmem:[%s272 + $0xc38] sm:$0xff]
        %v990 = vld [vmem:[%s272 + $0xc40] sm:$0xff]
        %v991 = vld [vmem:[%s272 + $0xc48] sm:$0xff]
        %v992 = vld [vmem:[%s272 + $0xc50] sm:$0xff]
        %v993 = vld [vmem:[%s272 + $0xc58] sm:$0xff]
        %v994 = vld [vmem:[%s272 + $0xc60] sm:$0xff]
        %v995 = vld [vmem:[%s272 + $0xc68] sm:$0xff]
        %v996 = vld [vmem:[%s272 + $0xc70] sm:$0xff]
        %v997 = vld [vmem:[%s272 + $0xc78] sm:$0xff]
        %v998 = vld [vmem:[%s272 + $0xc80] sm:$0xff]
        %v999 = vld [vmem:[%s272 + $0xc88] sm:$0xff]
        %v1000 = vld [vmem:[%s272 + $0xc90] sm:$0xff]
        %v1001 = vld [vmem:[%s272 + $0xc98] sm:$0xff]
        %v1002 = vld [vmem:[%s272 + $0xca0] sm:$0xff]
        %v1003 = vld [vmem:[%s272 + $0xca8] sm:$0xff]
        %v1004 = vld [vmem:[%s272 + $0xcb0] sm:$0xff]
        %v1005 = vld [vmem:[%s272 + $0xcb8] sm:$0xff]
        %v1006 = vld [vmem:[%s272 + $0xcc0] sm:$0xff]
        %v1007 = vld [vmem:[%s272 + $0xcc8] sm:$0xff]
        %v1008 = vld [vmem:[%s272 + $0xcd0] sm:$0xff]
        %v1009 = vld [vmem:[%s272 + $0xcd8] sm:$0xff]
        %v1010 = vld [vmem:[%s272 + $0xce0] sm:$0xff]
        %v1011 = vld [vmem:[%s272 + $0xce8] sm:$0xff]
        %v1012 = vld [vmem:[%s272 + $0xcf0] sm:$0xff]
        %v1013 = vld [vmem:[%s272 + $0xcf8] sm:$0xff]
        %v1014 = vld [vmem:[%s272 + $0xd00] sm:$0xff]
        %v1015 = vld [vmem:[%s272 + $0xd08] sm:$0xff]
        %v1016 = vld [vmem:[%s272 + $0xd10] sm:$0xff]
        %v1017 = vld [vmem:[%s272 + $0xd18] sm:$0xff]
        %v1018 = vld [vmem:[%s272 + $0xd20] sm:$0xff]
        %v1019 = vld [vmem:[%s272 + $0xd28] sm:$0xff]
        %v1020 = vld [vmem:[%s272 + $0xd30] sm:$0xff]
        %v1021 = vld [vmem:[%s272 + $0xd38] sm:$0xff]
        %v1022 = vld [vmem:[%s272 + $0xd40] sm:$0xff]
        %v1023 = vld [vmem:[%s272 + $0xd48] sm:$0xff]
        %v1024 = vld [vmem:[%s272 + $0xd50] sm:$0xff]
        %v1025 = vld [vmem:[%s272 + $0xd58] sm:$0xff]
        %v1026 = vld [vmem:[%s272 + $0xd60] sm:$0xff]
        %v1027 = vld [vmem:[%s272 + $0xd68] sm:$0xff]
        %v1028 = vld [vmem:[%s272 + $0xd70] sm:$0xff]
        %v1029 = vld [vmem:[%s272 + $0xd78] sm:$0xff]
        %v1030 = vld [vmem:[%s272 + $0xd80] sm:$0xff]
        %v1031 = vld [vmem:[%s272 + $0xd88] sm:$0xff]
        %v1032 = vld [vmem:[%s272 + $0xd90] sm:$0xff]
        %v1033 = vld [vmem:[%s272 + $0xd98] sm:$0xff]
        %v1034 = vld [vmem:[%s272 + $0xda0] sm:$0xff]
        %v1035 = vld [vmem:[%s272 + $0xda8] sm:$0xff]
        %v1036 = vld [vmem:[%s272 + $0xdb0] sm:$0xff]
        %v1037 = vld [vmem:[%s272 + $0xdb8] sm:$0xff]
        %v1038 = vld [vmem:[%s272 + $0xdc0] sm:$0xff]
        %v1039 = vld [vmem:[%s272 + $0xdc8] sm:$0xff]
        %v1040 = vld [vmem:[%s272 + $0xdd0] sm:$0xff]
        %v1041 = vld [vmem:[%s272 + $0xdd8] sm:$0xff]
        %v1042 = vld [vmem:[%s272 + $0xde0] sm:$0xff]
        %v1043 = vld [vmem:[%s272 + $0xde8] sm:$0xff]
        %v1044 = vld [vmem:[%s272 + $0xdf0] sm:$0xff]
        %v1045 = vld [vmem:[%s272 + $0xdf8] sm:$0xff]
        %v1046 = vld [vmem:[%s272 + $0xe00] sm:$0xff]
        %v1047 = vld [vmem:[%s272 + $0xe08] sm:$0xff]
        %v1048 = vld [vmem:[%s272 + $0xe10] sm:$0xff]
        %v1049 = vld [vmem:[%s272 + $0xe18] sm:$0xff]
        %v1050 = vld [vmem:[%s272 + $0xe20] sm:$0xff]
        %v1051 = vld [vmem:[%s272 + $0xe28] sm:$0xff]
        %v1052 = vld [vmem:[%s272 + $0xe30] sm:$0xff]
        %v1053 = vld [vmem:[%s272 + $0xe38] sm:$0xff]
        %v1054 = vld [vmem:[%s272 + $0xe40] sm:$0xff]
        %v1055 = vld [vmem:[%s272 + $0xe48] sm:$0xff]
        %v1056 = vld [vmem:[%s272 + $0xe50] sm:$0xff]
        %v1057 = vld [vmem:[%s272 + $0xe58] sm:$0xff]
        %v1058 = vld [vmem:[%s272 + $0xe60] sm:$0xff]
        %v1059 = vld [vmem:[%s272 + $0xe68] sm:$0xff]
        %v1060 = vld [vmem:[%s272 + $0xe70] sm:$0xff]
        %v1061 = vld [vmem:[%s272 + $0xe78] sm:$0xff]
        %v1062 = vld [vmem:[%s272 + $0xe80] sm:$0xff]
        %v1063 = vld [vmem:[%s272 + $0xe88] sm:$0xff]
        %v1064 = vld [vmem:[%s272 + $0xe90] sm:$0xff]
        %v1065 = vld [vmem:[%s272 + $0xe98] sm:$0xff]
        %v1066 = vld [vmem:[%s272 + $0xea0] sm:$0xff]
        %v1067 = vld [vmem:[%s272 + $0xea8] sm:$0xff]
        %v1068 = vld [vmem:[%s272 + $0xeb0] sm:$0xff]
        %v1069 = vld [vmem:[%s272 + $0xeb8] sm:$0xff]
        %v1070 = vld [vmem:[%s272 + $0xec0] sm:$0xff]
        %v1071 = vld [vmem:[%s272 + $0xec8] sm:$0xff]
        %v1072 = vld [vmem:[%s272 + $0xed0] sm:$0xff]
        %v1073 = vld [vmem:[%s272 + $0xed8] sm:$0xff]
        %v1074 = vld [vmem:[%s272 + $0xee0] sm:$0xff]
        %v1075 = vld [vmem:[%s272 + $0xee8] sm:$0xff]
        %v1076 = vld [vmem:[%s272 + $0xef0] sm:$0xff]
        %v1077 = vld [vmem:[%s272 + $0xef8] sm:$0xff]
        %v1078 = vld [vmem:[%s272 + $0xf00] sm:$0xff]
        %v1079 = vld [vmem:[%s272 + $0xf08] sm:$0xff]
        %v1080 = vld [vmem:[%s272 + $0xf10] sm:$0xff]
        %v1081 = vld [vmem:[%s272 + $0xf18] sm:$0xff]
        %v1082 = vld [vmem:[%s272 + $0xf20] sm:$0xff]
        %v1083 = vld [vmem:[%s272 + $0xf28] sm:$0xff]
        %v1084 = vld [vmem:[%s272 + $0xf30] sm:$0xff]
        %v1085 = vld [vmem:[%s272 + $0xf38] sm:$0xff]
        %v1086 = vld [vmem:[%s272 + $0xf40] sm:$0xff]
        %v1087 = vld [vmem:[%s272 + $0xf48] sm:$0xff]
        %v1088 = vld [vmem:[%s272 + $0xf50] sm:$0xff]
        %v1089 = vld [vmem:[%s272 + $0xf58] sm:$0xff]
        %v1090 = vld [vmem:[%s272 + $0xf60] sm:$0xff]
        %v1091 = vld [vmem:[%s272 + $0xf68] sm:$0xff]
        %v1092 = vld [vmem:[%s272 + $0xf70] sm:$0xff]
        %v1093 = vld [vmem:[%s272 + $0xf78] sm:$0xff]
        %v1094 = vld [vmem:[%s272 + $0xf80] sm:$0xff]
        %v1095 = vld [vmem:[%s272 + $0xf88] sm:$0xff]
        %v1096 = vld [vmem:[%s272 + $0xf90] sm:$0xff]
        %v1097 = vld [vmem:[%s272 + $0xf98] sm:$0xff]
        %v1098 = vld [vmem:[%s272 + $0xfa0] sm:$0xff]
        %v1099 = vld [vmem:[%s272 + $0xfa8] sm:$0xff]
        %v1100 = vld [vmem:[%s272 + $0xfb0] sm:$0xff]
        %v1101 = vld [vmem:[%s272 + $0xfb8] sm:$0xff]
        %v1102 = vld [vmem:[%s272 + $0xfc0] sm:$0xff]
        %v1103 = vld [vmem:[%s272 + $0xfc8] sm:$0xff]
        %v1104 = vld [vmem:[%s272 + $0xfd0] sm:$0xff]
        %v1105 = vld [vmem:[%s272 + $0xfd8] sm:$0xff]
        %v1106 = vld [vmem:[%s272 + $0xfe0] sm:$0xff]
        %v1107 = vld [vmem:[%s272 + $0xfe8] sm:$0xff]
        %v1108 = vld [vmem:[%s272 + $0xff0] sm:$0xff]
        %v1109 = vld [vmem:[%s272 + $0xff8] sm:$0xff]
        %1110 = vmatprep.subr.mxu0 %v599
        %1111 = vmatpush1.msra.mxu0 %v598
        %1112 = vmatprep.subr.mxu0 %v607
        %1113 = vmatpush1.msra.mxu0 %v606
        %1114 = vmatprep.subr.mxu0 %v615
        %1115 = vmatpush1.msra.mxu0 %v614
        %1116 = vmatprep.subr.mxu0 %v623
        %1117 = vmatpush1.msra.mxu0 %v622
        %1118 = vmatprep.subr.mxu0 %v631
        %1119 = vmatpush1.msra.mxu0 %v630
        %1120 = vmatprep.subr.mxu0 %v639
        %1121 = vmatpush1.msra.mxu0 %v638
        %1122 = vmatprep.subr.mxu0 %v647
        %1123 = vmatpush1.msra.mxu0 %v646
        %1124 = vmatprep.subr.mxu0 %v655
        %1125 = vmatpush1.msra.mxu0 %v654
        %1126 = vmatprep.subr.mxu0 %v663
        %1127 = vmatpush1.msra.mxu0 %v662
        %1128 = vmatprep.subr.mxu0 %v671
        %1129 = vmatpush1.msra.mxu0 %v670
        %1130 = vmatprep.subr.mxu0 %v679
        %1131 = vmatpush1.msra.mxu0 %v678
        %1132 = vmatprep.subr.mxu0 %v687
        %1133 = vmatpush1.msra.mxu0 %v686
        %1134 = vmatprep.subr.mxu0 %v695
        %1135 = vmatpush1.msra.mxu0 %v694
        %1136 = vmatprep.subr.mxu0 %v703
        %1137 = vmatpush1.msra.mxu0 %v702
        %1138 = vmatprep.subr.mxu0 %v711
        %1139 = vmatpush1.msra.mxu0 %v710
        %1140 = vmatprep.subr.mxu0 %v719
        %1141 = vmatpush1.msra.mxu0 %v718
        %1142 = vmatprep.subr.mxu0 %v727
        %1143 = vmatpush1.msra.mxu0 %v726
        %1144 = vmatprep.subr.mxu0 %v735
        %1145 = vmatpush1.msra.mxu0 %v734
        %1146 = vmatprep.subr.mxu0 %v743
        %1147 = vmatpush1.msra.mxu0 %v742
        %1148 = vmatprep.subr.mxu0 %v751
        %1149 = vmatpush1.msra.mxu0 %v750
        %1150 = vmatprep.subr.mxu0 %v759
        %1151 = vmatpush1.msra.mxu0 %v758
        %1152 = vmatprep.subr.mxu0 %v767
        %1153 = vmatpush1.msra.mxu0 %v766
        %1154 = vmatprep.subr.mxu0 %v775
        %1155 = vmatpush1.msra.mxu0 %v774
        %1156 = vmatprep.subr.mxu0 %v783
        %1157 = vmatpush1.msra.mxu0 %v782
        %1158 = vmatprep.subr.mxu0 %v791
        %1159 = vmatpush1.msra.mxu0 %v790
        %1160 = vmatprep.subr.mxu0 %v799
        %1161 = vmatpush1.msra.mxu0 %v798
        %1162 = vmatprep.subr.mxu0 %v807
        %1163 = vmatpush1.msra.mxu0 %v806
        %1164 = vmatprep.subr.mxu0 %v815
        %1165 = vmatpush1.msra.mxu0 %v814
        %1166 = vmatprep.subr.mxu0 %v823
        %1167 = vmatpush1.msra.mxu0 %v822
        %1168 = vmatprep.subr.mxu0 %v831
        %1169 = vmatpush1.msra.mxu0 %v830
        %1170 = vmatprep.subr.mxu0 %v839
        %1171 = vmatpush1.msra.mxu0 %v838
        %1172 = vmatprep.subr.mxu0 %v847
        %1173 = vmatpush1.msra.mxu0 %v846
        %1174 = vmatprep.mubr.f32.mxu0 %v343
        %1175 = vmatmul.mubr.f32.gmra.mrb[0].mxu0 %v342
        %v1176 = vpop.f32.mrb[0].mxu0
        %v1177 = vadd.f32 0.0, %v1176
        %v1178 = vpop.f32.mrb[0].mxu0
        %v1179 = vadd.f32 0.0, %v1178
        %1180 = vmatprep.mubr.f32.mxu0 %v347
        %1181 = vmatmul.mubr.f32.gmra.mrb[0].mxu0 %v346
        %v1182 = vpop.f32.mrb[0].mxu0
        %v1183 = vadd.f32 0.0, %v1182
        %v1184 = vpop.f32.mrb[0].mxu0
        %v1185 = vadd.f32 0.0, %v1184
        %1186 = vmatprep.mubr.f32.mxu0 %v351
        %1187 = vmatmul.mubr.f32.gmra.mrb[0].mxu0 %v350
        %v1188 = vpop.f32.mrb[0].mxu0
        %v1189 = vadd.f32 0.0, %v1188
        %v1190 = vpop.f32.mrb[0].mxu0
        %v1191 = vadd.f32 0.0, %v1190
        %1192 = vmatprep.mubr.f32.mxu0 %v355
        %1193 = vmatmul.mubr.f32.gmra.mrb[0].mxu0 %v354
        %v1194 = vpop.f32.mrb[0].mxu0
        %v1195 = vadd.f32 0.0, %v1194
        %v1196 = vpop.f32.mrb[0].mxu0
        %v1197 = vadd.f32 0.0, %v1196
        %1198 = vmatprep.mubr.f32.mxu0 %v359
        %1199 = vmatmul.mubr.f32.gmra.mrb[0].mxu0 %v358
        %v1200 = vpop.f32.mrb[0].mxu0
        %v1201 = vadd.f32 0.0, %v1200
        %v1202 = vpop.f32.mrb[0].mxu0
        %v1203 = vadd.f32 0.0, %v1202
        %1204 = vmatprep.mubr.f32.mxu0 %v363
        %1205 = vmatmul.mubr.f32.gmra.mrb[0].mxu0 %v362
        %v1206 = vpop.f32.mrb[0].mxu0
        %v1207 = vadd.f32 0.0, %v1206
        %v1208 = vpop.f32.mrb[0].mxu0
        %v1209 = vadd.f32 0.0, %v1208
        %1210 = vmatprep.mubr.f32.mxu0 %v367
        %1211 = vmatmul.mubr.f32.gmra.mrb[0].mxu0 %v366
        %v1212 = vpop.f32.mrb[0].mxu0
        %v1213 = vadd.f32 0.0, %v1212
        %v1214 = vpop.f32.mrb[0].mxu0
        %v1215 = vadd.f32 0.0, %v1214
        %1216 = vmatprep.mubr.f32.mxu0 %v371
        %1217 = vmatmul.mubr.f32.gmra.mrb[0].mxu0 %v370
        %v1218 = vpop.f32.mrb[0].mxu0
        %v1219 = vadd.f32 0.0, %v1218
        %v1220 = vpop.f32.mrb[0].mxu0
        %v1221 = vadd.f32 0.0, %v1220
        %1222 = vmatprep.mubr.f32.mxu0 %v375
        %1223 = vmatmul.mubr.f32.gmra.mrb[0].mxu0 %v374
        %v1224 = vpop.f32.mrb[0].mxu0
        %v1225 = vadd.f32 0.0, %v1224
        %v1226 = vpop.f32.mrb[0].mxu0
        %v1227 = vadd.f32 0.0, %v1226
        %1228 = vmatprep.mubr.f32.mxu0 %v379
        %1229 = vmatmul.mubr.f32.gmra.mrb[0].mxu0 %v378
        %v1230 = vpop.f32.mrb[0].mxu0
        %v1231 = vadd.f32 0.0, %v1230
        %v1232 = vpop.f32.mrb[0].mxu0
        %v1233 = vadd.f32 0.0, %v1232
        %1234 = vmatprep.mubr.f32.mxu0 %v383
        %1235 = vmatmul.mubr.f32.gmra.mrb[0].mxu0 %v382
        %v1236 = vpop.f32.mrb[0].mxu0
        %v1237 = vadd.f32 0.0, %v1236
        %v1238 = vpop.f32.mrb[0].mxu0
        %v1239 = vadd.f32 0.0, %v1238
        %1240 = vmatprep.mubr.f32.mxu0 %v387
        %1241 = vmatmul.mubr.f32.gmra.mrb[0].mxu0 %v386
        %v1242 = vpop.f32.mrb[0].mxu0
        %v1243 = vadd.f32 0.0, %v1242
        %v1244 = vpop.f32.mrb[0].mxu0
        %v1245 = vadd.f32 0.0, %v1244
        %1246 = vmatprep.mubr.f32.mxu0 %v391
        %1247 = vmatmul.mubr.f32.gmra.mrb[0].mxu0 %v390
        %v1248 = vpop.f32.mrb[0].mxu0
        %v1249 = vadd.f32 0.0, %v1248
        %v1250 = vpop.f32.mrb[0].mxu0
        %v1251 = vadd.f32 0.0, %v1250
        %1252 = vmatprep.mubr.f32.mxu0 %v395
        %1253 = vmatmul.mubr.f32.gmra.mrb[0].mxu0 %v394
        %v1254 = vpop.f32.mrb[0].mxu0
        %v1255 = vadd.f32 0.0, %v1254
        %v1256 = vpop.f32.mrb[0].mxu0
        %v1257 = vadd.f32 0.0, %v1256
        %1258 = vmatprep.mubr.f32.mxu0 %v399
        %1259 = vmatmul.mubr.f32.gmra.mrb[0].mxu0 %v398
        %v1260 = vpop.f32.mrb[0].mxu0
        %v1261 = vadd.f32 0.0, %v1260
        %v1262 = vpop.f32.mrb[0].mxu0
        %v1263 = vadd.f32 0.0, %v1262
        %1264 = vmatprep.mubr.f32.mxu0 %v403
        %1265 = vmatmul.mubr.f32.gmra.mrb[0].mxu0 %v402
        %v1266 = vpop.f32.mrb[0].mxu0
        %v1267 = vadd.f32 0.0, %v1266
        %v1268 = vpop.f32.mrb[0].mxu0
        %v1269 = vadd.f32 0.0, %v1268
        %1270 = vmatprep.mubr.f32.mxu0 %v407
        %1271 = vmatmul.mubr.f32.gmra.mrb[0].mxu0 %v406
        %v1272 = vpop.f32.mrb[0].mxu0
        %v1273 = vadd.f32 0.0, %v1272
        %v1274 = vpop.f32.mrb[0].mxu0
        %v1275 = vadd.f32 0.0, %v1274
        %1276 = vmatprep.mubr.f32.mxu0 %v411
        %1277 = vmatmul.mubr.f32.gmra.mrb[0].mxu0 %v410
        %v1278 = vpop.f32.mrb[0].mxu0
        %v1279 = vadd.f32 0.0, %v1278
        %v1280 = vpop.f32.mrb[0].mxu0
        %v1281 = vadd.f32 0.0, %v1280
        %1282 = vmatprep.mubr.f32.mxu0 %v415
        %1283 = vmatmul.mubr.f32.gmra.mrb[0].mxu0 %v414
        %v1284 = vpop.f32.mrb[0].mxu0
        %v1285 = vadd.f32 0.0, %v1284
        %v1286 = vpop.f32.mrb[0].mxu0
        %v1287 = vadd.f32 0.0, %v1286
        %1288 = vmatprep.mubr.f32.mxu0 %v419
        %1289 = vmatmul.mubr.f32.gmra.mrb[0].mxu0 %v418
        %v1290 = vpop.f32.mrb[0].mxu0
        %v1291 = vadd.f32 0.0, %v1290
        %v1292 = vpop.f32.mrb[0].mxu0
        %v1293 = vadd.f32 0.0, %v1292
        %1294 = vmatprep.mubr.f32.mxu0 %v423
        %1295 = vmatmul.mubr.f32.gmra.mrb[0].mxu0 %v422
        %v1296 = vpop.f32.mrb[0].mxu0
        %v1297 = vadd.f32 0.0, %v1296
        %v1298 = vpop.f32.mrb[0].mxu0
        %v1299 = vadd.f32 0.0, %v1298
        %1300 = vmatprep.mubr.f32.mxu0 %v427
        %1301 = vmatmul.mubr.f32.gmra.mrb[0].mxu0 %v426
        %v1302 = vpop.f32.mrb[0].mxu0
        %v1303 = vadd.f32 0.0, %v1302
        %v1304 = vpop.f32.mrb[0].mxu0
        %v1305 = vadd.f32 0.0, %v1304
        %1306 = vmatprep.mubr.f32.mxu0 %v431
        %1307 = vmatmul.mubr.f32.gmra.mrb[0].mxu0 %v430
        %v1308 = vpop.f32.mrb[0].mxu0
        %v1309 = vadd.f32 0.0, %v1308
        %v1310 = vpop.f32.mrb[0].mxu0
        %v1311 = vadd.f32 0.0, %v1310
        %1312 = vmatprep.mubr.f32.mxu0 %v435
        %1313 = vmatmul.mubr.f32.gmra.mrb[0].mxu0 %v434
        %v1314 = vpop.f32.mrb[0].mxu0
        %v1315 = vadd.f32 0.0, %v1314
        %v1316 = vpop.f32.mrb[0].mxu0
        %v1317 = vadd.f32 0.0, %v1316
        %1318 = vmatprep.mubr.f32.mxu0 %v439
        %1319 = vmatmul.mubr.f32.gmra.mrb[0].mxu0 %v438
        %v1320 = vpop.f32.mrb[0].mxu0
        %v1321 = vadd.f32 0.0, %v1320
        %v1322 = vpop.f32.mrb[0].mxu0
        %v1323 = vadd.f32 0.0, %v1322
        %1324 = vmatprep.mubr.f32.mxu0 %v443
        %1325 = vmatmul.mubr.f32.gmra.mrb[0].mxu0 %v442
        %v1326 = vpop.f32.mrb[0].mxu0
        %v1327 = vadd.f32 0.0, %v1326
        %v1328 = vpop.f32.mrb[0].mxu0
        %v1329 = vadd.f32 0.0, %v1328
        %1330 = vmatprep.mubr.f32.mxu0 %v447
        %1331 = vmatmul.mubr.f32.gmra.mrb[0].mxu0 %v446
        %v1332 = vpop.f32.mrb[0].mxu0
        %v1333 = vadd.f32 0.0, %v1332
        %v1334 = vpop.f32.mrb[0].mxu0
        %v1335 = vadd.f32 0.0, %v1334
        %1336 = vmatprep.mubr.f32.mxu0 %v451
        %1337 = vmatmul.mubr.f32.gmra.mrb[0].mxu0 %v450
        %v1338 = vpop.f32.mrb[0].mxu0
        %v1339 = vadd.f32 0.0, %v1338
        %v1340 = vpop.f32.mrb[0].mxu0
        %v1341 = vadd.f32 0.0, %v1340
        %1342 = vmatprep.mubr.f32.mxu0 %v455
        %1343 = vmatmul.mubr.f32.gmra.mrb[0].mxu0 %v454
        %v1344 = vpop.f32.mrb[0].mxu0
        %v1345 = vadd.f32 0.0, %v1344
        %v1346 = vpop.f32.mrb[0].mxu0
        %v1347 = vadd.f32 0.0, %v1346
        %1348 = vmatprep.mubr.f32.mxu0 %v459
        %1349 = vmatmul.mubr.f32.gmra.mrb[0].mxu0 %v458
        %v1350 = vpop.f32.mrb[0].mxu0
        %v1351 = vadd.f32 0.0, %v1350
        %v1352 = vpop.f32.mrb[0].mxu0
        %v1353 = vadd.f32 0.0, %v1352
        %1354 = vmatprep.mubr.f32.mxu0 %v463
        %1355 = vmatmul.mubr.f32.gmra.mrb[0].mxu0 %v462
        %v1356 = vpop.f32.mrb[0].mxu0
        %v1357 = vadd.f32 0.0, %v1356
        %v1358 = vpop.f32.mrb[0].mxu0
        %v1359 = vadd.f32 0.0, %v1358
        %1360 = vmatprep.mubr.f32.mxu0 %v467
        %1361 = vmatmul.mubr.f32.gmra.mrb[0].mxu0 %v466
        %v1362 = vpop.f32.mrb[0].mxu0
        %v1363 = vadd.f32 0.0, %v1362
        %v1364 = vpop.f32.mrb[0].mxu0
        %v1365 = vadd.f32 0.0, %v1364
        %1366 = vmatprep.mubr.f32.mxu0 %v471
        %1367 = vmatmul.mubr.f32.gmra.mrb[0].mxu0 %v470
        %v1368 = vpop.f32.mrb[0].mxu0
        %v1369 = vadd.f32 0.0, %v1368
        %v1370 = vpop.f32.mrb[0].mxu0
        %v1371 = vadd.f32 0.0, %v1370
        %1372 = vmatprep.mubr.f32.mxu0 %v475
        %1373 = vmatmul.mubr.f32.gmra.mrb[0].mxu0 %v474
        %v1374 = vpop.f32.mrb[0].mxu0
        %v1375 = vadd.f32 0.0, %v1374
        %v1376 = vpop.f32.mrb[0].mxu0
        %v1377 = vadd.f32 0.0, %v1376
        %1378 = vmatprep.mubr.f32.mxu0 %v479
        %1379 = vmatmul.mubr.f32.gmra.mrb[0].mxu0 %v478
        %v1380 = vpop.f32.mrb[0].mxu0
        %v1381 = vadd.f32 0.0, %v1380
        %v1382 = vpop.f32.mrb[0].mxu0
        %v1383 = vadd.f32 0.0, %v1382
        %1384 = vmatprep.mubr.f32.mxu0 %v483
        %1385 = vmatmul.mubr.f32.gmra.mrb[0].mxu0 %v482
        %v1386 = vpop.f32.mrb[0].mxu0
        %v1387 = vadd.f32 0.0, %v1386
        %v1388 = vpop.f32.mrb[0].mxu0
        %v1389 = vadd.f32 0.0, %v1388
        %1390 = vmatprep.mubr.f32.mxu0 %v487
        %1391 = vmatmul.mubr.f32.gmra.mrb[0].mxu0 %v486
        %v1392 = vpop.f32.mrb[0].mxu0
        %v1393 = vadd.f32 0.0, %v1392
        %v1394 = vpop.f32.mrb[0].mxu0
        %v1395 = vadd.f32 0.0, %v1394
        %1396 = vmatprep.mubr.f32.mxu0 %v491
        %1397 = vmatmul.mubr.f32.gmra.mrb[0].mxu0 %v490
        %v1398 = vpop.f32.mrb[0].mxu0
        %v1399 = vadd.f32 0.0, %v1398
        %v1400 = vpop.f32.mrb[0].mxu0
        %v1401 = vadd.f32 0.0, %v1400
        %1402 = vmatprep.mubr.f32.mxu0 %v495
        %1403 = vmatmul.mubr.f32.gmra.mrb[0].mxu0 %v494
        %v1404 = vpop.f32.mrb[0].mxu0
        %v1405 = vadd.f32 0.0, %v1404
        %v1406 = vpop.f32.mrb[0].mxu0
        %v1407 = vadd.f32 0.0, %v1406
        %1408 = vmatprep.mubr.f32.mxu0 %v499
        %1409 = vmatmul.mubr.f32.gmra.mrb[0].mxu0 %v498
        %v1410 = vpop.f32.mrb[0].mxu0
        %v1411 = vadd.f32 0.0, %v1410
        %v1412 = vpop.f32.mrb[0].mxu0
        %v1413 = vadd.f32 0.0, %v1412
        %1414 = vmatprep.mubr.f32.mxu0 %v503
        %1415 = vmatmul.mubr.f32.gmra.mrb[0].mxu0 %v502
        %v1416 = vpop.f32.mrb[0].mxu0
        %v1417 = vadd.f32 0.0, %v1416
        %v1418 = vpop.f32.mrb[0].mxu0
        %v1419 = vadd.f32 0.0, %v1418
        %1420 = vmatprep.mubr.f32.mxu0 %v507
        %1421 = vmatmul.mubr.f32.gmra.mrb[0].mxu0 %v506
        %v1422 = vpop.f32.mrb[0].mxu0
        %v1423 = vadd.f32 0.0, %v1422
        %v1424 = vpop.f32.mrb[0].mxu0
        %v1425 = vadd.f32 0.0, %v1424
        %1426 = vmatprep.mubr.f32.mxu0 %v511
        %1427 = vmatmul.mubr.f32.gmra.mrb[0].mxu0 %v510
        %v1428 = vpop.f32.mrb[0].mxu0
        %v1429 = vadd.f32 0.0, %v1428
        %v1430 = vpop.f32.mrb[0].mxu0
        %v1431 = vadd.f32 0.0, %v1430
        %1432 = vmatprep.mubr.f32.mxu0 %v515
        %1433 = vmatmul.mubr.f32.gmra.mrb[0].mxu0 %v514
        %v1434 = vpop.f32.mrb[0].mxu0
        %v1435 = vadd.f32 0.0, %v1434
        %v1436 = vpop.f32.mrb[0].mxu0
        %v1437 = vadd.f32 0.0, %v1436
        %1438 = vmatprep.mubr.f32.mxu0 %v519
        %1439 = vmatmul.mubr.f32.gmra.mrb[0].mxu0 %v518
        %v1440 = vpop.f32.mrb[0].mxu0
        %v1441 = vadd.f32 0.0, %v1440
        %v1442 = vpop.f32.mrb[0].mxu0
        %v1443 = vadd.f32 0.0, %v1442
        %1444 = vmatprep.mubr.f32.mxu0 %v523
        %1445 = vmatmul.mubr.f32.gmra.mrb[0].mxu0 %v522
        %v1446 = vpop.f32.mrb[0].mxu0
        %v1447 = vadd.f32 0.0, %v1446
        %v1448 = vpop.f32.mrb[0].mxu0
        %v1449 = vadd.f32 0.0, %v1448
        %1450 = vmatprep.mubr.f32.mxu0 %v527
        %1451 = vmatmul.mubr.f32.gmra.mrb[0].mxu0 %v526
        %v1452 = vpop.f32.mrb[0].mxu0
        %v1453 = vadd.f32 0.0, %v1452
        %v1454 = vpop.f32.mrb[0].mxu0
        %v1455 = vadd.f32 0.0, %v1454
        %1456 = vmatprep.mubr.f32.mxu0 %v531
        %1457 = vmatmul.mubr.f32.gmra.mrb[0].mxu0 %v530
        %v1458 = vpop.f32.mrb[0].mxu0
        %v1459 = vadd.f32 0.0, %v1458
        %v1460 = vpop.f32.mrb[0].mxu0
        %v1461 = vadd.f32 0.0, %v1460
        %1462 = vmatprep.mubr.f32.mxu0 %v535
        %1463 = vmatmul.mubr.f32.gmra.mrb[0].mxu0 %v534
        %v1464 = vpop.f32.mrb[0].mxu0
        %v1465 = vadd.f32 0.0, %v1464
        %v1466 = vpop.f32.mrb[0].mxu0
        %v1467 = vadd.f32 0.0, %v1466
        %1468 = vmatprep.mubr.f32.mxu0 %v539
        %1469 = vmatmul.mubr.f32.gmra.mrb[0].mxu0 %v538
        %v1470 = vpop.f32.mrb[0].mxu0
        %v1471 = vadd.f32 0.0, %v1470
        %v1472 = vpop.f32.mrb[0].mxu0
        %v1473 = vadd.f32 0.0, %v1472
        %1474 = vmatprep.mubr.f32.mxu0 %v543
        %1475 = vmatmul.mubr.f32.gmra.mrb[0].mxu0 %v542
        %v1476 = vpop.f32.mrb[0].mxu0
        %v1477 = vadd.f32 0.0, %v1476
        %v1478 = vpop.f32.mrb[0].mxu0
        %v1479 = vadd.f32 0.0, %v1478
        %1480 = vmatprep.mubr.f32.mxu0 %v547
        %1481 = vmatmul.mubr.f32.gmra.mrb[0].mxu0 %v546
        %v1482 = vpop.f32.mrb[0].mxu0
        %v1483 = vadd.f32 0.0, %v1482
        %v1484 = vpop.f32.mrb[0].mxu0
        %v1485 = vadd.f32 0.0, %v1484
        %1486 = vmatprep.mubr.f32.mxu0 %v551
        %1487 = vmatmul.mubr.f32.gmra.mrb[0].mxu0 %v550
        %v1488 = vpop.f32.mrb[0].mxu0
        %v1489 = vadd.f32 0.0, %v1488
        %v1490 = vpop.f32.mrb[0].mxu0
        %v1491 = vadd.f32 0.0, %v1490
        %1492 = vmatprep.mubr.f32.mxu0 %v555
        %1493 = vmatmul.mubr.f32.gmra.mrb[0].mxu0 %v554
        %v1494 = vpop.f32.mrb[0].mxu0
        %v1495 = vadd.f32 0.0, %v1494
        %v1496 = vpop.f32.mrb[0].mxu0
        %v1497 = vadd.f32 0.0, %v1496
        %1498 = vmatprep.mubr.f32.mxu0 %v559
        %1499 = vmatmul.mubr.f32.gmra.mrb[0].mxu0 %v558
        %v1500 = vpop.f32.mrb[0].mxu0
        %v1501 = vadd.f32 0.0, %v1500
        %v1502 = vpop.f32.mrb[0].mxu0
        %v1503 = vadd.f32 0.0, %v1502
        %1504 = vmatprep.mubr.f32.mxu0 %v563
        %1505 = vmatmul.mubr.f32.gmra.mrb[0].mxu0 %v562
        %v1506 = vpop.f32.mrb[0].mxu0
        %v1507 = vadd.f32 0.0, %v1506
        %v1508 = vpop.f32.mrb[0].mxu0
        %v1509 = vadd.f32 0.0, %v1508
        %1510 = vmatprep.mubr.f32.mxu0 %v567
        %1511 = vmatmul.mubr.f32.gmra.mrb[0].mxu0 %v566
        %v1512 = vpop.f32.mrb[0].mxu0
        %v1513 = vadd.f32 0.0, %v1512
        %v1514 = vpop.f32.mrb[0].mxu0
        %v1515 = vadd.f32 0.0, %v1514
        %1516 = vmatprep.mubr.f32.mxu0 %v571
        %1517 = vmatmul.mubr.f32.gmra.mrb[0].mxu0 %v570
        %v1518 = vpop.f32.mrb[0].mxu0
        %v1519 = vadd.f32 0.0, %v1518
        %v1520 = vpop.f32.mrb[0].mxu0
        %v1521 = vadd.f32 0.0, %v1520
        %1522 = vmatprep.mubr.f32.mxu0 %v575
        %1523 = vmatmul.mubr.f32.gmra.mrb[0].mxu0 %v574
        %v1524 = vpop.f32.mrb[0].mxu0
        %v1525 = vadd.f32 0.0, %v1524
        %v1526 = vpop.f32.mrb[0].mxu0
        %v1527 = vadd.f32 0.0, %v1526
        %1528 = vmatprep.mubr.f32.mxu0 %v579
        %1529 = vmatmul.mubr.f32.gmra.mrb[0].mxu0 %v578
        %v1530 = vpop.f32.mrb[0].mxu0
        %v1531 = vadd.f32 0.0, %v1530
        %v1532 = vpop.f32.mrb[0].mxu0
        %v1533 = vadd.f32 0.0, %v1532
        %1534 = vmatprep.mubr.f32.mxu0 %v583
        %1535 = vmatmul.mubr.f32.gmra.mrb[0].mxu0 %v582
        %v1536 = vpop.f32.mrb[0].mxu0
        %v1537 = vadd.f32 0.0, %v1536
        %v1538 = vpop.f32.mrb[0].mxu0
        %v1539 = vadd.f32 0.0, %v1538
        %1540 = vmatprep.mubr.f32.mxu0 %v587
        %1541 = vmatmul.mubr.f32.gmra.mrb[0].mxu0 %v586
        %v1542 = vpop.f32.mrb[0].mxu0
        %v1543 = vadd.f32 0.0, %v1542
        %v1544 = vpop.f32.mrb[0].mxu0
        %v1545 = vadd.f32 0.0, %v1544
        %1546 = vmatprep.mubr.f32.mxu0 %v591
        %1547 = vmatmul.mubr.f32.gmra.mrb[0].mxu0 %v590
        %v1548 = vpop.f32.mrb[0].mxu0
        %v1549 = vadd.f32 0.0, %v1548
        %v1550 = vpop.f32.mrb[0].mxu0
        %v1551 = vadd.f32 0.0, %v1550
        %1552 = vmatprep.mubr.f32.mxu0 %v595
        %1553 = vmatmul.mubr.f32.gmra.mrb[0].mxu0 %v594
        %v1554 = vpop.f32.mrb[0].mxu0
        %v1555 = vadd.f32 0.0, %v1554
        %v1556 = vpop.f32.mrb[0].mxu0
        %v1557 = vadd.f32 0.0, %v1556
        %1558 = vdwg.mxu0
        %1559 = vmatprep.subr.mxu0 %v855
        %1560 = vmatpush1.msra.mxu0 %v854
        %1561 = vmatprep.subr.mxu0 %v863
        %1562 = vmatpush1.msra.mxu0 %v862
        %1563 = vmatprep.subr.mxu0 %v871
        %1564 = vmatpush1.msra.mxu0 %v870
        %1565 = vmatprep.subr.mxu0 %v879
        %1566 = vmatpush1.msra.mxu0 %v878
        %1567 = vmatprep.subr.mxu0 %v887
        %1568 = vmatpush1.msra.mxu0 %v886
        %1569 = vmatprep.subr.mxu0 %v895
        %1570 = vmatpush1.msra.mxu0 %v894
        %1571 = vmatprep.subr.mxu0 %v903
        %1572 = vmatpush1.msra.mxu0 %v902
        %1573 = vmatprep.subr.mxu0 %v911
        %1574 = vmatpush1.msra.mxu0 %v910
        %1575 = vmatprep.subr.mxu0 %v919
        %1576 = vmatpush1.msra.mxu0 %v918
        %1577 = vmatprep.subr.mxu0 %v927
        %1578 = vmatpush1.msra.mxu0 %v926
        %1579 = vmatprep.subr.mxu0 %v935
        %1580 = vmatpush1.msra.mxu0 %v934
        %1581 = vmatprep.subr.mxu0 %v943
        %1582 = vmatpush1.msra.mxu0 %v942
        %1583 = vmatprep.subr.mxu0 %v951
        %1584 = vmatpush1.msra.mxu0 %v950
        %1585 = vmatprep.subr.mxu0 %v959
        %1586 = vmatpush1.msra.mxu0 %v958
        %1587 = vmatprep.subr.mxu0 %v967
        %1588 = vmatpush1.msra.mxu0 %v966
        %1589 = vmatprep.subr.mxu0 %v975
        %1590 = vmatpush1.msra.mxu0 %v974
        %1591 = vmatprep.subr.mxu0 %v983
        %1592 = vmatpush1.msra.mxu0 %v982
        %1593 = vmatprep.subr.mxu0 %v991
        %1594 = vmatpush1.msra.mxu0 %v990
        %1595 = vmatprep.subr.mxu0 %v999
        %1596 = vmatpush1.msra.mxu0 %v998
        %1597 = vmatprep.subr.mxu0 %v1007
        %1598 = vmatpush1.msra.mxu0 %v1006
        %1599 = vmatprep.subr.mxu0 %v1015
        %1600 = vmatpush1.msra.mxu0 %v1014
        %1601 = vmatprep.subr.mxu0 %v1023
        %1602 = vmatpush1.msra.mxu0 %v1022
        %1603 = vmatprep.subr.mxu0 %v1031
        %1604 = vmatpush1.msra.mxu0 %v1030
        %1605 = vmatprep.subr.mxu0 %v1039
        %1606 = vmatpush1.msra.mxu0 %v1038
        %1607 = vmatprep.subr.mxu0 %v1047
        %1608 = vmatpush1.msra.mxu0 %v1046
        %1609 = vmatprep.subr.mxu0 %v1055
        %1610 = vmatpush1.msra.mxu0 %v1054
        %1611 = vmatprep.subr.mxu0 %v1063
        %1612 = vmatpush1.msra.mxu0 %v1062
        %1613 = vmatprep.subr.mxu0 %v1071
        %1614 = vmatpush1.msra.mxu0 %v1070
        %1615 = vmatprep.subr.mxu0 %v1079
        %1616 = vmatpush1.msra.mxu0 %v1078
        %1617 = vmatprep.subr.mxu0 %v1087
        %1618 = vmatpush1.msra.mxu0 %v1086
        %1619 = vmatprep.subr.mxu0 %v1095
        %1620 = vmatpush1.msra.mxu0 %v1094
        %1621 = vmatprep.subr.mxu0 %v1103
        %1622 = vmatpush1.msra.mxu0 %v1102
        %1623 = vmatprep.mubr.f32.mxu0 %v345
        %1624 = vmatmul.mubr.f32.gmra.mrb[0].mxu0 %v344
        %v1625 = vpop.f32.mrb[0].mxu0
        %v1626 = vadd.f32 %v1177, %v1625
        %v1627 = vpop.f32.mrb[0].mxu0
        %v1628 = vadd.f32 %v1179, %v1627
        %1629 = vmatprep.mubr.f32.mxu0 %v349
        %1630 = vmatmul.mubr.f32.gmra.mrb[0].mxu0 %v348
        %v1631 = vpop.f32.mrb[0].mxu0
        %v1632 = vadd.f32 %v1183, %v1631
        %v1633 = vpop.f32.mrb[0].mxu0
        %v1634 = vadd.f32 %v1185, %v1633
        %1635 = vmatprep.mubr.f32.mxu0 %v353
        %1636 = vmatmul.mubr.f32.gmra.mrb[0].mxu0 %v352
        %v1637 = vpop.f32.mrb[0].mxu0
        %v1638 = vadd.f32 %v1189, %v1637
        %v1639 = vpop.f32.mrb[0].mxu0
        %v1640 = vadd.f32 %v1191, %v1639
        %1641 = vmatprep.mubr.f32.mxu0 %v357
        %1642 = vmatmul.mubr.f32.gmra.mrb[0].mxu0 %v356
        %v1643 = vpop.f32.mrb[0].mxu0
        %v1644 = vadd.f32 %v1195, %v1643
        %v1645 = vpop.f32.mrb[0].mxu0
        %v1646 = vadd.f32 %v1197, %v1645
        %1647 = vmatprep.mubr.f32.mxu0 %v361
        %1648 = vmatmul.mubr.f32.gmra.mrb[0].mxu0 %v360
        %v1649 = vpop.f32.mrb[0].mxu0
        %v1650 = vadd.f32 %v1201, %v1649
        %v1651 = vpop.f32.mrb[0].mxu0
        %v1652 = vadd.f32 %v1203, %v1651
        %1653 = vmatprep.mubr.f32.mxu0 %v365
        %1654 = vmatmul.mubr.f32.gmra.mrb[0].mxu0 %v364
        %v1655 = vpop.f32.mrb[0].mxu0
        %v1656 = vadd.f32 %v1207, %v1655
        %v1657 = vpop.f32.mrb[0].mxu0
        %v1658 = vadd.f32 %v1209, %v1657
        %1659 = vmatprep.mubr.f32.mxu0 %v369
        %1660 = vmatmul.mubr.f32.gmra.mrb[0].mxu0 %v368
        %v1661 = vpop.f32.mrb[0].mxu0
        %v1662 = vadd.f32 %v1213, %v1661
        %v1663 = vpop.f32.mrb[0].mxu0
        %v1664 = vadd.f32 %v1215, %v1663
        %1665 = vmatprep.mubr.f32.mxu0 %v373
        %1666 = vmatmul.mubr.f32.gmra.mrb[0].mxu0 %v372
        %v1667 = vpop.f32.mrb[0].mxu0
        %v1668 = vadd.f32 %v1219, %v1667
        %v1669 = vpop.f32.mrb[0].mxu0
        %v1670 = vadd.f32 %v1221, %v1669
        %1671 = vmatprep.mubr.f32.mxu0 %v377
        %1672 = vmatmul.mubr.f32.gmra.mrb[0].mxu0 %v376
        %v1673 = vpop.f32.mrb[0].mxu0
        %v1674 = vadd.f32 %v1225, %v1673
        %v1675 = vpop.f32.mrb[0].mxu0
        %v1676 = vadd.f32 %v1227, %v1675
        %1677 = vmatprep.mubr.f32.mxu0 %v381
        %1678 = vmatmul.mubr.f32.gmra.mrb[0].mxu0 %v380
        %v1679 = vpop.f32.mrb[0].mxu0
        %v1680 = vadd.f32 %v1231, %v1679
        %v1681 = vpop.f32.mrb[0].mxu0
        %v1682 = vadd.f32 %v1233, %v1681
        %1683 = vmatprep.mubr.f32.mxu0 %v385
        %1684 = vmatmul.mubr.f32.gmra.mrb[0].mxu0 %v384
        %v1685 = vpop.f32.mrb[0].mxu0
        %v1686 = vadd.f32 %v1237, %v1685
        %v1687 = vpop.f32.mrb[0].mxu0
        %v1688 = vadd.f32 %v1239, %v1687
        %1689 = vmatprep.mubr.f32.mxu0 %v389
        %1690 = vmatmul.mubr.f32.gmra.mrb[0].mxu0 %v388
        %v1691 = vpop.f32.mrb[0].mxu0
        %v1692 = vadd.f32 %v1243, %v1691
        %v1693 = vpop.f32.mrb[0].mxu0
        %v1694 = vadd.f32 %v1245, %v1693
        %1695 = vmatprep.mubr.f32.mxu0 %v393
        %1696 = vmatmul.mubr.f32.gmra.mrb[0].mxu0 %v392
        %v1697 = vpop.f32.mrb[0].mxu0
        %v1698 = vadd.f32 %v1249, %v1697
        %v1699 = vpop.f32.mrb[0].mxu0
        %v1700 = vadd.f32 %v1251, %v1699
        %1701 = vmatprep.mubr.f32.mxu0 %v397
        %1702 = vmatmul.mubr.f32.gmra.mrb[0].mxu0 %v396
        %v1703 = vpop.f32.mrb[0].mxu0
        %v1704 = vadd.f32 %v1255, %v1703
        %v1705 = vpop.f32.mrb[0].mxu0
        %v1706 = vadd.f32 %v1257, %v1705
        %1707 = vmatprep.mubr.f32.mxu0 %v401
        %1708 = vmatmul.mubr.f32.gmra.mrb[0].mxu0 %v400
        %v1709 = vpop.f32.mrb[0].mxu0
        %v1710 = vadd.f32 %v1261, %v1709
        %v1711 = vpop.f32.mrb[0].mxu0
        %v1712 = vadd.f32 %v1263, %v1711
        %1713 = vmatprep.mubr.f32.mxu0 %v405
        %1714 = vmatmul.mubr.f32.gmra.mrb[0].mxu0 %v404
        %v1715 = vpop.f32.mrb[0].mxu0
        %v1716 = vadd.f32 %v1267, %v1715
        %v1717 = vpop.f32.mrb[0].mxu0
        %v1718 = vadd.f32 %v1269, %v1717
        %1719 = vmatprep.mubr.f32.mxu0 %v409
        %1720 = vmatmul.mubr.f32.gmra.mrb[0].mxu0 %v408
        %v1721 = vpop.f32.mrb[0].mxu0
        %v1722 = vadd.f32 %v1273, %v1721
        %v1723 = vpop.f32.mrb[0].mxu0
        %v1724 = vadd.f32 %v1275, %v1723
        %1725 = vmatprep.mubr.f32.mxu0 %v413
        %1726 = vmatmul.mubr.f32.gmra.mrb[0].mxu0 %v412
        %v1727 = vpop.f32.mrb[0].mxu0
        %v1728 = vadd.f32 %v1279, %v1727
        %v1729 = vpop.f32.mrb[0].mxu0
        %v1730 = vadd.f32 %v1281, %v1729
        %1731 = vmatprep.mubr.f32.mxu0 %v417
        %1732 = vmatmul.mubr.f32.gmra.mrb[0].mxu0 %v416
        %v1733 = vpop.f32.mrb[0].mxu0
        %v1734 = vadd.f32 %v1285, %v1733
        %v1735 = vpop.f32.mrb[0].mxu0
        %v1736 = vadd.f32 %v1287, %v1735
        %1737 = vmatprep.mubr.f32.mxu0 %v421
        %1738 = vmatmul.mubr.f32.gmra.mrb[0].mxu0 %v420
        %v1739 = vpop.f32.mrb[0].mxu0
        %v1740 = vadd.f32 %v1291, %v1739
        %v1741 = vpop.f32.mrb[0].mxu0
        %v1742 = vadd.f32 %v1293, %v1741
        %1743 = vmatprep.mubr.f32.mxu0 %v425
        %1744 = vmatmul.mubr.f32.gmra.mrb[0].mxu0 %v424
        %v1745 = vpop.f32.mrb[0].mxu0
        %v1746 = vadd.f32 %v1297, %v1745
        %v1747 = vpop.f32.mrb[0].mxu0
        %v1748 = vadd.f32 %v1299, %v1747
        %1749 = vmatprep.mubr.f32.mxu0 %v429
        %1750 = vmatmul.mubr.f32.gmra.mrb[0].mxu0 %v428
        %v1751 = vpop.f32.mrb[0].mxu0
        %v1752 = vadd.f32 %v1303, %v1751
        %v1753 = vpop.f32.mrb[0].mxu0
        %v1754 = vadd.f32 %v1305, %v1753
        %1755 = vmatprep.mubr.f32.mxu0 %v433
        %1756 = vmatmul.mubr.f32.gmra.mrb[0].mxu0 %v432
        %v1757 = vpop.f32.mrb[0].mxu0
        %v1758 = vadd.f32 %v1309, %v1757
        %v1759 = vpop.f32.mrb[0].mxu0
        %v1760 = vadd.f32 %v1311, %v1759
        %1761 = vmatprep.mubr.f32.mxu0 %v437
        %1762 = vmatmul.mubr.f32.gmra.mrb[0].mxu0 %v436
        %v1763 = vpop.f32.mrb[0].mxu0
        %v1764 = vadd.f32 %v1315, %v1763
        %v1765 = vpop.f32.mrb[0].mxu0
        %v1766 = vadd.f32 %v1317, %v1765
        %1767 = vmatprep.mubr.f32.mxu0 %v441
        %1768 = vmatmul.mubr.f32.gmra.mrb[0].mxu0 %v440
        %v1769 = vpop.f32.mrb[0].mxu0
        %v1770 = vadd.f32 %v1321, %v1769
        %v1771 = vpop.f32.mrb[0].mxu0
        %v1772 = vadd.f32 %v1323, %v1771
        %1773 = vmatprep.mubr.f32.mxu0 %v445
        %1774 = vmatmul.mubr.f32.gmra.mrb[0].mxu0 %v444
        %v1775 = vpop.f32.mrb[0].mxu0
        %v1776 = vadd.f32 %v1327, %v1775
        %v1777 = vpop.f32.mrb[0].mxu0
        %v1778 = vadd.f32 %v1329, %v1777
        %1779 = vmatprep.mubr.f32.mxu0 %v449
        %1780 = vmatmul.mubr.f32.gmra.mrb[0].mxu0 %v448
        %v1781 = vpop.f32.mrb[0].mxu0
        %v1782 = vadd.f32 %v1333, %v1781
        %v1783 = vpop.f32.mrb[0].mxu0
        %v1784 = vadd.f32 %v1335, %v1783
        %1785 = vmatprep.mubr.f32.mxu0 %v453
        %1786 = vmatmul.mubr.f32.gmra.mrb[0].mxu0 %v452
        %v1787 = vpop.f32.mrb[0].mxu0
        %v1788 = vadd.f32 %v1339, %v1787
        %v1789 = vpop.f32.mrb[0].mxu0
        %v1790 = vadd.f32 %v1341, %v1789
        %1791 = vmatprep.mubr.f32.mxu0 %v457
        %1792 = vmatmul.mubr.f32.gmra.mrb[0].mxu0 %v456
        %v1793 = vpop.f32.mrb[0].mxu0
        %v1794 = vadd.f32 %v1345, %v1793
        %v1795 = vpop.f32.mrb[0].mxu0
        %v1796 = vadd.f32 %v1347, %v1795
        %1797 = vmatprep.mubr.f32.mxu0 %v461
        %1798 = vmatmul.mubr.f32.gmra.mrb[0].mxu0 %v460
        %v1799 = vpop.f32.mrb[0].mxu0
        %v1800 = vadd.f32 %v1351, %v1799
        %v1801 = vpop.f32.mrb[0].mxu0
        %v1802 = vadd.f32 %v1353, %v1801
        %1803 = vmatprep.mubr.f32.mxu0 %v465
        %1804 = vmatmul.mubr.f32.gmra.mrb[0].mxu0 %v464
        %v1805 = vpop.f32.mrb[0].mxu0
        %v1806 = vadd.f32 %v1357, %v1805
        %v1807 = vpop.f32.mrb[0].mxu0
        %v1808 = vadd.f32 %v1359, %v1807
        %1809 = vmatprep.mubr.f32.mxu0 %v469
        %1810 = vmatmul.mubr.f32.gmra.mrb[0].mxu0 %v468
        %v1811 = vpop.f32.mrb[0].mxu0
        %v1812 = vadd.f32 %v1363, %v1811
        %v1813 = vpop.f32.mrb[0].mxu0
        %v1814 = vadd.f32 %v1365, %v1813
        %1815 = vmatprep.mubr.f32.mxu0 %v473
        %1816 = vmatmul.mubr.f32.gmra.mrb[0].mxu0 %v472
        %v1817 = vpop.f32.mrb[0].mxu0
        %v1818 = vadd.f32 %v1369, %v1817
        %v1819 = vpop.f32.mrb[0].mxu0
        %v1820 = vadd.f32 %v1371, %v1819
        %1821 = vmatprep.mubr.f32.mxu0 %v477
        %1822 = vmatmul.mubr.f32.gmra.mrb[0].mxu0 %v476
        %v1823 = vpop.f32.mrb[0].mxu0
        %v1824 = vadd.f32 %v1375, %v1823
        %v1825 = vpop.f32.mrb[0].mxu0
        %v1826 = vadd.f32 %v1377, %v1825
        %1827 = vmatprep.mubr.f32.mxu0 %v481
        %1828 = vmatmul.mubr.f32.gmra.mrb[0].mxu0 %v480
        %v1829 = vpop.f32.mrb[0].mxu0
        %v1830 = vadd.f32 %v1381, %v1829
        %v1831 = vpop.f32.mrb[0].mxu0
        %v1832 = vadd.f32 %v1383, %v1831
        %1833 = vmatprep.mubr.f32.mxu0 %v485
        %1834 = vmatmul.mubr.f32.gmra.mrb[0].mxu0 %v484
        %v1835 = vpop.f32.mrb[0].mxu0
        %v1836 = vadd.f32 %v1387, %v1835
        %v1837 = vpop.f32.mrb[0].mxu0
        %v1838 = vadd.f32 %v1389, %v1837
        %1839 = vmatprep.mubr.f32.mxu0 %v489
        %1840 = vmatmul.mubr.f32.gmra.mrb[0].mxu0 %v488
        %v1841 = vpop.f32.mrb[0].mxu0
        %v1842 = vadd.f32 %v1393, %v1841
        %v1843 = vpop.f32.mrb[0].mxu0
        %v1844 = vadd.f32 %v1395, %v1843
        %1845 = vmatprep.mubr.f32.mxu0 %v493
        %1846 = vmatmul.mubr.f32.gmra.mrb[0].mxu0 %v492
        %v1847 = vpop.f32.mrb[0].mxu0
        %v1848 = vadd.f32 %v1399, %v1847
        %v1849 = vpop.f32.mrb[0].mxu0
        %v1850 = vadd.f32 %v1401, %v1849
        %1851 = vmatprep.mubr.f32.mxu0 %v497
        %1852 = vmatmul.mubr.f32.gmra.mrb[0].mxu0 %v496
        %v1853 = vpop.f32.mrb[0].mxu0
        %v1854 = vadd.f32 %v1405, %v1853
        %v1855 = vpop.f32.mrb[0].mxu0
        %v1856 = vadd.f32 %v1407, %v1855
        %1857 = vmatprep.mubr.f32.mxu0 %v501
        %1858 = vmatmul.mubr.f32.gmra.mrb[0].mxu0 %v500
        %v1859 = vpop.f32.mrb[0].mxu0
        %v1860 = vadd.f32 %v1411, %v1859
        %v1861 = vpop.f32.mrb[0].mxu0
        %v1862 = vadd.f32 %v1413, %v1861
        %1863 = vmatprep.mubr.f32.mxu0 %v505
        %1864 = vmatmul.mubr.f32.gmra.mrb[0].mxu0 %v504
        %v1865 = vpop.f32.mrb[0].mxu0
        %v1866 = vadd.f32 %v1417, %v1865
        %v1867 = vpop.f32.mrb[0].mxu0
        %v1868 = vadd.f32 %v1419, %v1867
        %1869 = vmatprep.mubr.f32.mxu0 %v509
        %1870 = vmatmul.mubr.f32.gmra.mrb[0].mxu0 %v508
        %v1871 = vpop.f32.mrb[0].mxu0
        %v1872 = vadd.f32 %v1423, %v1871
        %v1873 = vpop.f32.mrb[0].mxu0
        %v1874 = vadd.f32 %v1425, %v1873
        %1875 = vmatprep.mubr.f32.mxu0 %v513
        %1876 = vmatmul.mubr.f32.gmra.mrb[0].mxu0 %v512
        %v1877 = vpop.f32.mrb[0].mxu0
        %v1878 = vadd.f32 %v1429, %v1877
        %v1879 = vpop.f32.mrb[0].mxu0
        %v1880 = vadd.f32 %v1431, %v1879
        %1881 = vmatprep.mubr.f32.mxu0 %v517
        %1882 = vmatmul.mubr.f32.gmra.mrb[0].mxu0 %v516
        %v1883 = vpop.f32.mrb[0].mxu0
        %v1884 = vadd.f32 %v1435, %v1883
        %v1885 = vpop.f32.mrb[0].mxu0
        %v1886 = vadd.f32 %v1437, %v1885
        %1887 = vmatprep.mubr.f32.mxu0 %v521
        %1888 = vmatmul.mubr.f32.gmra.mrb[0].mxu0 %v520
        %v1889 = vpop.f32.mrb[0].mxu0
        %v1890 = vadd.f32 %v1441, %v1889
        %v1891 = vpop.f32.mrb[0].mxu0
        %v1892 = vadd.f32 %v1443, %v1891
        %1893 = vmatprep.mubr.f32.mxu0 %v525
        %1894 = vmatmul.mubr.f32.gmra.mrb[0].mxu0 %v524
        %v1895 = vpop.f32.mrb[0].mxu0
        %v1896 = vadd.f32 %v1447, %v1895
        %v1897 = vpop.f32.mrb[0].mxu0
        %v1898 = vadd.f32 %v1449, %v1897
        %1899 = vmatprep.mubr.f32.mxu0 %v529
        %1900 = vmatmul.mubr.f32.gmra.mrb[0].mxu0 %v528
        %v1901 = vpop.f32.mrb[0].mxu0
        %v1902 = vadd.f32 %v1453, %v1901
        %v1903 = vpop.f32.mrb[0].mxu0
        %v1904 = vadd.f32 %v1455, %v1903
        %1905 = vmatprep.mubr.f32.mxu0 %v533
        %1906 = vmatmul.mubr.f32.gmra.mrb[0].mxu0 %v532
        %v1907 = vpop.f32.mrb[0].mxu0
        %v1908 = vadd.f32 %v1459, %v1907
        %v1909 = vpop.f32.mrb[0].mxu0
        %v1910 = vadd.f32 %v1461, %v1909
        %1911 = vmatprep.mubr.f32.mxu0 %v537
        %1912 = vmatmul.mubr.f32.gmra.mrb[0].mxu0 %v536
        %v1913 = vpop.f32.mrb[0].mxu0
        %v1914 = vadd.f32 %v1465, %v1913
        %v1915 = vpop.f32.mrb[0].mxu0
        %v1916 = vadd.f32 %v1467, %v1915
        %1917 = vmatprep.mubr.f32.mxu0 %v541
        %1918 = vmatmul.mubr.f32.gmra.mrb[0].mxu0 %v540
        %v1919 = vpop.f32.mrb[0].mxu0
        %v1920 = vadd.f32 %v1471, %v1919
        %v1921 = vpop.f32.mrb[0].mxu0
        %v1922 = vadd.f32 %v1473, %v1921
        %1923 = vmatprep.mubr.f32.mxu0 %v545
        %1924 = vmatmul.mubr.f32.gmra.mrb[0].mxu0 %v544
        %v1925 = vpop.f32.mrb[0].mxu0
        %v1926 = vadd.f32 %v1477, %v1925
        %v1927 = vpop.f32.mrb[0].mxu0
        %v1928 = vadd.f32 %v1479, %v1927
        %1929 = vmatprep.mubr.f32.mxu0 %v549
        %1930 = vmatmul.mubr.f32.gmra.mrb[0].mxu0 %v548
        %v1931 = vpop.f32.mrb[0].mxu0
        %v1932 = vadd.f32 %v1483, %v1931
        %v1933 = vpop.f32.mrb[0].mxu0
        %v1934 = vadd.f32 %v1485, %v1933
        %1935 = vmatprep.mubr.f32.mxu0 %v553
        %1936 = vmatmul.mubr.f32.gmra.mrb[0].mxu0 %v552
        %v1937 = vpop.f32.mrb[0].mxu0
        %v1938 = vadd.f32 %v1489, %v1937
        %v1939 = vpop.f32.mrb[0].mxu0
        %v1940 = vadd.f32 %v1491, %v1939
        %1941 = vmatprep.mubr.f32.mxu0 %v557
        %1942 = vmatmul.mubr.f32.gmra.mrb[0].mxu0 %v556
        %v1943 = vpop.f32.mrb[0].mxu0
        %v1944 = vadd.f32 %v1495, %v1943
        %v1945 = vpop.f32.mrb[0].mxu0
        %v1946 = vadd.f32 %v1497, %v1945
        %1947 = vmatprep.mubr.f32.mxu0 %v561
        %1948 = vmatmul.mubr.f32.gmra.mrb[0].mxu0 %v560
        %v1949 = vpop.f32.mrb[0].mxu0
        %v1950 = vadd.f32 %v1501, %v1949
        %v1951 = vpop.f32.mrb[0].mxu0
        %v1952 = vadd.f32 %v1503, %v1951
        %1953 = vmatprep.mubr.f32.mxu0 %v565
        %1954 = vmatmul.mubr.f32.gmra.mrb[0].mxu0 %v564
        %v1955 = vpop.f32.mrb[0].mxu0
        %v1956 = vadd.f32 %v1507, %v1955
        %v1957 = vpop.f32.mrb[0].mxu0
        %v1958 = vadd.f32 %v1509, %v1957
        %1959 = vmatprep.mubr.f32.mxu0 %v569
        %1960 = vmatmul.mubr.f32.gmra.mrb[0].mxu0 %v568
        %v1961 = vpop.f32.mrb[0].mxu0
        %v1962 = vadd.f32 %v1513, %v1961
        %v1963 = vpop.f32.mrb[0].mxu0
        %v1964 = vadd.f32 %v1515, %v1963
        %1965 = vmatprep.mubr.f32.mxu0 %v573
        %1966 = vmatmul.mubr.f32.gmra.mrb[0].mxu0 %v572
        %v1967 = vpop.f32.mrb[0].mxu0
        %v1968 = vadd.f32 %v1519, %v1967
        %v1969 = vpop.f32.mrb[0].mxu0
        %v1970 = vadd.f32 %v1521, %v1969
        %1971 = vmatprep.mubr.f32.mxu0 %v577
        %1972 = vmatmul.mubr.f32.gmra.mrb[0].mxu0 %v576
        %v1973 = vpop.f32.mrb[0].mxu0
        %v1974 = vadd.f32 %v1525, %v1973
        %v1975 = vpop.f32.mrb[0].mxu0
        %v1976 = vadd.f32 %v1527, %v1975
        %1977 = vmatprep.mubr.f32.mxu0 %v581
        %1978 = vmatmul.mubr.f32.gmra.mrb[0].mxu0 %v580
        %v1979 = vpop.f32.mrb[0].mxu0
        %v1980 = vadd.f32 %v1531, %v1979
        %v1981 = vpop.f32.mrb[0].mxu0
        %v1982 = vadd.f32 %v1533, %v1981
        %1983 = vmatprep.mubr.f32.mxu0 %v585
        %1984 = vmatmul.mubr.f32.gmra.mrb[0].mxu0 %v584
        %v1985 = vpop.f32.mrb[0].mxu0
        %v1986 = vadd.f32 %v1537, %v1985
        %v1987 = vpop.f32.mrb[0].mxu0
        %v1988 = vadd.f32 %v1539, %v1987
        %1989 = vmatprep.mubr.f32.mxu0 %v589
        %1990 = vmatmul.mubr.f32.gmra.mrb[0].mxu0 %v588
        %v1991 = vpop.f32.mrb[0].mxu0
        %v1992 = vadd.f32 %v1543, %v1991
        %v1993 = vpop.f32.mrb[0].mxu0
        %v1994 = vadd.f32 %v1545, %v1993
        %1995 = vmatprep.mubr.f32.mxu0 %v593
        %1996 = vmatmul.mubr.f32.gmra.mrb[0].mxu0 %v592
        %v1997 = vpop.f32.mrb[0].mxu0
        %v1998 = vadd.f32 %v1549, %v1997
        %v1999 = vpop.f32.mrb[0].mxu0
        %v2000 = vadd.f32 %v1551, %v1999
        %2001 = vmatprep.mubr.f32.mxu0 %v597
        %2002 = vmatmul.mubr.f32.gmra.mrb[0].mxu0 %v596
        %v2003 = vpop.f32.mrb[0].mxu0
        %v2004 = vadd.f32 %v1555, %v2003
        %v2005 = vpop.f32.mrb[0].mxu0
        %v2006 = vadd.f32 %v1557, %v2005
        %2007 = vdwg.mxu0
        %2008 = vmatprep.subr.mxu0 %v601
        %2009 = vmatpush1.msra.mxu0 %v600
        %2010 = vmatprep.subr.mxu0 %v609
        %2011 = vmatpush1.msra.mxu0 %v608
        %2012 = vmatprep.subr.mxu0 %v617
        %2013 = vmatpush1.msra.mxu0 %v616
        %2014 = vmatprep.subr.mxu0 %v625
        %2015 = vmatpush1.msra.mxu0 %v624
        %2016 = vmatprep.subr.mxu0 %v633
        %2017 = vmatpush1.msra.mxu0 %v632
        %2018 = vmatprep.subr.mxu0 %v641
        %2019 = vmatpush1.msra.mxu0 %v640
        %2020 = vmatprep.subr.mxu0 %v649
        %2021 = vmatpush1.msra.mxu0 %v648
        %2022 = vmatprep.subr.mxu0 %v657
        %2023 = vmatpush1.msra.mxu0 %v656
        %2024 = vmatprep.subr.mxu0 %v665
        %2025 = vmatpush1.msra.mxu0 %v664
        %2026 = vmatprep.subr.mxu0 %v673
        %2027 = vmatpush1.msra.mxu0 %v672
        %2028 = vmatprep.subr.mxu0 %v681
        %2029 = vmatpush1.msra.mxu0 %v680
        %2030 = vmatprep.subr.mxu0 %v689
        %2031 = vmatpush1.msra.mxu0 %v688
        %2032 = vmatprep.subr.mxu0 %v697
        %2033 = vmatpush1.msra.mxu0 %v696
        %2034 = vmatprep.subr.mxu0 %v705
        %2035 = vmatpush1.msra.mxu0 %v704
        %2036 = vmatprep.subr.mxu0 %v713
        %2037 = vmatpush1.msra.mxu0 %v712
        %2038 = vmatprep.subr.mxu0 %v721
        %2039 = vmatpush1.msra.mxu0 %v720
        %2040 = vmatprep.subr.mxu0 %v729
        %2041 = vmatpush1.msra.mxu0 %v728
        %2042 = vmatprep.subr.mxu0 %v737
        %2043 = vmatpush1.msra.mxu0 %v736
        %2044 = vmatprep.subr.mxu0 %v745
        %2045 = vmatpush1.msra.mxu0 %v744
        %2046 = vmatprep.subr.mxu0 %v753
        %2047 = vmatpush1.msra.mxu0 %v752
        %2048 = vmatprep.subr.mxu0 %v761
        %2049 = vmatpush1.msra.mxu0 %v760
        %2050 = vmatprep.subr.mxu0 %v769
        %2051 = vmatpush1.msra.mxu0 %v768
        %2052 = vmatprep.subr.mxu0 %v777
        %2053 = vmatpush1.msra.mxu0 %v776
        %2054 = vmatprep.subr.mxu0 %v785
        %2055 = vmatpush1.msra.mxu0 %v784
        %2056 = vmatprep.subr.mxu0 %v793
        %2057 = vmatpush1.msra.mxu0 %v792
        %2058 = vmatprep.subr.mxu0 %v801
        %2059 = vmatpush1.msra.mxu0 %v800
        %2060 = vmatprep.subr.mxu0 %v809
        %2061 = vmatpush1.msra.mxu0 %v808
        %2062 = vmatprep.subr.mxu0 %v817
        %2063 = vmatpush1.msra.mxu0 %v816
        %2064 = vmatprep.subr.mxu0 %v825
        %2065 = vmatpush1.msra.mxu0 %v824
        %2066 = vmatprep.subr.mxu0 %v833
        %2067 = vmatpush1.msra.mxu0 %v832
        %2068 = vmatprep.subr.mxu0 %v841
        %2069 = vmatpush1.msra.mxu0 %v840
        %2070 = vmatprep.subr.mxu0 %v849
        %2071 = vmatpush1.msra.mxu0 %v848
        %2072 = vmatprep.mubr.f32.mxu0 %v343
        %2073 = vmatmul.mubr.f32.gmra.mrb[0].mxu0 %v342
        %v2074 = vpop.f32.mrb[0].mxu0
        %v2075 = vadd.f32 0.0, %v2074
        %v2076 = vpop.f32.mrb[0].mxu0
        %v2077 = vadd.f32 0.0, %v2076
        %2078 = vmatprep.mubr.f32.mxu0 %v347
        %2079 = vmatmul.mubr.f32.gmra.mrb[0].mxu0 %v346
        %v2080 = vpop.f32.mrb[0].mxu0
        %v2081 = vadd.f32 0.0, %v2080
        %v2082 = vpop.f32.mrb[0].mxu0
        %v2083 = vadd.f32 0.0, %v2082
        %2084 = vmatprep.mubr.f32.mxu0 %v351
        %2085 = vmatmul.mubr.f32.gmra.mrb[0].mxu0 %v350
        %v2086 = vpop.f32.mrb[0].mxu0
        %v2087 = vadd.f32 0.0, %v2086
        %v2088 = vpop.f32.mrb[0].mxu0
        %v2089 = vadd.f32 0.0, %v2088
        %2090 = vmatprep.mubr.f32.mxu0 %v355
        %2091 = vmatmul.mubr.f32.gmra.mrb[0].mxu0 %v354
        %v2092 = vpop.f32.mrb[0].mxu0
        %v2093 = vadd.f32 0.0, %v2092
        %v2094 = vpop.f32.mrb[0].mxu0
        %v2095 = vadd.f32 0.0, %v2094
        %2096 = vmatprep.mubr.f32.mxu0 %v359
        %2097 = vmatmul.mubr.f32.gmra.mrb[0].mxu0 %v358
        %v2098 = vpop.f32.mrb[0].mxu0
        %v2099 = vadd.f32 0.0, %v2098
        %v2100 = vpop.f32.mrb[0].mxu0
        %v2101 = vadd.f32 0.0, %v2100
        %2102 = vmatprep.mubr.f32.mxu0 %v363
        %2103 = vmatmul.mubr.f32.gmra.mrb[0].mxu0 %v362
        %v2104 = vpop.f32.mrb[0].mxu0
        %v2105 = vadd.f32 0.0, %v2104
        %v2106 = vpop.f32.mrb[0].mxu0
        %v2107 = vadd.f32 0.0, %v2106
        %2108 = vmatprep.mubr.f32.mxu0 %v367
        %2109 = vmatmul.mubr.f32.gmra.mrb[0].mxu0 %v366
        %v2110 = vpop.f32.mrb[0].mxu0
        %v2111 = vadd.f32 0.0, %v2110
        %v2112 = vpop.f32.mrb[0].mxu0
        %v2113 = vadd.f32 0.0, %v2112
        %2114 = vmatprep.mubr.f32.mxu0 %v371
        %2115 = vmatmul.mubr.f32.gmra.mrb[0].mxu0 %v370
        %v2116 = vpop.f32.mrb[0].mxu0
        %v2117 = vadd.f32 0.0, %v2116
        %v2118 = vpop.f32.mrb[0].mxu0
        %v2119 = vadd.f32 0.0, %v2118
        %2120 = vmatprep.mubr.f32.mxu0 %v375
        %2121 = vmatmul.mubr.f32.gmra.mrb[0].mxu0 %v374
        %v2122 = vpop.f32.mrb[0].mxu0
        %v2123 = vadd.f32 0.0, %v2122
        %v2124 = vpop.f32.mrb[0].mxu0
        %v2125 = vadd.f32 0.0, %v2124
        %2126 = vmatprep.mubr.f32.mxu0 %v379
        %2127 = vmatmul.mubr.f32.gmra.mrb[0].mxu0 %v378
        %v2128 = vpop.f32.mrb[0].mxu0
        %v2129 = vadd.f32 0.0, %v2128
        %v2130 = vpop.f32.mrb[0].mxu0
        %v2131 = vadd.f32 0.0, %v2130
        %2132 = vmatprep.mubr.f32.mxu0 %v383
        %2133 = vmatmul.mubr.f32.gmra.mrb[0].mxu0 %v382
        %v2134 = vpop.f32.mrb[0].mxu0
        %v2135 = vadd.f32 0.0, %v2134
        %v2136 = vpop.f32.mrb[0].mxu0
        %v2137 = vadd.f32 0.0, %v2136
        %2138 = vmatprep.mubr.f32.mxu0 %v387
        %2139 = vmatmul.mubr.f32.gmra.mrb[0].mxu0 %v386
        %v2140 = vpop.f32.mrb[0].mxu0
        %v2141 = vadd.f32 0.0, %v2140
        %v2142 = vpop.f32.mrb[0].mxu0
        %v2143 = vadd.f32 0.0, %v2142
        %2144 = vmatprep.mubr.f32.mxu0 %v391
        %2145 = vmatmul.mubr.f32.gmra.mrb[0].mxu0 %v390
        %v2146 = vpop.f32.mrb[0].mxu0
        %v2147 = vadd.f32 0.0, %v2146
        %v2148 = vpop.f32.mrb[0].mxu0
        %v2149 = vadd.f32 0.0, %v2148
        %2150 = vmatprep.mubr.f32.mxu0 %v395
        %2151 = vmatmul.mubr.f32.gmra.mrb[0].mxu0 %v394
        %v2152 = vpop.f32.mrb[0].mxu0
        %v2153 = vadd.f32 0.0, %v2152
        %v2154 = vpop.f32.mrb[0].mxu0
        %v2155 = vadd.f32 0.0, %v2154
        %2156 = vmatprep.mubr.f32.mxu0 %v399
        %2157 = vmatmul.mubr.f32.gmra.mrb[0].mxu0 %v398
        %v2158 = vpop.f32.mrb[0].mxu0
        %v2159 = vadd.f32 0.0, %v2158
        %v2160 = vpop.f32.mrb[0].mxu0
        %v2161 = vadd.f32 0.0, %v2160
        %2162 = vmatprep.mubr.f32.mxu0 %v403
        %2163 = vmatmul.mubr.f32.gmra.mrb[0].mxu0 %v402
        %v2164 = vpop.f32.mrb[0].mxu0
        %v2165 = vadd.f32 0.0, %v2164
        %v2166 = vpop.f32.mrb[0].mxu0
        %v2167 = vadd.f32 0.0, %v2166
        %2168 = vmatprep.mubr.f32.mxu0 %v407
        %2169 = vmatmul.mubr.f32.gmra.mrb[0].mxu0 %v406
        %v2170 = vpop.f32.mrb[0].mxu0
        %v2171 = vadd.f32 0.0, %v2170
        %v2172 = vpop.f32.mrb[0].mxu0
        %v2173 = vadd.f32 0.0, %v2172
        %2174 = vmatprep.mubr.f32.mxu0 %v411
        %2175 = vmatmul.mubr.f32.gmra.mrb[0].mxu0 %v410
        %v2176 = vpop.f32.mrb[0].mxu0
        %v2177 = vadd.f32 0.0, %v2176
        %v2178 = vpop.f32.mrb[0].mxu0
        %v2179 = vadd.f32 0.0, %v2178
        %2180 = vmatprep.mubr.f32.mxu0 %v415
        %2181 = vmatmul.mubr.f32.gmra.mrb[0].mxu0 %v414
        %v2182 = vpop.f32.mrb[0].mxu0
        %v2183 = vadd.f32 0.0, %v2182
        %v2184 = vpop.f32.mrb[0].mxu0
        %v2185 = vadd.f32 0.0, %v2184
        %2186 = vmatprep.mubr.f32.mxu0 %v419
        %2187 = vmatmul.mubr.f32.gmra.mrb[0].mxu0 %v418
        %v2188 = vpop.f32.mrb[0].mxu0
        %v2189 = vadd.f32 0.0, %v2188
        %v2190 = vpop.f32.mrb[0].mxu0
        %v2191 = vadd.f32 0.0, %v2190
        %2192 = vmatprep.mubr.f32.mxu0 %v423
        %2193 = vmatmul.mubr.f32.gmra.mrb[0].mxu0 %v422
        %v2194 = vpop.f32.mrb[0].mxu0
        %v2195 = vadd.f32 0.0, %v2194
        %v2196 = vpop.f32.mrb[0].mxu0
        %v2197 = vadd.f32 0.0, %v2196
        %2198 = vmatprep.mubr.f32.mxu0 %v427
        %2199 = vmatmul.mubr.f32.gmra.mrb[0].mxu0 %v426
        %v2200 = vpop.f32.mrb[0].mxu0
        %v2201 = vadd.f32 0.0, %v2200
        %v2202 = vpop.f32.mrb[0].mxu0
        %v2203 = vadd.f32 0.0, %v2202
        %2204 = vmatprep.mubr.f32.mxu0 %v431
        %2205 = vmatmul.mubr.f32.gmra.mrb[0].mxu0 %v430
        %v2206 = vpop.f32.mrb[0].mxu0
        %v2207 = vadd.f32 0.0, %v2206
        %v2208 = vpop.f32.mrb[0].mxu0
        %v2209 = vadd.f32 0.0, %v2208
        %2210 = vmatprep.mubr.f32.mxu0 %v435
        %2211 = vmatmul.mubr.f32.gmra.mrb[0].mxu0 %v434
        %v2212 = vpop.f32.mrb[0].mxu0
        %v2213 = vadd.f32 0.0, %v2212
        %v2214 = vpop.f32.mrb[0].mxu0
        %v2215 = vadd.f32 0.0, %v2214
        %2216 = vmatprep.mubr.f32.mxu0 %v439
        %2217 = vmatmul.mubr.f32.gmra.mrb[0].mxu0 %v438
        %v2218 = vpop.f32.mrb[0].mxu0
        %v2219 = vadd.f32 0.0, %v2218
        %v2220 = vpop.f32.mrb[0].mxu0
        %v2221 = vadd.f32 0.0, %v2220
        %2222 = vmatprep.mubr.f32.mxu0 %v443
        %2223 = vmatmul.mubr.f32.gmra.mrb[0].mxu0 %v442
        %v2224 = vpop.f32.mrb[0].mxu0
        %v2225 = vadd.f32 0.0, %v2224
        %v2226 = vpop.f32.mrb[0].mxu0
        %v2227 = vadd.f32 0.0, %v2226
        %2228 = vmatprep.mubr.f32.mxu0 %v447
        %2229 = vmatmul.mubr.f32.gmra.mrb[0].mxu0 %v446
        %v2230 = vpop.f32.mrb[0].mxu0
        %v2231 = vadd.f32 0.0, %v2230
        %v2232 = vpop.f32.mrb[0].mxu0
        %v2233 = vadd.f32 0.0, %v2232
        %2234 = vmatprep.mubr.f32.mxu0 %v451
        %2235 = vmatmul.mubr.f32.gmra.mrb[0].mxu0 %v450
        %v2236 = vpop.f32.mrb[0].mxu0
        %v2237 = vadd.f32 0.0, %v2236
        %v2238 = vpop.f32.mrb[0].mxu0
        %v2239 = vadd.f32 0.0, %v2238
        %2240 = vmatprep.mubr.f32.mxu0 %v455
        %2241 = vmatmul.mubr.f32.gmra.mrb[0].mxu0 %v454
        %v2242 = vpop.f32.mrb[0].mxu0
        %v2243 = vadd.f32 0.0, %v2242
        %v2244 = vpop.f32.mrb[0].mxu0
        %v2245 = vadd.f32 0.0, %v2244
        %2246 = vmatprep.mubr.f32.mxu0 %v459
        %2247 = vmatmul.mubr.f32.gmra.mrb[0].mxu0 %v458
        %v2248 = vpop.f32.mrb[0].mxu0
        %v2249 = vadd.f32 0.0, %v2248
        %v2250 = vpop.f32.mrb[0].mxu0
        %v2251 = vadd.f32 0.0, %v2250
        %2252 = vmatprep.mubr.f32.mxu0 %v463
        %2253 = vmatmul.mubr.f32.gmra.mrb[0].mxu0 %v462
        %v2254 = vpop.f32.mrb[0].mxu0
        %v2255 = vadd.f32 0.0, %v2254
        %v2256 = vpop.f32.mrb[0].mxu0
        %v2257 = vadd.f32 0.0, %v2256
        %2258 = vmatprep.mubr.f32.mxu0 %v467
        %2259 = vmatmul.mubr.f32.gmra.mrb[0].mxu0 %v466
        %v2260 = vpop.f32.mrb[0].mxu0
        %v2261 = vadd.f32 0.0, %v2260
        %v2262 = vpop.f32.mrb[0].mxu0
        %v2263 = vadd.f32 0.0, %v2262
        %2264 = vmatprep.mubr.f32.mxu0 %v471
        %2265 = vmatmul.mubr.f32.gmra.mrb[0].mxu0 %v470
        %v2266 = vpop.f32.mrb[0].mxu0
        %v2267 = vadd.f32 0.0, %v2266
        %v2268 = vpop.f32.mrb[0].mxu0
        %v2269 = vadd.f32 0.0, %v2268
        %2270 = vmatprep.mubr.f32.mxu0 %v475
        %2271 = vmatmul.mubr.f32.gmra.mrb[0].mxu0 %v474
        %v2272 = vpop.f32.mrb[0].mxu0
        %v2273 = vadd.f32 0.0, %v2272
        %v2274 = vpop.f32.mrb[0].mxu0
        %v2275 = vadd.f32 0.0, %v2274
        %2276 = vmatprep.mubr.f32.mxu0 %v479
        %2277 = vmatmul.mubr.f32.gmra.mrb[0].mxu0 %v478
        %v2278 = vpop.f32.mrb[0].mxu0
        %v2279 = vadd.f32 0.0, %v2278
        %v2280 = vpop.f32.mrb[0].mxu0
        %v2281 = vadd.f32 0.0, %v2280
        %2282 = vmatprep.mubr.f32.mxu0 %v483
        %2283 = vmatmul.mubr.f32.gmra.mrb[0].mxu0 %v482
        %v2284 = vpop.f32.mrb[0].mxu0
        %v2285 = vadd.f32 0.0, %v2284
        %v2286 = vpop.f32.mrb[0].mxu0
        %v2287 = vadd.f32 0.0, %v2286
        %2288 = vmatprep.mubr.f32.mxu0 %v487
        %2289 = vmatmul.mubr.f32.gmra.mrb[0].mxu0 %v486
        %v2290 = vpop.f32.mrb[0].mxu0
        %v2291 = vadd.f32 0.0, %v2290
        %v2292 = vpop.f32.mrb[0].mxu0
        %v2293 = vadd.f32 0.0, %v2292
        %2294 = vmatprep.mubr.f32.mxu0 %v491
        %2295 = vmatmul.mubr.f32.gmra.mrb[0].mxu0 %v490
        %v2296 = vpop.f32.mrb[0].mxu0
        %v2297 = vadd.f32 0.0, %v2296
        %v2298 = vpop.f32.mrb[0].mxu0
        %v2299 = vadd.f32 0.0, %v2298
        %2300 = vmatprep.mubr.f32.mxu0 %v495
        %2301 = vmatmul.mubr.f32.gmra.mrb[0].mxu0 %v494
        %v2302 = vpop.f32.mrb[0].mxu0
        %v2303 = vadd.f32 0.0, %v2302
        %v2304 = vpop.f32.mrb[0].mxu0
        %v2305 = vadd.f32 0.0, %v2304
        %2306 = vmatprep.mubr.f32.mxu0 %v499
        %2307 = vmatmul.mubr.f32.gmra.mrb[0].mxu0 %v498
        %v2308 = vpop.f32.mrb[0].mxu0
        %v2309 = vadd.f32 0.0, %v2308
        %v2310 = vpop.f32.mrb[0].mxu0
        %v2311 = vadd.f32 0.0, %v2310
        %2312 = vmatprep.mubr.f32.mxu0 %v503
        %2313 = vmatmul.mubr.f32.gmra.mrb[0].mxu0 %v502
        %v2314 = vpop.f32.mrb[0].mxu0
        %v2315 = vadd.f32 0.0, %v2314
        %v2316 = vpop.f32.mrb[0].mxu0
        %v2317 = vadd.f32 0.0, %v2316
        %2318 = vmatprep.mubr.f32.mxu0 %v507
        %2319 = vmatmul.mubr.f32.gmra.mrb[0].mxu0 %v506
        %v2320 = vpop.f32.mrb[0].mxu0
        %v2321 = vadd.f32 0.0, %v2320
        %v2322 = vpop.f32.mrb[0].mxu0
        %v2323 = vadd.f32 0.0, %v2322
        %2324 = vmatprep.mubr.f32.mxu0 %v511
        %2325 = vmatmul.mubr.f32.gmra.mrb[0].mxu0 %v510
        %v2326 = vpop.f32.mrb[0].mxu0
        %v2327 = vadd.f32 0.0, %v2326
        %v2328 = vpop.f32.mrb[0].mxu0
        %v2329 = vadd.f32 0.0, %v2328
        %2330 = vmatprep.mubr.f32.mxu0 %v515
        %2331 = vmatmul.mubr.f32.gmra.mrb[0].mxu0 %v514
        %v2332 = vpop.f32.mrb[0].mxu0
        %v2333 = vadd.f32 0.0, %v2332
        %v2334 = vpop.f32.mrb[0].mxu0
        %v2335 = vadd.f32 0.0, %v2334
        %2336 = vmatprep.mubr.f32.mxu0 %v519
        %2337 = vmatmul.mubr.f32.gmra.mrb[0].mxu0 %v518
        %v2338 = vpop.f32.mrb[0].mxu0
        %v2339 = vadd.f32 0.0, %v2338
        %v2340 = vpop.f32.mrb[0].mxu0
        %v2341 = vadd.f32 0.0, %v2340
        %2342 = vmatprep.mubr.f32.mxu0 %v523
        %2343 = vmatmul.mubr.f32.gmra.mrb[0].mxu0 %v522
        %v2344 = vpop.f32.mrb[0].mxu0
        %v2345 = vadd.f32 0.0, %v2344
        %v2346 = vpop.f32.mrb[0].mxu0
        %v2347 = vadd.f32 0.0, %v2346
        %2348 = vmatprep.mubr.f32.mxu0 %v527
        %2349 = vmatmul.mubr.f32.gmra.mrb[0].mxu0 %v526
        %v2350 = vpop.f32.mrb[0].mxu0
        %v2351 = vadd.f32 0.0, %v2350
        %v2352 = vpop.f32.mrb[0].mxu0
        %v2353 = vadd.f32 0.0, %v2352
        %2354 = vmatprep.mubr.f32.mxu0 %v531
        %2355 = vmatmul.mubr.f32.gmra.mrb[0].mxu0 %v530
        %v2356 = vpop.f32.mrb[0].mxu0
        %v2357 = vadd.f32 0.0, %v2356
        %v2358 = vpop.f32.mrb[0].mxu0
        %v2359 = vadd.f32 0.0, %v2358
        %2360 = vmatprep.mubr.f32.mxu0 %v535
        %2361 = vmatmul.mubr.f32.gmra.mrb[0].mxu0 %v534
        %v2362 = vpop.f32.mrb[0].mxu0
        %v2363 = vadd.f32 0.0, %v2362
        %v2364 = vpop.f32.mrb[0].mxu0
        %v2365 = vadd.f32 0.0, %v2364
        %2366 = vmatprep.mubr.f32.mxu0 %v539
        %2367 = vmatmul.mubr.f32.gmra.mrb[0].mxu0 %v538
        %v2368 = vpop.f32.mrb[0].mxu0
        %v2369 = vadd.f32 0.0, %v2368
        %v2370 = vpop.f32.mrb[0].mxu0
        %v2371 = vadd.f32 0.0, %v2370
        %2372 = vmatprep.mubr.f32.mxu0 %v543
        %2373 = vmatmul.mubr.f32.gmra.mrb[0].mxu0 %v542
        %v2374 = vpop.f32.mrb[0].mxu0
        %v2375 = vadd.f32 0.0, %v2374
        %v2376 = vpop.f32.mrb[0].mxu0
        %v2377 = vadd.f32 0.0, %v2376
        %2378 = vmatprep.mubr.f32.mxu0 %v547
        %2379 = vmatmul.mubr.f32.gmra.mrb[0].mxu0 %v546
        %v2380 = vpop.f32.mrb[0].mxu0
        %v2381 = vadd.f32 0.0, %v2380
        %v2382 = vpop.f32.mrb[0].mxu0
        %v2383 = vadd.f32 0.0, %v2382
        %2384 = vmatprep.mubr.f32.mxu0 %v551
        %2385 = vmatmul.mubr.f32.gmra.mrb[0].mxu0 %v550
        %v2386 = vpop.f32.mrb[0].mxu0
        %v2387 = vadd.f32 0.0, %v2386
        %v2388 = vpop.f32.mrb[0].mxu0
        %v2389 = vadd.f32 0.0, %v2388
        %2390 = vmatprep.mubr.f32.mxu0 %v555
        %2391 = vmatmul.mubr.f32.gmra.mrb[0].mxu0 %v554
        %v2392 = vpop.f32.mrb[0].mxu0
        %v2393 = vadd.f32 0.0, %v2392
        %v2394 = vpop.f32.mrb[0].mxu0
        %v2395 = vadd.f32 0.0, %v2394
        %2396 = vmatprep.mubr.f32.mxu0 %v559
        %2397 = vmatmul.mubr.f32.gmra.mrb[0].mxu0 %v558
        %v2398 = vpop.f32.mrb[0].mxu0
        %v2399 = vadd.f32 0.0, %v2398
        %v2400 = vpop.f32.mrb[0].mxu0
        %v2401 = vadd.f32 0.0, %v2400
        %2402 = vmatprep.mubr.f32.mxu0 %v563
        %2403 = vmatmul.mubr.f32.gmra.mrb[0].mxu0 %v562
        %v2404 = vpop.f32.mrb[0].mxu0
        %v2405 = vadd.f32 0.0, %v2404
        %v2406 = vpop.f32.mrb[0].mxu0
        %v2407 = vadd.f32 0.0, %v2406
        %2408 = vmatprep.mubr.f32.mxu0 %v567
        %2409 = vmatmul.mubr.f32.gmra.mrb[0].mxu0 %v566
        %v2410 = vpop.f32.mrb[0].mxu0
        %v2411 = vadd.f32 0.0, %v2410
        %v2412 = vpop.f32.mrb[0].mxu0
        %v2413 = vadd.f32 0.0, %v2412
        %2414 = vmatprep.mubr.f32.mxu0 %v571
        %2415 = vmatmul.mubr.f32.gmra.mrb[0].mxu0 %v570
        %v2416 = vpop.f32.mrb[0].mxu0
        %v2417 = vadd.f32 0.0, %v2416
        %v2418 = vpop.f32.mrb[0].mxu0
        %v2419 = vadd.f32 0.0, %v2418
        %2420 = vmatprep.mubr.f32.mxu0 %v575
        %2421 = vmatmul.mubr.f32.gmra.mrb[0].mxu0 %v574
        %v2422 = vpop.f32.mrb[0].mxu0
        %v2423 = vadd.f32 0.0, %v2422
        %v2424 = vpop.f32.mrb[0].mxu0
        %v2425 = vadd.f32 0.0, %v2424
        %2426 = vmatprep.mubr.f32.mxu0 %v579
        %2427 = vmatmul.mubr.f32.gmra.mrb[0].mxu0 %v578
        %v2428 = vpop.f32.mrb[0].mxu0
        %v2429 = vadd.f32 0.0, %v2428
        %v2430 = vpop.f32.mrb[0].mxu0
        %v2431 = vadd.f32 0.0, %v2430
        %2432 = vmatprep.mubr.f32.mxu0 %v583
        %2433 = vmatmul.mubr.f32.gmra.mrb[0].mxu0 %v582
        %v2434 = vpop.f32.mrb[0].mxu0
        %v2435 = vadd.f32 0.0, %v2434
        %v2436 = vpop.f32.mrb[0].mxu0
        %v2437 = vadd.f32 0.0, %v2436
        %2438 = vmatprep.mubr.f32.mxu0 %v587
        %2439 = vmatmul.mubr.f32.gmra.mrb[0].mxu0 %v586
        %v2440 = vpop.f32.mrb[0].mxu0
        %v2441 = vadd.f32 0.0, %v2440
        %v2442 = vpop.f32.mrb[0].mxu0
        %v2443 = vadd.f32 0.0, %v2442
        %2444 = vmatprep.mubr.f32.mxu0 %v591
        %2445 = vmatmul.mubr.f32.gmra.mrb[0].mxu0 %v590
        %v2446 = vpop.f32.mrb[0].mxu0
        %v2447 = vadd.f32 0.0, %v2446
        %v2448 = vpop.f32.mrb[0].mxu0
        %v2449 = vadd.f32 0.0, %v2448
        %2450 = vmatprep.mubr.f32.mxu0 %v595
        %2451 = vmatmul.mubr.f32.gmra.mrb[0].mxu0 %v594
        %v2452 = vpop.f32.mrb[0].mxu0
        %v2453 = vadd.f32 0.0, %v2452
        %v2454 = vpop.f32.mrb[0].mxu0
        %v2455 = vadd.f32 0.0, %v2454
        %2456 = vdwg.mxu0
        %2457 = vmatprep.subr.mxu0 %v857
        %2458 = vmatpush1.msra.mxu0 %v856
        %2459 = vmatprep.subr.mxu0 %v865
        %2460 = vmatpush1.msra.mxu0 %v864
        %2461 = vmatprep.subr.mxu0 %v873
        %2462 = vmatpush1.msra.mxu0 %v872
        %2463 = vmatprep.subr.mxu0 %v881
        %2464 = vmatpush1.msra.mxu0 %v880
        %2465 = vmatprep.subr.mxu0 %v889
        %2466 = vmatpush1.msra.mxu0 %v888
        %2467 = vmatprep.subr.mxu0 %v897
        %2468 = vmatpush1.msra.mxu0 %v896
        %2469 = vmatprep.subr.mxu0 %v905
        %2470 = vmatpush1.msra.mxu0 %v904
        %2471 = vmatprep.subr.mxu0 %v913
        %2472 = vmatpush1.msra.mxu0 %v912
        %2473 = vmatprep.subr.mxu0 %v921
        %2474 = vmatpush1.msra.mxu0 %v920
        %2475 = vmatprep.subr.mxu0 %v929
        %2476 = vmatpush1.msra.mxu0 %v928
        %2477 = vmatprep.subr.mxu0 %v937
        %2478 = vmatpush1.msra.mxu0 %v936
        %2479 = vmatprep.subr.mxu0 %v945
        %2480 = vmatpush1.msra.mxu0 %v944
        %2481 = vmatprep.subr.mxu0 %v953
        %2482 = vmatpush1.msra.mxu0 %v952
        %2483 = vmatprep.subr.mxu0 %v961
        %2484 = vmatpush1.msra.mxu0 %v960
        %2485 = vmatprep.subr.mxu0 %v969
        %2486 = vmatpush1.msra.mxu0 %v968
        %2487 = vmatprep.subr.mxu0 %v977
        %2488 = vmatpush1.msra.mxu0 %v976
        %2489 = vmatprep.subr.mxu0 %v985
        %2490 = vmatpush1.msra.mxu0 %v984
        %2491 = vmatprep.subr.mxu0 %v993
        %2492 = vmatpush1.msra.mxu0 %v992
        %2493 = vmatprep.subr.mxu0 %v1001
        %2494 = vmatpush1.msra.mxu0 %v1000
        %2495 = vmatprep.subr.mxu0 %v1009
        %2496 = vmatpush1.msra.mxu0 %v1008
        %2497 = vmatprep.subr.mxu0 %v1017
        %2498 = vmatpush1.msra.mxu0 %v1016
        %2499 = vmatprep.subr.mxu0 %v1025
        %2500 = vmatpush1.msra.mxu0 %v1024
        %2501 = vmatprep.subr.mxu0 %v1033
        %2502 = vmatpush1.msra.mxu0 %v1032
        %2503 = vmatprep.subr.mxu0 %v1041
        %2504 = vmatpush1.msra.mxu0 %v1040
        %2505 = vmatprep.subr.mxu0 %v1049
        %2506 = vmatpush1.msra.mxu0 %v1048
        %2507 = vmatprep.subr.mxu0 %v1057
        %2508 = vmatpush1.msra.mxu0 %v1056
        %2509 = vmatprep.subr.mxu0 %v1065
        %2510 = vmatpush1.msra.mxu0 %v1064
        %2511 = vmatprep.subr.mxu0 %v1073
        %2512 = vmatpush1.msra.mxu0 %v1072
        %2513 = vmatprep.subr.mxu0 %v1081
        %2514 = vmatpush1.msra.mxu0 %v1080
        %2515 = vmatprep.subr.mxu0 %v1089
        %2516 = vmatpush1.msra.mxu0 %v1088
        %2517 = vmatprep.subr.mxu0 %v1097
        %2518 = vmatpush1.msra.mxu0 %v1096
        %2519 = vmatprep.subr.mxu0 %v1105
        %2520 = vmatpush1.msra.mxu0 %v1104
        %2521 = vmatprep.mubr.f32.mxu0 %v345
        %2522 = vmatmul.mubr.f32.gmra.mrb[0].mxu0 %v344
        %v2523 = vpop.f32.mrb[0].mxu0
        %v2524 = vadd.f32 %v2075, %v2523
        %v2525 = vpop.f32.mrb[0].mxu0
        %v2526 = vadd.f32 %v2077, %v2525
        %2527 = vmatprep.mubr.f32.mxu0 %v349
        %2528 = vmatmul.mubr.f32.gmra.mrb[0].mxu0 %v348
        %v2529 = vpop.f32.mrb[0].mxu0
        %v2530 = vadd.f32 %v2081, %v2529
        %v2531 = vpop.f32.mrb[0].mxu0
        %v2532 = vadd.f32 %v2083, %v2531
        %2533 = vmatprep.mubr.f32.mxu0 %v353
        %2534 = vmatmul.mubr.f32.gmra.mrb[0].mxu0 %v352
        %v2535 = vpop.f32.mrb[0].mxu0
        %v2536 = vadd.f32 %v2087, %v2535
        %v2537 = vpop.f32.mrb[0].mxu0
        %v2538 = vadd.f32 %v2089, %v2537
        %2539 = vmatprep.mubr.f32.mxu0 %v357
        %2540 = vmatmul.mubr.f32.gmra.mrb[0].mxu0 %v356
        %v2541 = vpop.f32.mrb[0].mxu0
        %v2542 = vadd.f32 %v2093, %v2541
        %v2543 = vpop.f32.mrb[0].mxu0
        %v2544 = vadd.f32 %v2095, %v2543
        %2545 = vmatprep.mubr.f32.mxu0 %v361
        %2546 = vmatmul.mubr.f32.gmra.mrb[0].mxu0 %v360
        %v2547 = vpop.f32.mrb[0].mxu0
        %v2548 = vadd.f32 %v2099, %v2547
        %v2549 = vpop.f32.mrb[0].mxu0
        %v2550 = vadd.f32 %v2101, %v2549
        %2551 = vmatprep.mubr.f32.mxu0 %v365
        %2552 = vmatmul.mubr.f32.gmra.mrb[0].mxu0 %v364
        %v2553 = vpop.f32.mrb[0].mxu0
        %v2554 = vadd.f32 %v2105, %v2553
        %v2555 = vpop.f32.mrb[0].mxu0
        %v2556 = vadd.f32 %v2107, %v2555
        %2557 = vmatprep.mubr.f32.mxu0 %v369
        %2558 = vmatmul.mubr.f32.gmra.mrb[0].mxu0 %v368
        %v2559 = vpop.f32.mrb[0].mxu0
        %v2560 = vadd.f32 %v2111, %v2559
        %v2561 = vpop.f32.mrb[0].mxu0
        %v2562 = vadd.f32 %v2113, %v2561
        %2563 = vmatprep.mubr.f32.mxu0 %v373
        %2564 = vmatmul.mubr.f32.gmra.mrb[0].mxu0 %v372
        %v2565 = vpop.f32.mrb[0].mxu0
        %v2566 = vadd.f32 %v2117, %v2565
        %v2567 = vpop.f32.mrb[0].mxu0
        %v2568 = vadd.f32 %v2119, %v2567
        %2569 = vmatprep.mubr.f32.mxu0 %v377
        %2570 = vmatmul.mubr.f32.gmra.mrb[0].mxu0 %v376
        %v2571 = vpop.f32.mrb[0].mxu0
        %v2572 = vadd.f32 %v2123, %v2571
        %v2573 = vpop.f32.mrb[0].mxu0
        %v2574 = vadd.f32 %v2125, %v2573
        %2575 = vmatprep.mubr.f32.mxu0 %v381
        %2576 = vmatmul.mubr.f32.gmra.mrb[0].mxu0 %v380
        %v2577 = vpop.f32.mrb[0].mxu0
        %v2578 = vadd.f32 %v2129, %v2577
        %v2579 = vpop.f32.mrb[0].mxu0
        %v2580 = vadd.f32 %v2131, %v2579
        %2581 = vmatprep.mubr.f32.mxu0 %v385
        %2582 = vmatmul.mubr.f32.gmra.mrb[0].mxu0 %v384
        %v2583 = vpop.f32.mrb[0].mxu0
        %v2584 = vadd.f32 %v2135, %v2583
        %v2585 = vpop.f32.mrb[0].mxu0
        %v2586 = vadd.f32 %v2137, %v2585
        %2587 = vmatprep.mubr.f32.mxu0 %v389
        %2588 = vmatmul.mubr.f32.gmra.mrb[0].mxu0 %v388
        %v2589 = vpop.f32.mrb[0].mxu0
        %v2590 = vadd.f32 %v2141, %v2589
        %v2591 = vpop.f32.mrb[0].mxu0
        %v2592 = vadd.f32 %v2143, %v2591
        %2593 = vmatprep.mubr.f32.mxu0 %v393
        %2594 = vmatmul.mubr.f32.gmra.mrb[0].mxu0 %v392
        %v2595 = vpop.f32.mrb[0].mxu0
        %v2596 = vadd.f32 %v2147, %v2595
        %v2597 = vpop.f32.mrb[0].mxu0
        %v2598 = vadd.f32 %v2149, %v2597
        %2599 = vmatprep.mubr.f32.mxu0 %v397
        %2600 = vmatmul.mubr.f32.gmra.mrb[0].mxu0 %v396
        %v2601 = vpop.f32.mrb[0].mxu0
        %v2602 = vadd.f32 %v2153, %v2601
        %v2603 = vpop.f32.mrb[0].mxu0
        %v2604 = vadd.f32 %v2155, %v2603
        %2605 = vmatprep.mubr.f32.mxu0 %v401
        %2606 = vmatmul.mubr.f32.gmra.mrb[0].mxu0 %v400
        %v2607 = vpop.f32.mrb[0].mxu0
        %v2608 = vadd.f32 %v2159, %v2607
        %v2609 = vpop.f32.mrb[0].mxu0
        %v2610 = vadd.f32 %v2161, %v2609
        %2611 = vmatprep.mubr.f32.mxu0 %v405
        %2612 = vmatmul.mubr.f32.gmra.mrb[0].mxu0 %v404
        %v2613 = vpop.f32.mrb[0].mxu0
        %v2614 = vadd.f32 %v2165, %v2613
        %v2615 = vpop.f32.mrb[0].mxu0
        %v2616 = vadd.f32 %v2167, %v2615
        %2617 = vmatprep.mubr.f32.mxu0 %v409
        %2618 = vmatmul.mubr.f32.gmra.mrb[0].mxu0 %v408
        %v2619 = vpop.f32.mrb[0].mxu0
        %v2620 = vadd.f32 %v2171, %v2619
        %v2621 = vpop.f32.mrb[0].mxu0
        %v2622 = vadd.f32 %v2173, %v2621
        %2623 = vmatprep.mubr.f32.mxu0 %v413
        %2624 = vmatmul.mubr.f32.gmra.mrb[0].mxu0 %v412
        %v2625 = vpop.f32.mrb[0].mxu0
        %v2626 = vadd.f32 %v2177, %v2625
        %v2627 = vpop.f32.mrb[0].mxu0
        %v2628 = vadd.f32 %v2179, %v2627
        %2629 = vmatprep.mubr.f32.mxu0 %v417
        %2630 = vmatmul.mubr.f32.gmra.mrb[0].mxu0 %v416
        %v2631 = vpop.f32.mrb[0].mxu0
        %v2632 = vadd.f32 %v2183, %v2631
        %v2633 = vpop.f32.mrb[0].mxu0
        %v2634 = vadd.f32 %v2185, %v2633
        %2635 = vmatprep.mubr.f32.mxu0 %v421
        %2636 = vmatmul.mubr.f32.gmra.mrb[0].mxu0 %v420
        %v2637 = vpop.f32.mrb[0].mxu0
        %v2638 = vadd.f32 %v2189, %v2637
        %v2639 = vpop.f32.mrb[0].mxu0
        %v2640 = vadd.f32 %v2191, %v2639
        %2641 = vmatprep.mubr.f32.mxu0 %v425
        %2642 = vmatmul.mubr.f32.gmra.mrb[0].mxu0 %v424
        %v2643 = vpop.f32.mrb[0].mxu0
        %v2644 = vadd.f32 %v2195, %v2643
        %v2645 = vpop.f32.mrb[0].mxu0
        %v2646 = vadd.f32 %v2197, %v2645
        %2647 = vmatprep.mubr.f32.mxu0 %v429
        %2648 = vmatmul.mubr.f32.gmra.mrb[0].mxu0 %v428
        %v2649 = vpop.f32.mrb[0].mxu0
        %v2650 = vadd.f32 %v2201, %v2649
        %v2651 = vpop.f32.mrb[0].mxu0
        %v2652 = vadd.f32 %v2203, %v2651
        %2653 = vmatprep.mubr.f32.mxu0 %v433
        %2654 = vmatmul.mubr.f32.gmra.mrb[0].mxu0 %v432
        %v2655 = vpop.f32.mrb[0].mxu0
        %v2656 = vadd.f32 %v2207, %v2655
        %v2657 = vpop.f32.mrb[0].mxu0
        %v2658 = vadd.f32 %v2209, %v2657
        %2659 = vmatprep.mubr.f32.mxu0 %v437
        %2660 = vmatmul.mubr.f32.gmra.mrb[0].mxu0 %v436
        %v2661 = vpop.f32.mrb[0].mxu0
        %v2662 = vadd.f32 %v2213, %v2661
        %v2663 = vpop.f32.mrb[0].mxu0
        %v2664 = vadd.f32 %v2215, %v2663
        %2665 = vmatprep.mubr.f32.mxu0 %v441
        %2666 = vmatmul.mubr.f32.gmra.mrb[0].mxu0 %v440
        %v2667 = vpop.f32.mrb[0].mxu0
        %v2668 = vadd.f32 %v2219, %v2667
        %v2669 = vpop.f32.mrb[0].mxu0
        %v2670 = vadd.f32 %v2221, %v2669
        %2671 = vmatprep.mubr.f32.mxu0 %v445
        %2672 = vmatmul.mubr.f32.gmra.mrb[0].mxu0 %v444
        %v2673 = vpop.f32.mrb[0].mxu0
        %v2674 = vadd.f32 %v2225, %v2673
        %v2675 = vpop.f32.mrb[0].mxu0
        %v2676 = vadd.f32 %v2227, %v2675
        %2677 = vmatprep.mubr.f32.mxu0 %v449
        %2678 = vmatmul.mubr.f32.gmra.mrb[0].mxu0 %v448
        %v2679 = vpop.f32.mrb[0].mxu0
        %v2680 = vadd.f32 %v2231, %v2679
        %v2681 = vpop.f32.mrb[0].mxu0
        %v2682 = vadd.f32 %v2233, %v2681
        %2683 = vmatprep.mubr.f32.mxu0 %v453
        %2684 = vmatmul.mubr.f32.gmra.mrb[0].mxu0 %v452
        %v2685 = vpop.f32.mrb[0].mxu0
        %v2686 = vadd.f32 %v2237, %v2685
        %v2687 = vpop.f32.mrb[0].mxu0
        %v2688 = vadd.f32 %v2239, %v2687
        %2689 = vmatprep.mubr.f32.mxu0 %v457
        %2690 = vmatmul.mubr.f32.gmra.mrb[0].mxu0 %v456
        %v2691 = vpop.f32.mrb[0].mxu0
        %v2692 = vadd.f32 %v2243, %v2691
        %v2693 = vpop.f32.mrb[0].mxu0
        %v2694 = vadd.f32 %v2245, %v2693
        %2695 = vmatprep.mubr.f32.mxu0 %v461
        %2696 = vmatmul.mubr.f32.gmra.mrb[0].mxu0 %v460
        %v2697 = vpop.f32.mrb[0].mxu0
        %v2698 = vadd.f32 %v2249, %v2697
        %v2699 = vpop.f32.mrb[0].mxu0
        %v2700 = vadd.f32 %v2251, %v2699
        %2701 = vmatprep.mubr.f32.mxu0 %v465
        %2702 = vmatmul.mubr.f32.gmra.mrb[0].mxu0 %v464
        %v2703 = vpop.f32.mrb[0].mxu0
        %v2704 = vadd.f32 %v2255, %v2703
        %v2705 = vpop.f32.mrb[0].mxu0
        %v2706 = vadd.f32 %v2257, %v2705
        %2707 = vmatprep.mubr.f32.mxu0 %v469
        %2708 = vmatmul.mubr.f32.gmra.mrb[0].mxu0 %v468
        %v2709 = vpop.f32.mrb[0].mxu0
        %v2710 = vadd.f32 %v2261, %v2709
        %v2711 = vpop.f32.mrb[0].mxu0
        %v2712 = vadd.f32 %v2263, %v2711
        %2713 = vmatprep.mubr.f32.mxu0 %v473
        %2714 = vmatmul.mubr.f32.gmra.mrb[0].mxu0 %v472
        %v2715 = vpop.f32.mrb[0].mxu0
        %v2716 = vadd.f32 %v2267, %v2715
        %v2717 = vpop.f32.mrb[0].mxu0
        %v2718 = vadd.f32 %v2269, %v2717
        %2719 = vmatprep.mubr.f32.mxu0 %v477
        %2720 = vmatmul.mubr.f32.gmra.mrb[0].mxu0 %v476
        %v2721 = vpop.f32.mrb[0].mxu0
        %v2722 = vadd.f32 %v2273, %v2721
        %v2723 = vpop.f32.mrb[0].mxu0
        %v2724 = vadd.f32 %v2275, %v2723
        %2725 = vmatprep.mubr.f32.mxu0 %v481
        %2726 = vmatmul.mubr.f32.gmra.mrb[0].mxu0 %v480
        %v2727 = vpop.f32.mrb[0].mxu0
        %v2728 = vadd.f32 %v2279, %v2727
        %v2729 = vpop.f32.mrb[0].mxu0
        %v2730 = vadd.f32 %v2281, %v2729
        %2731 = vmatprep.mubr.f32.mxu0 %v485
        %2732 = vmatmul.mubr.f32.gmra.mrb[0].mxu0 %v484
        %v2733 = vpop.f32.mrb[0].mxu0
        %v2734 = vadd.f32 %v2285, %v2733
        %v2735 = vpop.f32.mrb[0].mxu0
        %v2736 = vadd.f32 %v2287, %v2735
        %2737 = vmatprep.mubr.f32.mxu0 %v489
        %2738 = vmatmul.mubr.f32.gmra.mrb[0].mxu0 %v488
        %v2739 = vpop.f32.mrb[0].mxu0
        %v2740 = vadd.f32 %v2291, %v2739
        %v2741 = vpop.f32.mrb[0].mxu0
        %v2742 = vadd.f32 %v2293, %v2741
        %2743 = vmatprep.mubr.f32.mxu0 %v493
        %2744 = vmatmul.mubr.f32.gmra.mrb[0].mxu0 %v492
        %v2745 = vpop.f32.mrb[0].mxu0
        %v2746 = vadd.f32 %v2297, %v2745
        %v2747 = vpop.f32.mrb[0].mxu0
        %v2748 = vadd.f32 %v2299, %v2747
        %2749 = vmatprep.mubr.f32.mxu0 %v497
        %2750 = vmatmul.mubr.f32.gmra.mrb[0].mxu0 %v496
        %v2751 = vpop.f32.mrb[0].mxu0
        %v2752 = vadd.f32 %v2303, %v2751
        %v2753 = vpop.f32.mrb[0].mxu0
        %v2754 = vadd.f32 %v2305, %v2753
        %2755 = vmatprep.mubr.f32.mxu0 %v501
        %2756 = vmatmul.mubr.f32.gmra.mrb[0].mxu0 %v500
        %v2757 = vpop.f32.mrb[0].mxu0
        %v2758 = vadd.f32 %v2309, %v2757
        %v2759 = vpop.f32.mrb[0].mxu0
        %v2760 = vadd.f32 %v2311, %v2759
        %2761 = vmatprep.mubr.f32.mxu0 %v505
        %2762 = vmatmul.mubr.f32.gmra.mrb[0].mxu0 %v504
        %v2763 = vpop.f32.mrb[0].mxu0
        %v2764 = vadd.f32 %v2315, %v2763
        %v2765 = vpop.f32.mrb[0].mxu0
        %v2766 = vadd.f32 %v2317, %v2765
        %2767 = vmatprep.mubr.f32.mxu0 %v509
        %2768 = vmatmul.mubr.f32.gmra.mrb[0].mxu0 %v508
        %v2769 = vpop.f32.mrb[0].mxu0
        %v2770 = vadd.f32 %v2321, %v2769
        %v2771 = vpop.f32.mrb[0].mxu0
        %v2772 = vadd.f32 %v2323, %v2771
        %2773 = vmatprep.mubr.f32.mxu0 %v513
        %2774 = vmatmul.mubr.f32.gmra.mrb[0].mxu0 %v512
        %v2775 = vpop.f32.mrb[0].mxu0
        %v2776 = vadd.f32 %v2327, %v2775
        %v2777 = vpop.f32.mrb[0].mxu0
        %v2778 = vadd.f32 %v2329, %v2777
        %2779 = vmatprep.mubr.f32.mxu0 %v517
        %2780 = vmatmul.mubr.f32.gmra.mrb[0].mxu0 %v516
        %v2781 = vpop.f32.mrb[0].mxu0
        %v2782 = vadd.f32 %v2333, %v2781
        %v2783 = vpop.f32.mrb[0].mxu0
        %v2784 = vadd.f32 %v2335, %v2783
        %2785 = vmatprep.mubr.f32.mxu0 %v521
        %2786 = vmatmul.mubr.f32.gmra.mrb[0].mxu0 %v520
        %v2787 = vpop.f32.mrb[0].mxu0
        %v2788 = vadd.f32 %v2339, %v2787
        %v2789 = vpop.f32.mrb[0].mxu0
        %v2790 = vadd.f32 %v2341, %v2789
        %2791 = vmatprep.mubr.f32.mxu0 %v525
        %2792 = vmatmul.mubr.f32.gmra.mrb[0].mxu0 %v524
        %v2793 = vpop.f32.mrb[0].mxu0
        %v2794 = vadd.f32 %v2345, %v2793
        %v2795 = vpop.f32.mrb[0].mxu0
        %v2796 = vadd.f32 %v2347, %v2795
        %2797 = vmatprep.mubr.f32.mxu0 %v529
        %2798 = vmatmul.mubr.f32.gmra.mrb[0].mxu0 %v528
        %v2799 = vpop.f32.mrb[0].mxu0
        %v2800 = vadd.f32 %v2351, %v2799
        %v2801 = vpop.f32.mrb[0].mxu0
        %v2802 = vadd.f32 %v2353, %v2801
        %2803 = vmatprep.mubr.f32.mxu0 %v533
        %2804 = vmatmul.mubr.f32.gmra.mrb[0].mxu0 %v532
        %v2805 = vpop.f32.mrb[0].mxu0
        %v2806 = vadd.f32 %v2357, %v2805
        %v2807 = vpop.f32.mrb[0].mxu0
        %v2808 = vadd.f32 %v2359, %v2807
        %2809 = vmatprep.mubr.f32.mxu0 %v537
        %2810 = vmatmul.mubr.f32.gmra.mrb[0].mxu0 %v536
        %v2811 = vpop.f32.mrb[0].mxu0
        %v2812 = vadd.f32 %v2363, %v2811
        %v2813 = vpop.f32.mrb[0].mxu0
        %v2814 = vadd.f32 %v2365, %v2813
        %2815 = vmatprep.mubr.f32.mxu0 %v541
        %2816 = vmatmul.mubr.f32.gmra.mrb[0].mxu0 %v540
        %v2817 = vpop.f32.mrb[0].mxu0
        %v2818 = vadd.f32 %v2369, %v2817
        %v2819 = vpop.f32.mrb[0].mxu0
        %v2820 = vadd.f32 %v2371, %v2819
        %2821 = vmatprep.mubr.f32.mxu0 %v545
        %2822 = vmatmul.mubr.f32.gmra.mrb[0].mxu0 %v544
        %v2823 = vpop.f32.mrb[0].mxu0
        %v2824 = vadd.f32 %v2375, %v2823
        %v2825 = vpop.f32.mrb[0].mxu0
        %v2826 = vadd.f32 %v2377, %v2825
        %2827 = vmatprep.mubr.f32.mxu0 %v549
        %2828 = vmatmul.mubr.f32.gmra.mrb[0].mxu0 %v548
        %v2829 = vpop.f32.mrb[0].mxu0
        %v2830 = vadd.f32 %v2381, %v2829
        %v2831 = vpop.f32.mrb[0].mxu0
        %v2832 = vadd.f32 %v2383, %v2831
        %2833 = vmatprep.mubr.f32.mxu0 %v553
        %2834 = vmatmul.mubr.f32.gmra.mrb[0].mxu0 %v552
        %v2835 = vpop.f32.mrb[0].mxu0
        %v2836 = vadd.f32 %v2387, %v2835
        %v2837 = vpop.f32.mrb[0].mxu0
        %v2838 = vadd.f32 %v2389, %v2837
        %2839 = vmatprep.mubr.f32.mxu0 %v557
        %2840 = vmatmul.mubr.f32.gmra.mrb[0].mxu0 %v556
        %v2841 = vpop.f32.mrb[0].mxu0
        %v2842 = vadd.f32 %v2393, %v2841
        %v2843 = vpop.f32.mrb[0].mxu0
        %v2844 = vadd.f32 %v2395, %v2843
        %2845 = vmatprep.mubr.f32.mxu0 %v561
        %2846 = vmatmul.mubr.f32.gmra.mrb[0].mxu0 %v560
        %v2847 = vpop.f32.mrb[0].mxu0
        %v2848 = vadd.f32 %v2399, %v2847
        %v2849 = vpop.f32.mrb[0].mxu0
        %v2850 = vadd.f32 %v2401, %v2849
        %2851 = vmatprep.mubr.f32.mxu0 %v565
        %2852 = vmatmul.mubr.f32.gmra.mrb[0].mxu0 %v564
        %v2853 = vpop.f32.mrb[0].mxu0
        %v2854 = vadd.f32 %v2405, %v2853
        %v2855 = vpop.f32.mrb[0].mxu0
        %v2856 = vadd.f32 %v2407, %v2855
        %2857 = vmatprep.mubr.f32.mxu0 %v569
        %2858 = vmatmul.mubr.f32.gmra.mrb[0].mxu0 %v568
        %v2859 = vpop.f32.mrb[0].mxu0
        %v2860 = vadd.f32 %v2411, %v2859
        %v2861 = vpop.f32.mrb[0].mxu0
        %v2862 = vadd.f32 %v2413, %v2861
        %2863 = vmatprep.mubr.f32.mxu0 %v573
        %2864 = vmatmul.mubr.f32.gmra.mrb[0].mxu0 %v572
        %v2865 = vpop.f32.mrb[0].mxu0
        %v2866 = vadd.f32 %v2417, %v2865
        %v2867 = vpop.f32.mrb[0].mxu0
        %v2868 = vadd.f32 %v2419, %v2867
        %2869 = vmatprep.mubr.f32.mxu0 %v577
        %2870 = vmatmul.mubr.f32.gmra.mrb[0].mxu0 %v576
        %v2871 = vpop.f32.mrb[0].mxu0
        %v2872 = vadd.f32 %v2423, %v2871
        %v2873 = vpop.f32.mrb[0].mxu0
        %v2874 = vadd.f32 %v2425, %v2873
        %2875 = vmatprep.mubr.f32.mxu0 %v581
        %2876 = vmatmul.mubr.f32.gmra.mrb[0].mxu0 %v580
        %v2877 = vpop.f32.mrb[0].mxu0
        %v2878 = vadd.f32 %v2429, %v2877
        %v2879 = vpop.f32.mrb[0].mxu0
        %v2880 = vadd.f32 %v2431, %v2879
        %2881 = vmatprep.mubr.f32.mxu0 %v585
        %2882 = vmatmul.mubr.f32.gmra.mrb[0].mxu0 %v584
        %v2883 = vpop.f32.mrb[0].mxu0
        %v2884 = vadd.f32 %v2435, %v2883
        %v2885 = vpop.f32.mrb[0].mxu0
        %v2886 = vadd.f32 %v2437, %v2885
        %2887 = vmatprep.mubr.f32.mxu0 %v589
        %2888 = vmatmul.mubr.f32.gmra.mrb[0].mxu0 %v588
        %v2889 = vpop.f32.mrb[0].mxu0
        %v2890 = vadd.f32 %v2441, %v2889
        %v2891 = vpop.f32.mrb[0].mxu0
        %v2892 = vadd.f32 %v2443, %v2891
        %2893 = vmatprep.mubr.f32.mxu0 %v593
        %2894 = vmatmul.mubr.f32.gmra.mrb[0].mxu0 %v592
        %v2895 = vpop.f32.mrb[0].mxu0
        %v2896 = vadd.f32 %v2447, %v2895
        %v2897 = vpop.f32.mrb[0].mxu0
        %v2898 = vadd.f32 %v2449, %v2897
        %2899 = vmatprep.mubr.f32.mxu0 %v597
        %2900 = vmatmul.mubr.f32.gmra.mrb[0].mxu0 %v596
        %v2901 = vpop.f32.mrb[0].mxu0
        %v2902 = vadd.f32 %v2453, %v2901
        %v2903 = vpop.f32.mrb[0].mxu0
        %v2904 = vadd.f32 %v2455, %v2903
        %2905 = vdwg.mxu0
        %2906 = vmatprep.subr.mxu0 %v603
        %2907 = vmatpush1.msra.mxu0 %v602
        %2908 = vmatprep.subr.mxu0 %v611
        %2909 = vmatpush1.msra.mxu0 %v610
        %2910 = vmatprep.subr.mxu0 %v619
        %2911 = vmatpush1.msra.mxu0 %v618
        %2912 = vmatprep.subr.mxu0 %v627
        %2913 = vmatpush1.msra.mxu0 %v626
        %2914 = vmatprep.subr.mxu0 %v635
        %2915 = vmatpush1.msra.mxu0 %v634
        %2916 = vmatprep.subr.mxu0 %v643
        %2917 = vmatpush1.msra.mxu0 %v642
        %2918 = vmatprep.subr.mxu0 %v651
        %2919 = vmatpush1.msra.mxu0 %v650
        %2920 = vmatprep.subr.mxu0 %v659
        %2921 = vmatpush1.msra.mxu0 %v658
        %2922 = vmatprep.subr.mxu0 %v667
        %2923 = vmatpush1.msra.mxu0 %v666
        %2924 = vmatprep.subr.mxu0 %v675
        %2925 = vmatpush1.msra.mxu0 %v674
        %2926 = vmatprep.subr.mxu0 %v683
        %2927 = vmatpush1.msra.mxu0 %v682
        %2928 = vmatprep.subr.mxu0 %v691
        %2929 = vmatpush1.msra.mxu0 %v690
        %2930 = vmatprep.subr.mxu0 %v699
        %2931 = vmatpush1.msra.mxu0 %v698
        %2932 = vmatprep.subr.mxu0 %v707
        %2933 = vmatpush1.msra.mxu0 %v706
        %2934 = vmatprep.subr.mxu0 %v715
        %2935 = vmatpush1.msra.mxu0 %v714
        %2936 = vmatprep.subr.mxu0 %v723
        %2937 = vmatpush1.msra.mxu0 %v722
        %2938 = vmatprep.subr.mxu0 %v731
        %2939 = vmatpush1.msra.mxu0 %v730
        %2940 = vmatprep.subr.mxu0 %v739
        %2941 = vmatpush1.msra.mxu0 %v738
        %2942 = vmatprep.subr.mxu0 %v747
        %2943 = vmatpush1.msra.mxu0 %v746
        %2944 = vmatprep.subr.mxu0 %v755
        %2945 = vmatpush1.msra.mxu0 %v754
        %2946 = vmatprep.subr.mxu0 %v763
        %2947 = vmatpush1.msra.mxu0 %v762
        %2948 = vmatprep.subr.mxu0 %v771
        %2949 = vmatpush1.msra.mxu0 %v770
        %2950 = vmatprep.subr.mxu0 %v779
        %2951 = vmatpush1.msra.mxu0 %v778
        %2952 = vmatprep.subr.mxu0 %v787
        %2953 = vmatpush1.msra.mxu0 %v786
        %2954 = vmatprep.subr.mxu0 %v795
        %2955 = vmatpush1.msra.mxu0 %v794
        %2956 = vmatprep.subr.mxu0 %v803
        %2957 = vmatpush1.msra.mxu0 %v802
        %2958 = vmatprep.subr.mxu0 %v811
        %2959 = vmatpush1.msra.mxu0 %v810
        %2960 = vmatprep.subr.mxu0 %v819
        %2961 = vmatpush1.msra.mxu0 %v818
        %2962 = vmatprep.subr.mxu0 %v827
        %2963 = vmatpush1.msra.mxu0 %v826
        %2964 = vmatprep.subr.mxu0 %v835
        %2965 = vmatpush1.msra.mxu0 %v834
        %2966 = vmatprep.subr.mxu0 %v843
        %2967 = vmatpush1.msra.mxu0 %v842
        %2968 = vmatprep.subr.mxu0 %v851
        %2969 = vmatpush1.msra.mxu0 %v850
        %2970 = vmatprep.mubr.f32.mxu0 %v343
        %2971 = vmatmul.mubr.f32.gmra.mrb[0].mxu0 %v342
        %v2972 = vpop.f32.mrb[0].mxu0
        %v2973 = vadd.f32 0.0, %v2972
        %v2974 = vpop.f32.mrb[0].mxu0
        %v2975 = vadd.f32 0.0, %v2974
        %2976 = vmatprep.mubr.f32.mxu0 %v347
        %2977 = vmatmul.mubr.f32.gmra.mrb[0].mxu0 %v346
        %v2978 = vpop.f32.mrb[0].mxu0
        %v2979 = vadd.f32 0.0, %v2978
        %v2980 = vpop.f32.mrb[0].mxu0
        %v2981 = vadd.f32 0.0, %v2980
        %2982 = vmatprep.mubr.f32.mxu0 %v351
        %2983 = vmatmul.mubr.f32.gmra.mrb[0].mxu0 %v350
        %v2984 = vpop.f32.mrb[0].mxu0
        %v2985 = vadd.f32 0.0, %v2984
        %v2986 = vpop.f32.mrb[0].mxu0
        %v2987 = vadd.f32 0.0, %v2986
        %2988 = vmatprep.mubr.f32.mxu0 %v355
        %2989 = vmatmul.mubr.f32.gmra.mrb[0].mxu0 %v354
        %v2990 = vpop.f32.mrb[0].mxu0
        %v2991 = vadd.f32 0.0, %v2990
        %v2992 = vpop.f32.mrb[0].mxu0
        %v2993 = vadd.f32 0.0, %v2992
        %2994 = vmatprep.mubr.f32.mxu0 %v359
        %2995 = vmatmul.mubr.f32.gmra.mrb[0].mxu0 %v358
        %v2996 = vpop.f32.mrb[0].mxu0
        %v2997 = vadd.f32 0.0, %v2996
        %v2998 = vpop.f32.mrb[0].mxu0
        %v2999 = vadd.f32 0.0, %v2998
        %3000 = vmatprep.mubr.f32.mxu0 %v363
        %3001 = vmatmul.mubr.f32.gmra.mrb[0].mxu0 %v362
        %v3002 = vpop.f32.mrb[0].mxu0
        %v3003 = vadd.f32 0.0, %v3002
        %v3004 = vpop.f32.mrb[0].mxu0
        %v3005 = vadd.f32 0.0, %v3004
        %3006 = vmatprep.mubr.f32.mxu0 %v367
        %3007 = vmatmul.mubr.f32.gmra.mrb[0].mxu0 %v366
        %v3008 = vpop.f32.mrb[0].mxu0
        %v3009 = vadd.f32 0.0, %v3008
        %v3010 = vpop.f32.mrb[0].mxu0
        %v3011 = vadd.f32 0.0, %v3010
        %3012 = vmatprep.mubr.f32.mxu0 %v371
        %3013 = vmatmul.mubr.f32.gmra.mrb[0].mxu0 %v370
        %v3014 = vpop.f32.mrb[0].mxu0
        %v3015 = vadd.f32 0.0, %v3014
        %v3016 = vpop.f32.mrb[0].mxu0
        %v3017 = vadd.f32 0.0, %v3016
        %3018 = vmatprep.mubr.f32.mxu0 %v375
        %3019 = vmatmul.mubr.f32.gmra.mrb[0].mxu0 %v374
        %v3020 = vpop.f32.mrb[0].mxu0
        %v3021 = vadd.f32 0.0, %v3020
        %v3022 = vpop.f32.mrb[0].mxu0
        %v3023 = vadd.f32 0.0, %v3022
        %3024 = vmatprep.mubr.f32.mxu0 %v379
        %3025 = vmatmul.mubr.f32.gmra.mrb[0].mxu0 %v378
        %v3026 = vpop.f32.mrb[0].mxu0
        %v3027 = vadd.f32 0.0, %v3026
        %v3028 = vpop.f32.mrb[0].mxu0
        %v3029 = vadd.f32 0.0, %v3028
        %3030 = vmatprep.mubr.f32.mxu0 %v383
        %3031 = vmatmul.mubr.f32.gmra.mrb[0].mxu0 %v382
        %v3032 = vpop.f32.mrb[0].mxu0
        %v3033 = vadd.f32 0.0, %v3032
        %v3034 = vpop.f32.mrb[0].mxu0
        %v3035 = vadd.f32 0.0, %v3034
        %3036 = vmatprep.mubr.f32.mxu0 %v387
        %3037 = vmatmul.mubr.f32.gmra.mrb[0].mxu0 %v386
        %v3038 = vpop.f32.mrb[0].mxu0
        %v3039 = vadd.f32 0.0, %v3038
        %v3040 = vpop.f32.mrb[0].mxu0
        %v3041 = vadd.f32 0.0, %v3040
        %3042 = vmatprep.mubr.f32.mxu0 %v391
        %3043 = vmatmul.mubr.f32.gmra.mrb[0].mxu0 %v390
        %v3044 = vpop.f32.mrb[0].mxu0
        %v3045 = vadd.f32 0.0, %v3044
        %v3046 = vpop.f32.mrb[0].mxu0
        %v3047 = vadd.f32 0.0, %v3046
        %3048 = vmatprep.mubr.f32.mxu0 %v395
        %3049 = vmatmul.mubr.f32.gmra.mrb[0].mxu0 %v394
        %v3050 = vpop.f32.mrb[0].mxu0
        %v3051 = vadd.f32 0.0, %v3050
        %v3052 = vpop.f32.mrb[0].mxu0
        %v3053 = vadd.f32 0.0, %v3052
        %3054 = vmatprep.mubr.f32.mxu0 %v399
        %3055 = vmatmul.mubr.f32.gmra.mrb[0].mxu0 %v398
        %v3056 = vpop.f32.mrb[0].mxu0
        %v3057 = vadd.f32 0.0, %v3056
        %v3058 = vpop.f32.mrb[0].mxu0
        %v3059 = vadd.f32 0.0, %v3058
        %3060 = vmatprep.mubr.f32.mxu0 %v403
        %3061 = vmatmul.mubr.f32.gmra.mrb[0].mxu0 %v402
        %v3062 = vpop.f32.mrb[0].mxu0
        %v3063 = vadd.f32 0.0, %v3062
        %v3064 = vpop.f32.mrb[0].mxu0
        %v3065 = vadd.f32 0.0, %v3064
        %3066 = vmatprep.mubr.f32.mxu0 %v407
        %3067 = vmatmul.mubr.f32.gmra.mrb[0].mxu0 %v406
        %v3068 = vpop.f32.mrb[0].mxu0
        %v3069 = vadd.f32 0.0, %v3068
        %v3070 = vpop.f32.mrb[0].mxu0
        %v3071 = vadd.f32 0.0, %v3070
        %3072 = vmatprep.mubr.f32.mxu0 %v411
        %3073 = vmatmul.mubr.f32.gmra.mrb[0].mxu0 %v410
        %v3074 = vpop.f32.mrb[0].mxu0
        %v3075 = vadd.f32 0.0, %v3074
        %v3076 = vpop.f32.mrb[0].mxu0
        %v3077 = vadd.f32 0.0, %v3076
        %3078 = vmatprep.mubr.f32.mxu0 %v415
        %3079 = vmatmul.mubr.f32.gmra.mrb[0].mxu0 %v414
        %v3080 = vpop.f32.mrb[0].mxu0
        %v3081 = vadd.f32 0.0, %v3080
        %v3082 = vpop.f32.mrb[0].mxu0
        %v3083 = vadd.f32 0.0, %v3082
        %3084 = vmatprep.mubr.f32.mxu0 %v419
        %3085 = vmatmul.mubr.f32.gmra.mrb[0].mxu0 %v418
        %v3086 = vpop.f32.mrb[0].mxu0
        %v3087 = vadd.f32 0.0, %v3086
        %v3088 = vpop.f32.mrb[0].mxu0
        %v3089 = vadd.f32 0.0, %v3088
        %3090 = vmatprep.mubr.f32.mxu0 %v423
        %3091 = vmatmul.mubr.f32.gmra.mrb[0].mxu0 %v422
        %v3092 = vpop.f32.mrb[0].mxu0
        %v3093 = vadd.f32 0.0, %v3092
        %v3094 = vpop.f32.mrb[0].mxu0
        %v3095 = vadd.f32 0.0, %v3094
        %3096 = vmatprep.mubr.f32.mxu0 %v427
        %3097 = vmatmul.mubr.f32.gmra.mrb[0].mxu0 %v426
        %v3098 = vpop.f32.mrb[0].mxu0
        %v3099 = vadd.f32 0.0, %v3098
        %v3100 = vpop.f32.mrb[0].mxu0
        %v3101 = vadd.f32 0.0, %v3100
        %3102 = vmatprep.mubr.f32.mxu0 %v431
        %3103 = vmatmul.mubr.f32.gmra.mrb[0].mxu0 %v430
        %v3104 = vpop.f32.mrb[0].mxu0
        %v3105 = vadd.f32 0.0, %v3104
        %v3106 = vpop.f32.mrb[0].mxu0
        %v3107 = vadd.f32 0.0, %v3106
        %3108 = vmatprep.mubr.f32.mxu0 %v435
        %3109 = vmatmul.mubr.f32.gmra.mrb[0].mxu0 %v434
        %v3110 = vpop.f32.mrb[0].mxu0
        %v3111 = vadd.f32 0.0, %v3110
        %v3112 = vpop.f32.mrb[0].mxu0
        %v3113 = vadd.f32 0.0, %v3112
        %3114 = vmatprep.mubr.f32.mxu0 %v439
        %3115 = vmatmul.mubr.f32.gmra.mrb[0].mxu0 %v438
        %v3116 = vpop.f32.mrb[0].mxu0
        %v3117 = vadd.f32 0.0, %v3116
        %v3118 = vpop.f32.mrb[0].mxu0
        %v3119 = vadd.f32 0.0, %v3118
        %3120 = vmatprep.mubr.f32.mxu0 %v443
        %3121 = vmatmul.mubr.f32.gmra.mrb[0].mxu0 %v442
        %v3122 = vpop.f32.mrb[0].mxu0
        %v3123 = vadd.f32 0.0, %v3122
        %v3124 = vpop.f32.mrb[0].mxu0
        %v3125 = vadd.f32 0.0, %v3124
        %3126 = vmatprep.mubr.f32.mxu0 %v447
        %3127 = vmatmul.mubr.f32.gmra.mrb[0].mxu0 %v446
        %v3128 = vpop.f32.mrb[0].mxu0
        %v3129 = vadd.f32 0.0, %v3128
        %v3130 = vpop.f32.mrb[0].mxu0
        %v3131 = vadd.f32 0.0, %v3130
        %3132 = vmatprep.mubr.f32.mxu0 %v451
        %3133 = vmatmul.mubr.f32.gmra.mrb[0].mxu0 %v450
        %v3134 = vpop.f32.mrb[0].mxu0
        %v3135 = vadd.f32 0.0, %v3134
        %v3136 = vpop.f32.mrb[0].mxu0
        %v3137 = vadd.f32 0.0, %v3136
        %3138 = vmatprep.mubr.f32.mxu0 %v455
        %3139 = vmatmul.mubr.f32.gmra.mrb[0].mxu0 %v454
        %v3140 = vpop.f32.mrb[0].mxu0
        %v3141 = vadd.f32 0.0, %v3140
        %v3142 = vpop.f32.mrb[0].mxu0
        %v3143 = vadd.f32 0.0, %v3142
        %3144 = vmatprep.mubr.f32.mxu0 %v459
        %3145 = vmatmul.mubr.f32.gmra.mrb[0].mxu0 %v458
        %v3146 = vpop.f32.mrb[0].mxu0
        %v3147 = vadd.f32 0.0, %v3146
        %v3148 = vpop.f32.mrb[0].mxu0
        %v3149 = vadd.f32 0.0, %v3148
        %3150 = vmatprep.mubr.f32.mxu0 %v463
        %3151 = vmatmul.mubr.f32.gmra.mrb[0].mxu0 %v462
        %v3152 = vpop.f32.mrb[0].mxu0
        %v3153 = vadd.f32 0.0, %v3152
        %v3154 = vpop.f32.mrb[0].mxu0
        %v3155 = vadd.f32 0.0, %v3154
        %3156 = vmatprep.mubr.f32.mxu0 %v467
        %3157 = vmatmul.mubr.f32.gmra.mrb[0].mxu0 %v466
        %v3158 = vpop.f32.mrb[0].mxu0
        %v3159 = vadd.f32 0.0, %v3158
        %v3160 = vpop.f32.mrb[0].mxu0
        %v3161 = vadd.f32 0.0, %v3160
        %3162 = vmatprep.mubr.f32.mxu0 %v471
        %3163 = vmatmul.mubr.f32.gmra.mrb[0].mxu0 %v470
        %v3164 = vpop.f32.mrb[0].mxu0
        %v3165 = vadd.f32 0.0, %v3164
        %v3166 = vpop.f32.mrb[0].mxu0
        %v3167 = vadd.f32 0.0, %v3166
        %3168 = vmatprep.mubr.f32.mxu0 %v475
        %3169 = vmatmul.mubr.f32.gmra.mrb[0].mxu0 %v474
        %v3170 = vpop.f32.mrb[0].mxu0
        %v3171 = vadd.f32 0.0, %v3170
        %v3172 = vpop.f32.mrb[0].mxu0
        %v3173 = vadd.f32 0.0, %v3172
        %3174 = vmatprep.mubr.f32.mxu0 %v479
        %3175 = vmatmul.mubr.f32.gmra.mrb[0].mxu0 %v478
        %v3176 = vpop.f32.mrb[0].mxu0
        %v3177 = vadd.f32 0.0, %v3176
        %v3178 = vpop.f32.mrb[0].mxu0
        %v3179 = vadd.f32 0.0, %v3178
        %3180 = vmatprep.mubr.f32.mxu0 %v483
        %3181 = vmatmul.mubr.f32.gmra.mrb[0].mxu0 %v482
        %v3182 = vpop.f32.mrb[0].mxu0
        %v3183 = vadd.f32 0.0, %v3182
        %v3184 = vpop.f32.mrb[0].mxu0
        %v3185 = vadd.f32 0.0, %v3184
        %3186 = vmatprep.mubr.f32.mxu0 %v487
        %3187 = vmatmul.mubr.f32.gmra.mrb[0].mxu0 %v486
        %v3188 = vpop.f32.mrb[0].mxu0
        %v3189 = vadd.f32 0.0, %v3188
        %v3190 = vpop.f32.mrb[0].mxu0
        %v3191 = vadd.f32 0.0, %v3190
        %3192 = vmatprep.mubr.f32.mxu0 %v491
        %3193 = vmatmul.mubr.f32.gmra.mrb[0].mxu0 %v490
        %v3194 = vpop.f32.mrb[0].mxu0
        %v3195 = vadd.f32 0.0, %v3194
        %v3196 = vpop.f32.mrb[0].mxu0
        %v3197 = vadd.f32 0.0, %v3196
        %3198 = vmatprep.mubr.f32.mxu0 %v495
        %3199 = vmatmul.mubr.f32.gmra.mrb[0].mxu0 %v494
        %v3200 = vpop.f32.mrb[0].mxu0
        %v3201 = vadd.f32 0.0, %v3200
        %v3202 = vpop.f32.mrb[0].mxu0
        %v3203 = vadd.f32 0.0, %v3202
        %3204 = vmatprep.mubr.f32.mxu0 %v499
        %3205 = vmatmul.mubr.f32.gmra.mrb[0].mxu0 %v498
        %v3206 = vpop.f32.mrb[0].mxu0
        %v3207 = vadd.f32 0.0, %v3206
        %v3208 = vpop.f32.mrb[0].mxu0
        %v3209 = vadd.f32 0.0, %v3208
        %3210 = vmatprep.mubr.f32.mxu0 %v503
        %3211 = vmatmul.mubr.f32.gmra.mrb[0].mxu0 %v502
        %v3212 = vpop.f32.mrb[0].mxu0
        %v3213 = vadd.f32 0.0, %v3212
        %v3214 = vpop.f32.mrb[0].mxu0
        %v3215 = vadd.f32 0.0, %v3214
        %3216 = vmatprep.mubr.f32.mxu0 %v507
        %3217 = vmatmul.mubr.f32.gmra.mrb[0].mxu0 %v506
        %v3218 = vpop.f32.mrb[0].mxu0
        %v3219 = vadd.f32 0.0, %v3218
        %v3220 = vpop.f32.mrb[0].mxu0
        %v3221 = vadd.f32 0.0, %v3220
        %3222 = vmatprep.mubr.f32.mxu0 %v511
        %3223 = vmatmul.mubr.f32.gmra.mrb[0].mxu0 %v510
        %v3224 = vpop.f32.mrb[0].mxu0
        %v3225 = vadd.f32 0.0, %v3224
        %v3226 = vpop.f32.mrb[0].mxu0
        %v3227 = vadd.f32 0.0, %v3226
        %3228 = vmatprep.mubr.f32.mxu0 %v515
        %3229 = vmatmul.mubr.f32.gmra.mrb[0].mxu0 %v514
        %v3230 = vpop.f32.mrb[0].mxu0
        %v3231 = vadd.f32 0.0, %v3230
        %v3232 = vpop.f32.mrb[0].mxu0
        %v3233 = vadd.f32 0.0, %v3232
        %3234 = vmatprep.mubr.f32.mxu0 %v519
        %3235 = vmatmul.mubr.f32.gmra.mrb[0].mxu0 %v518
        %v3236 = vpop.f32.mrb[0].mxu0
        %v3237 = vadd.f32 0.0, %v3236
        %v3238 = vpop.f32.mrb[0].mxu0
        %v3239 = vadd.f32 0.0, %v3238
        %3240 = vmatprep.mubr.f32.mxu0 %v523
        %3241 = vmatmul.mubr.f32.gmra.mrb[0].mxu0 %v522
        %v3242 = vpop.f32.mrb[0].mxu0
        %v3243 = vadd.f32 0.0, %v3242
        %v3244 = vpop.f32.mrb[0].mxu0
        %v3245 = vadd.f32 0.0, %v3244
        %3246 = vmatprep.mubr.f32.mxu0 %v527
        %3247 = vmatmul.mubr.f32.gmra.mrb[0].mxu0 %v526
        %v3248 = vpop.f32.mrb[0].mxu0
        %v3249 = vadd.f32 0.0, %v3248
        %v3250 = vpop.f32.mrb[0].mxu0
        %v3251 = vadd.f32 0.0, %v3250
        %3252 = vmatprep.mubr.f32.mxu0 %v531
        %3253 = vmatmul.mubr.f32.gmra.mrb[0].mxu0 %v530
        %v3254 = vpop.f32.mrb[0].mxu0
        %v3255 = vadd.f32 0.0, %v3254
        %v3256 = vpop.f32.mrb[0].mxu0
        %v3257 = vadd.f32 0.0, %v3256
        %3258 = vmatprep.mubr.f32.mxu0 %v535
        %3259 = vmatmul.mubr.f32.gmra.mrb[0].mxu0 %v534
        %v3260 = vpop.f32.mrb[0].mxu0
        %v3261 = vadd.f32 0.0, %v3260
        %v3262 = vpop.f32.mrb[0].mxu0
        %v3263 = vadd.f32 0.0, %v3262
        %3264 = vmatprep.mubr.f32.mxu0 %v539
        %3265 = vmatmul.mubr.f32.gmra.mrb[0].mxu0 %v538
        %v3266 = vpop.f32.mrb[0].mxu0
        %v3267 = vadd.f32 0.0, %v3266
        %v3268 = vpop.f32.mrb[0].mxu0
        %v3269 = vadd.f32 0.0, %v3268
        %3270 = vmatprep.mubr.f32.mxu0 %v543
        %3271 = vmatmul.mubr.f32.gmra.mrb[0].mxu0 %v542
        %v3272 = vpop.f32.mrb[0].mxu0
        %v3273 = vadd.f32 0.0, %v3272
        %v3274 = vpop.f32.mrb[0].mxu0
        %v3275 = vadd.f32 0.0, %v3274
        %3276 = vmatprep.mubr.f32.mxu0 %v547
        %3277 = vmatmul.mubr.f32.gmra.mrb[0].mxu0 %v546
        %v3278 = vpop.f32.mrb[0].mxu0
        %v3279 = vadd.f32 0.0, %v3278
        %v3280 = vpop.f32.mrb[0].mxu0
        %v3281 = vadd.f32 0.0, %v3280
        %3282 = vmatprep.mubr.f32.mxu0 %v551
        %3283 = vmatmul.mubr.f32.gmra.mrb[0].mxu0 %v550
        %v3284 = vpop.f32.mrb[0].mxu0
        %v3285 = vadd.f32 0.0, %v3284
        %v3286 = vpop.f32.mrb[0].mxu0
        %v3287 = vadd.f32 0.0, %v3286
        %3288 = vmatprep.mubr.f32.mxu0 %v555
        %3289 = vmatmul.mubr.f32.gmra.mrb[0].mxu0 %v554
        %v3290 = vpop.f32.mrb[0].mxu0
        %v3291 = vadd.f32 0.0, %v3290
        %v3292 = vpop.f32.mrb[0].mxu0
        %v3293 = vadd.f32 0.0, %v3292
        %3294 = vmatprep.mubr.f32.mxu0 %v559
        %3295 = vmatmul.mubr.f32.gmra.mrb[0].mxu0 %v558
        %v3296 = vpop.f32.mrb[0].mxu0
        %v3297 = vadd.f32 0.0, %v3296
        %v3298 = vpop.f32.mrb[0].mxu0
        %v3299 = vadd.f32 0.0, %v3298
        %3300 = vmatprep.mubr.f32.mxu0 %v563
        %3301 = vmatmul.mubr.f32.gmra.mrb[0].mxu0 %v562
        %v3302 = vpop.f32.mrb[0].mxu0
        %v3303 = vadd.f32 0.0, %v3302
        %v3304 = vpop.f32.mrb[0].mxu0
        %v3305 = vadd.f32 0.0, %v3304
        %3306 = vmatprep.mubr.f32.mxu0 %v567
        %3307 = vmatmul.mubr.f32.gmra.mrb[0].mxu0 %v566
        %v3308 = vpop.f32.mrb[0].mxu0
        %v3309 = vadd.f32 0.0, %v3308
        %v3310 = vpop.f32.mrb[0].mxu0
        %v3311 = vadd.f32 0.0, %v3310
        %3312 = vmatprep.mubr.f32.mxu0 %v571
        %3313 = vmatmul.mubr.f32.gmra.mrb[0].mxu0 %v570
        %v3314 = vpop.f32.mrb[0].mxu0
        %v3315 = vadd.f32 0.0, %v3314
        %v3316 = vpop.f32.mrb[0].mxu0
        %v3317 = vadd.f32 0.0, %v3316
        %3318 = vmatprep.mubr.f32.mxu0 %v575
        %3319 = vmatmul.mubr.f32.gmra.mrb[0].mxu0 %v574
        %v3320 = vpop.f32.mrb[0].mxu0
        %v3321 = vadd.f32 0.0, %v3320
        %v3322 = vpop.f32.mrb[0].mxu0
        %v3323 = vadd.f32 0.0, %v3322
        %3324 = vmatprep.mubr.f32.mxu0 %v579
        %3325 = vmatmul.mubr.f32.gmra.mrb[0].mxu0 %v578
        %v3326 = vpop.f32.mrb[0].mxu0
        %v3327 = vadd.f32 0.0, %v3326
        %v3328 = vpop.f32.mrb[0].mxu0
        %v3329 = vadd.f32 0.0, %v3328
        %3330 = vmatprep.mubr.f32.mxu0 %v583
        %3331 = vmatmul.mubr.f32.gmra.mrb[0].mxu0 %v582
        %v3332 = vpop.f32.mrb[0].mxu0
        %v3333 = vadd.f32 0.0, %v3332
        %v3334 = vpop.f32.mrb[0].mxu0
        %v3335 = vadd.f32 0.0, %v3334
        %3336 = vmatprep.mubr.f32.mxu0 %v587
        %3337 = vmatmul.mubr.f32.gmra.mrb[0].mxu0 %v586
        %v3338 = vpop.f32.mrb[0].mxu0
        %v3339 = vadd.f32 0.0, %v3338
        %v3340 = vpop.f32.mrb[0].mxu0
        %v3341 = vadd.f32 0.0, %v3340
        %3342 = vmatprep.mubr.f32.mxu0 %v591
        %3343 = vmatmul.mubr.f32.gmra.mrb[0].mxu0 %v590
        %v3344 = vpop.f32.mrb[0].mxu0
        %v3345 = vadd.f32 0.0, %v3344
        %v3346 = vpop.f32.mrb[0].mxu0
        %v3347 = vadd.f32 0.0, %v3346
        %3348 = vmatprep.mubr.f32.mxu0 %v595
        %3349 = vmatmul.mubr.f32.gmra.mrb[0].mxu0 %v594
        %v3350 = vpop.f32.mrb[0].mxu0
        %v3351 = vadd.f32 0.0, %v3350
        %v3352 = vpop.f32.mrb[0].mxu0
        %v3353 = vadd.f32 0.0, %v3352
        %3354 = vdwg.mxu0
        %3355 = vmatprep.subr.mxu0 %v859
        %3356 = vmatpush1.msra.mxu0 %v858
        %3357 = vmatprep.subr.mxu0 %v867
        %3358 = vmatpush1.msra.mxu0 %v866
        %3359 = vmatprep.subr.mxu0 %v875
        %3360 = vmatpush1.msra.mxu0 %v874
        %3361 = vmatprep.subr.mxu0 %v883
        %3362 = vmatpush1.msra.mxu0 %v882
        %3363 = vmatprep.subr.mxu0 %v891
        %3364 = vmatpush1.msra.mxu0 %v890
        %3365 = vmatprep.subr.mxu0 %v899
        %3366 = vmatpush1.msra.mxu0 %v898
        %3367 = vmatprep.subr.mxu0 %v907
        %3368 = vmatpush1.msra.mxu0 %v906
        %3369 = vmatprep.subr.mxu0 %v915
        %3370 = vmatpush1.msra.mxu0 %v914
        %3371 = vmatprep.subr.mxu0 %v923
        %3372 = vmatpush1.msra.mxu0 %v922
        %3373 = vmatprep.subr.mxu0 %v931
        %3374 = vmatpush1.msra.mxu0 %v930
        %3375 = vmatprep.subr.mxu0 %v939
        %3376 = vmatpush1.msra.mxu0 %v938
        %3377 = vmatprep.subr.mxu0 %v947
        %3378 = vmatpush1.msra.mxu0 %v946
        %3379 = vmatprep.subr.mxu0 %v955
        %3380 = vmatpush1.msra.mxu0 %v954
        %3381 = vmatprep.subr.mxu0 %v963
        %3382 = vmatpush1.msra.mxu0 %v962
        %3383 = vmatprep.subr.mxu0 %v971
        %3384 = vmatpush1.msra.mxu0 %v970
        %3385 = vmatprep.subr.mxu0 %v979
        %3386 = vmatpush1.msra.mxu0 %v978
        %3387 = vmatprep.subr.mxu0 %v987
        %3388 = vmatpush1.msra.mxu0 %v986
        %3389 = vmatprep.subr.mxu0 %v995
        %3390 = vmatpush1.msra.mxu0 %v994
        %3391 = vmatprep.subr.mxu0 %v1003
        %3392 = vmatpush1.msra.mxu0 %v1002
        %3393 = vmatprep.subr.mxu0 %v1011
        %3394 = vmatpush1.msra.mxu0 %v1010
        %3395 = vmatprep.subr.mxu0 %v1019
        %3396 = vmatpush1.msra.mxu0 %v1018
        %3397 = vmatprep.subr.mxu0 %v1027
        %3398 = vmatpush1.msra.mxu0 %v1026
        %3399 = vmatprep.subr.mxu0 %v1035
        %3400 = vmatpush1.msra.mxu0 %v1034
        %3401 = vmatprep.subr.mxu0 %v1043
        %3402 = vmatpush1.msra.mxu0 %v1042
        %3403 = vmatprep.subr.mxu0 %v1051
        %3404 = vmatpush1.msra.mxu0 %v1050
        %3405 = vmatprep.subr.mxu0 %v1059
        %3406 = vmatpush1.msra.mxu0 %v1058
        %3407 = vmatprep.subr.mxu0 %v1067
        %3408 = vmatpush1.msra.mxu0 %v1066
        %3409 = vmatprep.subr.mxu0 %v1075
        %3410 = vmatpush1.msra.mxu0 %v1074
        %3411 = vmatprep.subr.mxu0 %v1083
        %3412 = vmatpush1.msra.mxu0 %v1082
        %3413 = vmatprep.subr.mxu0 %v1091
        %3414 = vmatpush1.msra.mxu0 %v1090
        %3415 = vmatprep.subr.mxu0 %v1099
        %3416 = vmatpush1.msra.mxu0 %v1098
        %3417 = vmatprep.subr.mxu0 %v1107
        %3418 = vmatpush1.msra.mxu0 %v1106
        %3419 = vmatprep.mubr.f32.mxu0 %v345
        %3420 = vmatmul.mubr.f32.gmra.mrb[0].mxu0 %v344
        %v3421 = vpop.f32.mrb[0].mxu0
        %v3422 = vadd.f32 %v2973, %v3421
        %v3423 = vpop.f32.mrb[0].mxu0
        %v3424 = vadd.f32 %v2975, %v3423
        %3425 = vmatprep.mubr.f32.mxu0 %v349
        %3426 = vmatmul.mubr.f32.gmra.mrb[0].mxu0 %v348
        %v3427 = vpop.f32.mrb[0].mxu0
        %v3428 = vadd.f32 %v2979, %v3427
        %v3429 = vpop.f32.mrb[0].mxu0
        %v3430 = vadd.f32 %v2981, %v3429
        %3431 = vmatprep.mubr.f32.mxu0 %v353
        %3432 = vmatmul.mubr.f32.gmra.mrb[0].mxu0 %v352
        %v3433 = vpop.f32.mrb[0].mxu0
        %v3434 = vadd.f32 %v2985, %v3433
        %v3435 = vpop.f32.mrb[0].mxu0
        %v3436 = vadd.f32 %v2987, %v3435
        %3437 = vmatprep.mubr.f32.mxu0 %v357
        %3438 = vmatmul.mubr.f32.gmra.mrb[0].mxu0 %v356
        %v3439 = vpop.f32.mrb[0].mxu0
        %v3440 = vadd.f32 %v2991, %v3439
        %v3441 = vpop.f32.mrb[0].mxu0
        %v3442 = vadd.f32 %v2993, %v3441
        %3443 = vmatprep.mubr.f32.mxu0 %v361
        %3444 = vmatmul.mubr.f32.gmra.mrb[0].mxu0 %v360
        %v3445 = vpop.f32.mrb[0].mxu0
        %v3446 = vadd.f32 %v2997, %v3445
        %v3447 = vpop.f32.mrb[0].mxu0
        %v3448 = vadd.f32 %v2999, %v3447
        %3449 = vmatprep.mubr.f32.mxu0 %v365
        %3450 = vmatmul.mubr.f32.gmra.mrb[0].mxu0 %v364
        %v3451 = vpop.f32.mrb[0].mxu0
        %v3452 = vadd.f32 %v3003, %v3451
        %v3453 = vpop.f32.mrb[0].mxu0
        %v3454 = vadd.f32 %v3005, %v3453
        %3455 = vmatprep.mubr.f32.mxu0 %v369
        %3456 = vmatmul.mubr.f32.gmra.mrb[0].mxu0 %v368
        %v3457 = vpop.f32.mrb[0].mxu0
        %v3458 = vadd.f32 %v3009, %v3457
        %v3459 = vpop.f32.mrb[0].mxu0
        %v3460 = vadd.f32 %v3011, %v3459
        %3461 = vmatprep.mubr.f32.mxu0 %v373
        %3462 = vmatmul.mubr.f32.gmra.mrb[0].mxu0 %v372
        %v3463 = vpop.f32.mrb[0].mxu0
        %v3464 = vadd.f32 %v3015, %v3463
        %v3465 = vpop.f32.mrb[0].mxu0
        %v3466 = vadd.f32 %v3017, %v3465
        %3467 = vmatprep.mubr.f32.mxu0 %v377
        %3468 = vmatmul.mubr.f32.gmra.mrb[0].mxu0 %v376
        %v3469 = vpop.f32.mrb[0].mxu0
        %v3470 = vadd.f32 %v3021, %v3469
        %v3471 = vpop.f32.mrb[0].mxu0
        %v3472 = vadd.f32 %v3023, %v3471
        %3473 = vmatprep.mubr.f32.mxu0 %v381
        %3474 = vmatmul.mubr.f32.gmra.mrb[0].mxu0 %v380
        %v3475 = vpop.f32.mrb[0].mxu0
        %v3476 = vadd.f32 %v3027, %v3475
        %v3477 = vpop.f32.mrb[0].mxu0
        %v3478 = vadd.f32 %v3029, %v3477
        %3479 = vmatprep.mubr.f32.mxu0 %v385
        %3480 = vmatmul.mubr.f32.gmra.mrb[0].mxu0 %v384
        %v3481 = vpop.f32.mrb[0].mxu0
        %v3482 = vadd.f32 %v3033, %v3481
        %v3483 = vpop.f32.mrb[0].mxu0
        %v3484 = vadd.f32 %v3035, %v3483
        %3485 = vmatprep.mubr.f32.mxu0 %v389
        %3486 = vmatmul.mubr.f32.gmra.mrb[0].mxu0 %v388
        %v3487 = vpop.f32.mrb[0].mxu0
        %v3488 = vadd.f32 %v3039, %v3487
        %v3489 = vpop.f32.mrb[0].mxu0
        %v3490 = vadd.f32 %v3041, %v3489
        %3491 = vmatprep.mubr.f32.mxu0 %v393
        %3492 = vmatmul.mubr.f32.gmra.mrb[0].mxu0 %v392
        %v3493 = vpop.f32.mrb[0].mxu0
        %v3494 = vadd.f32 %v3045, %v3493
        %v3495 = vpop.f32.mrb[0].mxu0
        %v3496 = vadd.f32 %v3047, %v3495
        %3497 = vmatprep.mubr.f32.mxu0 %v397
        %3498 = vmatmul.mubr.f32.gmra.mrb[0].mxu0 %v396
        %v3499 = vpop.f32.mrb[0].mxu0
        %v3500 = vadd.f32 %v3051, %v3499
        %v3501 = vpop.f32.mrb[0].mxu0
        %v3502 = vadd.f32 %v3053, %v3501
        %3503 = vmatprep.mubr.f32.mxu0 %v401
        %3504 = vmatmul.mubr.f32.gmra.mrb[0].mxu0 %v400
        %v3505 = vpop.f32.mrb[0].mxu0
        %v3506 = vadd.f32 %v3057, %v3505
        %v3507 = vpop.f32.mrb[0].mxu0
        %v3508 = vadd.f32 %v3059, %v3507
        %3509 = vmatprep.mubr.f32.mxu0 %v405
        %3510 = vmatmul.mubr.f32.gmra.mrb[0].mxu0 %v404
        %v3511 = vpop.f32.mrb[0].mxu0
        %v3512 = vadd.f32 %v3063, %v3511
        %v3513 = vpop.f32.mrb[0].mxu0
        %v3514 = vadd.f32 %v3065, %v3513
        %3515 = vmatprep.mubr.f32.mxu0 %v409
        %3516 = vmatmul.mubr.f32.gmra.mrb[0].mxu0 %v408
        %v3517 = vpop.f32.mrb[0].mxu0
        %v3518 = vadd.f32 %v3069, %v3517
        %v3519 = vpop.f32.mrb[0].mxu0
        %v3520 = vadd.f32 %v3071, %v3519
        %3521 = vmatprep.mubr.f32.mxu0 %v413
        %3522 = vmatmul.mubr.f32.gmra.mrb[0].mxu0 %v412
        %v3523 = vpop.f32.mrb[0].mxu0
        %v3524 = vadd.f32 %v3075, %v3523
        %v3525 = vpop.f32.mrb[0].mxu0
        %v3526 = vadd.f32 %v3077, %v3525
        %3527 = vmatprep.mubr.f32.mxu0 %v417
        %3528 = vmatmul.mubr.f32.gmra.mrb[0].mxu0 %v416
        %v3529 = vpop.f32.mrb[0].mxu0
        %v3530 = vadd.f32 %v3081, %v3529
        %v3531 = vpop.f32.mrb[0].mxu0
        %v3532 = vadd.f32 %v3083, %v3531
        %3533 = vmatprep.mubr.f32.mxu0 %v421
        %3534 = vmatmul.mubr.f32.gmra.mrb[0].mxu0 %v420
        %v3535 = vpop.f32.mrb[0].mxu0
        %v3536 = vadd.f32 %v3087, %v3535
        %v3537 = vpop.f32.mrb[0].mxu0
        %v3538 = vadd.f32 %v3089, %v3537
        %3539 = vmatprep.mubr.f32.mxu0 %v425
        %3540 = vmatmul.mubr.f32.gmra.mrb[0].mxu0 %v424
        %v3541 = vpop.f32.mrb[0].mxu0
        %v3542 = vadd.f32 %v3093, %v3541
        %v3543 = vpop.f32.mrb[0].mxu0
        %v3544 = vadd.f32 %v3095, %v3543
        %3545 = vmatprep.mubr.f32.mxu0 %v429
        %3546 = vmatmul.mubr.f32.gmra.mrb[0].mxu0 %v428
        %v3547 = vpop.f32.mrb[0].mxu0
        %v3548 = vadd.f32 %v3099, %v3547
        %v3549 = vpop.f32.mrb[0].mxu0
        %v3550 = vadd.f32 %v3101, %v3549
        %3551 = vmatprep.mubr.f32.mxu0 %v433
        %3552 = vmatmul.mubr.f32.gmra.mrb[0].mxu0 %v432
        %v3553 = vpop.f32.mrb[0].mxu0
        %v3554 = vadd.f32 %v3105, %v3553
        %v3555 = vpop.f32.mrb[0].mxu0
        %v3556 = vadd.f32 %v3107, %v3555
        %3557 = vmatprep.mubr.f32.mxu0 %v437
        %3558 = vmatmul.mubr.f32.gmra.mrb[0].mxu0 %v436
        %v3559 = vpop.f32.mrb[0].mxu0
        %v3560 = vadd.f32 %v3111, %v3559
        %v3561 = vpop.f32.mrb[0].mxu0
        %v3562 = vadd.f32 %v3113, %v3561
        %3563 = vmatprep.mubr.f32.mxu0 %v441
        %3564 = vmatmul.mubr.f32.gmra.mrb[0].mxu0 %v440
        %v3565 = vpop.f32.mrb[0].mxu0
        %v3566 = vadd.f32 %v3117, %v3565
        %v3567 = vpop.f32.mrb[0].mxu0
        %v3568 = vadd.f32 %v3119, %v3567
        %3569 = vmatprep.mubr.f32.mxu0 %v445
        %3570 = vmatmul.mubr.f32.gmra.mrb[0].mxu0 %v444
        %v3571 = vpop.f32.mrb[0].mxu0
        %v3572 = vadd.f32 %v3123, %v3571
        %v3573 = vpop.f32.mrb[0].mxu0
        %v3574 = vadd.f32 %v3125, %v3573
        %3575 = vmatprep.mubr.f32.mxu0 %v449
        %3576 = vmatmul.mubr.f32.gmra.mrb[0].mxu0 %v448
        %v3577 = vpop.f32.mrb[0].mxu0
        %v3578 = vadd.f32 %v3129, %v3577
        %v3579 = vpop.f32.mrb[0].mxu0
        %v3580 = vadd.f32 %v3131, %v3579
        %3581 = vmatprep.mubr.f32.mxu0 %v453
        %3582 = vmatmul.mubr.f32.gmra.mrb[0].mxu0 %v452
        %v3583 = vpop.f32.mrb[0].mxu0
        %v3584 = vadd.f32 %v3135, %v3583
        %v3585 = vpop.f32.mrb[0].mxu0
        %v3586 = vadd.f32 %v3137, %v3585
        %3587 = vmatprep.mubr.f32.mxu0 %v457
        %3588 = vmatmul.mubr.f32.gmra.mrb[0].mxu0 %v456
        %v3589 = vpop.f32.mrb[0].mxu0
        %v3590 = vadd.f32 %v3141, %v3589
        %v3591 = vpop.f32.mrb[0].mxu0
        %v3592 = vadd.f32 %v3143, %v3591
        %3593 = vmatprep.mubr.f32.mxu0 %v461
        %3594 = vmatmul.mubr.f32.gmra.mrb[0].mxu0 %v460
        %v3595 = vpop.f32.mrb[0].mxu0
        %v3596 = vadd.f32 %v3147, %v3595
        %v3597 = vpop.f32.mrb[0].mxu0
        %v3598 = vadd.f32 %v3149, %v3597
        %3599 = vmatprep.mubr.f32.mxu0 %v465
        %3600 = vmatmul.mubr.f32.gmra.mrb[0].mxu0 %v464
        %v3601 = vpop.f32.mrb[0].mxu0
        %v3602 = vadd.f32 %v3153, %v3601
        %v3603 = vpop.f32.mrb[0].mxu0
        %v3604 = vadd.f32 %v3155, %v3603
        %3605 = vmatprep.mubr.f32.mxu0 %v469
        %3606 = vmatmul.mubr.f32.gmra.mrb[0].mxu0 %v468
        %v3607 = vpop.f32.mrb[0].mxu0
        %v3608 = vadd.f32 %v3159, %v3607
        %v3609 = vpop.f32.mrb[0].mxu0
        %v3610 = vadd.f32 %v3161, %v3609
        %3611 = vmatprep.mubr.f32.mxu0 %v473
        %3612 = vmatmul.mubr.f32.gmra.mrb[0].mxu0 %v472
        %v3613 = vpop.f32.mrb[0].mxu0
        %v3614 = vadd.f32 %v3165, %v3613
        %v3615 = vpop.f32.mrb[0].mxu0
        %v3616 = vadd.f32 %v3167, %v3615
        %3617 = vmatprep.mubr.f32.mxu0 %v477
        %3618 = vmatmul.mubr.f32.gmra.mrb[0].mxu0 %v476
        %v3619 = vpop.f32.mrb[0].mxu0
        %v3620 = vadd.f32 %v3171, %v3619
        %v3621 = vpop.f32.mrb[0].mxu0
        %v3622 = vadd.f32 %v3173, %v3621
        %3623 = vmatprep.mubr.f32.mxu0 %v481
        %3624 = vmatmul.mubr.f32.gmra.mrb[0].mxu0 %v480
        %v3625 = vpop.f32.mrb[0].mxu0
        %v3626 = vadd.f32 %v3177, %v3625
        %v3627 = vpop.f32.mrb[0].mxu0
        %v3628 = vadd.f32 %v3179, %v3627
        %3629 = vmatprep.mubr.f32.mxu0 %v485
        %3630 = vmatmul.mubr.f32.gmra.mrb[0].mxu0 %v484
        %v3631 = vpop.f32.mrb[0].mxu0
        %v3632 = vadd.f32 %v3183, %v3631
        %v3633 = vpop.f32.mrb[0].mxu0
        %v3634 = vadd.f32 %v3185, %v3633
        %3635 = vmatprep.mubr.f32.mxu0 %v489
        %3636 = vmatmul.mubr.f32.gmra.mrb[0].mxu0 %v488
        %v3637 = vpop.f32.mrb[0].mxu0
        %v3638 = vadd.f32 %v3189, %v3637
        %v3639 = vpop.f32.mrb[0].mxu0
        %v3640 = vadd.f32 %v3191, %v3639
        %3641 = vmatprep.mubr.f32.mxu0 %v493
        %3642 = vmatmul.mubr.f32.gmra.mrb[0].mxu0 %v492
        %v3643 = vpop.f32.mrb[0].mxu0
        %v3644 = vadd.f32 %v3195, %v3643
        %v3645 = vpop.f32.mrb[0].mxu0
        %v3646 = vadd.f32 %v3197, %v3645
        %3647 = vmatprep.mubr.f32.mxu0 %v497
        %3648 = vmatmul.mubr.f32.gmra.mrb[0].mxu0 %v496
        %v3649 = vpop.f32.mrb[0].mxu0
        %v3650 = vadd.f32 %v3201, %v3649
        %v3651 = vpop.f32.mrb[0].mxu0
        %v3652 = vadd.f32 %v3203, %v3651
        %3653 = vmatprep.mubr.f32.mxu0 %v501
        %3654 = vmatmul.mubr.f32.gmra.mrb[0].mxu0 %v500
        %v3655 = vpop.f32.mrb[0].mxu0
        %v3656 = vadd.f32 %v3207, %v3655
        %v3657 = vpop.f32.mrb[0].mxu0
        %v3658 = vadd.f32 %v3209, %v3657
        %3659 = vmatprep.mubr.f32.mxu0 %v505
        %3660 = vmatmul.mubr.f32.gmra.mrb[0].mxu0 %v504
        %v3661 = vpop.f32.mrb[0].mxu0
        %v3662 = vadd.f32 %v3213, %v3661
        %v3663 = vpop.f32.mrb[0].mxu0
        %v3664 = vadd.f32 %v3215, %v3663
        %3665 = vmatprep.mubr.f32.mxu0 %v509
        %3666 = vmatmul.mubr.f32.gmra.mrb[0].mxu0 %v508
        %v3667 = vpop.f32.mrb[0].mxu0
        %v3668 = vadd.f32 %v3219, %v3667
        %v3669 = vpop.f32.mrb[0].mxu0
        %v3670 = vadd.f32 %v3221, %v3669
        %3671 = vmatprep.mubr.f32.mxu0 %v513
        %3672 = vmatmul.mubr.f32.gmra.mrb[0].mxu0 %v512
        %v3673 = vpop.f32.mrb[0].mxu0
        %v3674 = vadd.f32 %v3225, %v3673
        %v3675 = vpop.f32.mrb[0].mxu0
        %v3676 = vadd.f32 %v3227, %v3675
        %3677 = vmatprep.mubr.f32.mxu0 %v517
        %3678 = vmatmul.mubr.f32.gmra.mrb[0].mxu0 %v516
        %v3679 = vpop.f32.mrb[0].mxu0
        %v3680 = vadd.f32 %v3231, %v3679
        %v3681 = vpop.f32.mrb[0].mxu0
        %v3682 = vadd.f32 %v3233, %v3681
        %3683 = vmatprep.mubr.f32.mxu0 %v521
        %3684 = vmatmul.mubr.f32.gmra.mrb[0].mxu0 %v520
        %v3685 = vpop.f32.mrb[0].mxu0
        %v3686 = vadd.f32 %v3237, %v3685
        %v3687 = vpop.f32.mrb[0].mxu0
        %v3688 = vadd.f32 %v3239, %v3687
        %3689 = vmatprep.mubr.f32.mxu0 %v525
        %3690 = vmatmul.mubr.f32.gmra.mrb[0].mxu0 %v524
        %v3691 = vpop.f32.mrb[0].mxu0
        %v3692 = vadd.f32 %v3243, %v3691
        %v3693 = vpop.f32.mrb[0].mxu0
        %v3694 = vadd.f32 %v3245, %v3693
        %3695 = vmatprep.mubr.f32.mxu0 %v529
        %3696 = vmatmul.mubr.f32.gmra.mrb[0].mxu0 %v528
        %v3697 = vpop.f32.mrb[0].mxu0
        %v3698 = vadd.f32 %v3249, %v3697
        %v3699 = vpop.f32.mrb[0].mxu0
        %v3700 = vadd.f32 %v3251, %v3699
        %3701 = vmatprep.mubr.f32.mxu0 %v533
        %3702 = vmatmul.mubr.f32.gmra.mrb[0].mxu0 %v532
        %v3703 = vpop.f32.mrb[0].mxu0
        %v3704 = vadd.f32 %v3255, %v3703
        %v3705 = vpop.f32.mrb[0].mxu0
        %v3706 = vadd.f32 %v3257, %v3705
        %3707 = vmatprep.mubr.f32.mxu0 %v537
        %3708 = vmatmul.mubr.f32.gmra.mrb[0].mxu0 %v536
        %v3709 = vpop.f32.mrb[0].mxu0
        %v3710 = vadd.f32 %v3261, %v3709
        %v3711 = vpop.f32.mrb[0].mxu0
        %v3712 = vadd.f32 %v3263, %v3711
        %3713 = vmatprep.mubr.f32.mxu0 %v541
        %3714 = vmatmul.mubr.f32.gmra.mrb[0].mxu0 %v540
        %v3715 = vpop.f32.mrb[0].mxu0
        %v3716 = vadd.f32 %v3267, %v3715
        %v3717 = vpop.f32.mrb[0].mxu0
        %v3718 = vadd.f32 %v3269, %v3717
        %3719 = vmatprep.mubr.f32.mxu0 %v545
        %3720 = vmatmul.mubr.f32.gmra.mrb[0].mxu0 %v544
        %v3721 = vpop.f32.mrb[0].mxu0
        %v3722 = vadd.f32 %v3273, %v3721
        %v3723 = vpop.f32.mrb[0].mxu0
        %v3724 = vadd.f32 %v3275, %v3723
        %3725 = vmatprep.mubr.f32.mxu0 %v549
        %3726 = vmatmul.mubr.f32.gmra.mrb[0].mxu0 %v548
        %v3727 = vpop.f32.mrb[0].mxu0
        %v3728 = vadd.f32 %v3279, %v3727
        %v3729 = vpop.f32.mrb[0].mxu0
        %v3730 = vadd.f32 %v3281, %v3729
        %3731 = vmatprep.mubr.f32.mxu0 %v553
        %3732 = vmatmul.mubr.f32.gmra.mrb[0].mxu0 %v552
        %v3733 = vpop.f32.mrb[0].mxu0
        %v3734 = vadd.f32 %v3285, %v3733
        %v3735 = vpop.f32.mrb[0].mxu0
        %v3736 = vadd.f32 %v3287, %v3735
        %3737 = vmatprep.mubr.f32.mxu0 %v557
        %3738 = vmatmul.mubr.f32.gmra.mrb[0].mxu0 %v556
        %v3739 = vpop.f32.mrb[0].mxu0
        %v3740 = vadd.f32 %v3291, %v3739
        %v3741 = vpop.f32.mrb[0].mxu0
        %v3742 = vadd.f32 %v3293, %v3741
        %3743 = vmatprep.mubr.f32.mxu0 %v561
        %3744 = vmatmul.mubr.f32.gmra.mrb[0].mxu0 %v560
        %v3745 = vpop.f32.mrb[0].mxu0
        %v3746 = vadd.f32 %v3297, %v3745
        %v3747 = vpop.f32.mrb[0].mxu0
        %v3748 = vadd.f32 %v3299, %v3747
        %3749 = vmatprep.mubr.f32.mxu0 %v565
        %3750 = vmatmul.mubr.f32.gmra.mrb[0].mxu0 %v564
        %v3751 = vpop.f32.mrb[0].mxu0
        %v3752 = vadd.f32 %v3303, %v3751
        %v3753 = vpop.f32.mrb[0].mxu0
        %v3754 = vadd.f32 %v3305, %v3753
        %3755 = vmatprep.mubr.f32.mxu0 %v569
        %3756 = vmatmul.mubr.f32.gmra.mrb[0].mxu0 %v568
        %v3757 = vpop.f32.mrb[0].mxu0
        %v3758 = vadd.f32 %v3309, %v3757
        %v3759 = vpop.f32.mrb[0].mxu0
        %v3760 = vadd.f32 %v3311, %v3759
        %3761 = vmatprep.mubr.f32.mxu0 %v573
        %3762 = vmatmul.mubr.f32.gmra.mrb[0].mxu0 %v572
        %v3763 = vpop.f32.mrb[0].mxu0
        %v3764 = vadd.f32 %v3315, %v3763
        %v3765 = vpop.f32.mrb[0].mxu0
        %v3766 = vadd.f32 %v3317, %v3765
        %3767 = vmatprep.mubr.f32.mxu0 %v577
        %3768 = vmatmul.mubr.f32.gmra.mrb[0].mxu0 %v576
        %v3769 = vpop.f32.mrb[0].mxu0
        %v3770 = vadd.f32 %v3321, %v3769
        %v3771 = vpop.f32.mrb[0].mxu0
        %v3772 = vadd.f32 %v3323, %v3771
        %3773 = vmatprep.mubr.f32.mxu0 %v581
        %3774 = vmatmul.mubr.f32.gmra.mrb[0].mxu0 %v580
        %v3775 = vpop.f32.mrb[0].mxu0
        %v3776 = vadd.f32 %v3327, %v3775
        %v3777 = vpop.f32.mrb[0].mxu0
        %v3778 = vadd.f32 %v3329, %v3777
        %3779 = vmatprep.mubr.f32.mxu0 %v585
        %3780 = vmatmul.mubr.f32.gmra.mrb[0].mxu0 %v584
        %v3781 = vpop.f32.mrb[0].mxu0
        %v3782 = vadd.f32 %v3333, %v3781
        %v3783 = vpop.f32.mrb[0].mxu0
        %v3784 = vadd.f32 %v3335, %v3783
        %3785 = vmatprep.mubr.f32.mxu0 %v589
        %3786 = vmatmul.mubr.f32.gmra.mrb[0].mxu0 %v588
        %v3787 = vpop.f32.mrb[0].mxu0
        %v3788 = vadd.f32 %v3339, %v3787
        %v3789 = vpop.f32.mrb[0].mxu0
        %v3790 = vadd.f32 %v3341, %v3789
        %3791 = vmatprep.mubr.f32.mxu0 %v593
        %3792 = vmatmul.mubr.f32.gmra.mrb[0].mxu0 %v592
        %v3793 = vpop.f32.mrb[0].mxu0
        %v3794 = vadd.f32 %v3345, %v3793
        %v3795 = vpop.f32.mrb[0].mxu0
        %v3796 = vadd.f32 %v3347, %v3795
        %3797 = vmatprep.mubr.f32.mxu0 %v597
        %3798 = vmatmul.mubr.f32.gmra.mrb[0].mxu0 %v596
        %v3799 = vpop.f32.mrb[0].mxu0
        %v3800 = vadd.f32 %v3351, %v3799
        %v3801 = vpop.f32.mrb[0].mxu0
        %v3802 = vadd.f32 %v3353, %v3801
        %3803 = vdwg.mxu0
        %3804 = vmatprep.subr.mxu0 %v605
        %3805 = vmatpush1.msra.mxu0 %v604
        %3806 = vmatprep.subr.mxu0 %v613
        %3807 = vmatpush1.msra.mxu0 %v612
        %3808 = vmatprep.subr.mxu0 %v621
        %3809 = vmatpush1.msra.mxu0 %v620
        %3810 = vmatprep.subr.mxu0 %v629
        %3811 = vmatpush1.msra.mxu0 %v628
        %3812 = vmatprep.subr.mxu0 %v637
        %3813 = vmatpush1.msra.mxu0 %v636
        %3814 = vmatprep.subr.mxu0 %v645
        %3815 = vmatpush1.msra.mxu0 %v644
        %3816 = vmatprep.subr.mxu0 %v653
        %3817 = vmatpush1.msra.mxu0 %v652
        %3818 = vmatprep.subr.mxu0 %v661
        %3819 = vmatpush1.msra.mxu0 %v660
        %3820 = vmatprep.subr.mxu0 %v669
        %3821 = vmatpush1.msra.mxu0 %v668
        %3822 = vmatprep.subr.mxu0 %v677
        %3823 = vmatpush1.msra.mxu0 %v676
        %3824 = vmatprep.subr.mxu0 %v685
        %3825 = vmatpush1.msra.mxu0 %v684
        %3826 = vmatprep.subr.mxu0 %v693
        %3827 = vmatpush1.msra.mxu0 %v692
        %3828 = vmatprep.subr.mxu0 %v701
        %3829 = vmatpush1.msra.mxu0 %v700
        %3830 = vmatprep.subr.mxu0 %v709
        %3831 = vmatpush1.msra.mxu0 %v708
        %3832 = vmatprep.subr.mxu0 %v717
        %3833 = vmatpush1.msra.mxu0 %v716
        %3834 = vmatprep.subr.mxu0 %v725
        %3835 = vmatpush1.msra.mxu0 %v724
        %3836 = vmatprep.subr.mxu0 %v733
        %3837 = vmatpush1.msra.mxu0 %v732
        %3838 = vmatprep.subr.mxu0 %v741
        %3839 = vmatpush1.msra.mxu0 %v740
        %3840 = vmatprep.subr.mxu0 %v749
        %3841 = vmatpush1.msra.mxu0 %v748
        %3842 = vmatprep.subr.mxu0 %v757
        %3843 = vmatpush1.msra.mxu0 %v756
        %3844 = vmatprep.subr.mxu0 %v765
        %3845 = vmatpush1.msra.mxu0 %v764
        %3846 = vmatprep.subr.mxu0 %v773
        %3847 = vmatpush1.msra.mxu0 %v772
        %3848 = vmatprep.subr.mxu0 %v781
        %3849 = vmatpush1.msra.mxu0 %v780
        %3850 = vmatprep.subr.mxu0 %v789
        %3851 = vmatpush1.msra.mxu0 %v788
        %3852 = vmatprep.subr.mxu0 %v797
        %3853 = vmatpush1.msra.mxu0 %v796
        %3854 = vmatprep.subr.mxu0 %v805
        %3855 = vmatpush1.msra.mxu0 %v804
        %3856 = vmatprep.subr.mxu0 %v813
        %3857 = vmatpush1.msra.mxu0 %v812
        %3858 = vmatprep.subr.mxu0 %v821
        %3859 = vmatpush1.msra.mxu0 %v820
        %3860 = vmatprep.subr.mxu0 %v829
        %3861 = vmatpush1.msra.mxu0 %v828
        %3862 = vmatprep.subr.mxu0 %v837
        %3863 = vmatpush1.msra.mxu0 %v836
        %3864 = vmatprep.subr.mxu0 %v845
        %3865 = vmatpush1.msra.mxu0 %v844
        %3866 = vmatprep.subr.mxu0 %v853
        %3867 = vmatpush1.msra.mxu0 %v852
        %3868 = vmatprep.mubr.f32.mxu0 %v343
        %3869 = vmatmul.mubr.f32.gmra.mrb[0].mxu0 %v342
        %v3870 = vpop.f32.mrb[0].mxu0
        %v3871 = vadd.f32 0.0, %v3870
        %v3872 = vpop.f32.mrb[0].mxu0
        %v3873 = vadd.f32 0.0, %v3872
        %3874 = vmatprep.mubr.f32.mxu0 %v347
        %3875 = vmatmul.mubr.f32.gmra.mrb[0].mxu0 %v346
        %v3876 = vpop.f32.mrb[0].mxu0
        %v3877 = vadd.f32 0.0, %v3876
        %v3878 = vpop.f32.mrb[0].mxu0
        %v3879 = vadd.f32 0.0, %v3878
        %3880 = vmatprep.mubr.f32.mxu0 %v351
        %3881 = vmatmul.mubr.f32.gmra.mrb[0].mxu0 %v350
        %v3882 = vpop.f32.mrb[0].mxu0
        %v3883 = vadd.f32 0.0, %v3882
        %v3884 = vpop.f32.mrb[0].mxu0
        %v3885 = vadd.f32 0.0, %v3884
        %3886 = vmatprep.mubr.f32.mxu0 %v355
        %3887 = vmatmul.mubr.f32.gmra.mrb[0].mxu0 %v354
        %v3888 = vpop.f32.mrb[0].mxu0
        %v3889 = vadd.f32 0.0, %v3888
        %v3890 = vpop.f32.mrb[0].mxu0
        %v3891 = vadd.f32 0.0, %v3890
        %3892 = vmatprep.mubr.f32.mxu0 %v359
        %3893 = vmatmul.mubr.f32.gmra.mrb[0].mxu0 %v358
        %v3894 = vpop.f32.mrb[0].mxu0
        %v3895 = vadd.f32 0.0, %v3894
        %v3896 = vpop.f32.mrb[0].mxu0
        %v3897 = vadd.f32 0.0, %v3896
        %3898 = vmatprep.mubr.f32.mxu0 %v363
        %3899 = vmatmul.mubr.f32.gmra.mrb[0].mxu0 %v362
        %v3900 = vpop.f32.mrb[0].mxu0
        %v3901 = vadd.f32 0.0, %v3900
        %v3902 = vpop.f32.mrb[0].mxu0
        %v3903 = vadd.f32 0.0, %v3902
        %3904 = vmatprep.mubr.f32.mxu0 %v367
        %3905 = vmatmul.mubr.f32.gmra.mrb[0].mxu0 %v366
        %v3906 = vpop.f32.mrb[0].mxu0
        %v3907 = vadd.f32 0.0, %v3906
        %v3908 = vpop.f32.mrb[0].mxu0
        %v3909 = vadd.f32 0.0, %v3908
        %3910 = vmatprep.mubr.f32.mxu0 %v371
        %3911 = vmatmul.mubr.f32.gmra.mrb[0].mxu0 %v370
        %v3912 = vpop.f32.mrb[0].mxu0
        %v3913 = vadd.f32 0.0, %v3912
        %v3914 = vpop.f32.mrb[0].mxu0
        %v3915 = vadd.f32 0.0, %v3914
        %3916 = vmatprep.mubr.f32.mxu0 %v375
        %3917 = vmatmul.mubr.f32.gmra.mrb[0].mxu0 %v374
        %v3918 = vpop.f32.mrb[0].mxu0
        %v3919 = vadd.f32 0.0, %v3918
        %v3920 = vpop.f32.mrb[0].mxu0
        %v3921 = vadd.f32 0.0, %v3920
        %3922 = vmatprep.mubr.f32.mxu0 %v379
        %3923 = vmatmul.mubr.f32.gmra.mrb[0].mxu0 %v378
        %v3924 = vpop.f32.mrb[0].mxu0
        %v3925 = vadd.f32 0.0, %v3924
        %v3926 = vpop.f32.mrb[0].mxu0
        %v3927 = vadd.f32 0.0, %v3926
        %3928 = vmatprep.mubr.f32.mxu0 %v383
        %3929 = vmatmul.mubr.f32.gmra.mrb[0].mxu0 %v382
        %v3930 = vpop.f32.mrb[0].mxu0
        %v3931 = vadd.f32 0.0, %v3930
        %v3932 = vpop.f32.mrb[0].mxu0
        %v3933 = vadd.f32 0.0, %v3932
        %3934 = vmatprep.mubr.f32.mxu0 %v387
        %3935 = vmatmul.mubr.f32.gmra.mrb[0].mxu0 %v386
        %v3936 = vpop.f32.mrb[0].mxu0
        %v3937 = vadd.f32 0.0, %v3936
        %v3938 = vpop.f32.mrb[0].mxu0
        %v3939 = vadd.f32 0.0, %v3938
        %3940 = vmatprep.mubr.f32.mxu0 %v391
        %3941 = vmatmul.mubr.f32.gmra.mrb[0].mxu0 %v390
        %v3942 = vpop.f32.mrb[0].mxu0
        %v3943 = vadd.f32 0.0, %v3942
        %v3944 = vpop.f32.mrb[0].mxu0
        %v3945 = vadd.f32 0.0, %v3944
        %3946 = vmatprep.mubr.f32.mxu0 %v395
        %3947 = vmatmul.mubr.f32.gmra.mrb[0].mxu0 %v394
        %v3948 = vpop.f32.mrb[0].mxu0
        %v3949 = vadd.f32 0.0, %v3948
        %v3950 = vpop.f32.mrb[0].mxu0
        %v3951 = vadd.f32 0.0, %v3950
        %3952 = vmatprep.mubr.f32.mxu0 %v399
        %3953 = vmatmul.mubr.f32.gmra.mrb[0].mxu0 %v398
        %v3954 = vpop.f32.mrb[0].mxu0
        %v3955 = vadd.f32 0.0, %v3954
        %v3956 = vpop.f32.mrb[0].mxu0
        %v3957 = vadd.f32 0.0, %v3956
        %3958 = vmatprep.mubr.f32.mxu0 %v403
        %3959 = vmatmul.mubr.f32.gmra.mrb[0].mxu0 %v402
        %v3960 = vpop.f32.mrb[0].mxu0
        %v3961 = vadd.f32 0.0, %v3960
        %v3962 = vpop.f32.mrb[0].mxu0
        %v3963 = vadd.f32 0.0, %v3962
        %3964 = vmatprep.mubr.f32.mxu0 %v407
        %3965 = vmatmul.mubr.f32.gmra.mrb[0].mxu0 %v406
        %v3966 = vpop.f32.mrb[0].mxu0
        %v3967 = vadd.f32 0.0, %v3966
        %v3968 = vpop.f32.mrb[0].mxu0
        %v3969 = vadd.f32 0.0, %v3968
        %3970 = vmatprep.mubr.f32.mxu0 %v411
        %3971 = vmatmul.mubr.f32.gmra.mrb[0].mxu0 %v410
        %v3972 = vpop.f32.mrb[0].mxu0
        %v3973 = vadd.f32 0.0, %v3972
        %v3974 = vpop.f32.mrb[0].mxu0
        %v3975 = vadd.f32 0.0, %v3974
        %3976 = vmatprep.mubr.f32.mxu0 %v415
        %3977 = vmatmul.mubr.f32.gmra.mrb[0].mxu0 %v414
        %v3978 = vpop.f32.mrb[0].mxu0
        %v3979 = vadd.f32 0.0, %v3978
        %v3980 = vpop.f32.mrb[0].mxu0
        %v3981 = vadd.f32 0.0, %v3980
        %3982 = vmatprep.mubr.f32.mxu0 %v419
        %3983 = vmatmul.mubr.f32.gmra.mrb[0].mxu0 %v418
        %v3984 = vpop.f32.mrb[0].mxu0
        %v3985 = vadd.f32 0.0, %v3984
        %v3986 = vpop.f32.mrb[0].mxu0
        %v3987 = vadd.f32 0.0, %v3986
        %3988 = vmatprep.mubr.f32.mxu0 %v423
        %3989 = vmatmul.mubr.f32.gmra.mrb[0].mxu0 %v422
        %v3990 = vpop.f32.mrb[0].mxu0
        %v3991 = vadd.f32 0.0, %v3990
        %v3992 = vpop.f32.mrb[0].mxu0
        %v3993 = vadd.f32 0.0, %v3992
        %3994 = vmatprep.mubr.f32.mxu0 %v427
        %3995 = vmatmul.mubr.f32.gmra.mrb[0].mxu0 %v426
        %v3996 = vpop.f32.mrb[0].mxu0
        %v3997 = vadd.f32 0.0, %v3996
        %v3998 = vpop.f32.mrb[0].mxu0
        %v3999 = vadd.f32 0.0, %v3998
        %4000 = vmatprep.mubr.f32.mxu0 %v431
        %4001 = vmatmul.mubr.f32.gmra.mrb[0].mxu0 %v430
        %v4002 = vpop.f32.mrb[0].mxu0
        %v4003 = vadd.f32 0.0, %v4002
        %v4004 = vpop.f32.mrb[0].mxu0
        %v4005 = vadd.f32 0.0, %v4004
        %4006 = vmatprep.mubr.f32.mxu0 %v435
        %4007 = vmatmul.mubr.f32.gmra.mrb[0].mxu0 %v434
        %v4008 = vpop.f32.mrb[0].mxu0
        %v4009 = vadd.f32 0.0, %v4008
        %v4010 = vpop.f32.mrb[0].mxu0
        %v4011 = vadd.f32 0.0, %v4010
        %4012 = vmatprep.mubr.f32.mxu0 %v439
        %4013 = vmatmul.mubr.f32.gmra.mrb[0].mxu0 %v438
        %v4014 = vpop.f32.mrb[0].mxu0
        %v4015 = vadd.f32 0.0, %v4014
        %v4016 = vpop.f32.mrb[0].mxu0
        %v4017 = vadd.f32 0.0, %v4016
        %4018 = vmatprep.mubr.f32.mxu0 %v443
        %4019 = vmatmul.mubr.f32.gmra.mrb[0].mxu0 %v442
        %v4020 = vpop.f32.mrb[0].mxu0
        %v4021 = vadd.f32 0.0, %v4020
        %v4022 = vpop.f32.mrb[0].mxu0
        %v4023 = vadd.f32 0.0, %v4022
        %4024 = vmatprep.mubr.f32.mxu0 %v447
        %4025 = vmatmul.mubr.f32.gmra.mrb[0].mxu0 %v446
        %v4026 = vpop.f32.mrb[0].mxu0
        %v4027 = vadd.f32 0.0, %v4026
        %v4028 = vpop.f32.mrb[0].mxu0
        %v4029 = vadd.f32 0.0, %v4028
        %4030 = vmatprep.mubr.f32.mxu0 %v451
        %4031 = vmatmul.mubr.f32.gmra.mrb[0].mxu0 %v450
        %v4032 = vpop.f32.mrb[0].mxu0
        %v4033 = vadd.f32 0.0, %v4032
        %v4034 = vpop.f32.mrb[0].mxu0
        %v4035 = vadd.f32 0.0, %v4034
        %4036 = vmatprep.mubr.f32.mxu0 %v455
        %4037 = vmatmul.mubr.f32.gmra.mrb[0].mxu0 %v454
        %v4038 = vpop.f32.mrb[0].mxu0
        %v4039 = vadd.f32 0.0, %v4038
        %v4040 = vpop.f32.mrb[0].mxu0
        %v4041 = vadd.f32 0.0, %v4040
        %4042 = vmatprep.mubr.f32.mxu0 %v459
        %4043 = vmatmul.mubr.f32.gmra.mrb[0].mxu0 %v458
        %v4044 = vpop.f32.mrb[0].mxu0
        %v4045 = vadd.f32 0.0, %v4044
        %v4046 = vpop.f32.mrb[0].mxu0
        %v4047 = vadd.f32 0.0, %v4046
        %4048 = vmatprep.mubr.f32.mxu0 %v463
        %4049 = vmatmul.mubr.f32.gmra.mrb[0].mxu0 %v462
        %v4050 = vpop.f32.mrb[0].mxu0
        %v4051 = vadd.f32 0.0, %v4050
        %v4052 = vpop.f32.mrb[0].mxu0
        %v4053 = vadd.f32 0.0, %v4052
        %4054 = vmatprep.mubr.f32.mxu0 %v467
        %4055 = vmatmul.mubr.f32.gmra.mrb[0].mxu0 %v466
        %v4056 = vpop.f32.mrb[0].mxu0
        %v4057 = vadd.f32 0.0, %v4056
        %v4058 = vpop.f32.mrb[0].mxu0
        %v4059 = vadd.f32 0.0, %v4058
        %4060 = vmatprep.mubr.f32.mxu0 %v471
        %4061 = vmatmul.mubr.f32.gmra.mrb[0].mxu0 %v470
        %v4062 = vpop.f32.mrb[0].mxu0
        %v4063 = vadd.f32 0.0, %v4062
        %v4064 = vpop.f32.mrb[0].mxu0
        %v4065 = vadd.f32 0.0, %v4064
        %4066 = vmatprep.mubr.f32.mxu0 %v475
        %4067 = vmatmul.mubr.f32.gmra.mrb[0].mxu0 %v474
        %v4068 = vpop.f32.mrb[0].mxu0
        %v4069 = vadd.f32 0.0, %v4068
        %v4070 = vpop.f32.mrb[0].mxu0
        %v4071 = vadd.f32 0.0, %v4070
        %4072 = vmatprep.mubr.f32.mxu0 %v479
        %4073 = vmatmul.mubr.f32.gmra.mrb[0].mxu0 %v478
        %v4074 = vpop.f32.mrb[0].mxu0
        %v4075 = vadd.f32 0.0, %v4074
        %v4076 = vpop.f32.mrb[0].mxu0
        %v4077 = vadd.f32 0.0, %v4076
        %4078 = vmatprep.mubr.f32.mxu0 %v483
        %4079 = vmatmul.mubr.f32.gmra.mrb[0].mxu0 %v482
        %v4080 = vpop.f32.mrb[0].mxu0
        %v4081 = vadd.f32 0.0, %v4080
        %v4082 = vpop.f32.mrb[0].mxu0
        %v4083 = vadd.f32 0.0, %v4082
        %4084 = vmatprep.mubr.f32.mxu0 %v487
        %4085 = vmatmul.mubr.f32.gmra.mrb[0].mxu0 %v486
        %v4086 = vpop.f32.mrb[0].mxu0
        %v4087 = vadd.f32 0.0, %v4086
        %v4088 = vpop.f32.mrb[0].mxu0
        %v4089 = vadd.f32 0.0, %v4088
        %4090 = vmatprep.mubr.f32.mxu0 %v491
        %4091 = vmatmul.mubr.f32.gmra.mrb[0].mxu0 %v490
        %v4092 = vpop.f32.mrb[0].mxu0
        %v4093 = vadd.f32 0.0, %v4092
        %v4094 = vpop.f32.mrb[0].mxu0
        %v4095 = vadd.f32 0.0, %v4094
        %4096 = vmatprep.mubr.f32.mxu0 %v495
        %4097 = vmatmul.mubr.f32.gmra.mrb[0].mxu0 %v494
        %v4098 = vpop.f32.mrb[0].mxu0
        %v4099 = vadd.f32 0.0, %v4098
        %v4100 = vpop.f32.mrb[0].mxu0
        %v4101 = vadd.f32 0.0, %v4100
        %4102 = vmatprep.mubr.f32.mxu0 %v499
        %4103 = vmatmul.mubr.f32.gmra.mrb[0].mxu0 %v498
        %v4104 = vpop.f32.mrb[0].mxu0
        %v4105 = vadd.f32 0.0, %v4104
        %v4106 = vpop.f32.mrb[0].mxu0
        %v4107 = vadd.f32 0.0, %v4106
        %4108 = vmatprep.mubr.f32.mxu0 %v503
        %4109 = vmatmul.mubr.f32.gmra.mrb[0].mxu0 %v502
        %v4110 = vpop.f32.mrb[0].mxu0
        %v4111 = vadd.f32 0.0, %v4110
        %v4112 = vpop.f32.mrb[0].mxu0
        %v4113 = vadd.f32 0.0, %v4112
        %4114 = vmatprep.mubr.f32.mxu0 %v507
        %4115 = vmatmul.mubr.f32.gmra.mrb[0].mxu0 %v506
        %v4116 = vpop.f32.mrb[0].mxu0
        %v4117 = vadd.f32 0.0, %v4116
        %v4118 = vpop.f32.mrb[0].mxu0
        %v4119 = vadd.f32 0.0, %v4118
        %4120 = vmatprep.mubr.f32.mxu0 %v511
        %4121 = vmatmul.mubr.f32.gmra.mrb[0].mxu0 %v510
        %v4122 = vpop.f32.mrb[0].mxu0
        %v4123 = vadd.f32 0.0, %v4122
        %v4124 = vpop.f32.mrb[0].mxu0
        %v4125 = vadd.f32 0.0, %v4124
        %4126 = vmatprep.mubr.f32.mxu0 %v515
        %4127 = vmatmul.mubr.f32.gmra.mrb[0].mxu0 %v514
        %v4128 = vpop.f32.mrb[0].mxu0
        %v4129 = vadd.f32 0.0, %v4128
        %v4130 = vpop.f32.mrb[0].mxu0
        %v4131 = vadd.f32 0.0, %v4130
        %4132 = vmatprep.mubr.f32.mxu0 %v519
        %4133 = vmatmul.mubr.f32.gmra.mrb[0].mxu0 %v518
        %v4134 = vpop.f32.mrb[0].mxu0
        %v4135 = vadd.f32 0.0, %v4134
        %v4136 = vpop.f32.mrb[0].mxu0
        %v4137 = vadd.f32 0.0, %v4136
        %4138 = vmatprep.mubr.f32.mxu0 %v523
        %4139 = vmatmul.mubr.f32.gmra.mrb[0].mxu0 %v522
        %v4140 = vpop.f32.mrb[0].mxu0
        %v4141 = vadd.f32 0.0, %v4140
        %v4142 = vpop.f32.mrb[0].mxu0
        %v4143 = vadd.f32 0.0, %v4142
        %4144 = vmatprep.mubr.f32.mxu0 %v527
        %4145 = vmatmul.mubr.f32.gmra.mrb[0].mxu0 %v526
        %v4146 = vpop.f32.mrb[0].mxu0
        %v4147 = vadd.f32 0.0, %v4146
        %v4148 = vpop.f32.mrb[0].mxu0
        %v4149 = vadd.f32 0.0, %v4148
        %4150 = vmatprep.mubr.f32.mxu0 %v531
        %4151 = vmatmul.mubr.f32.gmra.mrb[0].mxu0 %v530
        %v4152 = vpop.f32.mrb[0].mxu0
        %v4153 = vadd.f32 0.0, %v4152
        %v4154 = vpop.f32.mrb[0].mxu0
        %v4155 = vadd.f32 0.0, %v4154
        %4156 = vmatprep.mubr.f32.mxu0 %v535
        %4157 = vmatmul.mubr.f32.gmra.mrb[0].mxu0 %v534
        %v4158 = vpop.f32.mrb[0].mxu0
        %v4159 = vadd.f32 0.0, %v4158
        %v4160 = vpop.f32.mrb[0].mxu0
        %v4161 = vadd.f32 0.0, %v4160
        %4162 = vmatprep.mubr.f32.mxu0 %v539
        %4163 = vmatmul.mubr.f32.gmra.mrb[0].mxu0 %v538
        %v4164 = vpop.f32.mrb[0].mxu0
        %v4165 = vadd.f32 0.0, %v4164
        %v4166 = vpop.f32.mrb[0].mxu0
        %v4167 = vadd.f32 0.0, %v4166
        %4168 = vmatprep.mubr.f32.mxu0 %v543
        %4169 = vmatmul.mubr.f32.gmra.mrb[0].mxu0 %v542
        %v4170 = vpop.f32.mrb[0].mxu0
        %v4171 = vadd.f32 0.0, %v4170
        %v4172 = vpop.f32.mrb[0].mxu0
        %v4173 = vadd.f32 0.0, %v4172
        %4174 = vmatprep.mubr.f32.mxu0 %v547
        %4175 = vmatmul.mubr.f32.gmra.mrb[0].mxu0 %v546
        %v4176 = vpop.f32.mrb[0].mxu0
        %v4177 = vadd.f32 0.0, %v4176
        %v4178 = vpop.f32.mrb[0].mxu0
        %v4179 = vadd.f32 0.0, %v4178
        %4180 = vmatprep.mubr.f32.mxu0 %v551
        %4181 = vmatmul.mubr.f32.gmra.mrb[0].mxu0 %v550
        %v4182 = vpop.f32.mrb[0].mxu0
        %v4183 = vadd.f32 0.0, %v4182
        %v4184 = vpop.f32.mrb[0].mxu0
        %v4185 = vadd.f32 0.0, %v4184
        %4186 = vmatprep.mubr.f32.mxu0 %v555
        %4187 = vmatmul.mubr.f32.gmra.mrb[0].mxu0 %v554
        %v4188 = vpop.f32.mrb[0].mxu0
        %v4189 = vadd.f32 0.0, %v4188
        %v4190 = vpop.f32.mrb[0].mxu0
        %v4191 = vadd.f32 0.0, %v4190
        %4192 = vmatprep.mubr.f32.mxu0 %v559
        %4193 = vmatmul.mubr.f32.gmra.mrb[0].mxu0 %v558
        %v4194 = vpop.f32.mrb[0].mxu0
        %v4195 = vadd.f32 0.0, %v4194
        %v4196 = vpop.f32.mrb[0].mxu0
        %v4197 = vadd.f32 0.0, %v4196
        %4198 = vmatprep.mubr.f32.mxu0 %v563
        %4199 = vmatmul.mubr.f32.gmra.mrb[0].mxu0 %v562
        %v4200 = vpop.f32.mrb[0].mxu0
        %v4201 = vadd.f32 0.0, %v4200
        %v4202 = vpop.f32.mrb[0].mxu0
        %v4203 = vadd.f32 0.0, %v4202
        %4204 = vmatprep.mubr.f32.mxu0 %v567
        %4205 = vmatmul.mubr.f32.gmra.mrb[0].mxu0 %v566
        %v4206 = vpop.f32.mrb[0].mxu0
        %v4207 = vadd.f32 0.0, %v4206
        %v4208 = vpop.f32.mrb[0].mxu0
        %v4209 = vadd.f32 0.0, %v4208
        %4210 = vmatprep.mubr.f32.mxu0 %v571
        %4211 = vmatmul.mubr.f32.gmra.mrb[0].mxu0 %v570
        %v4212 = vpop.f32.mrb[0].mxu0
        %v4213 = vadd.f32 0.0, %v4212
        %v4214 = vpop.f32.mrb[0].mxu0
        %v4215 = vadd.f32 0.0, %v4214
        %4216 = vmatprep.mubr.f32.mxu0 %v575
        %4217 = vmatmul.mubr.f32.gmra.mrb[0].mxu0 %v574
        %v4218 = vpop.f32.mrb[0].mxu0
        %v4219 = vadd.f32 0.0, %v4218
        %v4220 = vpop.f32.mrb[0].mxu0
        %v4221 = vadd.f32 0.0, %v4220
        %4222 = vmatprep.mubr.f32.mxu0 %v579
        %4223 = vmatmul.mubr.f32.gmra.mrb[0].mxu0 %v578
        %v4224 = vpop.f32.mrb[0].mxu0
        %v4225 = vadd.f32 0.0, %v4224
        %v4226 = vpop.f32.mrb[0].mxu0
        %v4227 = vadd.f32 0.0, %v4226
        %4228 = vmatprep.mubr.f32.mxu0 %v583
        %4229 = vmatmul.mubr.f32.gmra.mrb[0].mxu0 %v582
        %v4230 = vpop.f32.mrb[0].mxu0
        %v4231 = vadd.f32 0.0, %v4230
        %v4232 = vpop.f32.mrb[0].mxu0
        %v4233 = vadd.f32 0.0, %v4232
        %4234 = vmatprep.mubr.f32.mxu0 %v587
        %4235 = vmatmul.mubr.f32.gmra.mrb[0].mxu0 %v586
        %v4236 = vpop.f32.mrb[0].mxu0
        %v4237 = vadd.f32 0.0, %v4236
        %v4238 = vpop.f32.mrb[0].mxu0
        %v4239 = vadd.f32 0.0, %v4238
        %4240 = vmatprep.mubr.f32.mxu0 %v591
        %4241 = vmatmul.mubr.f32.gmra.mrb[0].mxu0 %v590
        %v4242 = vpop.f32.mrb[0].mxu0
        %v4243 = vadd.f32 0.0, %v4242
        %v4244 = vpop.f32.mrb[0].mxu0
        %v4245 = vadd.f32 0.0, %v4244
        %4246 = vmatprep.mubr.f32.mxu0 %v595
        %4247 = vmatmul.mubr.f32.gmra.mrb[0].mxu0 %v594
        %v4248 = vpop.f32.mrb[0].mxu0
        %v4249 = vadd.f32 0.0, %v4248
        %v4250 = vpop.f32.mrb[0].mxu0
        %v4251 = vadd.f32 0.0, %v4250
        %4252 = vdwg.mxu0
        %4253 = vmatprep.subr.mxu0 %v861
        %4254 = vmatpush1.msra.mxu0 %v860
        %4255 = vmatprep.subr.mxu0 %v869
        %4256 = vmatpush1.msra.mxu0 %v868
        %4257 = vmatprep.subr.mxu0 %v877
        %4258 = vmatpush1.msra.mxu0 %v876
        %4259 = vmatprep.subr.mxu0 %v885
        %4260 = vmatpush1.msra.mxu0 %v884
        %4261 = vmatprep.subr.mxu0 %v893
        %4262 = vmatpush1.msra.mxu0 %v892
        %4263 = vmatprep.subr.mxu0 %v901
        %4264 = vmatpush1.msra.mxu0 %v900
        %4265 = vmatprep.subr.mxu0 %v909
        %4266 = vmatpush1.msra.mxu0 %v908
        %4267 = vmatprep.subr.mxu0 %v917
        %4268 = vmatpush1.msra.mxu0 %v916
        %4269 = vmatprep.subr.mxu0 %v925
        %4270 = vmatpush1.msra.mxu0 %v924
        %4271 = vmatprep.subr.mxu0 %v933
        %4272 = vmatpush1.msra.mxu0 %v932
        %4273 = vmatprep.subr.mxu0 %v941
        %4274 = vmatpush1.msra.mxu0 %v940
        %4275 = vmatprep.subr.mxu0 %v949
        %4276 = vmatpush1.msra.mxu0 %v948
        %4277 = vmatprep.subr.mxu0 %v957
        %4278 = vmatpush1.msra.mxu0 %v956
        %4279 = vmatprep.subr.mxu0 %v965
        %4280 = vmatpush1.msra.mxu0 %v964
        %4281 = vmatprep.subr.mxu0 %v973
        %4282 = vmatpush1.msra.mxu0 %v972
        %4283 = vmatprep.subr.mxu0 %v981
        %4284 = vmatpush1.msra.mxu0 %v980
        %4285 = vmatprep.subr.mxu0 %v989
        %4286 = vmatpush1.msra.mxu0 %v988
        %4287 = vmatprep.subr.mxu0 %v997
        %4288 = vmatpush1.msra.mxu0 %v996
        %4289 = vmatprep.subr.mxu0 %v1005
        %4290 = vmatpush1.msra.mxu0 %v1004
        %4291 = vmatprep.subr.mxu0 %v1013
        %4292 = vmatpush1.msra.mxu0 %v1012
        %4293 = vmatprep.subr.mxu0 %v1021
        %4294 = vmatpush1.msra.mxu0 %v1020
        %4295 = vmatprep.subr.mxu0 %v1029
        %4296 = vmatpush1.msra.mxu0 %v1028
        %4297 = vmatprep.subr.mxu0 %v1037
        %4298 = vmatpush1.msra.mxu0 %v1036
        %4299 = vmatprep.subr.mxu0 %v1045
        %4300 = vmatpush1.msra.mxu0 %v1044
        %4301 = vmatprep.subr.mxu0 %v1053
        %4302 = vmatpush1.msra.mxu0 %v1052
        %4303 = vmatprep.subr.mxu0 %v1061
        %4304 = vmatpush1.msra.mxu0 %v1060
        %4305 = vmatprep.subr.mxu0 %v1069
        %4306 = vmatpush1.msra.mxu0 %v1068
        %4307 = vmatprep.subr.mxu0 %v1077
        %4308 = vmatpush1.msra.mxu0 %v1076
        %4309 = vmatprep.subr.mxu0 %v1085
        %4310 = vmatpush1.msra.mxu0 %v1084
        %4311 = vmatprep.subr.mxu0 %v1093
        %4312 = vmatpush1.msra.mxu0 %v1092
        %4313 = vmatprep.subr.mxu0 %v1101
        %4314 = vmatpush1.msra.mxu0 %v1100
        %4315 = vmatprep.subr.mxu0 %v1109
        %4316 = vmatpush1.msra.mxu0 %v1108
        %4317 = vmatprep.mubr.f32.mxu0 %v345
        %4318 = vmatmul.mubr.f32.gmra.mrb[0].mxu0 %v344
        %v4319 = vpop.f32.mrb[0].mxu0
        %v4320 = vadd.f32 %v3871, %v4319
        %v4321 = vpop.f32.mrb[0].mxu0
        %v4322 = vadd.f32 %v3873, %v4321
        %4323 = vmatprep.mubr.f32.mxu0 %v349
        %4324 = vmatmul.mubr.f32.gmra.mrb[0].mxu0 %v348
        %v4325 = vpop.f32.mrb[0].mxu0
        %v4326 = vadd.f32 %v3877, %v4325
        %v4327 = vpop.f32.mrb[0].mxu0
        %v4328 = vadd.f32 %v3879, %v4327
        %4329 = vmatprep.mubr.f32.mxu0 %v353
        %4330 = vmatmul.mubr.f32.gmra.mrb[0].mxu0 %v352
        %v4331 = vpop.f32.mrb[0].mxu0
        %v4332 = vadd.f32 %v3883, %v4331
        %v4333 = vpop.f32.mrb[0].mxu0
        %v4334 = vadd.f32 %v3885, %v4333
        %4335 = vmatprep.mubr.f32.mxu0 %v357
        %4336 = vmatmul.mubr.f32.gmra.mrb[0].mxu0 %v356
        %v4337 = vpop.f32.mrb[0].mxu0
        %v4338 = vadd.f32 %v3889, %v4337
        %v4339 = vpop.f32.mrb[0].mxu0
        %v4340 = vadd.f32 %v3891, %v4339
        %4341 = vmatprep.mubr.f32.mxu0 %v361
        %4342 = vmatmul.mubr.f32.gmra.mrb[0].mxu0 %v360
        %v4343 = vpop.f32.mrb[0].mxu0
        %v4344 = vadd.f32 %v3895, %v4343
        %v4345 = vpop.f32.mrb[0].mxu0
        %v4346 = vadd.f32 %v3897, %v4345
        %4347 = vmatprep.mubr.f32.mxu0 %v365
        %4348 = vmatmul.mubr.f32.gmra.mrb[0].mxu0 %v364
        %v4349 = vpop.f32.mrb[0].mxu0
        %v4350 = vadd.f32 %v3901, %v4349
        %v4351 = vpop.f32.mrb[0].mxu0
        %v4352 = vadd.f32 %v3903, %v4351
        %4353 = vmatprep.mubr.f32.mxu0 %v369
        %4354 = vmatmul.mubr.f32.gmra.mrb[0].mxu0 %v368
        %v4355 = vpop.f32.mrb[0].mxu0
        %v4356 = vadd.f32 %v3907, %v4355
        %v4357 = vpop.f32.mrb[0].mxu0
        %v4358 = vadd.f32 %v3909, %v4357
        %4359 = vmatprep.mubr.f32.mxu0 %v373
        %4360 = vmatmul.mubr.f32.gmra.mrb[0].mxu0 %v372
        %v4361 = vpop.f32.mrb[0].mxu0
        %v4362 = vadd.f32 %v3913, %v4361
        %v4363 = vpop.f32.mrb[0].mxu0
        %v4364 = vadd.f32 %v3915, %v4363
        %4365 = vmatprep.mubr.f32.mxu0 %v377
        %4366 = vmatmul.mubr.f32.gmra.mrb[0].mxu0 %v376
        %v4367 = vpop.f32.mrb[0].mxu0
        %v4368 = vadd.f32 %v3919, %v4367
        %v4369 = vpop.f32.mrb[0].mxu0
        %v4370 = vadd.f32 %v3921, %v4369
        %4371 = vmatprep.mubr.f32.mxu0 %v381
        %4372 = vmatmul.mubr.f32.gmra.mrb[0].mxu0 %v380
        %v4373 = vpop.f32.mrb[0].mxu0
        %v4374 = vadd.f32 %v3925, %v4373
        %v4375 = vpop.f32.mrb[0].mxu0
        %v4376 = vadd.f32 %v3927, %v4375
        %4377 = vmatprep.mubr.f32.mxu0 %v385
        %4378 = vmatmul.mubr.f32.gmra.mrb[0].mxu0 %v384
        %v4379 = vpop.f32.mrb[0].mxu0
        %v4380 = vadd.f32 %v3931, %v4379
        %v4381 = vpop.f32.mrb[0].mxu0
        %v4382 = vadd.f32 %v3933, %v4381
        %4383 = vmatprep.mubr.f32.mxu0 %v389
        %4384 = vmatmul.mubr.f32.gmra.mrb[0].mxu0 %v388
        %v4385 = vpop.f32.mrb[0].mxu0
        %v4386 = vadd.f32 %v3937, %v4385
        %v4387 = vpop.f32.mrb[0].mxu0
        %v4388 = vadd.f32 %v3939, %v4387
        %4389 = vmatprep.mubr.f32.mxu0 %v393
        %4390 = vmatmul.mubr.f32.gmra.mrb[0].mxu0 %v392
        %v4391 = vpop.f32.mrb[0].mxu0
        %v4392 = vadd.f32 %v3943, %v4391
        %v4393 = vpop.f32.mrb[0].mxu0
        %v4394 = vadd.f32 %v3945, %v4393
        %4395 = vmatprep.mubr.f32.mxu0 %v397
        %4396 = vmatmul.mubr.f32.gmra.mrb[0].mxu0 %v396
        %v4397 = vpop.f32.mrb[0].mxu0
        %v4398 = vadd.f32 %v3949, %v4397
        %v4399 = vpop.f32.mrb[0].mxu0
        %v4400 = vadd.f32 %v3951, %v4399
        %4401 = vmatprep.mubr.f32.mxu0 %v401
        %4402 = vmatmul.mubr.f32.gmra.mrb[0].mxu0 %v400
        %v4403 = vpop.f32.mrb[0].mxu0
        %v4404 = vadd.f32 %v3955, %v4403
        %v4405 = vpop.f32.mrb[0].mxu0
        %v4406 = vadd.f32 %v3957, %v4405
        %4407 = vmatprep.mubr.f32.mxu0 %v405
        %4408 = vmatmul.mubr.f32.gmra.mrb[0].mxu0 %v404
        %v4409 = vpop.f32.mrb[0].mxu0
        %v4410 = vadd.f32 %v3961, %v4409
        %v4411 = vpop.f32.mrb[0].mxu0
        %v4412 = vadd.f32 %v3963, %v4411
        %4413 = vmatprep.mubr.f32.mxu0 %v409
        %4414 = vmatmul.mubr.f32.gmra.mrb[0].mxu0 %v408
        %v4415 = vpop.f32.mrb[0].mxu0
        %v4416 = vadd.f32 %v3967, %v4415
        %v4417 = vpop.f32.mrb[0].mxu0
        %v4418 = vadd.f32 %v3969, %v4417
        %4419 = vmatprep.mubr.f32.mxu0 %v413
        %4420 = vmatmul.mubr.f32.gmra.mrb[0].mxu0 %v412
        %v4421 = vpop.f32.mrb[0].mxu0
        %v4422 = vadd.f32 %v3973, %v4421
        %v4423 = vpop.f32.mrb[0].mxu0
        %v4424 = vadd.f32 %v3975, %v4423
        %4425 = vmatprep.mubr.f32.mxu0 %v417
        %4426 = vmatmul.mubr.f32.gmra.mrb[0].mxu0 %v416
        %v4427 = vpop.f32.mrb[0].mxu0
        %v4428 = vadd.f32 %v3979, %v4427
        %v4429 = vpop.f32.mrb[0].mxu0
        %v4430 = vadd.f32 %v3981, %v4429
        %4431 = vmatprep.mubr.f32.mxu0 %v421
        %4432 = vmatmul.mubr.f32.gmra.mrb[0].mxu0 %v420
        %v4433 = vpop.f32.mrb[0].mxu0
        %v4434 = vadd.f32 %v3985, %v4433
        %v4435 = vpop.f32.mrb[0].mxu0
        %v4436 = vadd.f32 %v3987, %v4435
        %4437 = vmatprep.mubr.f32.mxu0 %v425
        %4438 = vmatmul.mubr.f32.gmra.mrb[0].mxu0 %v424
        %v4439 = vpop.f32.mrb[0].mxu0
        %v4440 = vadd.f32 %v3991, %v4439
        %v4441 = vpop.f32.mrb[0].mxu0
        %v4442 = vadd.f32 %v3993, %v4441
        %4443 = vmatprep.mubr.f32.mxu0 %v429
        %4444 = vmatmul.mubr.f32.gmra.mrb[0].mxu0 %v428
        %v4445 = vpop.f32.mrb[0].mxu0
        %v4446 = vadd.f32 %v3997, %v4445
        %v4447 = vpop.f32.mrb[0].mxu0
        %v4448 = vadd.f32 %v3999, %v4447
        %4449 = vmatprep.mubr.f32.mxu0 %v433
        %4450 = vmatmul.mubr.f32.gmra.mrb[0].mxu0 %v432
        %v4451 = vpop.f32.mrb[0].mxu0
        %v4452 = vadd.f32 %v4003, %v4451
        %v4453 = vpop.f32.mrb[0].mxu0
        %v4454 = vadd.f32 %v4005, %v4453
        %4455 = vmatprep.mubr.f32.mxu0 %v437
        %4456 = vmatmul.mubr.f32.gmra.mrb[0].mxu0 %v436
        %v4457 = vpop.f32.mrb[0].mxu0
        %v4458 = vadd.f32 %v4009, %v4457
        %v4459 = vpop.f32.mrb[0].mxu0
        %v4460 = vadd.f32 %v4011, %v4459
        %4461 = vmatprep.mubr.f32.mxu0 %v441
        %4462 = vmatmul.mubr.f32.gmra.mrb[0].mxu0 %v440
        %v4463 = vpop.f32.mrb[0].mxu0
        %v4464 = vadd.f32 %v4015, %v4463
        %v4465 = vpop.f32.mrb[0].mxu0
        %v4466 = vadd.f32 %v4017, %v4465
        %4467 = vmatprep.mubr.f32.mxu0 %v445
        %4468 = vmatmul.mubr.f32.gmra.mrb[0].mxu0 %v444
        %v4469 = vpop.f32.mrb[0].mxu0
        %v4470 = vadd.f32 %v4021, %v4469
        %v4471 = vpop.f32.mrb[0].mxu0
        %v4472 = vadd.f32 %v4023, %v4471
        %4473 = vmatprep.mubr.f32.mxu0 %v449
        %4474 = vmatmul.mubr.f32.gmra.mrb[0].mxu0 %v448
        %v4475 = vpop.f32.mrb[0].mxu0
        %v4476 = vadd.f32 %v4027, %v4475
        %v4477 = vpop.f32.mrb[0].mxu0
        %v4478 = vadd.f32 %v4029, %v4477
        %4479 = vmatprep.mubr.f32.mxu0 %v453
        %4480 = vmatmul.mubr.f32.gmra.mrb[0].mxu0 %v452
        %v4481 = vpop.f32.mrb[0].mxu0
        %v4482 = vadd.f32 %v4033, %v4481
        %v4483 = vpop.f32.mrb[0].mxu0
        %v4484 = vadd.f32 %v4035, %v4483
        %4485 = vmatprep.mubr.f32.mxu0 %v457
        %4486 = vmatmul.mubr.f32.gmra.mrb[0].mxu0 %v456
        %v4487 = vpop.f32.mrb[0].mxu0
        %v4488 = vadd.f32 %v4039, %v4487
        %v4489 = vpop.f32.mrb[0].mxu0
        %v4490 = vadd.f32 %v4041, %v4489
        %4491 = vmatprep.mubr.f32.mxu0 %v461
        %4492 = vmatmul.mubr.f32.gmra.mrb[0].mxu0 %v460
        %v4493 = vpop.f32.mrb[0].mxu0
        %v4494 = vadd.f32 %v4045, %v4493
        %v4495 = vpop.f32.mrb[0].mxu0
        %v4496 = vadd.f32 %v4047, %v4495
        %4497 = vmatprep.mubr.f32.mxu0 %v465
        %4498 = vmatmul.mubr.f32.gmra.mrb[0].mxu0 %v464
        %v4499 = vpop.f32.mrb[0].mxu0
        %v4500 = vadd.f32 %v4051, %v4499
        %v4501 = vpop.f32.mrb[0].mxu0
        %v4502 = vadd.f32 %v4053, %v4501
        %4503 = vmatprep.mubr.f32.mxu0 %v469
        %4504 = vmatmul.mubr.f32.gmra.mrb[0].mxu0 %v468
        %v4505 = vpop.f32.mrb[0].mxu0
        %v4506 = vadd.f32 %v4057, %v4505
        %v4507 = vpop.f32.mrb[0].mxu0
        %v4508 = vadd.f32 %v4059, %v4507
        %4509 = vmatprep.mubr.f32.mxu0 %v473
        %4510 = vmatmul.mubr.f32.gmra.mrb[0].mxu0 %v472
        %v4511 = vpop.f32.mrb[0].mxu0
        %v4512 = vadd.f32 %v4063, %v4511
        %v4513 = vpop.f32.mrb[0].mxu0
        %v4514 = vadd.f32 %v4065, %v4513
        %4515 = vmatprep.mubr.f32.mxu0 %v477
        %4516 = vmatmul.mubr.f32.gmra.mrb[0].mxu0 %v476
        %v4517 = vpop.f32.mrb[0].mxu0
        %v4518 = vadd.f32 %v4069, %v4517
        %v4519 = vpop.f32.mrb[0].mxu0
        %v4520 = vadd.f32 %v4071, %v4519
        %4521 = vmatprep.mubr.f32.mxu0 %v481
        %4522 = vmatmul.mubr.f32.gmra.mrb[0].mxu0 %v480
        %v4523 = vpop.f32.mrb[0].mxu0
        %v4524 = vadd.f32 %v4075, %v4523
        %v4525 = vpop.f32.mrb[0].mxu0
        %v4526 = vadd.f32 %v4077, %v4525
        %4527 = vmatprep.mubr.f32.mxu0 %v485
        %4528 = vmatmul.mubr.f32.gmra.mrb[0].mxu0 %v484
        %v4529 = vpop.f32.mrb[0].mxu0
        %v4530 = vadd.f32 %v4081, %v4529
        %v4531 = vpop.f32.mrb[0].mxu0
        %v4532 = vadd.f32 %v4083, %v4531
        %4533 = vmatprep.mubr.f32.mxu0 %v489
        %4534 = vmatmul.mubr.f32.gmra.mrb[0].mxu0 %v488
        %v4535 = vpop.f32.mrb[0].mxu0
        %v4536 = vadd.f32 %v4087, %v4535
        %v4537 = vpop.f32.mrb[0].mxu0
        %v4538 = vadd.f32 %v4089, %v4537
        %4539 = vmatprep.mubr.f32.mxu0 %v493
        %4540 = vmatmul.mubr.f32.gmra.mrb[0].mxu0 %v492
        %v4541 = vpop.f32.mrb[0].mxu0
        %v4542 = vadd.f32 %v4093, %v4541
        %v4543 = vpop.f32.mrb[0].mxu0
        %v4544 = vadd.f32 %v4095, %v4543
        %4545 = vmatprep.mubr.f32.mxu0 %v497
        %4546 = vmatmul.mubr.f32.gmra.mrb[0].mxu0 %v496
        %v4547 = vpop.f32.mrb[0].mxu0
        %v4548 = vadd.f32 %v4099, %v4547
        %v4549 = vpop.f32.mrb[0].mxu0
        %v4550 = vadd.f32 %v4101, %v4549
        %4551 = vmatprep.mubr.f32.mxu0 %v501
        %4552 = vmatmul.mubr.f32.gmra.mrb[0].mxu0 %v500
        %v4553 = vpop.f32.mrb[0].mxu0
        %v4554 = vadd.f32 %v4105, %v4553
        %v4555 = vpop.f32.mrb[0].mxu0
        %v4556 = vadd.f32 %v4107, %v4555
        %4557 = vmatprep.mubr.f32.mxu0 %v505
        %4558 = vmatmul.mubr.f32.gmra.mrb[0].mxu0 %v504
        %v4559 = vpop.f32.mrb[0].mxu0
        %v4560 = vadd.f32 %v4111, %v4559
        %v4561 = vpop.f32.mrb[0].mxu0
        %v4562 = vadd.f32 %v4113, %v4561
        %4563 = vmatprep.mubr.f32.mxu0 %v509
        %4564 = vmatmul.mubr.f32.gmra.mrb[0].mxu0 %v508
        %v4565 = vpop.f32.mrb[0].mxu0
        %v4566 = vadd.f32 %v4117, %v4565
        %v4567 = vpop.f32.mrb[0].mxu0
        %v4568 = vadd.f32 %v4119, %v4567
        %4569 = vmatprep.mubr.f32.mxu0 %v513
        %4570 = vmatmul.mubr.f32.gmra.mrb[0].mxu0 %v512
        %v4571 = vpop.f32.mrb[0].mxu0
        %v4572 = vadd.f32 %v4123, %v4571
        %v4573 = vpop.f32.mrb[0].mxu0
        %v4574 = vadd.f32 %v4125, %v4573
        %4575 = vmatprep.mubr.f32.mxu0 %v517
        %4576 = vmatmul.mubr.f32.gmra.mrb[0].mxu0 %v516
        %v4577 = vpop.f32.mrb[0].mxu0
        %v4578 = vadd.f32 %v4129, %v4577
        %v4579 = vpop.f32.mrb[0].mxu0
        %v4580 = vadd.f32 %v4131, %v4579
        %4581 = vmatprep.mubr.f32.mxu0 %v521
        %4582 = vmatmul.mubr.f32.gmra.mrb[0].mxu0 %v520
        %v4583 = vpop.f32.mrb[0].mxu0
        %v4584 = vadd.f32 %v4135, %v4583
        %v4585 = vpop.f32.mrb[0].mxu0
        %v4586 = vadd.f32 %v4137, %v4585
        %4587 = vmatprep.mubr.f32.mxu0 %v525
        %4588 = vmatmul.mubr.f32.gmra.mrb[0].mxu0 %v524
        %v4589 = vpop.f32.mrb[0].mxu0
        %v4590 = vadd.f32 %v4141, %v4589
        %v4591 = vpop.f32.mrb[0].mxu0
        %v4592 = vadd.f32 %v4143, %v4591
        %4593 = vmatprep.mubr.f32.mxu0 %v529
        %4594 = vmatmul.mubr.f32.gmra.mrb[0].mxu0 %v528
        %v4595 = vpop.f32.mrb[0].mxu0
        %v4596 = vadd.f32 %v4147, %v4595
        %v4597 = vpop.f32.mrb[0].mxu0
        %v4598 = vadd.f32 %v4149, %v4597
        %4599 = vmatprep.mubr.f32.mxu0 %v533
        %4600 = vmatmul.mubr.f32.gmra.mrb[0].mxu0 %v532
        %v4601 = vpop.f32.mrb[0].mxu0
        %v4602 = vadd.f32 %v4153, %v4601
        %v4603 = vpop.f32.mrb[0].mxu0
        %v4604 = vadd.f32 %v4155, %v4603
        %4605 = vmatprep.mubr.f32.mxu0 %v537
        %4606 = vmatmul.mubr.f32.gmra.mrb[0].mxu0 %v536
        %v4607 = vpop.f32.mrb[0].mxu0
        %v4608 = vadd.f32 %v4159, %v4607
        %v4609 = vpop.f32.mrb[0].mxu0
        %v4610 = vadd.f32 %v4161, %v4609
        %4611 = vmatprep.mubr.f32.mxu0 %v541
        %4612 = vmatmul.mubr.f32.gmra.mrb[0].mxu0 %v540
        %v4613 = vpop.f32.mrb[0].mxu0
        %v4614 = vadd.f32 %v4165, %v4613
        %v4615 = vpop.f32.mrb[0].mxu0
        %v4616 = vadd.f32 %v4167, %v4615
        %4617 = vmatprep.mubr.f32.mxu0 %v545
        %4618 = vmatmul.mubr.f32.gmra.mrb[0].mxu0 %v544
        %v4619 = vpop.f32.mrb[0].mxu0
        %v4620 = vadd.f32 %v4171, %v4619
        %v4621 = vpop.f32.mrb[0].mxu0
        %v4622 = vadd.f32 %v4173, %v4621
        %4623 = vmatprep.mubr.f32.mxu0 %v549
        %4624 = vmatmul.mubr.f32.gmra.mrb[0].mxu0 %v548
        %v4625 = vpop.f32.mrb[0].mxu0
        %v4626 = vadd.f32 %v4177, %v4625
        %v4627 = vpop.f32.mrb[0].mxu0
        %v4628 = vadd.f32 %v4179, %v4627
        %4629 = vmatprep.mubr.f32.mxu0 %v553
        %4630 = vmatmul.mubr.f32.gmra.mrb[0].mxu0 %v552
        %v4631 = vpop.f32.mrb[0].mxu0
        %v4632 = vadd.f32 %v4183, %v4631
        %v4633 = vpop.f32.mrb[0].mxu0
        %v4634 = vadd.f32 %v4185, %v4633
        %4635 = vmatprep.mubr.f32.mxu0 %v557
        %4636 = vmatmul.mubr.f32.gmra.mrb[0].mxu0 %v556
        %v4637 = vpop.f32.mrb[0].mxu0
        %v4638 = vadd.f32 %v4189, %v4637
        %v4639 = vpop.f32.mrb[0].mxu0
        %v4640 = vadd.f32 %v4191, %v4639
        %4641 = vmatprep.mubr.f32.mxu0 %v561
        %4642 = vmatmul.mubr.f32.gmra.mrb[0].mxu0 %v560
        %v4643 = vpop.f32.mrb[0].mxu0
        %v4644 = vadd.f32 %v4195, %v4643
        %v4645 = vpop.f32.mrb[0].mxu0
        %v4646 = vadd.f32 %v4197, %v4645
        %4647 = vmatprep.mubr.f32.mxu0 %v565
        %4648 = vmatmul.mubr.f32.gmra.mrb[0].mxu0 %v564
        %v4649 = vpop.f32.mrb[0].mxu0
        %v4650 = vadd.f32 %v4201, %v4649
        %v4651 = vpop.f32.mrb[0].mxu0
        %v4652 = vadd.f32 %v4203, %v4651
        %4653 = vmatprep.mubr.f32.mxu0 %v569
        %4654 = vmatmul.mubr.f32.gmra.mrb[0].mxu0 %v568
        %v4655 = vpop.f32.mrb[0].mxu0
        %v4656 = vadd.f32 %v4207, %v4655
        %v4657 = vpop.f32.mrb[0].mxu0
        %v4658 = vadd.f32 %v4209, %v4657
        %4659 = vmatprep.mubr.f32.mxu0 %v573
        %4660 = vmatmul.mubr.f32.gmra.mrb[0].mxu0 %v572
        %v4661 = vpop.f32.mrb[0].mxu0
        %v4662 = vadd.f32 %v4213, %v4661
        %v4663 = vpop.f32.mrb[0].mxu0
        %v4664 = vadd.f32 %v4215, %v4663
        %4665 = vmatprep.mubr.f32.mxu0 %v577
        %4666 = vmatmul.mubr.f32.gmra.mrb[0].mxu0 %v576
        %v4667 = vpop.f32.mrb[0].mxu0
        %v4668 = vadd.f32 %v4219, %v4667
        %v4669 = vpop.f32.mrb[0].mxu0
        %v4670 = vadd.f32 %v4221, %v4669
        %4671 = vmatprep.mubr.f32.mxu0 %v581
        %4672 = vmatmul.mubr.f32.gmra.mrb[0].mxu0 %v580
        %v4673 = vpop.f32.mrb[0].mxu0
        %v4674 = vadd.f32 %v4225, %v4673
        %v4675 = vpop.f32.mrb[0].mxu0
        %v4676 = vadd.f32 %v4227, %v4675
        %4677 = vmatprep.mubr.f32.mxu0 %v585
        %4678 = vmatmul.mubr.f32.gmra.mrb[0].mxu0 %v584
        %v4679 = vpop.f32.mrb[0].mxu0
        %v4680 = vadd.f32 %v4231, %v4679
        %v4681 = vpop.f32.mrb[0].mxu0
        %v4682 = vadd.f32 %v4233, %v4681
        %4683 = vmatprep.mubr.f32.mxu0 %v589
        %4684 = vmatmul.mubr.f32.gmra.mrb[0].mxu0 %v588
        %v4685 = vpop.f32.mrb[0].mxu0
        %v4686 = vadd.f32 %v4237, %v4685
        %v4687 = vpop.f32.mrb[0].mxu0
        %v4688 = vadd.f32 %v4239, %v4687
        %4689 = vmatprep.mubr.f32.mxu0 %v593
        %4690 = vmatmul.mubr.f32.gmra.mrb[0].mxu0 %v592
        %v4691 = vpop.f32.mrb[0].mxu0
        %v4692 = vadd.f32 %v4243, %v4691
        %v4693 = vpop.f32.mrb[0].mxu0
        %v4694 = vadd.f32 %v4245, %v4693
        %4695 = vmatprep.mubr.f32.mxu0 %v597
        %4696 = vmatmul.mubr.f32.gmra.mrb[0].mxu0 %v596
        %v4697 = vpop.f32.mrb[0].mxu0
        %v4698 = vadd.f32 %v4249, %v4697
        %v4699 = vpop.f32.mrb[0].mxu0
        %v4700 = vadd.f32 %v4251, %v4699
        %4701 = vdwg.mxu0
        %p4702 = scmp.eq.s32.totalorder %s30, 0
        // Predicated region
        $region45: #{tpu_custom_call.1} parent=31 // pred_check
          %p4703 = pneg %p4702
        $region46: #{tpu_custom_call.1} parent=31 // pred_check_branch
          %4705 = sbr.rel (%p4703) target = $region48
        $region47: #{tpu_custom_call.1} parent=31 // pred_region
          %4706 = vst [vmem:[#allocation2] sm:$0xff] %v1626
          %4707 = vst [vmem:[#allocation2 + $0x8] sm:$0xff] %v1628
          %4708 = vst [vmem:[#allocation2 + $0x10] sm:$0xff] %v2524
          %4709 = vst [vmem:[#allocation2 + $0x18] sm:$0xff] %v2526
          %4710 = vst [vmem:[#allocation2 + $0x20] sm:$0xff] %v3422
          %4711 = vst [vmem:[#allocation2 + $0x28] sm:$0xff] %v3424
          %4712 = vst [vmem:[#allocation2 + $0x30] sm:$0xff] %v4320
          %4713 = vst [vmem:[#allocation2 + $0x38] sm:$0xff] %v4322
          %4714 = vst [vmem:[#allocation2 + $0x40] sm:$0xff] %v1632
          %4715 = vst [vmem:[#allocation2 + $0x48] sm:$0xff] %v1634
          %4716 = vst [vmem:[#allocation2 + $0x50] sm:$0xff] %v2530
          %4717 = vst [vmem:[#allocation2 + $0x58] sm:$0xff] %v2532
          %4718 = vst [vmem:[#allocation2 + $0x60] sm:$0xff] %v3428
          %4719 = vst [vmem:[#allocation2 + $0x68] sm:$0xff] %v3430
          %4720 = vst [vmem:[#allocation2 + $0x70] sm:$0xff] %v4326
          %4721 = vst [vmem:[#allocation2 + $0x78] sm:$0xff] %v4328
          %4722 = vst [vmem:[#allocation2 + $0x80] sm:$0xff] %v1638
          %4723 = vst [vmem:[#allocation2 + $0x88] sm:$0xff] %v1640
          %4724 = vst [vmem:[#allocation2 + $0x90] sm:$0xff] %v2536
          %4725 = vst [vmem:[#allocation2 + $0x98] sm:$0xff] %v2538
          %4726 = vst [vmem:[#allocation2 + $0xa0] sm:$0xff] %v3434
          %4727 = vst [vmem:[#allocation2 + $0xa8] sm:$0xff] %v3436
          %4728 = vst [vmem:[#allocation2 + $0xb0] sm:$0xff] %v4332
          %4729 = vst [vmem:[#allocation2 + $0xb8] sm:$0xff] %v4334
          %4730 = vst [vmem:[#allocation2 + $0xc0] sm:$0xff] %v1644
          %4731 = vst [vmem:[#allocation2 + $0xc8] sm:$0xff] %v1646
          %4732 = vst [vmem:[#allocation2 + $0xd0] sm:$0xff] %v2542
          %4733 = vst [vmem:[#allocation2 + $0xd8] sm:$0xff] %v2544
          %4734 = vst [vmem:[#allocation2 + $0xe0] sm:$0xff] %v3440
          %4735 = vst [vmem:[#allocation2 + $0xe8] sm:$0xff] %v3442
          %4736 = vst [vmem:[#allocation2 + $0xf0] sm:$0xff] %v4338
          %4737 = vst [vmem:[#allocation2 + $0xf8] sm:$0xff] %v4340
          %4738 = vst [vmem:[#allocation2 + $0x100] sm:$0xff] %v1650
          %4739 = vst [vmem:[#allocation2 + $0x108] sm:$0xff] %v1652
          %4740 = vst [vmem:[#allocation2 + $0x110] sm:$0xff] %v2548
          %4741 = vst [vmem:[#allocation2 + $0x118] sm:$0xff] %v2550
          %4742 = vst [vmem:[#allocation2 + $0x120] sm:$0xff] %v3446
          %4743 = vst [vmem:[#allocation2 + $0x128] sm:$0xff] %v3448
          %4744 = vst [vmem:[#allocation2 + $0x130] sm:$0xff] %v4344
          %4745 = vst [vmem:[#allocation2 + $0x138] sm:$0xff] %v4346
          %4746 = vst [vmem:[#allocation2 + $0x140] sm:$0xff] %v1656
          %4747 = vst [vmem:[#allocation2 + $0x148] sm:$0xff] %v1658
          %4748 = vst [vmem:[#allocation2 + $0x150] sm:$0xff] %v2554
          %4749 = vst [vmem:[#allocation2 + $0x158] sm:$0xff] %v2556
          %4750 = vst [vmem:[#allocation2 + $0x160] sm:$0xff] %v3452
          %4751 = vst [vmem:[#allocation2 + $0x168] sm:$0xff] %v3454
          %4752 = vst [vmem:[#allocation2 + $0x170] sm:$0xff] %v4350
          %4753 = vst [vmem:[#allocation2 + $0x178] sm:$0xff] %v4352
          %4754 = vst [vmem:[#allocation2 + $0x180] sm:$0xff] %v1662
          %4755 = vst [vmem:[#allocation2 + $0x188] sm:$0xff] %v1664
          %4756 = vst [vmem:[#allocation2 + $0x190] sm:$0xff] %v2560
          %4757 = vst [vmem:[#allocation2 + $0x198] sm:$0xff] %v2562
          %4758 = vst [vmem:[#allocation2 + $0x1a0] sm:$0xff] %v3458
          %4759 = vst [vmem:[#allocation2 + $0x1a8] sm:$0xff] %v3460
          %4760 = vst [vmem:[#allocation2 + $0x1b0] sm:$0xff] %v4356
          %4761 = vst [vmem:[#allocation2 + $0x1b8] sm:$0xff] %v4358
          %4762 = vst [vmem:[#allocation2 + $0x1c0] sm:$0xff] %v1668
          %4763 = vst [vmem:[#allocation2 + $0x1c8] sm:$0xff] %v1670
          %4764 = vst [vmem:[#allocation2 + $0x1d0] sm:$0xff] %v2566
          %4765 = vst [vmem:[#allocation2 + $0x1d8] sm:$0xff] %v2568
          %4766 = vst [vmem:[#allocation2 + $0x1e0] sm:$0xff] %v3464
          %4767 = vst [vmem:[#allocation2 + $0x1e8] sm:$0xff] %v3466
          %4768 = vst [vmem:[#allocation2 + $0x1f0] sm:$0xff] %v4362
          %4769 = vst [vmem:[#allocation2 + $0x1f8] sm:$0xff] %v4364
          %4770 = vst [vmem:[#allocation2 + $0x200] sm:$0xff] %v1674
          %4771 = vst [vmem:[#allocation2 + $0x208] sm:$0xff] %v1676
          %4772 = vst [vmem:[#allocation2 + $0x210] sm:$0xff] %v2572
          %4773 = vst [vmem:[#allocation2 + $0x218] sm:$0xff] %v2574
          %4774 = vst [vmem:[#allocation2 + $0x220] sm:$0xff] %v3470
          %4775 = vst [vmem:[#allocation2 + $0x228] sm:$0xff] %v3472
          %4776 = vst [vmem:[#allocation2 + $0x230] sm:$0xff] %v4368
          %4777 = vst [vmem:[#allocation2 + $0x238] sm:$0xff] %v4370
          %4778 = vst [vmem:[#allocation2 + $0x240] sm:$0xff] %v1680
          %4779 = vst [vmem:[#allocation2 + $0x248] sm:$0xff] %v1682
          %4780 = vst [vmem:[#allocation2 + $0x250] sm:$0xff] %v2578
          %4781 = vst [vmem:[#allocation2 + $0x258] sm:$0xff] %v2580
          %4782 = vst [vmem:[#allocation2 + $0x260] sm:$0xff] %v3476
          %4783 = vst [vmem:[#allocation2 + $0x268] sm:$0xff] %v3478
          %4784 = vst [vmem:[#allocation2 + $0x270] sm:$0xff] %v4374
          %4785 = vst [vmem:[#allocation2 + $0x278] sm:$0xff] %v4376
          %4786 = vst [vmem:[#allocation2 + $0x280] sm:$0xff] %v1686
          %4787 = vst [vmem:[#allocation2 + $0x288] sm:$0xff] %v1688
          %4788 = vst [vmem:[#allocation2 + $0x290] sm:$0xff] %v2584
          %4789 = vst [vmem:[#allocation2 + $0x298] sm:$0xff] %v2586
          %4790 = vst [vmem:[#allocation2 + $0x2a0] sm:$0xff] %v3482
          %4791 = vst [vmem:[#allocation2 + $0x2a8] sm:$0xff] %v3484
          %4792 = vst [vmem:[#allocation2 + $0x2b0] sm:$0xff] %v4380
          %4793 = vst [vmem:[#allocation2 + $0x2b8] sm:$0xff] %v4382
          %4794 = vst [vmem:[#allocation2 + $0x2c0] sm:$0xff] %v1692
          %4795 = vst [vmem:[#allocation2 + $0x2c8] sm:$0xff] %v1694
          %4796 = vst [vmem:[#allocation2 + $0x2d0] sm:$0xff] %v2590
          %4797 = vst [vmem:[#allocation2 + $0x2d8] sm:$0xff] %v2592
          %4798 = vst [vmem:[#allocation2 + $0x2e0] sm:$0xff] %v3488
          %4799 = vst [vmem:[#allocation2 + $0x2e8] sm:$0xff] %v3490
          %4800 = vst [vmem:[#allocation2 + $0x2f0] sm:$0xff] %v4386
          %4801 = vst [vmem:[#allocation2 + $0x2f8] sm:$0xff] %v4388
          %4802 = vst [vmem:[#allocation2 + $0x300] sm:$0xff] %v1698
          %4803 = vst [vmem:[#allocation2 + $0x308] sm:$0xff] %v1700
          %4804 = vst [vmem:[#allocation2 + $0x310] sm:$0xff] %v2596
          %4805 = vst [vmem:[#allocation2 + $0x318] sm:$0xff] %v2598
          %4806 = vst [vmem:[#allocation2 + $0x320] sm:$0xff] %v3494
          %4807 = vst [vmem:[#allocation2 + $0x328] sm:$0xff] %v3496
          %4808 = vst [vmem:[#allocation2 + $0x330] sm:$0xff] %v4392
          %4809 = vst [vmem:[#allocation2 + $0x338] sm:$0xff] %v4394
          %4810 = vst [vmem:[#allocation2 + $0x340] sm:$0xff] %v1704
          %4811 = vst [vmem:[#allocation2 + $0x348] sm:$0xff] %v1706
          %4812 = vst [vmem:[#allocation2 + $0x350] sm:$0xff] %v2602
          %4813 = vst [vmem:[#allocation2 + $0x358] sm:$0xff] %v2604
          %4814 = vst [vmem:[#allocation2 + $0x360] sm:$0xff] %v3500
          %4815 = vst [vmem:[#allocation2 + $0x368] sm:$0xff] %v3502
          %4816 = vst [vmem:[#allocation2 + $0x370] sm:$0xff] %v4398
          %4817 = vst [vmem:[#allocation2 + $0x378] sm:$0xff] %v4400
          %4818 = vst [vmem:[#allocation2 + $0x380] sm:$0xff] %v1710
          %4819 = vst [vmem:[#allocation2 + $0x388] sm:$0xff] %v1712
          %4820 = vst [vmem:[#allocation2 + $0x390] sm:$0xff] %v2608
          %4821 = vst [vmem:[#allocation2 + $0x398] sm:$0xff] %v2610
          %4822 = vst [vmem:[#allocation2 + $0x3a0] sm:$0xff] %v3506
          %4823 = vst [vmem:[#allocation2 + $0x3a8] sm:$0xff] %v3508
          %4824 = vst [vmem:[#allocation2 + $0x3b0] sm:$0xff] %v4404
          %4825 = vst [vmem:[#allocation2 + $0x3b8] sm:$0xff] %v4406
          %4826 = vst [vmem:[#allocation2 + $0x3c0] sm:$0xff] %v1716
          %4827 = vst [vmem:[#allocation2 + $0x3c8] sm:$0xff] %v1718
          %4828 = vst [vmem:[#allocation2 + $0x3d0] sm:$0xff] %v2614
          %4829 = vst [vmem:[#allocation2 + $0x3d8] sm:$0xff] %v2616
          %4830 = vst [vmem:[#allocation2 + $0x3e0] sm:$0xff] %v3512
          %4831 = vst [vmem:[#allocation2 + $0x3e8] sm:$0xff] %v3514
          %4832 = vst [vmem:[#allocation2 + $0x3f0] sm:$0xff] %v4410
          %4833 = vst [vmem:[#allocation2 + $0x3f8] sm:$0xff] %v4412
          %4834 = vst [vmem:[#allocation2 + $0x400] sm:$0xff] %v1722
          %4835 = vst [vmem:[#allocation2 + $0x408] sm:$0xff] %v1724
          %4836 = vst [vmem:[#allocation2 + $0x410] sm:$0xff] %v2620
          %4837 = vst [vmem:[#allocation2 + $0x418] sm:$0xff] %v2622
          %4838 = vst [vmem:[#allocation2 + $0x420] sm:$0xff] %v3518
          %4839 = vst [vmem:[#allocation2 + $0x428] sm:$0xff] %v3520
          %4840 = vst [vmem:[#allocation2 + $0x430] sm:$0xff] %v4416
          %4841 = vst [vmem:[#allocation2 + $0x438] sm:$0xff] %v4418
          %4842 = vst [vmem:[#allocation2 + $0x440] sm:$0xff] %v1728
          %4843 = vst [vmem:[#allocation2 + $0x448] sm:$0xff] %v1730
          %4844 = vst [vmem:[#allocation2 + $0x450] sm:$0xff] %v2626
          %4845 = vst [vmem:[#allocation2 + $0x458] sm:$0xff] %v2628
          %4846 = vst [vmem:[#allocation2 + $0x460] sm:$0xff] %v3524
          %4847 = vst [vmem:[#allocation2 + $0x468] sm:$0xff] %v3526
          %4848 = vst [vmem:[#allocation2 + $0x470] sm:$0xff] %v4422
          %4849 = vst [vmem:[#allocation2 + $0x478] sm:$0xff] %v4424
          %4850 = vst [vmem:[#allocation2 + $0x480] sm:$0xff] %v1734
          %4851 = vst [vmem:[#allocation2 + $0x488] sm:$0xff] %v1736
          %4852 = vst [vmem:[#allocation2 + $0x490] sm:$0xff] %v2632
          %4853 = vst [vmem:[#allocation2 + $0x498] sm:$0xff] %v2634
          %4854 = vst [vmem:[#allocation2 + $0x4a0] sm:$0xff] %v3530
          %4855 = vst [vmem:[#allocation2 + $0x4a8] sm:$0xff] %v3532
          %4856 = vst [vmem:[#allocation2 + $0x4b0] sm:$0xff] %v4428
          %4857 = vst [vmem:[#allocation2 + $0x4b8] sm:$0xff] %v4430
          %4858 = vst [vmem:[#allocation2 + $0x4c0] sm:$0xff] %v1740
          %4859 = vst [vmem:[#allocation2 + $0x4c8] sm:$0xff] %v1742
          %4860 = vst [vmem:[#allocation2 + $0x4d0] sm:$0xff] %v2638
          %4861 = vst [vmem:[#allocation2 + $0x4d8] sm:$0xff] %v2640
          %4862 = vst [vmem:[#allocation2 + $0x4e0] sm:$0xff] %v3536
          %4863 = vst [vmem:[#allocation2 + $0x4e8] sm:$0xff] %v3538
          %4864 = vst [vmem:[#allocation2 + $0x4f0] sm:$0xff] %v4434
          %4865 = vst [vmem:[#allocation2 + $0x4f8] sm:$0xff] %v4436
          %4866 = vst [vmem:[#allocation2 + $0x500] sm:$0xff] %v1746
          %4867 = vst [vmem:[#allocation2 + $0x508] sm:$0xff] %v1748
          %4868 = vst [vmem:[#allocation2 + $0x510] sm:$0xff] %v2644
          %4869 = vst [vmem:[#allocation2 + $0x518] sm:$0xff] %v2646
          %4870 = vst [vmem:[#allocation2 + $0x520] sm:$0xff] %v3542
          %4871 = vst [vmem:[#allocation2 + $0x528] sm:$0xff] %v3544
          %4872 = vst [vmem:[#allocation2 + $0x530] sm:$0xff] %v4440
          %4873 = vst [vmem:[#allocation2 + $0x538] sm:$0xff] %v4442
          %4874 = vst [vmem:[#allocation2 + $0x540] sm:$0xff] %v1752
          %4875 = vst [vmem:[#allocation2 + $0x548] sm:$0xff] %v1754
          %4876 = vst [vmem:[#allocation2 + $0x550] sm:$0xff] %v2650
          %4877 = vst [vmem:[#allocation2 + $0x558] sm:$0xff] %v2652
          %4878 = vst [vmem:[#allocation2 + $0x560] sm:$0xff] %v3548
          %4879 = vst [vmem:[#allocation2 + $0x568] sm:$0xff] %v3550
          %4880 = vst [vmem:[#allocation2 + $0x570] sm:$0xff] %v4446
          %4881 = vst [vmem:[#allocation2 + $0x578] sm:$0xff] %v4448
          %4882 = vst [vmem:[#allocation2 + $0x580] sm:$0xff] %v1758
          %4883 = vst [vmem:[#allocation2 + $0x588] sm:$0xff] %v1760
          %4884 = vst [vmem:[#allocation2 + $0x590] sm:$0xff] %v2656
          %4885 = vst [vmem:[#allocation2 + $0x598] sm:$0xff] %v2658
          %4886 = vst [vmem:[#allocation2 + $0x5a0] sm:$0xff] %v3554
          %4887 = vst [vmem:[#allocation2 + $0x5a8] sm:$0xff] %v3556
          %4888 = vst [vmem:[#allocation2 + $0x5b0] sm:$0xff] %v4452
          %4889 = vst [vmem:[#allocation2 + $0x5b8] sm:$0xff] %v4454
          %4890 = vst [vmem:[#allocation2 + $0x5c0] sm:$0xff] %v1764
          %4891 = vst [vmem:[#allocation2 + $0x5c8] sm:$0xff] %v1766
          %4892 = vst [vmem:[#allocation2 + $0x5d0] sm:$0xff] %v2662
          %4893 = vst [vmem:[#allocation2 + $0x5d8] sm:$0xff] %v2664
          %4894 = vst [vmem:[#allocation2 + $0x5e0] sm:$0xff] %v3560
          %4895 = vst [vmem:[#allocation2 + $0x5e8] sm:$0xff] %v3562
          %4896 = vst [vmem:[#allocation2 + $0x5f0] sm:$0xff] %v4458
          %4897 = vst [vmem:[#allocation2 + $0x5f8] sm:$0xff] %v4460
          %4898 = vst [vmem:[#allocation2 + $0x600] sm:$0xff] %v1770
          %4899 = vst [vmem:[#allocation2 + $0x608] sm:$0xff] %v1772
          %4900 = vst [vmem:[#allocation2 + $0x610] sm:$0xff] %v2668
          %4901 = vst [vmem:[#allocation2 + $0x618] sm:$0xff] %v2670
          %4902 = vst [vmem:[#allocation2 + $0x620] sm:$0xff] %v3566
          %4903 = vst [vmem:[#allocation2 + $0x628] sm:$0xff] %v3568
          %4904 = vst [vmem:[#allocation2 + $0x630] sm:$0xff] %v4464
          %4905 = vst [vmem:[#allocation2 + $0x638] sm:$0xff] %v4466
          %4906 = vst [vmem:[#allocation2 + $0x640] sm:$0xff] %v1776
          %4907 = vst [vmem:[#allocation2 + $0x648] sm:$0xff] %v1778
          %4908 = vst [vmem:[#allocation2 + $0x650] sm:$0xff] %v2674
          %4909 = vst [vmem:[#allocation2 + $0x658] sm:$0xff] %v2676
          %4910 = vst [vmem:[#allocation2 + $0x660] sm:$0xff] %v3572
          %4911 = vst [vmem:[#allocation2 + $0x668] sm:$0xff] %v3574
          %4912 = vst [vmem:[#allocation2 + $0x670] sm:$0xff] %v4470
          %4913 = vst [vmem:[#allocation2 + $0x678] sm:$0xff] %v4472
          %4914 = vst [vmem:[#allocation2 + $0x680] sm:$0xff] %v1782
          %4915 = vst [vmem:[#allocation2 + $0x688] sm:$0xff] %v1784
          %4916 = vst [vmem:[#allocation2 + $0x690] sm:$0xff] %v2680
          %4917 = vst [vmem:[#allocation2 + $0x698] sm:$0xff] %v2682
          %4918 = vst [vmem:[#allocation2 + $0x6a0] sm:$0xff] %v3578
          %4919 = vst [vmem:[#allocation2 + $0x6a8] sm:$0xff] %v3580
          %4920 = vst [vmem:[#allocation2 + $0x6b0] sm:$0xff] %v4476
          %4921 = vst [vmem:[#allocation2 + $0x6b8] sm:$0xff] %v4478
          %4922 = vst [vmem:[#allocation2 + $0x6c0] sm:$0xff] %v1788
          %4923 = vst [vmem:[#allocation2 + $0x6c8] sm:$0xff] %v1790
          %4924 = vst [vmem:[#allocation2 + $0x6d0] sm:$0xff] %v2686
          %4925 = vst [vmem:[#allocation2 + $0x6d8] sm:$0xff] %v2688
          %4926 = vst [vmem:[#allocation2 + $0x6e0] sm:$0xff] %v3584
          %4927 = vst [vmem:[#allocation2 + $0x6e8] sm:$0xff] %v3586
          %4928 = vst [vmem:[#allocation2 + $0x6f0] sm:$0xff] %v4482
          %4929 = vst [vmem:[#allocation2 + $0x6f8] sm:$0xff] %v4484
          %4930 = vst [vmem:[#allocation2 + $0x700] sm:$0xff] %v1794
          %4931 = vst [vmem:[#allocation2 + $0x708] sm:$0xff] %v1796
          %4932 = vst [vmem:[#allocation2 + $0x710] sm:$0xff] %v2692
          %4933 = vst [vmem:[#allocation2 + $0x718] sm:$0xff] %v2694
          %4934 = vst [vmem:[#allocation2 + $0x720] sm:$0xff] %v3590
          %4935 = vst [vmem:[#allocation2 + $0x728] sm:$0xff] %v3592
          %4936 = vst [vmem:[#allocation2 + $0x730] sm:$0xff] %v4488
          %4937 = vst [vmem:[#allocation2 + $0x738] sm:$0xff] %v4490
          %4938 = vst [vmem:[#allocation2 + $0x740] sm:$0xff] %v1800
          %4939 = vst [vmem:[#allocation2 + $0x748] sm:$0xff] %v1802
          %4940 = vst [vmem:[#allocation2 + $0x750] sm:$0xff] %v2698
          %4941 = vst [vmem:[#allocation2 + $0x758] sm:$0xff] %v2700
          %4942 = vst [vmem:[#allocation2 + $0x760] sm:$0xff] %v3596
          %4943 = vst [vmem:[#allocation2 + $0x768] sm:$0xff] %v3598
          %4944 = vst [vmem:[#allocation2 + $0x770] sm:$0xff] %v4494
          %4945 = vst [vmem:[#allocation2 + $0x778] sm:$0xff] %v4496
          %4946 = vst [vmem:[#allocation2 + $0x780] sm:$0xff] %v1806
          %4947 = vst [vmem:[#allocation2 + $0x788] sm:$0xff] %v1808
          %4948 = vst [vmem:[#allocation2 + $0x790] sm:$0xff] %v2704
          %4949 = vst [vmem:[#allocation2 + $0x798] sm:$0xff] %v2706
          %4950 = vst [vmem:[#allocation2 + $0x7a0] sm:$0xff] %v3602
          %4951 = vst [vmem:[#allocation2 + $0x7a8] sm:$0xff] %v3604
          %4952 = vst [vmem:[#allocation2 + $0x7b0] sm:$0xff] %v4500
          %4953 = vst [vmem:[#allocation2 + $0x7b8] sm:$0xff] %v4502
          %4954 = vst [vmem:[#allocation2 + $0x7c0] sm:$0xff] %v1812
          %4955 = vst [vmem:[#allocation2 + $0x7c8] sm:$0xff] %v1814
          %4956 = vst [vmem:[#allocation2 + $0x7d0] sm:$0xff] %v2710
          %4957 = vst [vmem:[#allocation2 + $0x7d8] sm:$0xff] %v2712
          %4958 = vst [vmem:[#allocation2 + $0x7e0] sm:$0xff] %v3608
          %4959 = vst [vmem:[#allocation2 + $0x7e8] sm:$0xff] %v3610
          %4960 = vst [vmem:[#allocation2 + $0x7f0] sm:$0xff] %v4506
          %4961 = vst [vmem:[#allocation2 + $0x7f8] sm:$0xff] %v4508
          %4962 = vst [vmem:[#allocation2 + $0x800] sm:$0xff] %v1818
          %4963 = vst [vmem:[#allocation2 + $0x808] sm:$0xff] %v1820
          %4964 = vst [vmem:[#allocation2 + $0x810] sm:$0xff] %v2716
          %4965 = vst [vmem:[#allocation2 + $0x818] sm:$0xff] %v2718
          %4966 = vst [vmem:[#allocation2 + $0x820] sm:$0xff] %v3614
          %4967 = vst [vmem:[#allocation2 + $0x828] sm:$0xff] %v3616
          %4968 = vst [vmem:[#allocation2 + $0x830] sm:$0xff] %v4512
          %4969 = vst [vmem:[#allocation2 + $0x838] sm:$0xff] %v4514
          %4970 = vst [vmem:[#allocation2 + $0x840] sm:$0xff] %v1824
          %4971 = vst [vmem:[#allocation2 + $0x848] sm:$0xff] %v1826
          %4972 = vst [vmem:[#allocation2 + $0x850] sm:$0xff] %v2722
          %4973 = vst [vmem:[#allocation2 + $0x858] sm:$0xff] %v2724
          %4974 = vst [vmem:[#allocation2 + $0x860] sm:$0xff] %v3620
          %4975 = vst [vmem:[#allocation2 + $0x868] sm:$0xff] %v3622
          %4976 = vst [vmem:[#allocation2 + $0x870] sm:$0xff] %v4518
          %4977 = vst [vmem:[#allocation2 + $0x878] sm:$0xff] %v4520
          %4978 = vst [vmem:[#allocation2 + $0x880] sm:$0xff] %v1830
          %4979 = vst [vmem:[#allocation2 + $0x888] sm:$0xff] %v1832
          %4980 = vst [vmem:[#allocation2 + $0x890] sm:$0xff] %v2728
          %4981 = vst [vmem:[#allocation2 + $0x898] sm:$0xff] %v2730
          %4982 = vst [vmem:[#allocation2 + $0x8a0] sm:$0xff] %v3626
          %4983 = vst [vmem:[#allocation2 + $0x8a8] sm:$0xff] %v3628
          %4984 = vst [vmem:[#allocation2 + $0x8b0] sm:$0xff] %v4524
          %4985 = vst [vmem:[#allocation2 + $0x8b8] sm:$0xff] %v4526
          %4986 = vst [vmem:[#allocation2 + $0x8c0] sm:$0xff] %v1836
          %4987 = vst [vmem:[#allocation2 + $0x8c8] sm:$0xff] %v1838
          %4988 = vst [vmem:[#allocation2 + $0x8d0] sm:$0xff] %v2734
          %4989 = vst [vmem:[#allocation2 + $0x8d8] sm:$0xff] %v2736
          %4990 = vst [vmem:[#allocation2 + $0x8e0] sm:$0xff] %v3632
          %4991 = vst [vmem:[#allocation2 + $0x8e8] sm:$0xff] %v3634
          %4992 = vst [vmem:[#allocation2 + $0x8f0] sm:$0xff] %v4530
          %4993 = vst [vmem:[#allocation2 + $0x8f8] sm:$0xff] %v4532
          %4994 = vst [vmem:[#allocation2 + $0x900] sm:$0xff] %v1842
          %4995 = vst [vmem:[#allocation2 + $0x908] sm:$0xff] %v1844
          %4996 = vst [vmem:[#allocation2 + $0x910] sm:$0xff] %v2740
          %4997 = vst [vmem:[#allocation2 + $0x918] sm:$0xff] %v2742
          %4998 = vst [vmem:[#allocation2 + $0x920] sm:$0xff] %v3638
          %4999 = vst [vmem:[#allocation2 + $0x928] sm:$0xff] %v3640
          %5000 = vst [vmem:[#allocation2 + $0x930] sm:$0xff] %v4536
          %5001 = vst [vmem:[#allocation2 + $0x938] sm:$0xff] %v4538
          %5002 = vst [vmem:[#allocation2 + $0x940] sm:$0xff] %v1848
          %5003 = vst [vmem:[#allocation2 + $0x948] sm:$0xff] %v1850
          %5004 = vst [vmem:[#allocation2 + $0x950] sm:$0xff] %v2746
          %5005 = vst [vmem:[#allocation2 + $0x958] sm:$0xff] %v2748
          %5006 = vst [vmem:[#allocation2 + $0x960] sm:$0xff] %v3644
          %5007 = vst [vmem:[#allocation2 + $0x968] sm:$0xff] %v3646
          %5008 = vst [vmem:[#allocation2 + $0x970] sm:$0xff] %v4542
          %5009 = vst [vmem:[#allocation2 + $0x978] sm:$0xff] %v4544
          %5010 = vst [vmem:[#allocation2 + $0x980] sm:$0xff] %v1854
          %5011 = vst [vmem:[#allocation2 + $0x988] sm:$0xff] %v1856
          %5012 = vst [vmem:[#allocation2 + $0x990] sm:$0xff] %v2752
          %5013 = vst [vmem:[#allocation2 + $0x998] sm:$0xff] %v2754
          %5014 = vst [vmem:[#allocation2 + $0x9a0] sm:$0xff] %v3650
          %5015 = vst [vmem:[#allocation2 + $0x9a8] sm:$0xff] %v3652
          %5016 = vst [vmem:[#allocation2 + $0x9b0] sm:$0xff] %v4548
          %5017 = vst [vmem:[#allocation2 + $0x9b8] sm:$0xff] %v4550
          %5018 = vst [vmem:[#allocation2 + $0x9c0] sm:$0xff] %v1860
          %5019 = vst [vmem:[#allocation2 + $0x9c8] sm:$0xff] %v1862
          %5020 = vst [vmem:[#allocation2 + $0x9d0] sm:$0xff] %v2758
          %5021 = vst [vmem:[#allocation2 + $0x9d8] sm:$0xff] %v2760
          %5022 = vst [vmem:[#allocation2 + $0x9e0] sm:$0xff] %v3656
          %5023 = vst [vmem:[#allocation2 + $0x9e8] sm:$0xff] %v3658
          %5024 = vst [vmem:[#allocation2 + $0x9f0] sm:$0xff] %v4554
          %5025 = vst [vmem:[#allocation2 + $0x9f8] sm:$0xff] %v4556
          %5026 = vst [vmem:[#allocation2 + $0xa00] sm:$0xff] %v1866
          %5027 = vst [vmem:[#allocation2 + $0xa08] sm:$0xff] %v1868
          %5028 = vst [vmem:[#allocation2 + $0xa10] sm:$0xff] %v2764
          %5029 = vst [vmem:[#allocation2 + $0xa18] sm:$0xff] %v2766
          %5030 = vst [vmem:[#allocation2 + $0xa20] sm:$0xff] %v3662
          %5031 = vst [vmem:[#allocation2 + $0xa28] sm:$0xff] %v3664
          %5032 = vst [vmem:[#allocation2 + $0xa30] sm:$0xff] %v4560
          %5033 = vst [vmem:[#allocation2 + $0xa38] sm:$0xff] %v4562
          %5034 = vst [vmem:[#allocation2 + $0xa40] sm:$0xff] %v1872
          %5035 = vst [vmem:[#allocation2 + $0xa48] sm:$0xff] %v1874
          %5036 = vst [vmem:[#allocation2 + $0xa50] sm:$0xff] %v2770
          %5037 = vst [vmem:[#allocation2 + $0xa58] sm:$0xff] %v2772
          %5038 = vst [vmem:[#allocation2 + $0xa60] sm:$0xff] %v3668
          %5039 = vst [vmem:[#allocation2 + $0xa68] sm:$0xff] %v3670
          %5040 = vst [vmem:[#allocation2 + $0xa70] sm:$0xff] %v4566
          %5041 = vst [vmem:[#allocation2 + $0xa78] sm:$0xff] %v4568
          %5042 = vst [vmem:[#allocation2 + $0xa80] sm:$0xff] %v1878
          %5043 = vst [vmem:[#allocation2 + $0xa88] sm:$0xff] %v1880
          %5044 = vst [vmem:[#allocation2 + $0xa90] sm:$0xff] %v2776
          %5045 = vst [vmem:[#allocation2 + $0xa98] sm:$0xff] %v2778
          %5046 = vst [vmem:[#allocation2 + $0xaa0] sm:$0xff] %v3674
          %5047 = vst [vmem:[#allocation2 + $0xaa8] sm:$0xff] %v3676
          %5048 = vst [vmem:[#allocation2 + $0xab0] sm:$0xff] %v4572
          %5049 = vst [vmem:[#allocation2 + $0xab8] sm:$0xff] %v4574
          %5050 = vst [vmem:[#allocation2 + $0xac0] sm:$0xff] %v1884
          %5051 = vst [vmem:[#allocation2 + $0xac8] sm:$0xff] %v1886
          %5052 = vst [vmem:[#allocation2 + $0xad0] sm:$0xff] %v2782
          %5053 = vst [vmem:[#allocation2 + $0xad8] sm:$0xff] %v2784
          %5054 = vst [vmem:[#allocation2 + $0xae0] sm:$0xff] %v3680
          %5055 = vst [vmem:[#allocation2 + $0xae8] sm:$0xff] %v3682
          %5056 = vst [vmem:[#allocation2 + $0xaf0] sm:$0xff] %v4578
          %5057 = vst [vmem:[#allocation2 + $0xaf8] sm:$0xff] %v4580
          %5058 = vst [vmem:[#allocation2 + $0xb00] sm:$0xff] %v1890
          %5059 = vst [vmem:[#allocation2 + $0xb08] sm:$0xff] %v1892
          %5060 = vst [vmem:[#allocation2 + $0xb10] sm:$0xff] %v2788
          %5061 = vst [vmem:[#allocation2 + $0xb18] sm:$0xff] %v2790
          %5062 = vst [vmem:[#allocation2 + $0xb20] sm:$0xff] %v3686
          %5063 = vst [vmem:[#allocation2 + $0xb28] sm:$0xff] %v3688
          %5064 = vst [vmem:[#allocation2 + $0xb30] sm:$0xff] %v4584
          %5065 = vst [vmem:[#allocation2 + $0xb38] sm:$0xff] %v4586
          %5066 = vst [vmem:[#allocation2 + $0xb40] sm:$0xff] %v1896
          %5067 = vst [vmem:[#allocation2 + $0xb48] sm:$0xff] %v1898
          %5068 = vst [vmem:[#allocation2 + $0xb50] sm:$0xff] %v2794
          %5069 = vst [vmem:[#allocation2 + $0xb58] sm:$0xff] %v2796
          %5070 = vst [vmem:[#allocation2 + $0xb60] sm:$0xff] %v3692
          %5071 = vst [vmem:[#allocation2 + $0xb68] sm:$0xff] %v3694
          %5072 = vst [vmem:[#allocation2 + $0xb70] sm:$0xff] %v4590
          %5073 = vst [vmem:[#allocation2 + $0xb78] sm:$0xff] %v4592
          %5074 = vst [vmem:[#allocation2 + $0xb80] sm:$0xff] %v1902
          %5075 = vst [vmem:[#allocation2 + $0xb88] sm:$0xff] %v1904
          %5076 = vst [vmem:[#allocation2 + $0xb90] sm:$0xff] %v2800
          %5077 = vst [vmem:[#allocation2 + $0xb98] sm:$0xff] %v2802
          %5078 = vst [vmem:[#allocation2 + $0xba0] sm:$0xff] %v3698
          %5079 = vst [vmem:[#allocation2 + $0xba8] sm:$0xff] %v3700
          %5080 = vst [vmem:[#allocation2 + $0xbb0] sm:$0xff] %v4596
          %5081 = vst [vmem:[#allocation2 + $0xbb8] sm:$0xff] %v4598
          %5082 = vst [vmem:[#allocation2 + $0xbc0] sm:$0xff] %v1908
          %5083 = vst [vmem:[#allocation2 + $0xbc8] sm:$0xff] %v1910
          %5084 = vst [vmem:[#allocation2 + $0xbd0] sm:$0xff] %v2806
          %5085 = vst [vmem:[#allocation2 + $0xbd8] sm:$0xff] %v2808
          %5086 = vst [vmem:[#allocation2 + $0xbe0] sm:$0xff] %v3704
          %5087 = vst [vmem:[#allocation2 + $0xbe8] sm:$0xff] %v3706
          %5088 = vst [vmem:[#allocation2 + $0xbf0] sm:$0xff] %v4602
          %5089 = vst [vmem:[#allocation2 + $0xbf8] sm:$0xff] %v4604
          %5090 = vst [vmem:[#allocation2 + $0xc00] sm:$0xff] %v1914
          %5091 = vst [vmem:[#allocation2 + $0xc08] sm:$0xff] %v1916
          %5092 = vst [vmem:[#allocation2 + $0xc10] sm:$0xff] %v2812
          %5093 = vst [vmem:[#allocation2 + $0xc18] sm:$0xff] %v2814
          %5094 = vst [vmem:[#allocation2 + $0xc20] sm:$0xff] %v3710
          %5095 = vst [vmem:[#allocation2 + $0xc28] sm:$0xff] %v3712
          %5096 = vst [vmem:[#allocation2 + $0xc30] sm:$0xff] %v4608
          %5097 = vst [vmem:[#allocation2 + $0xc38] sm:$0xff] %v4610
          %5098 = vst [vmem:[#allocation2 + $0xc40] sm:$0xff] %v1920
          %5099 = vst [vmem:[#allocation2 + $0xc48] sm:$0xff] %v1922
          %5100 = vst [vmem:[#allocation2 + $0xc50] sm:$0xff] %v2818
          %5101 = vst [vmem:[#allocation2 + $0xc58] sm:$0xff] %v2820
          %5102 = vst [vmem:[#allocation2 + $0xc60] sm:$0xff] %v3716
          %5103 = vst [vmem:[#allocation2 + $0xc68] sm:$0xff] %v3718
          %5104 = vst [vmem:[#allocation2 + $0xc70] sm:$0xff] %v4614
          %5105 = vst [vmem:[#allocation2 + $0xc78] sm:$0xff] %v4616
          %5106 = vst [vmem:[#allocation2 + $0xc80] sm:$0xff] %v1926
          %5107 = vst [vmem:[#allocation2 + $0xc88] sm:$0xff] %v1928
          %5108 = vst [vmem:[#allocation2 + $0xc90] sm:$0xff] %v2824
          %5109 = vst [vmem:[#allocation2 + $0xc98] sm:$0xff] %v2826
          %5110 = vst [vmem:[#allocation2 + $0xca0] sm:$0xff] %v3722
          %5111 = vst [vmem:[#allocation2 + $0xca8] sm:$0xff] %v3724
          %5112 = vst [vmem:[#allocation2 + $0xcb0] sm:$0xff] %v4620
          %5113 = vst [vmem:[#allocation2 + $0xcb8] sm:$0xff] %v4622
          %5114 = vst [vmem:[#allocation2 + $0xcc0] sm:$0xff] %v1932
          %5115 = vst [vmem:[#allocation2 + $0xcc8] sm:$0xff] %v1934
          %5116 = vst [vmem:[#allocation2 + $0xcd0] sm:$0xff] %v2830
          %5117 = vst [vmem:[#allocation2 + $0xcd8] sm:$0xff] %v2832
          %5118 = vst [vmem:[#allocation2 + $0xce0] sm:$0xff] %v3728
          %5119 = vst [vmem:[#allocation2 + $0xce8] sm:$0xff] %v3730
          %5120 = vst [vmem:[#allocation2 + $0xcf0] sm:$0xff] %v4626
          %5121 = vst [vmem:[#allocation2 + $0xcf8] sm:$0xff] %v4628
          %5122 = vst [vmem:[#allocation2 + $0xd00] sm:$0xff] %v1938
          %5123 = vst [vmem:[#allocation2 + $0xd08] sm:$0xff] %v1940
          %5124 = vst [vmem:[#allocation2 + $0xd10] sm:$0xff] %v2836
          %5125 = vst [vmem:[#allocation2 + $0xd18] sm:$0xff] %v2838
          %5126 = vst [vmem:[#allocation2 + $0xd20] sm:$0xff] %v3734
          %5127 = vst [vmem:[#allocation2 + $0xd28] sm:$0xff] %v3736
          %5128 = vst [vmem:[#allocation2 + $0xd30] sm:$0xff] %v4632
          %5129 = vst [vmem:[#allocation2 + $0xd38] sm:$0xff] %v4634
          %5130 = vst [vmem:[#allocation2 + $0xd40] sm:$0xff] %v1944
          %5131 = vst [vmem:[#allocation2 + $0xd48] sm:$0xff] %v1946
          %5132 = vst [vmem:[#allocation2 + $0xd50] sm:$0xff] %v2842
          %5133 = vst [vmem:[#allocation2 + $0xd58] sm:$0xff] %v2844
          %5134 = vst [vmem:[#allocation2 + $0xd60] sm:$0xff] %v3740
          %5135 = vst [vmem:[#allocation2 + $0xd68] sm:$0xff] %v3742
          %5136 = vst [vmem:[#allocation2 + $0xd70] sm:$0xff] %v4638
          %5137 = vst [vmem:[#allocation2 + $0xd78] sm:$0xff] %v4640
          %5138 = vst [vmem:[#allocation2 + $0xd80] sm:$0xff] %v1950
          %5139 = vst [vmem:[#allocation2 + $0xd88] sm:$0xff] %v1952
          %5140 = vst [vmem:[#allocation2 + $0xd90] sm:$0xff] %v2848
          %5141 = vst [vmem:[#allocation2 + $0xd98] sm:$0xff] %v2850
          %5142 = vst [vmem:[#allocation2 + $0xda0] sm:$0xff] %v3746
          %5143 = vst [vmem:[#allocation2 + $0xda8] sm:$0xff] %v3748
          %5144 = vst [vmem:[#allocation2 + $0xdb0] sm:$0xff] %v4644
          %5145 = vst [vmem:[#allocation2 + $0xdb8] sm:$0xff] %v4646
          %5146 = vst [vmem:[#allocation2 + $0xdc0] sm:$0xff] %v1956
          %5147 = vst [vmem:[#allocation2 + $0xdc8] sm:$0xff] %v1958
          %5148 = vst [vmem:[#allocation2 + $0xdd0] sm:$0xff] %v2854
          %5149 = vst [vmem:[#allocation2 + $0xdd8] sm:$0xff] %v2856
          %5150 = vst [vmem:[#allocation2 + $0xde0] sm:$0xff] %v3752
          %5151 = vst [vmem:[#allocation2 + $0xde8] sm:$0xff] %v3754
          %5152 = vst [vmem:[#allocation2 + $0xdf0] sm:$0xff] %v4650
          %5153 = vst [vmem:[#allocation2 + $0xdf8] sm:$0xff] %v4652
          %5154 = vst [vmem:[#allocation2 + $0xe00] sm:$0xff] %v1962
          %5155 = vst [vmem:[#allocation2 + $0xe08] sm:$0xff] %v1964
          %5156 = vst [vmem:[#allocation2 + $0xe10] sm:$0xff] %v2860
          %5157 = vst [vmem:[#allocation2 + $0xe18] sm:$0xff] %v2862
          %5158 = vst [vmem:[#allocation2 + $0xe20] sm:$0xff] %v3758
          %5159 = vst [vmem:[#allocation2 + $0xe28] sm:$0xff] %v3760
          %5160 = vst [vmem:[#allocation2 + $0xe30] sm:$0xff] %v4656
          %5161 = vst [vmem:[#allocation2 + $0xe38] sm:$0xff] %v4658
          %5162 = vst [vmem:[#allocation2 + $0xe40] sm:$0xff] %v1968
          %5163 = vst [vmem:[#allocation2 + $0xe48] sm:$0xff] %v1970
          %5164 = vst [vmem:[#allocation2 + $0xe50] sm:$0xff] %v2866
          %5165 = vst [vmem:[#allocation2 + $0xe58] sm:$0xff] %v2868
          %5166 = vst [vmem:[#allocation2 + $0xe60] sm:$0xff] %v3764
          %5167 = vst [vmem:[#allocation2 + $0xe68] sm:$0xff] %v3766
          %5168 = vst [vmem:[#allocation2 + $0xe70] sm:$0xff] %v4662
          %5169 = vst [vmem:[#allocation2 + $0xe78] sm:$0xff] %v4664
          %5170 = vst [vmem:[#allocation2 + $0xe80] sm:$0xff] %v1974
          %5171 = vst [vmem:[#allocation2 + $0xe88] sm:$0xff] %v1976
          %5172 = vst [vmem:[#allocation2 + $0xe90] sm:$0xff] %v2872
          %5173 = vst [vmem:[#allocation2 + $0xe98] sm:$0xff] %v2874
          %5174 = vst [vmem:[#allocation2 + $0xea0] sm:$0xff] %v3770
          %5175 = vst [vmem:[#allocation2 + $0xea8] sm:$0xff] %v3772
          %5176 = vst [vmem:[#allocation2 + $0xeb0] sm:$0xff] %v4668
          %5177 = vst [vmem:[#allocation2 + $0xeb8] sm:$0xff] %v4670
          %5178 = vst [vmem:[#allocation2 + $0xec0] sm:$0xff] %v1980
          %5179 = vst [vmem:[#allocation2 + $0xec8] sm:$0xff] %v1982
          %5180 = vst [vmem:[#allocation2 + $0xed0] sm:$0xff] %v2878
          %5181 = vst [vmem:[#allocation2 + $0xed8] sm:$0xff] %v2880
          %5182 = vst [vmem:[#allocation2 + $0xee0] sm:$0xff] %v3776
          %5183 = vst [vmem:[#allocation2 + $0xee8] sm:$0xff] %v3778
          %5184 = vst [vmem:[#allocation2 + $0xef0] sm:$0xff] %v4674
          %5185 = vst [vmem:[#allocation2 + $0xef8] sm:$0xff] %v4676
          %5186 = vst [vmem:[#allocation2 + $0xf00] sm:$0xff] %v1986
          %5187 = vst [vmem:[#allocation2 + $0xf08] sm:$0xff] %v1988
          %5188 = vst [vmem:[#allocation2 + $0xf10] sm:$0xff] %v2884
          %5189 = vst [vmem:[#allocation2 + $0xf18] sm:$0xff] %v2886
          %5190 = vst [vmem:[#allocation2 + $0xf20] sm:$0xff] %v3782
          %5191 = vst [vmem:[#allocation2 + $0xf28] sm:$0xff] %v3784
          %5192 = vst [vmem:[#allocation2 + $0xf30] sm:$0xff] %v4680
          %5193 = vst [vmem:[#allocation2 + $0xf38] sm:$0xff] %v4682
          %5194 = vst [vmem:[#allocation2 + $0xf40] sm:$0xff] %v1992
          %5195 = vst [vmem:[#allocation2 + $0xf48] sm:$0xff] %v1994
          %5196 = vst [vmem:[#allocation2 + $0xf50] sm:$0xff] %v2890
          %5197 = vst [vmem:[#allocation2 + $0xf58] sm:$0xff] %v2892
          %5198 = vst [vmem:[#allocation2 + $0xf60] sm:$0xff] %v3788
          %5199 = vst [vmem:[#allocation2 + $0xf68] sm:$0xff] %v3790
          %5200 = vst [vmem:[#allocation2 + $0xf70] sm:$0xff] %v4686
          %5201 = vst [vmem:[#allocation2 + $0xf78] sm:$0xff] %v4688
          %5202 = vst [vmem:[#allocation2 + $0xf80] sm:$0xff] %v1998
          %5203 = vst [vmem:[#allocation2 + $0xf88] sm:$0xff] %v2000
          %5204 = vst [vmem:[#allocation2 + $0xf90] sm:$0xff] %v2896
          %5205 = vst [vmem:[#allocation2 + $0xf98] sm:$0xff] %v2898
          %5206 = vst [vmem:[#allocation2 + $0xfa0] sm:$0xff] %v3794
          %5207 = vst [vmem:[#allocation2 + $0xfa8] sm:$0xff] %v3796
          %5208 = vst [vmem:[#allocation2 + $0xfb0] sm:$0xff] %v4692
          %5209 = vst [vmem:[#allocation2 + $0xfb8] sm:$0xff] %v4694
          %5210 = vst [vmem:[#allocation2 + $0xfc0] sm:$0xff] %v2004
          %5211 = vst [vmem:[#allocation2 + $0xfc8] sm:$0xff] %v2006
          %5212 = vst [vmem:[#allocation2 + $0xfd0] sm:$0xff] %v2902
          %5213 = vst [vmem:[#allocation2 + $0xfd8] sm:$0xff] %v2904
          %5214 = vst [vmem:[#allocation2 + $0xfe0] sm:$0xff] %v3800
          %5215 = vst [vmem:[#allocation2 + $0xfe8] sm:$0xff] %v3802
          %5216 = vst [vmem:[#allocation2 + $0xff0] sm:$0xff] %v4698
          %5217 = vst [vmem:[#allocation2 + $0xff8] sm:$0xff] %v4700
        $region48: #{tpu_custom_call.1} parent=31 // pred_fallthru
          _
        %p5218 = scmp.gt.s32.totalorder %s30, 0
        // Predicated region
        $region49: #{tpu_custom_call.1} parent=31 // pred_check
          %p5219 = pneg %p5218
        $region50: #{tpu_custom_call.1} parent=31 // pred_check_branch
          %5221 = sbr.rel (%p5219) target = $region52
        $region51: #{tpu_custom_call.1} parent=31 // pred_region
          %v5222 = vld [vmem:[#allocation2] sm:$0xff]
          %v5223 = vld [vmem:[#allocation2 + $0x8] sm:$0xff]
          %v5224 = vld [vmem:[#allocation2 + $0x10] sm:$0xff]
          %v5225 = vld [vmem:[#allocation2 + $0x18] sm:$0xff]
          %v5226 = vld [vmem:[#allocation2 + $0x20] sm:$0xff]
          %v5227 = vld [vmem:[#allocation2 + $0x28] sm:$0xff]
          %v5228 = vld [vmem:[#allocation2 + $0x30] sm:$0xff]
          %v5229 = vld [vmem:[#allocation2 + $0x38] sm:$0xff]
          %v5230 = vld [vmem:[#allocation2 + $0x40] sm:$0xff]
          %v5231 = vld [vmem:[#allocation2 + $0x48] sm:$0xff]
          %v5232 = vld [vmem:[#allocation2 + $0x50] sm:$0xff]
          %v5233 = vld [vmem:[#allocation2 + $0x58] sm:$0xff]
          %v5234 = vld [vmem:[#allocation2 + $0x60] sm:$0xff]
          %v5235 = vld [vmem:[#allocation2 + $0x68] sm:$0xff]
          %v5236 = vld [vmem:[#allocation2 + $0x70] sm:$0xff]
          %v5237 = vld [vmem:[#allocation2 + $0x78] sm:$0xff]
          %v5238 = vld [vmem:[#allocation2 + $0x80] sm:$0xff]
          %v5239 = vld [vmem:[#allocation2 + $0x88] sm:$0xff]
          %v5240 = vld [vmem:[#allocation2 + $0x90] sm:$0xff]
          %v5241 = vld [vmem:[#allocation2 + $0x98] sm:$0xff]
          %v5242 = vld [vmem:[#allocation2 + $0xa0] sm:$0xff]
          %v5243 = vld [vmem:[#allocation2 + $0xa8] sm:$0xff]
          %v5244 = vld [vmem:[#allocation2 + $0xb0] sm:$0xff]
          %v5245 = vld [vmem:[#allocation2 + $0xb8] sm:$0xff]
          %v5246 = vld [vmem:[#allocation2 + $0xc0] sm:$0xff]
          %v5247 = vld [vmem:[#allocation2 + $0xc8] sm:$0xff]
          %v5248 = vld [vmem:[#allocation2 + $0xd0] sm:$0xff]
          %v5249 = vld [vmem:[#allocation2 + $0xd8] sm:$0xff]
          %v5250 = vld [vmem:[#allocation2 + $0xe0] sm:$0xff]
          %v5251 = vld [vmem:[#allocation2 + $0xe8] sm:$0xff]
          %v5252 = vld [vmem:[#allocation2 + $0xf0] sm:$0xff]
          %v5253 = vld [vmem:[#allocation2 + $0xf8] sm:$0xff]
          %v5254 = vld [vmem:[#allocation2 + $0x100] sm:$0xff]
          %v5255 = vld [vmem:[#allocation2 + $0x108] sm:$0xff]
          %v5256 = vld [vmem:[#allocation2 + $0x110] sm:$0xff]
          %v5257 = vld [vmem:[#allocation2 + $0x118] sm:$0xff]
          %v5258 = vld [vmem:[#allocation2 + $0x120] sm:$0xff]
          %v5259 = vld [vmem:[#allocation2 + $0x128] sm:$0xff]
          %v5260 = vld [vmem:[#allocation2 + $0x130] sm:$0xff]
          %v5261 = vld [vmem:[#allocation2 + $0x138] sm:$0xff]
          %v5262 = vld [vmem:[#allocation2 + $0x140] sm:$0xff]
          %v5263 = vld [vmem:[#allocation2 + $0x148] sm:$0xff]
          %v5264 = vld [vmem:[#allocation2 + $0x150] sm:$0xff]
          %v5265 = vld [vmem:[#allocation2 + $0x158] sm:$0xff]
          %v5266 = vld [vmem:[#allocation2 + $0x160] sm:$0xff]
          %v5267 = vld [vmem:[#allocation2 + $0x168] sm:$0xff]
          %v5268 = vld [vmem:[#allocation2 + $0x170] sm:$0xff]
          %v5269 = vld [vmem:[#allocation2 + $0x178] sm:$0xff]
          %v5270 = vld [vmem:[#allocation2 + $0x180] sm:$0xff]
          %v5271 = vld [vmem:[#allocation2 + $0x188] sm:$0xff]
          %v5272 = vld [vmem:[#allocation2 + $0x190] sm:$0xff]
          %v5273 = vld [vmem:[#allocation2 + $0x198] sm:$0xff]
          %v5274 = vld [vmem:[#allocation2 + $0x1a0] sm:$0xff]
          %v5275 = vld [vmem:[#allocation2 + $0x1a8] sm:$0xff]
          %v5276 = vld [vmem:[#allocation2 + $0x1b0] sm:$0xff]
          %v5277 = vld [vmem:[#allocation2 + $0x1b8] sm:$0xff]
          %v5278 = vld [vmem:[#allocation2 + $0x1c0] sm:$0xff]
          %v5279 = vld [vmem:[#allocation2 + $0x1c8] sm:$0xff]
          %v5280 = vld [vmem:[#allocation2 + $0x1d0] sm:$0xff]
          %v5281 = vld [vmem:[#allocation2 + $0x1d8] sm:$0xff]
          %v5282 = vld [vmem:[#allocation2 + $0x1e0] sm:$0xff]
          %v5283 = vld [vmem:[#allocation2 + $0x1e8] sm:$0xff]
          %v5284 = vld [vmem:[#allocation2 + $0x1f0] sm:$0xff]
          %v5285 = vld [vmem:[#allocation2 + $0x1f8] sm:$0xff]
          %v5286 = vld [vmem:[#allocation2 + $0x200] sm:$0xff]
          %v5287 = vld [vmem:[#allocation2 + $0x208] sm:$0xff]
          %v5288 = vld [vmem:[#allocation2 + $0x210] sm:$0xff]
          %v5289 = vld [vmem:[#allocation2 + $0x218] sm:$0xff]
          %v5290 = vld [vmem:[#allocation2 + $0x220] sm:$0xff]
          %v5291 = vld [vmem:[#allocation2 + $0x228] sm:$0xff]
          %v5292 = vld [vmem:[#allocation2 + $0x230] sm:$0xff]
          %v5293 = vld [vmem:[#allocation2 + $0x238] sm:$0xff]
          %v5294 = vld [vmem:[#allocation2 + $0x240] sm:$0xff]
          %v5295 = vld [vmem:[#allocation2 + $0x248] sm:$0xff]
          %v5296 = vld [vmem:[#allocation2 + $0x250] sm:$0xff]
          %v5297 = vld [vmem:[#allocation2 + $0x258] sm:$0xff]
          %v5298 = vld [vmem:[#allocation2 + $0x260] sm:$0xff]
          %v5299 = vld [vmem:[#allocation2 + $0x268] sm:$0xff]
          %v5300 = vld [vmem:[#allocation2 + $0x270] sm:$0xff]
          %v5301 = vld [vmem:[#allocation2 + $0x278] sm:$0xff]
          %v5302 = vld [vmem:[#allocation2 + $0x280] sm:$0xff]
          %v5303 = vld [vmem:[#allocation2 + $0x288] sm:$0xff]
          %v5304 = vld [vmem:[#allocation2 + $0x290] sm:$0xff]
          %v5305 = vld [vmem:[#allocation2 + $0x298] sm:$0xff]
          %v5306 = vld [vmem:[#allocation2 + $0x2a0] sm:$0xff]
          %v5307 = vld [vmem:[#allocation2 + $0x2a8] sm:$0xff]
          %v5308 = vld [vmem:[#allocation2 + $0x2b0] sm:$0xff]
          %v5309 = vld [vmem:[#allocation2 + $0x2b8] sm:$0xff]
          %v5310 = vld [vmem:[#allocation2 + $0x2c0] sm:$0xff]
          %v5311 = vld [vmem:[#allocation2 + $0x2c8] sm:$0xff]
          %v5312 = vld [vmem:[#allocation2 + $0x2d0] sm:$0xff]
          %v5313 = vld [vmem:[#allocation2 + $0x2d8] sm:$0xff]
          %v5314 = vld [vmem:[#allocation2 + $0x2e0] sm:$0xff]
          %v5315 = vld [vmem:[#allocation2 + $0x2e8] sm:$0xff]
          %v5316 = vld [vmem:[#allocation2 + $0x2f0] sm:$0xff]
          %v5317 = vld [vmem:[#allocation2 + $0x2f8] sm:$0xff]
          %v5318 = vld [vmem:[#allocation2 + $0x300] sm:$0xff]
          %v5319 = vld [vmem:[#allocation2 + $0x308] sm:$0xff]
          %v5320 = vld [vmem:[#allocation2 + $0x310] sm:$0xff]
          %v5321 = vld [vmem:[#allocation2 + $0x318] sm:$0xff]
          %v5322 = vld [vmem:[#allocation2 + $0x320] sm:$0xff]
          %v5323 = vld [vmem:[#allocation2 + $0x328] sm:$0xff]
          %v5324 = vld [vmem:[#allocation2 + $0x330] sm:$0xff]
          %v5325 = vld [vmem:[#allocation2 + $0x338] sm:$0xff]
          %v5326 = vld [vmem:[#allocation2 + $0x340] sm:$0xff]
          %v5327 = vld [vmem:[#allocation2 + $0x348] sm:$0xff]
          %v5328 = vld [vmem:[#allocation2 + $0x350] sm:$0xff]
          %v5329 = vld [vmem:[#allocation2 + $0x358] sm:$0xff]
          %v5330 = vld [vmem:[#allocation2 + $0x360] sm:$0xff]
          %v5331 = vld [vmem:[#allocation2 + $0x368] sm:$0xff]
          %v5332 = vld [vmem:[#allocation2 + $0x370] sm:$0xff]
          %v5333 = vld [vmem:[#allocation2 + $0x378] sm:$0xff]
          %v5334 = vld [vmem:[#allocation2 + $0x380] sm:$0xff]
          %v5335 = vld [vmem:[#allocation2 + $0x388] sm:$0xff]
          %v5336 = vld [vmem:[#allocation2 + $0x390] sm:$0xff]
          %v5337 = vld [vmem:[#allocation2 + $0x398] sm:$0xff]
          %v5338 = vld [vmem:[#allocation2 + $0x3a0] sm:$0xff]
          %v5339 = vld [vmem:[#allocation2 + $0x3a8] sm:$0xff]
          %v5340 = vld [vmem:[#allocation2 + $0x3b0] sm:$0xff]
          %v5341 = vld [vmem:[#allocation2 + $0x3b8] sm:$0xff]
          %v5342 = vld [vmem:[#allocation2 + $0x3c0] sm:$0xff]
          %v5343 = vld [vmem:[#allocation2 + $0x3c8] sm:$0xff]
          %v5344 = vld [vmem:[#allocation2 + $0x3d0] sm:$0xff]
          %v5345 = vld [vmem:[#allocation2 + $0x3d8] sm:$0xff]
          %v5346 = vld [vmem:[#allocation2 + $0x3e0] sm:$0xff]
          %v5347 = vld [vmem:[#allocation2 + $0x3e8] sm:$0xff]
          %v5348 = vld [vmem:[#allocation2 + $0x3f0] sm:$0xff]
          %v5349 = vld [vmem:[#allocation2 + $0x3f8] sm:$0xff]
          %v5350 = vld [vmem:[#allocation2 + $0x400] sm:$0xff]
          %v5351 = vld [vmem:[#allocation2 + $0x408] sm:$0xff]
          %v5352 = vld [vmem:[#allocation2 + $0x410] sm:$0xff]
          %v5353 = vld [vmem:[#allocation2 + $0x418] sm:$0xff]
          %v5354 = vld [vmem:[#allocation2 + $0x420] sm:$0xff]
          %v5355 = vld [vmem:[#allocation2 + $0x428] sm:$0xff]
          %v5356 = vld [vmem:[#allocation2 + $0x430] sm:$0xff]
          %v5357 = vld [vmem:[#allocation2 + $0x438] sm:$0xff]
          %v5358 = vld [vmem:[#allocation2 + $0x440] sm:$0xff]
          %v5359 = vld [vmem:[#allocation2 + $0x448] sm:$0xff]
          %v5360 = vld [vmem:[#allocation2 + $0x450] sm:$0xff]
          %v5361 = vld [vmem:[#allocation2 + $0x458] sm:$0xff]
          %v5362 = vld [vmem:[#allocation2 + $0x460] sm:$0xff]
          %v5363 = vld [vmem:[#allocation2 + $0x468] sm:$0xff]
          %v5364 = vld [vmem:[#allocation2 + $0x470] sm:$0xff]
          %v5365 = vld [vmem:[#allocation2 + $0x478] sm:$0xff]
          %v5366 = vld [vmem:[#allocation2 + $0x480] sm:$0xff]
          %v5367 = vld [vmem:[#allocation2 + $0x488] sm:$0xff]
          %v5368 = vld [vmem:[#allocation2 + $0x490] sm:$0xff]
          %v5369 = vld [vmem:[#allocation2 + $0x498] sm:$0xff]
          %v5370 = vld [vmem:[#allocation2 + $0x4a0] sm:$0xff]
          %v5371 = vld [vmem:[#allocation2 + $0x4a8] sm:$0xff]
          %v5372 = vld [vmem:[#allocation2 + $0x4b0] sm:$0xff]
          %v5373 = vld [vmem:[#allocation2 + $0x4b8] sm:$0xff]
          %v5374 = vld [vmem:[#allocation2 + $0x4c0] sm:$0xff]
          %v5375 = vld [vmem:[#allocation2 + $0x4c8] sm:$0xff]
          %v5376 = vld [vmem:[#allocation2 + $0x4d0] sm:$0xff]
          %v5377 = vld [vmem:[#allocation2 + $0x4d8] sm:$0xff]
          %v5378 = vld [vmem:[#allocation2 + $0x4e0] sm:$0xff]
          %v5379 = vld [vmem:[#allocation2 + $0x4e8] sm:$0xff]
          %v5380 = vld [vmem:[#allocation2 + $0x4f0] sm:$0xff]
          %v5381 = vld [vmem:[#allocation2 + $0x4f8] sm:$0xff]
          %v5382 = vld [vmem:[#allocation2 + $0x500] sm:$0xff]
          %v5383 = vld [vmem:[#allocation2 + $0x508] sm:$0xff]
          %v5384 = vld [vmem:[#allocation2 + $0x510] sm:$0xff]
          %v5385 = vld [vmem:[#allocation2 + $0x518] sm:$0xff]
          %v5386 = vld [vmem:[#allocation2 + $0x520] sm:$0xff]
          %v5387 = vld [vmem:[#allocation2 + $0x528] sm:$0xff]
          %v5388 = vld [vmem:[#allocation2 + $0x530] sm:$0xff]
          %v5389 = vld [vmem:[#allocation2 + $0x538] sm:$0xff]
          %v5390 = vld [vmem:[#allocation2 + $0x540] sm:$0xff]
          %v5391 = vld [vmem:[#allocation2 + $0x548] sm:$0xff]
          %v5392 = vld [vmem:[#allocation2 + $0x550] sm:$0xff]
          %v5393 = vld [vmem:[#allocation2 + $0x558] sm:$0xff]
          %v5394 = vld [vmem:[#allocation2 + $0x560] sm:$0xff]
          %v5395 = vld [vmem:[#allocation2 + $0x568] sm:$0xff]
          %v5396 = vld [vmem:[#allocation2 + $0x570] sm:$0xff]
          %v5397 = vld [vmem:[#allocation2 + $0x578] sm:$0xff]
          %v5398 = vld [vmem:[#allocation2 + $0x580] sm:$0xff]
          %v5399 = vld [vmem:[#allocation2 + $0x588] sm:$0xff]
          %v5400 = vld [vmem:[#allocation2 + $0x590] sm:$0xff]
          %v5401 = vld [vmem:[#allocation2 + $0x598] sm:$0xff]
          %v5402 = vld [vmem:[#allocation2 + $0x5a0] sm:$0xff]
          %v5403 = vld [vmem:[#allocation2 + $0x5a8] sm:$0xff]
          %v5404 = vld [vmem:[#allocation2 + $0x5b0] sm:$0xff]
          %v5405 = vld [vmem:[#allocation2 + $0x5b8] sm:$0xff]
          %v5406 = vld [vmem:[#allocation2 + $0x5c0] sm:$0xff]
          %v5407 = vld [vmem:[#allocation2 + $0x5c8] sm:$0xff]
          %v5408 = vld [vmem:[#allocation2 + $0x5d0] sm:$0xff]
          %v5409 = vld [vmem:[#allocation2 + $0x5d8] sm:$0xff]
          %v5410 = vld [vmem:[#allocation2 + $0x5e0] sm:$0xff]
          %v5411 = vld [vmem:[#allocation2 + $0x5e8] sm:$0xff]
          %v5412 = vld [vmem:[#allocation2 + $0x5f0] sm:$0xff]
          %v5413 = vld [vmem:[#allocation2 + $0x5f8] sm:$0xff]
          %v5414 = vld [vmem:[#allocation2 + $0x600] sm:$0xff]
          %v5415 = vld [vmem:[#allocation2 + $0x608] sm:$0xff]
          %v5416 = vld [vmem:[#allocation2 + $0x610] sm:$0xff]
          %v5417 = vld [vmem:[#allocation2 + $0x618] sm:$0xff]
          %v5418 = vld [vmem:[#allocation2 + $0x620] sm:$0xff]
          %v5419 = vld [vmem:[#allocation2 + $0x628] sm:$0xff]
          %v5420 = vld [vmem:[#allocation2 + $0x630] sm:$0xff]
          %v5421 = vld [vmem:[#allocation2 + $0x638] sm:$0xff]
          %v5422 = vld [vmem:[#allocation2 + $0x640] sm:$0xff]
          %v5423 = vld [vmem:[#allocation2 + $0x648] sm:$0xff]
          %v5424 = vld [vmem:[#allocation2 + $0x650] sm:$0xff]
          %v5425 = vld [vmem:[#allocation2 + $0x658] sm:$0xff]
          %v5426 = vld [vmem:[#allocation2 + $0x660] sm:$0xff]
          %v5427 = vld [vmem:[#allocation2 + $0x668] sm:$0xff]
          %v5428 = vld [vmem:[#allocation2 + $0x670] sm:$0xff]
          %v5429 = vld [vmem:[#allocation2 + $0x678] sm:$0xff]
          %v5430 = vld [vmem:[#allocation2 + $0x680] sm:$0xff]
          %v5431 = vld [vmem:[#allocation2 + $0x688] sm:$0xff]
          %v5432 = vld [vmem:[#allocation2 + $0x690] sm:$0xff]
          %v5433 = vld [vmem:[#allocation2 + $0x698] sm:$0xff]
          %v5434 = vld [vmem:[#allocation2 + $0x6a0] sm:$0xff]
          %v5435 = vld [vmem:[#allocation2 + $0x6a8] sm:$0xff]
          %v5436 = vld [vmem:[#allocation2 + $0x6b0] sm:$0xff]
          %v5437 = vld [vmem:[#allocation2 + $0x6b8] sm:$0xff]
          %v5438 = vld [vmem:[#allocation2 + $0x6c0] sm:$0xff]
          %v5439 = vld [vmem:[#allocation2 + $0x6c8] sm:$0xff]
          %v5440 = vld [vmem:[#allocation2 + $0x6d0] sm:$0xff]
          %v5441 = vld [vmem:[#allocation2 + $0x6d8] sm:$0xff]
          %v5442 = vld [vmem:[#allocation2 + $0x6e0] sm:$0xff]
          %v5443 = vld [vmem:[#allocation2 + $0x6e8] sm:$0xff]
          %v5444 = vld [vmem:[#allocation2 + $0x6f0] sm:$0xff]
          %v5445 = vld [vmem:[#allocation2 + $0x6f8] sm:$0xff]
          %v5446 = vld [vmem:[#allocation2 + $0x700] sm:$0xff]
          %v5447 = vld [vmem:[#allocation2 + $0x708] sm:$0xff]
          %v5448 = vld [vmem:[#allocation2 + $0x710] sm:$0xff]
          %v5449 = vld [vmem:[#allocation2 + $0x718] sm:$0xff]
          %v5450 = vld [vmem:[#allocation2 + $0x720] sm:$0xff]
          %v5451 = vld [vmem:[#allocation2 + $0x728] sm:$0xff]
          %v5452 = vld [vmem:[#allocation2 + $0x730] sm:$0xff]
          %v5453 = vld [vmem:[#allocation2 + $0x738] sm:$0xff]
          %v5454 = vld [vmem:[#allocation2 + $0x740] sm:$0xff]
          %v5455 = vld [vmem:[#allocation2 + $0x748] sm:$0xff]
          %v5456 = vld [vmem:[#allocation2 + $0x750] sm:$0xff]
          %v5457 = vld [vmem:[#allocation2 + $0x758] sm:$0xff]
          %v5458 = vld [vmem:[#allocation2 + $0x760] sm:$0xff]
          %v5459 = vld [vmem:[#allocation2 + $0x768] sm:$0xff]
          %v5460 = vld [vmem:[#allocation2 + $0x770] sm:$0xff]
          %v5461 = vld [vmem:[#allocation2 + $0x778] sm:$0xff]
          %v5462 = vld [vmem:[#allocation2 + $0x780] sm:$0xff]
          %v5463 = vld [vmem:[#allocation2 + $0x788] sm:$0xff]
          %v5464 = vld [vmem:[#allocation2 + $0x790] sm:$0xff]
          %v5465 = vld [vmem:[#allocation2 + $0x798] sm:$0xff]
          %v5466 = vld [vmem:[#allocation2 + $0x7a0] sm:$0xff]
          %v5467 = vld [vmem:[#allocation2 + $0x7a8] sm:$0xff]
          %v5468 = vld [vmem:[#allocation2 + $0x7b0] sm:$0xff]
          %v5469 = vld [vmem:[#allocation2 + $0x7b8] sm:$0xff]
          %v5470 = vld [vmem:[#allocation2 + $0x7c0] sm:$0xff]
          %v5471 = vld [vmem:[#allocation2 + $0x7c8] sm:$0xff]
          %v5472 = vld [vmem:[#allocation2 + $0x7d0] sm:$0xff]
          %v5473 = vld [vmem:[#allocation2 + $0x7d8] sm:$0xff]
          %v5474 = vld [vmem:[#allocation2 + $0x7e0] sm:$0xff]
          %v5475 = vld [vmem:[#allocation2 + $0x7e8] sm:$0xff]
          %v5476 = vld [vmem:[#allocation2 + $0x7f0] sm:$0xff]
          %v5477 = vld [vmem:[#allocation2 + $0x7f8] sm:$0xff]
          %v5478 = vld [vmem:[#allocation2 + $0x800] sm:$0xff]
          %v5479 = vld [vmem:[#allocation2 + $0x808] sm:$0xff]
          %v5480 = vld [vmem:[#allocation2 + $0x810] sm:$0xff]
          %v5481 = vld [vmem:[#allocation2 + $0x818] sm:$0xff]
          %v5482 = vld [vmem:[#allocation2 + $0x820] sm:$0xff]
          %v5483 = vld [vmem:[#allocation2 + $0x828] sm:$0xff]
          %v5484 = vld [vmem:[#allocation2 + $0x830] sm:$0xff]
          %v5485 = vld [vmem:[#allocation2 + $0x838] sm:$0xff]
          %v5486 = vld [vmem:[#allocation2 + $0x840] sm:$0xff]
          %v5487 = vld [vmem:[#allocation2 + $0x848] sm:$0xff]
          %v5488 = vld [vmem:[#allocation2 + $0x850] sm:$0xff]
          %v5489 = vld [vmem:[#allocation2 + $0x858] sm:$0xff]
          %v5490 = vld [vmem:[#allocation2 + $0x860] sm:$0xff]
          %v5491 = vld [vmem:[#allocation2 + $0x868] sm:$0xff]
          %v5492 = vld [vmem:[#allocation2 + $0x870] sm:$0xff]
          %v5493 = vld [vmem:[#allocation2 + $0x878] sm:$0xff]
          %v5494 = vld [vmem:[#allocation2 + $0x880] sm:$0xff]
          %v5495 = vld [vmem:[#allocation2 + $0x888] sm:$0xff]
          %v5496 = vld [vmem:[#allocation2 + $0x890] sm:$0xff]
          %v5497 = vld [vmem:[#allocation2 + $0x898] sm:$0xff]
          %v5498 = vld [vmem:[#allocation2 + $0x8a0] sm:$0xff]
          %v5499 = vld [vmem:[#allocation2 + $0x8a8] sm:$0xff]
          %v5500 = vld [vmem:[#allocation2 + $0x8b0] sm:$0xff]
          %v5501 = vld [vmem:[#allocation2 + $0x8b8] sm:$0xff]
          %v5502 = vld [vmem:[#allocation2 + $0x8c0] sm:$0xff]
          %v5503 = vld [vmem:[#allocation2 + $0x8c8] sm:$0xff]
          %v5504 = vld [vmem:[#allocation2 + $0x8d0] sm:$0xff]
          %v5505 = vld [vmem:[#allocation2 + $0x8d8] sm:$0xff]
          %v5506 = vld [vmem:[#allocation2 + $0x8e0] sm:$0xff]
          %v5507 = vld [vmem:[#allocation2 + $0x8e8] sm:$0xff]
          %v5508 = vld [vmem:[#allocation2 + $0x8f0] sm:$0xff]
          %v5509 = vld [vmem:[#allocation2 + $0x8f8] sm:$0xff]
          %v5510 = vld [vmem:[#allocation2 + $0x900] sm:$0xff]
          %v5511 = vld [vmem:[#allocation2 + $0x908] sm:$0xff]
          %v5512 = vld [vmem:[#allocation2 + $0x910] sm:$0xff]
          %v5513 = vld [vmem:[#allocation2 + $0x918] sm:$0xff]
          %v5514 = vld [vmem:[#allocation2 + $0x920] sm:$0xff]
          %v5515 = vld [vmem:[#allocation2 + $0x928] sm:$0xff]
          %v5516 = vld [vmem:[#allocation2 + $0x930] sm:$0xff]
          %v5517 = vld [vmem:[#allocation2 + $0x938] sm:$0xff]
          %v5518 = vld [vmem:[#allocation2 + $0x940] sm:$0xff]
          %v5519 = vld [vmem:[#allocation2 + $0x948] sm:$0xff]
          %v5520 = vld [vmem:[#allocation2 + $0x950] sm:$0xff]
          %v5521 = vld [vmem:[#allocation2 + $0x958] sm:$0xff]
          %v5522 = vld [vmem:[#allocation2 + $0x960] sm:$0xff]
          %v5523 = vld [vmem:[#allocation2 + $0x968] sm:$0xff]
          %v5524 = vld [vmem:[#allocation2 + $0x970] sm:$0xff]
          %v5525 = vld [vmem:[#allocation2 + $0x978] sm:$0xff]
          %v5526 = vld [vmem:[#allocation2 + $0x980] sm:$0xff]
          %v5527 = vld [vmem:[#allocation2 + $0x988] sm:$0xff]
          %v5528 = vld [vmem:[#allocation2 + $0x990] sm:$0xff]
          %v5529 = vld [vmem:[#allocation2 + $0x998] sm:$0xff]
          %v5530 = vld [vmem:[#allocation2 + $0x9a0] sm:$0xff]
          %v5531 = vld [vmem:[#allocation2 + $0x9a8] sm:$0xff]
          %v5532 = vld [vmem:[#allocation2 + $0x9b0] sm:$0xff]
          %v5533 = vld [vmem:[#allocation2 + $0x9b8] sm:$0xff]
          %v5534 = vld [vmem:[#allocation2 + $0x9c0] sm:$0xff]
          %v5535 = vld [vmem:[#allocation2 + $0x9c8] sm:$0xff]
          %v5536 = vld [vmem:[#allocation2 + $0x9d0] sm:$0xff]
          %v5537 = vld [vmem:[#allocation2 + $0x9d8] sm:$0xff]
          %v5538 = vld [vmem:[#allocation2 + $0x9e0] sm:$0xff]
          %v5539 = vld [vmem:[#allocation2 + $0x9e8] sm:$0xff]
          %v5540 = vld [vmem:[#allocation2 + $0x9f0] sm:$0xff]
          %v5541 = vld [vmem:[#allocation2 + $0x9f8] sm:$0xff]
          %v5542 = vld [vmem:[#allocation2 + $0xa00] sm:$0xff]
          %v5543 = vld [vmem:[#allocation2 + $0xa08] sm:$0xff]
          %v5544 = vld [vmem:[#allocation2 + $0xa10] sm:$0xff]
          %v5545 = vld [vmem:[#allocation2 + $0xa18] sm:$0xff]
          %v5546 = vld [vmem:[#allocation2 + $0xa20] sm:$0xff]
          %v5547 = vld [vmem:[#allocation2 + $0xa28] sm:$0xff]
          %v5548 = vld [vmem:[#allocation2 + $0xa30] sm:$0xff]
          %v5549 = vld [vmem:[#allocation2 + $0xa38] sm:$0xff]
          %v5550 = vld [vmem:[#allocation2 + $0xa40] sm:$0xff]
          %v5551 = vld [vmem:[#allocation2 + $0xa48] sm:$0xff]
          %v5552 = vld [vmem:[#allocation2 + $0xa50] sm:$0xff]
          %v5553 = vld [vmem:[#allocation2 + $0xa58] sm:$0xff]
          %v5554 = vld [vmem:[#allocation2 + $0xa60] sm:$0xff]
          %v5555 = vld [vmem:[#allocation2 + $0xa68] sm:$0xff]
          %v5556 = vld [vmem:[#allocation2 + $0xa70] sm:$0xff]
          %v5557 = vld [vmem:[#allocation2 + $0xa78] sm:$0xff]
          %v5558 = vld [vmem:[#allocation2 + $0xa80] sm:$0xff]
          %v5559 = vld [vmem:[#allocation2 + $0xa88] sm:$0xff]
          %v5560 = vld [vmem:[#allocation2 + $0xa90] sm:$0xff]
          %v5561 = vld [vmem:[#allocation2 + $0xa98] sm:$0xff]
          %v5562 = vld [vmem:[#allocation2 + $0xaa0] sm:$0xff]
          %v5563 = vld [vmem:[#allocation2 + $0xaa8] sm:$0xff]
          %v5564 = vld [vmem:[#allocation2 + $0xab0] sm:$0xff]
          %v5565 = vld [vmem:[#allocation2 + $0xab8] sm:$0xff]
          %v5566 = vld [vmem:[#allocation2 + $0xac0] sm:$0xff]
          %v5567 = vld [vmem:[#allocation2 + $0xac8] sm:$0xff]
          %v5568 = vld [vmem:[#allocation2 + $0xad0] sm:$0xff]
          %v5569 = vld [vmem:[#allocation2 + $0xad8] sm:$0xff]
          %v5570 = vld [vmem:[#allocation2 + $0xae0] sm:$0xff]
          %v5571 = vld [vmem:[#allocation2 + $0xae8] sm:$0xff]
          %v5572 = vld [vmem:[#allocation2 + $0xaf0] sm:$0xff]
          %v5573 = vld [vmem:[#allocation2 + $0xaf8] sm:$0xff]
          %v5574 = vld [vmem:[#allocation2 + $0xb00] sm:$0xff]
          %v5575 = vld [vmem:[#allocation2 + $0xb08] sm:$0xff]
          %v5576 = vld [vmem:[#allocation2 + $0xb10] sm:$0xff]
          %v5577 = vld [vmem:[#allocation2 + $0xb18] sm:$0xff]
          %v5578 = vld [vmem:[#allocation2 + $0xb20] sm:$0xff]
          %v5579 = vld [vmem:[#allocation2 + $0xb28] sm:$0xff]
          %v5580 = vld [vmem:[#allocation2 + $0xb30] sm:$0xff]
          %v5581 = vld [vmem:[#allocation2 + $0xb38] sm:$0xff]
          %v5582 = vld [vmem:[#allocation2 + $0xb40] sm:$0xff]
          %v5583 = vld [vmem:[#allocation2 + $0xb48] sm:$0xff]
          %v5584 = vld [vmem:[#allocation2 + $0xb50] sm:$0xff]
          %v5585 = vld [vmem:[#allocation2 + $0xb58] sm:$0xff]
          %v5586 = vld [vmem:[#allocation2 + $0xb60] sm:$0xff]
          %v5587 = vld [vmem:[#allocation2 + $0xb68] sm:$0xff]
          %v5588 = vld [vmem:[#allocation2 + $0xb70] sm:$0xff]
          %v5589 = vld [vmem:[#allocation2 + $0xb78] sm:$0xff]
          %v5590 = vld [vmem:[#allocation2 + $0xb80] sm:$0xff]
          %v5591 = vld [vmem:[#allocation2 + $0xb88] sm:$0xff]
          %v5592 = vld [vmem:[#allocation2 + $0xb90] sm:$0xff]
          %v5593 = vld [vmem:[#allocation2 + $0xb98] sm:$0xff]
          %v5594 = vld [vmem:[#allocation2 + $0xba0] sm:$0xff]
          %v5595 = vld [vmem:[#allocation2 + $0xba8] sm:$0xff]
          %v5596 = vld [vmem:[#allocation2 + $0xbb0] sm:$0xff]
          %v5597 = vld [vmem:[#allocation2 + $0xbb8] sm:$0xff]
          %v5598 = vld [vmem:[#allocation2 + $0xbc0] sm:$0xff]
          %v5599 = vld [vmem:[#allocation2 + $0xbc8] sm:$0xff]
          %v5600 = vld [vmem:[#allocation2 + $0xbd0] sm:$0xff]
          %v5601 = vld [vmem:[#allocation2 + $0xbd8] sm:$0xff]
          %v5602 = vld [vmem:[#allocation2 + $0xbe0] sm:$0xff]
          %v5603 = vld [vmem:[#allocation2 + $0xbe8] sm:$0xff]
          %v5604 = vld [vmem:[#allocation2 + $0xbf0] sm:$0xff]
          %v5605 = vld [vmem:[#allocation2 + $0xbf8] sm:$0xff]
          %v5606 = vld [vmem:[#allocation2 + $0xc00] sm:$0xff]
          %v5607 = vld [vmem:[#allocation2 + $0xc08] sm:$0xff]
          %v5608 = vld [vmem:[#allocation2 + $0xc10] sm:$0xff]
          %v5609 = vld [vmem:[#allocation2 + $0xc18] sm:$0xff]
          %v5610 = vld [vmem:[#allocation2 + $0xc20] sm:$0xff]
          %v5611 = vld [vmem:[#allocation2 + $0xc28] sm:$0xff]
          %v5612 = vld [vmem:[#allocation2 + $0xc30] sm:$0xff]
          %v5613 = vld [vmem:[#allocation2 + $0xc38] sm:$0xff]
          %v5614 = vld [vmem:[#allocation2 + $0xc40] sm:$0xff]
          %v5615 = vld [vmem:[#allocation2 + $0xc48] sm:$0xff]
          %v5616 = vld [vmem:[#allocation2 + $0xc50] sm:$0xff]
          %v5617 = vld [vmem:[#allocation2 + $0xc58] sm:$0xff]
          %v5618 = vld [vmem:[#allocation2 + $0xc60] sm:$0xff]
          %v5619 = vld [vmem:[#allocation2 + $0xc68] sm:$0xff]
          %v5620 = vld [vmem:[#allocation2 + $0xc70] sm:$0xff]
          %v5621 = vld [vmem:[#allocation2 + $0xc78] sm:$0xff]
          %v5622 = vld [vmem:[#allocation2 + $0xc80] sm:$0xff]
          %v5623 = vld [vmem:[#allocation2 + $0xc88] sm:$0xff]
          %v5624 = vld [vmem:[#allocation2 + $0xc90] sm:$0xff]
          %v5625 = vld [vmem:[#allocation2 + $0xc98] sm:$0xff]
          %v5626 = vld [vmem:[#allocation2 + $0xca0] sm:$0xff]
          %v5627 = vld [vmem:[#allocation2 + $0xca8] sm:$0xff]
          %v5628 = vld [vmem:[#allocation2 + $0xcb0] sm:$0xff]
          %v5629 = vld [vmem:[#allocation2 + $0xcb8] sm:$0xff]
          %v5630 = vld [vmem:[#allocation2 + $0xcc0] sm:$0xff]
          %v5631 = vld [vmem:[#allocation2 + $0xcc8] sm:$0xff]
          %v5632 = vld [vmem:[#allocation2 + $0xcd0] sm:$0xff]
          %v5633 = vld [vmem:[#allocation2 + $0xcd8] sm:$0xff]
          %v5634 = vld [vmem:[#allocation2 + $0xce0] sm:$0xff]
          %v5635 = vld [vmem:[#allocation2 + $0xce8] sm:$0xff]
          %v5636 = vld [vmem:[#allocation2 + $0xcf0] sm:$0xff]
          %v5637 = vld [vmem:[#allocation2 + $0xcf8] sm:$0xff]
          %v5638 = vld [vmem:[#allocation2 + $0xd00] sm:$0xff]
          %v5639 = vld [vmem:[#allocation2 + $0xd08] sm:$0xff]
          %v5640 = vld [vmem:[#allocation2 + $0xd10] sm:$0xff]
          %v5641 = vld [vmem:[#allocation2 + $0xd18] sm:$0xff]
          %v5642 = vld [vmem:[#allocation2 + $0xd20] sm:$0xff]
          %v5643 = vld [vmem:[#allocation2 + $0xd28] sm:$0xff]
          %v5644 = vld [vmem:[#allocation2 + $0xd30] sm:$0xff]
          %v5645 = vld [vmem:[#allocation2 + $0xd38] sm:$0xff]
          %v5646 = vld [vmem:[#allocation2 + $0xd40] sm:$0xff]
          %v5647 = vld [vmem:[#allocation2 + $0xd48] sm:$0xff]
          %v5648 = vld [vmem:[#allocation2 + $0xd50] sm:$0xff]
          %v5649 = vld [vmem:[#allocation2 + $0xd58] sm:$0xff]
          %v5650 = vld [vmem:[#allocation2 + $0xd60] sm:$0xff]
          %v5651 = vld [vmem:[#allocation2 + $0xd68] sm:$0xff]
          %v5652 = vld [vmem:[#allocation2 + $0xd70] sm:$0xff]
          %v5653 = vld [vmem:[#allocation2 + $0xd78] sm:$0xff]
          %v5654 = vld [vmem:[#allocation2 + $0xd80] sm:$0xff]
          %v5655 = vld [vmem:[#allocation2 + $0xd88] sm:$0xff]
          %v5656 = vld [vmem:[#allocation2 + $0xd90] sm:$0xff]
          %v5657 = vld [vmem:[#allocation2 + $0xd98] sm:$0xff]
          %v5658 = vld [vmem:[#allocation2 + $0xda0] sm:$0xff]
          %v5659 = vld [vmem:[#allocation2 + $0xda8] sm:$0xff]
          %v5660 = vld [vmem:[#allocation2 + $0xdb0] sm:$0xff]
          %v5661 = vld [vmem:[#allocation2 + $0xdb8] sm:$0xff]
          %v5662 = vld [vmem:[#allocation2 + $0xdc0] sm:$0xff]
          %v5663 = vld [vmem:[#allocation2 + $0xdc8] sm:$0xff]
          %v5664 = vld [vmem:[#allocation2 + $0xdd0] sm:$0xff]
          %v5665 = vld [vmem:[#allocation2 + $0xdd8] sm:$0xff]
          %v5666 = vld [vmem:[#allocation2 + $0xde0] sm:$0xff]
          %v5667 = vld [vmem:[#allocation2 + $0xde8] sm:$0xff]
          %v5668 = vld [vmem:[#allocation2 + $0xdf0] sm:$0xff]
          %v5669 = vld [vmem:[#allocation2 + $0xdf8] sm:$0xff]
          %v5670 = vld [vmem:[#allocation2 + $0xe00] sm:$0xff]
          %v5671 = vld [vmem:[#allocation2 + $0xe08] sm:$0xff]
          %v5672 = vld [vmem:[#allocation2 + $0xe10] sm:$0xff]
          %v5673 = vld [vmem:[#allocation2 + $0xe18] sm:$0xff]
          %v5674 = vld [vmem:[#allocation2 + $0xe20] sm:$0xff]
          %v5675 = vld [vmem:[#allocation2 + $0xe28] sm:$0xff]
          %v5676 = vld [vmem:[#allocation2 + $0xe30] sm:$0xff]
          %v5677 = vld [vmem:[#allocation2 + $0xe38] sm:$0xff]
          %v5678 = vld [vmem:[#allocation2 + $0xe40] sm:$0xff]
          %v5679 = vld [vmem:[#allocation2 + $0xe48] sm:$0xff]
          %v5680 = vld [vmem:[#allocation2 + $0xe50] sm:$0xff]
          %v5681 = vld [vmem:[#allocation2 + $0xe58] sm:$0xff]
          %v5682 = vld [vmem:[#allocation2 + $0xe60] sm:$0xff]
          %v5683 = vld [vmem:[#allocation2 + $0xe68] sm:$0xff]
          %v5684 = vld [vmem:[#allocation2 + $0xe70] sm:$0xff]
          %v5685 = vld [vmem:[#allocation2 + $0xe78] sm:$0xff]
          %v5686 = vld [vmem:[#allocation2 + $0xe80] sm:$0xff]
          %v5687 = vld [vmem:[#allocation2 + $0xe88] sm:$0xff]
          %v5688 = vld [vmem:[#allocation2 + $0xe90] sm:$0xff]
          %v5689 = vld [vmem:[#allocation2 + $0xe98] sm:$0xff]
          %v5690 = vld [vmem:[#allocation2 + $0xea0] sm:$0xff]
          %v5691 = vld [vmem:[#allocation2 + $0xea8] sm:$0xff]
          %v5692 = vld [vmem:[#allocation2 + $0xeb0] sm:$0xff]
          %v5693 = vld [vmem:[#allocation2 + $0xeb8] sm:$0xff]
          %v5694 = vld [vmem:[#allocation2 + $0xec0] sm:$0xff]
          %v5695 = vld [vmem:[#allocation2 + $0xec8] sm:$0xff]
          %v5696 = vld [vmem:[#allocation2 + $0xed0] sm:$0xff]
          %v5697 = vld [vmem:[#allocation2 + $0xed8] sm:$0xff]
          %v5698 = vld [vmem:[#allocation2 + $0xee0] sm:$0xff]
          %v5699 = vld [vmem:[#allocation2 + $0xee8] sm:$0xff]
          %v5700 = vld [vmem:[#allocation2 + $0xef0] sm:$0xff]
          %v5701 = vld [vmem:[#allocation2 + $0xef8] sm:$0xff]
          %v5702 = vld [vmem:[#allocation2 + $0xf00] sm:$0xff]
          %v5703 = vld [vmem:[#allocation2 + $0xf08] sm:$0xff]
          %v5704 = vld [vmem:[#allocation2 + $0xf10] sm:$0xff]
          %v5705 = vld [vmem:[#allocation2 + $0xf18] sm:$0xff]
          %v5706 = vld [vmem:[#allocation2 + $0xf20] sm:$0xff]
          %v5707 = vld [vmem:[#allocation2 + $0xf28] sm:$0xff]
          %v5708 = vld [vmem:[#allocation2 + $0xf30] sm:$0xff]
          %v5709 = vld [vmem:[#allocation2 + $0xf38] sm:$0xff]
          %v5710 = vld [vmem:[#allocation2 + $0xf40] sm:$0xff]
          %v5711 = vld [vmem:[#allocation2 + $0xf48] sm:$0xff]
          %v5712 = vld [vmem:[#allocation2 + $0xf50] sm:$0xff]
          %v5713 = vld [vmem:[#allocation2 + $0xf58] sm:$0xff]
          %v5714 = vld [vmem:[#allocation2 + $0xf60] sm:$0xff]
          %v5715 = vld [vmem:[#allocation2 + $0xf68] sm:$0xff]
          %v5716 = vld [vmem:[#allocation2 + $0xf70] sm:$0xff]
          %v5717 = vld [vmem:[#allocation2 + $0xf78] sm:$0xff]
          %v5718 = vld [vmem:[#allocation2 + $0xf80] sm:$0xff]
          %v5719 = vld [vmem:[#allocation2 + $0xf88] sm:$0xff]
          %v5720 = vld [vmem:[#allocation2 + $0xf90] sm:$0xff]
          %v5721 = vld [vmem:[#allocation2 + $0xf98] sm:$0xff]
          %v5722 = vld [vmem:[#allocation2 + $0xfa0] sm:$0xff]
          %v5723 = vld [vmem:[#allocation2 + $0xfa8] sm:$0xff]
          %v5724 = vld [vmem:[#allocation2 + $0xfb0] sm:$0xff]
          %v5725 = vld [vmem:[#allocation2 + $0xfb8] sm:$0xff]
          %v5726 = vld [vmem:[#allocation2 + $0xfc0] sm:$0xff]
          %v5727 = vld [vmem:[#allocation2 + $0xfc8] sm:$0xff]
          %v5728 = vld [vmem:[#allocation2 + $0xfd0] sm:$0xff]
          %v5729 = vld [vmem:[#allocation2 + $0xfd8] sm:$0xff]
          %v5730 = vld [vmem:[#allocation2 + $0xfe0] sm:$0xff]
          %v5731 = vld [vmem:[#allocation2 + $0xfe8] sm:$0xff]
          %v5732 = vld [vmem:[#allocation2 + $0xff0] sm:$0xff]
          %v5733 = vld [vmem:[#allocation2 + $0xff8] sm:$0xff]
          %v5734 = vadd.f32 %v5222, %v1626
          %v5735 = vadd.f32 %v5223, %v1628
          %v5736 = vadd.f32 %v5224, %v2524
          %v5737 = vadd.f32 %v5225, %v2526
          %v5738 = vadd.f32 %v5226, %v3422
          %v5739 = vadd.f32 %v5227, %v3424
          %v5740 = vadd.f32 %v5228, %v4320
          %v5741 = vadd.f32 %v5229, %v4322
          %v5742 = vadd.f32 %v5230, %v1632
          %v5743 = vadd.f32 %v5231, %v1634
          %v5744 = vadd.f32 %v5232, %v2530
          %v5745 = vadd.f32 %v5233, %v2532
          %v5746 = vadd.f32 %v5234, %v3428
          %v5747 = vadd.f32 %v5235, %v3430
          %v5748 = vadd.f32 %v5236, %v4326
          %v5749 = vadd.f32 %v5237, %v4328
          %v5750 = vadd.f32 %v5238, %v1638
          %v5751 = vadd.f32 %v5239, %v1640
          %v5752 = vadd.f32 %v5240, %v2536
          %v5753 = vadd.f32 %v5241, %v2538
          %v5754 = vadd.f32 %v5242, %v3434
          %v5755 = vadd.f32 %v5243, %v3436
          %v5756 = vadd.f32 %v5244, %v4332
          %v5757 = vadd.f32 %v5245, %v4334
          %v5758 = vadd.f32 %v5246, %v1644
          %v5759 = vadd.f32 %v5247, %v1646
          %v5760 = vadd.f32 %v5248, %v2542
          %v5761 = vadd.f32 %v5249, %v2544
          %v5762 = vadd.f32 %v5250, %v3440
          %v5763 = vadd.f32 %v5251, %v3442
          %v5764 = vadd.f32 %v5252, %v4338
          %v5765 = vadd.f32 %v5253, %v4340
          %v5766 = vadd.f32 %v5254, %v1650
          %v5767 = vadd.f32 %v5255, %v1652
          %v5768 = vadd.f32 %v5256, %v2548
          %v5769 = vadd.f32 %v5257, %v2550
          %v5770 = vadd.f32 %v5258, %v3446
          %v5771 = vadd.f32 %v5259, %v3448
          %v5772 = vadd.f32 %v5260, %v4344
          %v5773 = vadd.f32 %v5261, %v4346
          %v5774 = vadd.f32 %v5262, %v1656
          %v5775 = vadd.f32 %v5263, %v1658
          %v5776 = vadd.f32 %v5264, %v2554
          %v5777 = vadd.f32 %v5265, %v2556
          %v5778 = vadd.f32 %v5266, %v3452
          %v5779 = vadd.f32 %v5267, %v3454
          %v5780 = vadd.f32 %v5268, %v4350
          %v5781 = vadd.f32 %v5269, %v4352
          %v5782 = vadd.f32 %v5270, %v1662
          %v5783 = vadd.f32 %v5271, %v1664
          %v5784 = vadd.f32 %v5272, %v2560
          %v5785 = vadd.f32 %v5273, %v2562
          %v5786 = vadd.f32 %v5274, %v3458
          %v5787 = vadd.f32 %v5275, %v3460
          %v5788 = vadd.f32 %v5276, %v4356
          %v5789 = vadd.f32 %v5277, %v4358
          %v5790 = vadd.f32 %v5278, %v1668
          %v5791 = vadd.f32 %v5279, %v1670
          %v5792 = vadd.f32 %v5280, %v2566
          %v5793 = vadd.f32 %v5281, %v2568
          %v5794 = vadd.f32 %v5282, %v3464
          %v5795 = vadd.f32 %v5283, %v3466
          %v5796 = vadd.f32 %v5284, %v4362
          %v5797 = vadd.f32 %v5285, %v4364
          %v5798 = vadd.f32 %v5286, %v1674
          %v5799 = vadd.f32 %v5287, %v1676
          %v5800 = vadd.f32 %v5288, %v2572
          %v5801 = vadd.f32 %v5289, %v2574
          %v5802 = vadd.f32 %v5290, %v3470
          %v5803 = vadd.f32 %v5291, %v3472
          %v5804 = vadd.f32 %v5292, %v4368
          %v5805 = vadd.f32 %v5293, %v4370
          %v5806 = vadd.f32 %v5294, %v1680
          %v5807 = vadd.f32 %v5295, %v1682
          %v5808 = vadd.f32 %v5296, %v2578
          %v5809 = vadd.f32 %v5297, %v2580
          %v5810 = vadd.f32 %v5298, %v3476
          %v5811 = vadd.f32 %v5299, %v3478
          %v5812 = vadd.f32 %v5300, %v4374
          %v5813 = vadd.f32 %v5301, %v4376
          %v5814 = vadd.f32 %v5302, %v1686
          %v5815 = vadd.f32 %v5303, %v1688
          %v5816 = vadd.f32 %v5304, %v2584
          %v5817 = vadd.f32 %v5305, %v2586
          %v5818 = vadd.f32 %v5306, %v3482
          %v5819 = vadd.f32 %v5307, %v3484
          %v5820 = vadd.f32 %v5308, %v4380
          %v5821 = vadd.f32 %v5309, %v4382
          %v5822 = vadd.f32 %v5310, %v1692
          %v5823 = vadd.f32 %v5311, %v1694
          %v5824 = vadd.f32 %v5312, %v2590
          %v5825 = vadd.f32 %v5313, %v2592
          %v5826 = vadd.f32 %v5314, %v3488
          %v5827 = vadd.f32 %v5315, %v3490
          %v5828 = vadd.f32 %v5316, %v4386
          %v5829 = vadd.f32 %v5317, %v4388
          %v5830 = vadd.f32 %v5318, %v1698
          %v5831 = vadd.f32 %v5319, %v1700
          %v5832 = vadd.f32 %v5320, %v2596
          %v5833 = vadd.f32 %v5321, %v2598
          %v5834 = vadd.f32 %v5322, %v3494
          %v5835 = vadd.f32 %v5323, %v3496
          %v5836 = vadd.f32 %v5324, %v4392
          %v5837 = vadd.f32 %v5325, %v4394
          %v5838 = vadd.f32 %v5326, %v1704
          %v5839 = vadd.f32 %v5327, %v1706
          %v5840 = vadd.f32 %v5328, %v2602
          %v5841 = vadd.f32 %v5329, %v2604
          %v5842 = vadd.f32 %v5330, %v3500
          %v5843 = vadd.f32 %v5331, %v3502
          %v5844 = vadd.f32 %v5332, %v4398
          %v5845 = vadd.f32 %v5333, %v4400
          %v5846 = vadd.f32 %v5334, %v1710
          %v5847 = vadd.f32 %v5335, %v1712
          %v5848 = vadd.f32 %v5336, %v2608
          %v5849 = vadd.f32 %v5337, %v2610
          %v5850 = vadd.f32 %v5338, %v3506
          %v5851 = vadd.f32 %v5339, %v3508
          %v5852 = vadd.f32 %v5340, %v4404
          %v5853 = vadd.f32 %v5341, %v4406
          %v5854 = vadd.f32 %v5342, %v1716
          %v5855 = vadd.f32 %v5343, %v1718
          %v5856 = vadd.f32 %v5344, %v2614
          %v5857 = vadd.f32 %v5345, %v2616
          %v5858 = vadd.f32 %v5346, %v3512
          %v5859 = vadd.f32 %v5347, %v3514
          %v5860 = vadd.f32 %v5348, %v4410
          %v5861 = vadd.f32 %v5349, %v4412
          %v5862 = vadd.f32 %v5350, %v1722
          %v5863 = vadd.f32 %v5351, %v1724
          %v5864 = vadd.f32 %v5352, %v2620
          %v5865 = vadd.f32 %v5353, %v2622
          %v5866 = vadd.f32 %v5354, %v3518
          %v5867 = vadd.f32 %v5355, %v3520
          %v5868 = vadd.f32 %v5356, %v4416
          %v5869 = vadd.f32 %v5357, %v4418
          %v5870 = vadd.f32 %v5358, %v1728
          %v5871 = vadd.f32 %v5359, %v1730
          %v5872 = vadd.f32 %v5360, %v2626
          %v5873 = vadd.f32 %v5361, %v2628
          %v5874 = vadd.f32 %v5362, %v3524
          %v5875 = vadd.f32 %v5363, %v3526
          %v5876 = vadd.f32 %v5364, %v4422
          %v5877 = vadd.f32 %v5365, %v4424
          %v5878 = vadd.f32 %v5366, %v1734
          %v5879 = vadd.f32 %v5367, %v1736
          %v5880 = vadd.f32 %v5368, %v2632
          %v5881 = vadd.f32 %v5369, %v2634
          %v5882 = vadd.f32 %v5370, %v3530
          %v5883 = vadd.f32 %v5371, %v3532
          %v5884 = vadd.f32 %v5372, %v4428
          %v5885 = vadd.f32 %v5373, %v4430
          %v5886 = vadd.f32 %v5374, %v1740
          %v5887 = vadd.f32 %v5375, %v1742
          %v5888 = vadd.f32 %v5376, %v2638
          %v5889 = vadd.f32 %v5377, %v2640
          %v5890 = vadd.f32 %v5378, %v3536
          %v5891 = vadd.f32 %v5379, %v3538
          %v5892 = vadd.f32 %v5380, %v4434
          %v5893 = vadd.f32 %v5381, %v4436
          %v5894 = vadd.f32 %v5382, %v1746
          %v5895 = vadd.f32 %v5383, %v1748
          %v5896 = vadd.f32 %v5384, %v2644
          %v5897 = vadd.f32 %v5385, %v2646
          %v5898 = vadd.f32 %v5386, %v3542
          %v5899 = vadd.f32 %v5387, %v3544
          %v5900 = vadd.f32 %v5388, %v4440
          %v5901 = vadd.f32 %v5389, %v4442
          %v5902 = vadd.f32 %v5390, %v1752
          %v5903 = vadd.f32 %v5391, %v1754
          %v5904 = vadd.f32 %v5392, %v2650
          %v5905 = vadd.f32 %v5393, %v2652
          %v5906 = vadd.f32 %v5394, %v3548
          %v5907 = vadd.f32 %v5395, %v3550
          %v5908 = vadd.f32 %v5396, %v4446
          %v5909 = vadd.f32 %v5397, %v4448
          %v5910 = vadd.f32 %v5398, %v1758
          %v5911 = vadd.f32 %v5399, %v1760
          %v5912 = vadd.f32 %v5400, %v2656
          %v5913 = vadd.f32 %v5401, %v2658
          %v5914 = vadd.f32 %v5402, %v3554
          %v5915 = vadd.f32 %v5403, %v3556
          %v5916 = vadd.f32 %v5404, %v4452
          %v5917 = vadd.f32 %v5405, %v4454
          %v5918 = vadd.f32 %v5406, %v1764
          %v5919 = vadd.f32 %v5407, %v1766
          %v5920 = vadd.f32 %v5408, %v2662
          %v5921 = vadd.f32 %v5409, %v2664
          %v5922 = vadd.f32 %v5410, %v3560
          %v5923 = vadd.f32 %v5411, %v3562
          %v5924 = vadd.f32 %v5412, %v4458
          %v5925 = vadd.f32 %v5413, %v4460
          %v5926 = vadd.f32 %v5414, %v1770
          %v5927 = vadd.f32 %v5415, %v1772
          %v5928 = vadd.f32 %v5416, %v2668
          %v5929 = vadd.f32 %v5417, %v2670
          %v5930 = vadd.f32 %v5418, %v3566
          %v5931 = vadd.f32 %v5419, %v3568
          %v5932 = vadd.f32 %v5420, %v4464
          %v5933 = vadd.f32 %v5421, %v4466
          %v5934 = vadd.f32 %v5422, %v1776
          %v5935 = vadd.f32 %v5423, %v1778
          %v5936 = vadd.f32 %v5424, %v2674
          %v5937 = vadd.f32 %v5425, %v2676
          %v5938 = vadd.f32 %v5426, %v3572
          %v5939 = vadd.f32 %v5427, %v3574
          %v5940 = vadd.f32 %v5428, %v4470
          %v5941 = vadd.f32 %v5429, %v4472
          %v5942 = vadd.f32 %v5430, %v1782
          %v5943 = vadd.f32 %v5431, %v1784
          %v5944 = vadd.f32 %v5432, %v2680
          %v5945 = vadd.f32 %v5433, %v2682
          %v5946 = vadd.f32 %v5434, %v3578
          %v5947 = vadd.f32 %v5435, %v3580
          %v5948 = vadd.f32 %v5436, %v4476
          %v5949 = vadd.f32 %v5437, %v4478
          %v5950 = vadd.f32 %v5438, %v1788
          %v5951 = vadd.f32 %v5439, %v1790
          %v5952 = vadd.f32 %v5440, %v2686
          %v5953 = vadd.f32 %v5441, %v2688
          %v5954 = vadd.f32 %v5442, %v3584
          %v5955 = vadd.f32 %v5443, %v3586
          %v5956 = vadd.f32 %v5444, %v4482
          %v5957 = vadd.f32 %v5445, %v4484
          %v5958 = vadd.f32 %v5446, %v1794
          %v5959 = vadd.f32 %v5447, %v1796
          %v5960 = vadd.f32 %v5448, %v2692
          %v5961 = vadd.f32 %v5449, %v2694
          %v5962 = vadd.f32 %v5450, %v3590
          %v5963 = vadd.f32 %v5451, %v3592
          %v5964 = vadd.f32 %v5452, %v4488
          %v5965 = vadd.f32 %v5453, %v4490
          %v5966 = vadd.f32 %v5454, %v1800
          %v5967 = vadd.f32 %v5455, %v1802
          %v5968 = vadd.f32 %v5456, %v2698
          %v5969 = vadd.f32 %v5457, %v2700
          %v5970 = vadd.f32 %v5458, %v3596
          %v5971 = vadd.f32 %v5459, %v3598
          %v5972 = vadd.f32 %v5460, %v4494
          %v5973 = vadd.f32 %v5461, %v4496
          %v5974 = vadd.f32 %v5462, %v1806
          %v5975 = vadd.f32 %v5463, %v1808
          %v5976 = vadd.f32 %v5464, %v2704
          %v5977 = vadd.f32 %v5465, %v2706
          %v5978 = vadd.f32 %v5466, %v3602
          %v5979 = vadd.f32 %v5467, %v3604
          %v5980 = vadd.f32 %v5468, %v4500
          %v5981 = vadd.f32 %v5469, %v4502
          %v5982 = vadd.f32 %v5470, %v1812
          %v5983 = vadd.f32 %v5471, %v1814
          %v5984 = vadd.f32 %v5472, %v2710
          %v5985 = vadd.f32 %v5473, %v2712
          %v5986 = vadd.f32 %v5474, %v3608
          %v5987 = vadd.f32 %v5475, %v3610
          %v5988 = vadd.f32 %v5476, %v4506
          %v5989 = vadd.f32 %v5477, %v4508
          %v5990 = vadd.f32 %v5478, %v1818
          %v5991 = vadd.f32 %v5479, %v1820
          %v5992 = vadd.f32 %v5480, %v2716
          %v5993 = vadd.f32 %v5481, %v2718
          %v5994 = vadd.f32 %v5482, %v3614
          %v5995 = vadd.f32 %v5483, %v3616
          %v5996 = vadd.f32 %v5484, %v4512
          %v5997 = vadd.f32 %v5485, %v4514
          %v5998 = vadd.f32 %v5486, %v1824
          %v5999 = vadd.f32 %v5487, %v1826
          %v6000 = vadd.f32 %v5488, %v2722
          %v6001 = vadd.f32 %v5489, %v2724
          %v6002 = vadd.f32 %v5490, %v3620
          %v6003 = vadd.f32 %v5491, %v3622
          %v6004 = vadd.f32 %v5492, %v4518
          %v6005 = vadd.f32 %v5493, %v4520
          %v6006 = vadd.f32 %v5494, %v1830
          %v6007 = vadd.f32 %v5495, %v1832
          %v6008 = vadd.f32 %v5496, %v2728
          %v6009 = vadd.f32 %v5497, %v2730
          %v6010 = vadd.f32 %v5498, %v3626
          %v6011 = vadd.f32 %v5499, %v3628
          %v6012 = vadd.f32 %v5500, %v4524
          %v6013 = vadd.f32 %v5501, %v4526
          %v6014 = vadd.f32 %v5502, %v1836
          %v6015 = vadd.f32 %v5503, %v1838
          %v6016 = vadd.f32 %v5504, %v2734
          %v6017 = vadd.f32 %v5505, %v2736
          %v6018 = vadd.f32 %v5506, %v3632
          %v6019 = vadd.f32 %v5507, %v3634
          %v6020 = vadd.f32 %v5508, %v4530
          %v6021 = vadd.f32 %v5509, %v4532
          %v6022 = vadd.f32 %v5510, %v1842
          %v6023 = vadd.f32 %v5511, %v1844
          %v6024 = vadd.f32 %v5512, %v2740
          %v6025 = vadd.f32 %v5513, %v2742
          %v6026 = vadd.f32 %v5514, %v3638
          %v6027 = vadd.f32 %v5515, %v3640
          %v6028 = vadd.f32 %v5516, %v4536
          %v6029 = vadd.f32 %v5517, %v4538
          %v6030 = vadd.f32 %v5518, %v1848
          %v6031 = vadd.f32 %v5519, %v1850
          %v6032 = vadd.f32 %v5520, %v2746
          %v6033 = vadd.f32 %v5521, %v2748
          %v6034 = vadd.f32 %v5522, %v3644
          %v6035 = vadd.f32 %v5523, %v3646
          %v6036 = vadd.f32 %v5524, %v4542
          %v6037 = vadd.f32 %v5525, %v4544
          %v6038 = vadd.f32 %v5526, %v1854
          %v6039 = vadd.f32 %v5527, %v1856
          %v6040 = vadd.f32 %v5528, %v2752
          %v6041 = vadd.f32 %v5529, %v2754
          %v6042 = vadd.f32 %v5530, %v3650
          %v6043 = vadd.f32 %v5531, %v3652
          %v6044 = vadd.f32 %v5532, %v4548
          %v6045 = vadd.f32 %v5533, %v4550
          %v6046 = vadd.f32 %v5534, %v1860
          %v6047 = vadd.f32 %v5535, %v1862
          %v6048 = vadd.f32 %v5536, %v2758
          %v6049 = vadd.f32 %v5537, %v2760
          %v6050 = vadd.f32 %v5538, %v3656
          %v6051 = vadd.f32 %v5539, %v3658
          %v6052 = vadd.f32 %v5540, %v4554
          %v6053 = vadd.f32 %v5541, %v4556
          %v6054 = vadd.f32 %v5542, %v1866
          %v6055 = vadd.f32 %v5543, %v1868
          %v6056 = vadd.f32 %v5544, %v2764
          %v6057 = vadd.f32 %v5545, %v2766
          %v6058 = vadd.f32 %v5546, %v3662
          %v6059 = vadd.f32 %v5547, %v3664
          %v6060 = vadd.f32 %v5548, %v4560
          %v6061 = vadd.f32 %v5549, %v4562
          %v6062 = vadd.f32 %v5550, %v1872
          %v6063 = vadd.f32 %v5551, %v1874
          %v6064 = vadd.f32 %v5552, %v2770
          %v6065 = vadd.f32 %v5553, %v2772
          %v6066 = vadd.f32 %v5554, %v3668
          %v6067 = vadd.f32 %v5555, %v3670
          %v6068 = vadd.f32 %v5556, %v4566
          %v6069 = vadd.f32 %v5557, %v4568
          %v6070 = vadd.f32 %v5558, %v1878
          %v6071 = vadd.f32 %v5559, %v1880
          %v6072 = vadd.f32 %v5560, %v2776
          %v6073 = vadd.f32 %v5561, %v2778
          %v6074 = vadd.f32 %v5562, %v3674
          %v6075 = vadd.f32 %v5563, %v3676
          %v6076 = vadd.f32 %v5564, %v4572
          %v6077 = vadd.f32 %v5565, %v4574
          %v6078 = vadd.f32 %v5566, %v1884
          %v6079 = vadd.f32 %v5567, %v1886
          %v6080 = vadd.f32 %v5568, %v2782
          %v6081 = vadd.f32 %v5569, %v2784
          %v6082 = vadd.f32 %v5570, %v3680
          %v6083 = vadd.f32 %v5571, %v3682
          %v6084 = vadd.f32 %v5572, %v4578
          %v6085 = vadd.f32 %v5573, %v4580
          %v6086 = vadd.f32 %v5574, %v1890
          %v6087 = vadd.f32 %v5575, %v1892
          %v6088 = vadd.f32 %v5576, %v2788
          %v6089 = vadd.f32 %v5577, %v2790
          %v6090 = vadd.f32 %v5578, %v3686
          %v6091 = vadd.f32 %v5579, %v3688
          %v6092 = vadd.f32 %v5580, %v4584
          %v6093 = vadd.f32 %v5581, %v4586
          %v6094 = vadd.f32 %v5582, %v1896
          %v6095 = vadd.f32 %v5583, %v1898
          %v6096 = vadd.f32 %v5584, %v2794
          %v6097 = vadd.f32 %v5585, %v2796
          %v6098 = vadd.f32 %v5586, %v3692
          %v6099 = vadd.f32 %v5587, %v3694
          %v6100 = vadd.f32 %v5588, %v4590
          %v6101 = vadd.f32 %v5589, %v4592
          %v6102 = vadd.f32 %v5590, %v1902
          %v6103 = vadd.f32 %v5591, %v1904
          %v6104 = vadd.f32 %v5592, %v2800
          %v6105 = vadd.f32 %v5593, %v2802
          %v6106 = vadd.f32 %v5594, %v3698
          %v6107 = vadd.f32 %v5595, %v3700
          %v6108 = vadd.f32 %v5596, %v4596
          %v6109 = vadd.f32 %v5597, %v4598
          %v6110 = vadd.f32 %v5598, %v1908
          %v6111 = vadd.f32 %v5599, %v1910
          %v6112 = vadd.f32 %v5600, %v2806
          %v6113 = vadd.f32 %v5601, %v2808
          %v6114 = vadd.f32 %v5602, %v3704
          %v6115 = vadd.f32 %v5603, %v3706
          %v6116 = vadd.f32 %v5604, %v4602
          %v6117 = vadd.f32 %v5605, %v4604
          %v6118 = vadd.f32 %v5606, %v1914
          %v6119 = vadd.f32 %v5607, %v1916
          %v6120 = vadd.f32 %v5608, %v2812
          %v6121 = vadd.f32 %v5609, %v2814
          %v6122 = vadd.f32 %v5610, %v3710
          %v6123 = vadd.f32 %v5611, %v3712
          %v6124 = vadd.f32 %v5612, %v4608
          %v6125 = vadd.f32 %v5613, %v4610
          %v6126 = vadd.f32 %v5614, %v1920
          %v6127 = vadd.f32 %v5615, %v1922
          %v6128 = vadd.f32 %v5616, %v2818
          %v6129 = vadd.f32 %v5617, %v2820
          %v6130 = vadd.f32 %v5618, %v3716
          %v6131 = vadd.f32 %v5619, %v3718
          %v6132 = vadd.f32 %v5620, %v4614
          %v6133 = vadd.f32 %v5621, %v4616
          %v6134 = vadd.f32 %v5622, %v1926
          %v6135 = vadd.f32 %v5623, %v1928
          %v6136 = vadd.f32 %v5624, %v2824
          %v6137 = vadd.f32 %v5625, %v2826
          %v6138 = vadd.f32 %v5626, %v3722
          %v6139 = vadd.f32 %v5627, %v3724
          %v6140 = vadd.f32 %v5628, %v4620
          %v6141 = vadd.f32 %v5629, %v4622
          %v6142 = vadd.f32 %v5630, %v1932
          %v6143 = vadd.f32 %v5631, %v1934
          %v6144 = vadd.f32 %v5632, %v2830
          %v6145 = vadd.f32 %v5633, %v2832
          %v6146 = vadd.f32 %v5634, %v3728
          %v6147 = vadd.f32 %v5635, %v3730
          %v6148 = vadd.f32 %v5636, %v4626
          %v6149 = vadd.f32 %v5637, %v4628
          %v6150 = vadd.f32 %v5638, %v1938
          %v6151 = vadd.f32 %v5639, %v1940
          %v6152 = vadd.f32 %v5640, %v2836
          %v6153 = vadd.f32 %v5641, %v2838
          %v6154 = vadd.f32 %v5642, %v3734
          %v6155 = vadd.f32 %v5643, %v3736
          %v6156 = vadd.f32 %v5644, %v4632
          %v6157 = vadd.f32 %v5645, %v4634
          %v6158 = vadd.f32 %v5646, %v1944
          %v6159 = vadd.f32 %v5647, %v1946
          %v6160 = vadd.f32 %v5648, %v2842
          %v6161 = vadd.f32 %v5649, %v2844
          %v6162 = vadd.f32 %v5650, %v3740
          %v6163 = vadd.f32 %v5651, %v3742
          %v6164 = vadd.f32 %v5652, %v4638
          %v6165 = vadd.f32 %v5653, %v4640
          %v6166 = vadd.f32 %v5654, %v1950
          %v6167 = vadd.f32 %v5655, %v1952
          %v6168 = vadd.f32 %v5656, %v2848
          %v6169 = vadd.f32 %v5657, %v2850
          %v6170 = vadd.f32 %v5658, %v3746
          %v6171 = vadd.f32 %v5659, %v3748
          %v6172 = vadd.f32 %v5660, %v4644
          %v6173 = vadd.f32 %v5661, %v4646
          %v6174 = vadd.f32 %v5662, %v1956
          %v6175 = vadd.f32 %v5663, %v1958
          %v6176 = vadd.f32 %v5664, %v2854
          %v6177 = vadd.f32 %v5665, %v2856
          %v6178 = vadd.f32 %v5666, %v3752
          %v6179 = vadd.f32 %v5667, %v3754
          %v6180 = vadd.f32 %v5668, %v4650
          %v6181 = vadd.f32 %v5669, %v4652
          %v6182 = vadd.f32 %v5670, %v1962
          %v6183 = vadd.f32 %v5671, %v1964
          %v6184 = vadd.f32 %v5672, %v2860
          %v6185 = vadd.f32 %v5673, %v2862
          %v6186 = vadd.f32 %v5674, %v3758
          %v6187 = vadd.f32 %v5675, %v3760
          %v6188 = vadd.f32 %v5676, %v4656
          %v6189 = vadd.f32 %v5677, %v4658
          %v6190 = vadd.f32 %v5678, %v1968
          %v6191 = vadd.f32 %v5679, %v1970
          %v6192 = vadd.f32 %v5680, %v2866
          %v6193 = vadd.f32 %v5681, %v2868
          %v6194 = vadd.f32 %v5682, %v3764
          %v6195 = vadd.f32 %v5683, %v3766
          %v6196 = vadd.f32 %v5684, %v4662
          %v6197 = vadd.f32 %v5685, %v4664
          %v6198 = vadd.f32 %v5686, %v1974
          %v6199 = vadd.f32 %v5687, %v1976
          %v6200 = vadd.f32 %v5688, %v2872
          %v6201 = vadd.f32 %v5689, %v2874
          %v6202 = vadd.f32 %v5690, %v3770
          %v6203 = vadd.f32 %v5691, %v3772
          %v6204 = vadd.f32 %v5692, %v4668
          %v6205 = vadd.f32 %v5693, %v4670
          %v6206 = vadd.f32 %v5694, %v1980
          %v6207 = vadd.f32 %v5695, %v1982
          %v6208 = vadd.f32 %v5696, %v2878
          %v6209 = vadd.f32 %v5697, %v2880
          %v6210 = vadd.f32 %v5698, %v3776
          %v6211 = vadd.f32 %v5699, %v3778
          %v6212 = vadd.f32 %v5700, %v4674
          %v6213 = vadd.f32 %v5701, %v4676
          %v6214 = vadd.f32 %v5702, %v1986
          %v6215 = vadd.f32 %v5703, %v1988
          %v6216 = vadd.f32 %v5704, %v2884
          %v6217 = vadd.f32 %v5705, %v2886
          %v6218 = vadd.f32 %v5706, %v3782
          %v6219 = vadd.f32 %v5707, %v3784
          %v6220 = vadd.f32 %v5708, %v4680
          %v6221 = vadd.f32 %v5709, %v4682
          %v6222 = vadd.f32 %v5710, %v1992
          %v6223 = vadd.f32 %v5711, %v1994
          %v6224 = vadd.f32 %v5712, %v2890
          %v6225 = vadd.f32 %v5713, %v2892
          %v6226 = vadd.f32 %v5714, %v3788
          %v6227 = vadd.f32 %v5715, %v3790
          %v6228 = vadd.f32 %v5716, %v4686
          %v6229 = vadd.f32 %v5717, %v4688
          %v6230 = vadd.f32 %v5718, %v1998
          %v6231 = vadd.f32 %v5719, %v2000
          %v6232 = vadd.f32 %v5720, %v2896
          %v6233 = vadd.f32 %v5721, %v2898
          %v6234 = vadd.f32 %v5722, %v3794
          %v6235 = vadd.f32 %v5723, %v3796
          %v6236 = vadd.f32 %v5724, %v4692
          %v6237 = vadd.f32 %v5725, %v4694
          %v6238 = vadd.f32 %v5726, %v2004
          %v6239 = vadd.f32 %v5727, %v2006
          %v6240 = vadd.f32 %v5728, %v2902
          %v6241 = vadd.f32 %v5729, %v2904
          %v6242 = vadd.f32 %v5730, %v3800
          %v6243 = vadd.f32 %v5731, %v3802
          %v6244 = vadd.f32 %v5732, %v4698
          %v6245 = vadd.f32 %v5733, %v4700
          %6246 = vst [vmem:[#allocation2] sm:$0xff] %v5734
          %6247 = vst [vmem:[#allocation2 + $0x8] sm:$0xff] %v5735
          %6248 = vst [vmem:[#allocation2 + $0x10] sm:$0xff] %v5736
          %6249 = vst [vmem:[#allocation2 + $0x18] sm:$0xff] %v5737
          %6250 = vst [vmem:[#allocation2 + $0x20] sm:$0xff] %v5738
          %6251 = vst [vmem:[#allocation2 + $0x28] sm:$0xff] %v5739
          %6252 = vst [vmem:[#allocation2 + $0x30] sm:$0xff] %v5740
          %6253 = vst [vmem:[#allocation2 + $0x38] sm:$0xff] %v5741
          %6254 = vst [vmem:[#allocation2 + $0x40] sm:$0xff] %v5742
          %6255 = vst [vmem:[#allocation2 + $0x48] sm:$0xff] %v5743
          %6256 = vst [vmem:[#allocation2 + $0x50] sm:$0xff] %v5744
          %6257 = vst [vmem:[#allocation2 + $0x58] sm:$0xff] %v5745
          %6258 = vst [vmem:[#allocation2 + $0x60] sm:$0xff] %v5746
          %6259 = vst [vmem:[#allocation2 + $0x68] sm:$0xff] %v5747
          %6260 = vst [vmem:[#allocation2 + $0x70] sm:$0xff] %v5748
          %6261 = vst [vmem:[#allocation2 + $0x78] sm:$0xff] %v5749
          %6262 = vst [vmem:[#allocation2 + $0x80] sm:$0xff] %v5750
          %6263 = vst [vmem:[#allocation2 + $0x88] sm:$0xff] %v5751
          %6264 = vst [vmem:[#allocation2 + $0x90] sm:$0xff] %v5752
          %6265 = vst [vmem:[#allocation2 + $0x98] sm:$0xff] %v5753
          %6266 = vst [vmem:[#allocation2 + $0xa0] sm:$0xff] %v5754
          %6267 = vst [vmem:[#allocation2 + $0xa8] sm:$0xff] %v5755
          %6268 = vst [vmem:[#allocation2 + $0xb0] sm:$0xff] %v5756
          %6269 = vst [vmem:[#allocation2 + $0xb8] sm:$0xff] %v5757
          %6270 = vst [vmem:[#allocation2 + $0xc0] sm:$0xff] %v5758
          %6271 = vst [vmem:[#allocation2 + $0xc8] sm:$0xff] %v5759
          %6272 = vst [vmem:[#allocation2 + $0xd0] sm:$0xff] %v5760
          %6273 = vst [vmem:[#allocation2 + $0xd8] sm:$0xff] %v5761
          %6274 = vst [vmem:[#allocation2 + $0xe0] sm:$0xff] %v5762
          %6275 = vst [vmem:[#allocation2 + $0xe8] sm:$0xff] %v5763
          %6276 = vst [vmem:[#allocation2 + $0xf0] sm:$0xff] %v5764
          %6277 = vst [vmem:[#allocation2 + $0xf8] sm:$0xff] %v5765
          %6278 = vst [vmem:[#allocation2 + $0x100] sm:$0xff] %v5766
          %6279 = vst [vmem:[#allocation2 + $0x108] sm:$0xff] %v5767
          %6280 = vst [vmem:[#allocation2 + $0x110] sm:$0xff] %v5768
          %6281 = vst [vmem:[#allocation2 + $0x118] sm:$0xff] %v5769
          %6282 = vst [vmem:[#allocation2 + $0x120] sm:$0xff] %v5770
          %6283 = vst [vmem:[#allocation2 + $0x128] sm:$0xff] %v5771
          %6284 = vst [vmem:[#allocation2 + $0x130] sm:$0xff] %v5772
          %6285 = vst [vmem:[#allocation2 + $0x138] sm:$0xff] %v5773
          %6286 = vst [vmem:[#allocation2 + $0x140] sm:$0xff] %v5774
          %6287 = vst [vmem:[#allocation2 + $0x148] sm:$0xff] %v5775
          %6288 = vst [vmem:[#allocation2 + $0x150] sm:$0xff] %v5776
          %6289 = vst [vmem:[#allocation2 + $0x158] sm:$0xff] %v5777
          %6290 = vst [vmem:[#allocation2 + $0x160] sm:$0xff] %v5778
          %6291 = vst [vmem:[#allocation2 + $0x168] sm:$0xff] %v5779
          %6292 = vst [vmem:[#allocation2 + $0x170] sm:$0xff] %v5780
          %6293 = vst [vmem:[#allocation2 + $0x178] sm:$0xff] %v5781
          %6294 = vst [vmem:[#allocation2 + $0x180] sm:$0xff] %v5782
          %6295 = vst [vmem:[#allocation2 + $0x188] sm:$0xff] %v5783
          %6296 = vst [vmem:[#allocation2 + $0x190] sm:$0xff] %v5784
          %6297 = vst [vmem:[#allocation2 + $0x198] sm:$0xff] %v5785
          %6298 = vst [vmem:[#allocation2 + $0x1a0] sm:$0xff] %v5786
          %6299 = vst [vmem:[#allocation2 + $0x1a8] sm:$0xff] %v5787
          %6300 = vst [vmem:[#allocation2 + $0x1b0] sm:$0xff] %v5788
          %6301 = vst [vmem:[#allocation2 + $0x1b8] sm:$0xff] %v5789
          %6302 = vst [vmem:[#allocation2 + $0x1c0] sm:$0xff] %v5790
          %6303 = vst [vmem:[#allocation2 + $0x1c8] sm:$0xff] %v5791
          %6304 = vst [vmem:[#allocation2 + $0x1d0] sm:$0xff] %v5792
          %6305 = vst [vmem:[#allocation2 + $0x1d8] sm:$0xff] %v5793
          %6306 = vst [vmem:[#allocation2 + $0x1e0] sm:$0xff] %v5794
          %6307 = vst [vmem:[#allocation2 + $0x1e8] sm:$0xff] %v5795
          %6308 = vst [vmem:[#allocation2 + $0x1f0] sm:$0xff] %v5796
          %6309 = vst [vmem:[#allocation2 + $0x1f8] sm:$0xff] %v5797
          %6310 = vst [vmem:[#allocation2 + $0x200] sm:$0xff] %v5798
          %6311 = vst [vmem:[#allocation2 + $0x208] sm:$0xff] %v5799
          %6312 = vst [vmem:[#allocation2 + $0x210] sm:$0xff] %v5800
          %6313 = vst [vmem:[#allocation2 + $0x218] sm:$0xff] %v5801
          %6314 = vst [vmem:[#allocation2 + $0x220] sm:$0xff] %v5802
          %6315 = vst [vmem:[#allocation2 + $0x228] sm:$0xff] %v5803
          %6316 = vst [vmem:[#allocation2 + $0x230] sm:$0xff] %v5804
          %6317 = vst [vmem:[#allocation2 + $0x238] sm:$0xff] %v5805
          %6318 = vst [vmem:[#allocation2 + $0x240] sm:$0xff] %v5806
          %6319 = vst [vmem:[#allocation2 + $0x248] sm:$0xff] %v5807
          %6320 = vst [vmem:[#allocation2 + $0x250] sm:$0xff] %v5808
          %6321 = vst [vmem:[#allocation2 + $0x258] sm:$0xff] %v5809
          %6322 = vst [vmem:[#allocation2 + $0x260] sm:$0xff] %v5810
          %6323 = vst [vmem:[#allocation2 + $0x268] sm:$0xff] %v5811
          %6324 = vst [vmem:[#allocation2 + $0x270] sm:$0xff] %v5812
          %6325 = vst [vmem:[#allocation2 + $0x278] sm:$0xff] %v5813
          %6326 = vst [vmem:[#allocation2 + $0x280] sm:$0xff] %v5814
          %6327 = vst [vmem:[#allocation2 + $0x288] sm:$0xff] %v5815
          %6328 = vst [vmem:[#allocation2 + $0x290] sm:$0xff] %v5816
          %6329 = vst [vmem:[#allocation2 + $0x298] sm:$0xff] %v5817
          %6330 = vst [vmem:[#allocation2 + $0x2a0] sm:$0xff] %v5818
          %6331 = vst [vmem:[#allocation2 + $0x2a8] sm:$0xff] %v5819
          %6332 = vst [vmem:[#allocation2 + $0x2b0] sm:$0xff] %v5820
          %6333 = vst [vmem:[#allocation2 + $0x2b8] sm:$0xff] %v5821
          %6334 = vst [vmem:[#allocation2 + $0x2c0] sm:$0xff] %v5822
          %6335 = vst [vmem:[#allocation2 + $0x2c8] sm:$0xff] %v5823
          %6336 = vst [vmem:[#allocation2 + $0x2d0] sm:$0xff] %v5824
          %6337 = vst [vmem:[#allocation2 + $0x2d8] sm:$0xff] %v5825
          %6338 = vst [vmem:[#allocation2 + $0x2e0] sm:$0xff] %v5826
          %6339 = vst [vmem:[#allocation2 + $0x2e8] sm:$0xff] %v5827
          %6340 = vst [vmem:[#allocation2 + $0x2f0] sm:$0xff] %v5828
          %6341 = vst [vmem:[#allocation2 + $0x2f8] sm:$0xff] %v5829
          %6342 = vst [vmem:[#allocation2 + $0x300] sm:$0xff] %v5830
          %6343 = vst [vmem:[#allocation2 + $0x308] sm:$0xff] %v5831
          %6344 = vst [vmem:[#allocation2 + $0x310] sm:$0xff] %v5832
          %6345 = vst [vmem:[#allocation2 + $0x318] sm:$0xff] %v5833
          %6346 = vst [vmem:[#allocation2 + $0x320] sm:$0xff] %v5834
          %6347 = vst [vmem:[#allocation2 + $0x328] sm:$0xff] %v5835
          %6348 = vst [vmem:[#allocation2 + $0x330] sm:$0xff] %v5836
          %6349 = vst [vmem:[#allocation2 + $0x338] sm:$0xff] %v5837
          %6350 = vst [vmem:[#allocation2 + $0x340] sm:$0xff] %v5838
          %6351 = vst [vmem:[#allocation2 + $0x348] sm:$0xff] %v5839
          %6352 = vst [vmem:[#allocation2 + $0x350] sm:$0xff] %v5840
          %6353 = vst [vmem:[#allocation2 + $0x358] sm:$0xff] %v5841
          %6354 = vst [vmem:[#allocation2 + $0x360] sm:$0xff] %v5842
          %6355 = vst [vmem:[#allocation2 + $0x368] sm:$0xff] %v5843
          %6356 = vst [vmem:[#allocation2 + $0x370] sm:$0xff] %v5844
          %6357 = vst [vmem:[#allocation2 + $0x378] sm:$0xff] %v5845
          %6358 = vst [vmem:[#allocation2 + $0x380] sm:$0xff] %v5846
          %6359 = vst [vmem:[#allocation2 + $0x388] sm:$0xff] %v5847
          %6360 = vst [vmem:[#allocation2 + $0x390] sm:$0xff] %v5848
          %6361 = vst [vmem:[#allocation2 + $0x398] sm:$0xff] %v5849
          %6362 = vst [vmem:[#allocation2 + $0x3a0] sm:$0xff] %v5850
          %6363 = vst [vmem:[#allocation2 + $0x3a8] sm:$0xff] %v5851
          %6364 = vst [vmem:[#allocation2 + $0x3b0] sm:$0xff] %v5852
          %6365 = vst [vmem:[#allocation2 + $0x3b8] sm:$0xff] %v5853
          %6366 = vst [vmem:[#allocation2 + $0x3c0] sm:$0xff] %v5854
          %6367 = vst [vmem:[#allocation2 + $0x3c8] sm:$0xff] %v5855
          %6368 = vst [vmem:[#allocation2 + $0x3d0] sm:$0xff] %v5856
          %6369 = vst [vmem:[#allocation2 + $0x3d8] sm:$0xff] %v5857
          %6370 = vst [vmem:[#allocation2 + $0x3e0] sm:$0xff] %v5858
          %6371 = vst [vmem:[#allocation2 + $0x3e8] sm:$0xff] %v5859
          %6372 = vst [vmem:[#allocation2 + $0x3f0] sm:$0xff] %v5860
          %6373 = vst [vmem:[#allocation2 + $0x3f8] sm:$0xff] %v5861
          %6374 = vst [vmem:[#allocation2 + $0x400] sm:$0xff] %v5862
          %6375 = vst [vmem:[#allocation2 + $0x408] sm:$0xff] %v5863
          %6376 = vst [vmem:[#allocation2 + $0x410] sm:$0xff] %v5864
          %6377 = vst [vmem:[#allocation2 + $0x418] sm:$0xff] %v5865
          %6378 = vst [vmem:[#allocation2 + $0x420] sm:$0xff] %v5866
          %6379 = vst [vmem:[#allocation2 + $0x428] sm:$0xff] %v5867
          %6380 = vst [vmem:[#allocation2 + $0x430] sm:$0xff] %v5868
          %6381 = vst [vmem:[#allocation2 + $0x438] sm:$0xff] %v5869
          %6382 = vst [vmem:[#allocation2 + $0x440] sm:$0xff] %v5870
          %6383 = vst [vmem:[#allocation2 + $0x448] sm:$0xff] %v5871
          %6384 = vst [vmem:[#allocation2 + $0x450] sm:$0xff] %v5872
          %6385 = vst [vmem:[#allocation2 + $0x458] sm:$0xff] %v5873
          %6386 = vst [vmem:[#allocation2 + $0x460] sm:$0xff] %v5874
          %6387 = vst [vmem:[#allocation2 + $0x468] sm:$0xff] %v5875
          %6388 = vst [vmem:[#allocation2 + $0x470] sm:$0xff] %v5876
          %6389 = vst [vmem:[#allocation2 + $0x478] sm:$0xff] %v5877
          %6390 = vst [vmem:[#allocation2 + $0x480] sm:$0xff] %v5878
          %6391 = vst [vmem:[#allocation2 + $0x488] sm:$0xff] %v5879
          %6392 = vst [vmem:[#allocation2 + $0x490] sm:$0xff] %v5880
          %6393 = vst [vmem:[#allocation2 + $0x498] sm:$0xff] %v5881
          %6394 = vst [vmem:[#allocation2 + $0x4a0] sm:$0xff] %v5882
          %6395 = vst [vmem:[#allocation2 + $0x4a8] sm:$0xff] %v5883
          %6396 = vst [vmem:[#allocation2 + $0x4b0] sm:$0xff] %v5884
          %6397 = vst [vmem:[#allocation2 + $0x4b8] sm:$0xff] %v5885
          %6398 = vst [vmem:[#allocation2 + $0x4c0] sm:$0xff] %v5886
          %6399 = vst [vmem:[#allocation2 + $0x4c8] sm:$0xff] %v5887
          %6400 = vst [vmem:[#allocation2 + $0x4d0] sm:$0xff] %v5888
          %6401 = vst [vmem:[#allocation2 + $0x4d8] sm:$0xff] %v5889
          %6402 = vst [vmem:[#allocation2 + $0x4e0] sm:$0xff] %v5890
          %6403 = vst [vmem:[#allocation2 + $0x4e8] sm:$0xff] %v5891
          %6404 = vst [vmem:[#allocation2 + $0x4f0] sm:$0xff] %v5892
          %6405 = vst [vmem:[#allocation2 + $0x4f8] sm:$0xff] %v5893
          %6406 = vst [vmem:[#allocation2 + $0x500] sm:$0xff] %v5894
          %6407 = vst [vmem:[#allocation2 + $0x508] sm:$0xff] %v5895
          %6408 = vst [vmem:[#allocation2 + $0x510] sm:$0xff] %v5896
          %6409 = vst [vmem:[#allocation2 + $0x518] sm:$0xff] %v5897
          %6410 = vst [vmem:[#allocation2 + $0x520] sm:$0xff] %v5898
          %6411 = vst [vmem:[#allocation2 + $0x528] sm:$0xff] %v5899
          %6412 = vst [vmem:[#allocation2 + $0x530] sm:$0xff] %v5900
          %6413 = vst [vmem:[#allocation2 + $0x538] sm:$0xff] %v5901
          %6414 = vst [vmem:[#allocation2 + $0x540] sm:$0xff] %v5902
          %6415 = vst [vmem:[#allocation2 + $0x548] sm:$0xff] %v5903
          %6416 = vst [vmem:[#allocation2 + $0x550] sm:$0xff] %v5904
          %6417 = vst [vmem:[#allocation2 + $0x558] sm:$0xff] %v5905
          %6418 = vst [vmem:[#allocation2 + $0x560] sm:$0xff] %v5906
          %6419 = vst [vmem:[#allocation2 + $0x568] sm:$0xff] %v5907
          %6420 = vst [vmem:[#allocation2 + $0x570] sm:$0xff] %v5908
          %6421 = vst [vmem:[#allocation2 + $0x578] sm:$0xff] %v5909
          %6422 = vst [vmem:[#allocation2 + $0x580] sm:$0xff] %v5910
          %6423 = vst [vmem:[#allocation2 + $0x588] sm:$0xff] %v5911
          %6424 = vst [vmem:[#allocation2 + $0x590] sm:$0xff] %v5912
          %6425 = vst [vmem:[#allocation2 + $0x598] sm:$0xff] %v5913
          %6426 = vst [vmem:[#allocation2 + $0x5a0] sm:$0xff] %v5914
          %6427 = vst [vmem:[#allocation2 + $0x5a8] sm:$0xff] %v5915
          %6428 = vst [vmem:[#allocation2 + $0x5b0] sm:$0xff] %v5916
          %6429 = vst [vmem:[#allocation2 + $0x5b8] sm:$0xff] %v5917
          %6430 = vst [vmem:[#allocation2 + $0x5c0] sm:$0xff] %v5918
          %6431 = vst [vmem:[#allocation2 + $0x5c8] sm:$0xff] %v5919
          %6432 = vst [vmem:[#allocation2 + $0x5d0] sm:$0xff] %v5920
          %6433 = vst [vmem:[#allocation2 + $0x5d8] sm:$0xff] %v5921
          %6434 = vst [vmem:[#allocation2 + $0x5e0] sm:$0xff] %v5922
          %6435 = vst [vmem:[#allocation2 + $0x5e8] sm:$0xff] %v5923
          %6436 = vst [vmem:[#allocation2 + $0x5f0] sm:$0xff] %v5924
          %6437 = vst [vmem:[#allocation2 + $0x5f8] sm:$0xff] %v5925
          %6438 = vst [vmem:[#allocation2 + $0x600] sm:$0xff] %v5926
          %6439 = vst [vmem:[#allocation2 + $0x608] sm:$0xff] %v5927
          %6440 = vst [vmem:[#allocation2 + $0x610] sm:$0xff] %v5928
          %6441 = vst [vmem:[#allocation2 + $0x618] sm:$0xff] %v5929
          %6442 = vst [vmem:[#allocation2 + $0x620] sm:$0xff] %v5930
          %6443 = vst [vmem:[#allocation2 + $0x628] sm:$0xff] %v5931
          %6444 = vst [vmem:[#allocation2 + $0x630] sm:$0xff] %v5932
          %6445 = vst [vmem:[#allocation2 + $0x638] sm:$0xff] %v5933
          %6446 = vst [vmem:[#allocation2 + $0x640] sm:$0xff] %v5934
          %6447 = vst [vmem:[#allocation2 + $0x648] sm:$0xff] %v5935
          %6448 = vst [vmem:[#allocation2 + $0x650] sm:$0xff] %v5936
          %6449 = vst [vmem:[#allocation2 + $0x658] sm:$0xff] %v5937
          %6450 = vst [vmem:[#allocation2 + $0x660] sm:$0xff] %v5938
          %6451 = vst [vmem:[#allocation2 + $0x668] sm:$0xff] %v5939
          %6452 = vst [vmem:[#allocation2 + $0x670] sm:$0xff] %v5940
          %6453 = vst [vmem:[#allocation2 + $0x678] sm:$0xff] %v5941
          %6454 = vst [vmem:[#allocation2 + $0x680] sm:$0xff] %v5942
          %6455 = vst [vmem:[#allocation2 + $0x688] sm:$0xff] %v5943
          %6456 = vst [vmem:[#allocation2 + $0x690] sm:$0xff] %v5944
          %6457 = vst [vmem:[#allocation2 + $0x698] sm:$0xff] %v5945
          %6458 = vst [vmem:[#allocation2 + $0x6a0] sm:$0xff] %v5946
          %6459 = vst [vmem:[#allocation2 + $0x6a8] sm:$0xff] %v5947
          %6460 = vst [vmem:[#allocation2 + $0x6b0] sm:$0xff] %v5948
          %6461 = vst [vmem:[#allocation2 + $0x6b8] sm:$0xff] %v5949
          %6462 = vst [vmem:[#allocation2 + $0x6c0] sm:$0xff] %v5950
          %6463 = vst [vmem:[#allocation2 + $0x6c8] sm:$0xff] %v5951
          %6464 = vst [vmem:[#allocation2 + $0x6d0] sm:$0xff] %v5952
          %6465 = vst [vmem:[#allocation2 + $0x6d8] sm:$0xff] %v5953
          %6466 = vst [vmem:[#allocation2 + $0x6e0] sm:$0xff] %v5954
          %6467 = vst [vmem:[#allocation2 + $0x6e8] sm:$0xff] %v5955
          %6468 = vst [vmem:[#allocation2 + $0x6f0] sm:$0xff] %v5956
          %6469 = vst [vmem:[#allocation2 + $0x6f8] sm:$0xff] %v5957
          %6470 = vst [vmem:[#allocation2 + $0x700] sm:$0xff] %v5958
          %6471 = vst [vmem:[#allocation2 + $0x708] sm:$0xff] %v5959
          %6472 = vst [vmem:[#allocation2 + $0x710] sm:$0xff] %v5960
          %6473 = vst [vmem:[#allocation2 + $0x718] sm:$0xff] %v5961
          %6474 = vst [vmem:[#allocation2 + $0x720] sm:$0xff] %v5962
          %6475 = vst [vmem:[#allocation2 + $0x728] sm:$0xff] %v5963
          %6476 = vst [vmem:[#allocation2 + $0x730] sm:$0xff] %v5964
          %6477 = vst [vmem:[#allocation2 + $0x738] sm:$0xff] %v5965
          %6478 = vst [vmem:[#allocation2 + $0x740] sm:$0xff] %v5966
          %6479 = vst [vmem:[#allocation2 + $0x748] sm:$0xff] %v5967
          %6480 = vst [vmem:[#allocation2 + $0x750] sm:$0xff] %v5968
          %6481 = vst [vmem:[#allocation2 + $0x758] sm:$0xff] %v5969
          %6482 = vst [vmem:[#allocation2 + $0x760] sm:$0xff] %v5970
          %6483 = vst [vmem:[#allocation2 + $0x768] sm:$0xff] %v5971
          %6484 = vst [vmem:[#allocation2 + $0x770] sm:$0xff] %v5972
          %6485 = vst [vmem:[#allocation2 + $0x778] sm:$0xff] %v5973
          %6486 = vst [vmem:[#allocation2 + $0x780] sm:$0xff] %v5974
          %6487 = vst [vmem:[#allocation2 + $0x788] sm:$0xff] %v5975
          %6488 = vst [vmem:[#allocation2 + $0x790] sm:$0xff] %v5976
          %6489 = vst [vmem:[#allocation2 + $0x798] sm:$0xff] %v5977
          %6490 = vst [vmem:[#allocation2 + $0x7a0] sm:$0xff] %v5978
          %6491 = vst [vmem:[#allocation2 + $0x7a8] sm:$0xff] %v5979
          %6492 = vst [vmem:[#allocation2 + $0x7b0] sm:$0xff] %v5980
          %6493 = vst [vmem:[#allocation2 + $0x7b8] sm:$0xff] %v5981
          %6494 = vst [vmem:[#allocation2 + $0x7c0] sm:$0xff] %v5982
          %6495 = vst [vmem:[#allocation2 + $0x7c8] sm:$0xff] %v5983
          %6496 = vst [vmem:[#allocation2 + $0x7d0] sm:$0xff] %v5984
          %6497 = vst [vmem:[#allocation2 + $0x7d8] sm:$0xff] %v5985
          %6498 = vst [vmem:[#allocation2 + $0x7e0] sm:$0xff] %v5986
          %6499 = vst [vmem:[#allocation2 + $0x7e8] sm:$0xff] %v5987
          %6500 = vst [vmem:[#allocation2 + $0x7f0] sm:$0xff] %v5988
          %6501 = vst [vmem:[#allocation2 + $0x7f8] sm:$0xff] %v5989
          %6502 = vst [vmem:[#allocation2 + $0x800] sm:$0xff] %v5990
          %6503 = vst [vmem:[#allocation2 + $0x808] sm:$0xff] %v5991
          %6504 = vst [vmem:[#allocation2 + $0x810] sm:$0xff] %v5992
          %6505 = vst [vmem:[#allocation2 + $0x818] sm:$0xff] %v5993
          %6506 = vst [vmem:[#allocation2 + $0x820] sm:$0xff] %v5994
          %6507 = vst [vmem:[#allocation2 + $0x828] sm:$0xff] %v5995
          %6508 = vst [vmem:[#allocation2 + $0x830] sm:$0xff] %v5996
          %6509 = vst [vmem:[#allocation2 + $0x838] sm:$0xff] %v5997
          %6510 = vst [vmem:[#allocation2 + $0x840] sm:$0xff] %v5998
          %6511 = vst [vmem:[#allocation2 + $0x848] sm:$0xff] %v5999
          %6512 = vst [vmem:[#allocation2 + $0x850] sm:$0xff] %v6000
          %6513 = vst [vmem:[#allocation2 + $0x858] sm:$0xff] %v6001
          %6514 = vst [vmem:[#allocation2 + $0x860] sm:$0xff] %v6002
          %6515 = vst [vmem:[#allocation2 + $0x868] sm:$0xff] %v6003
          %6516 = vst [vmem:[#allocation2 + $0x870] sm:$0xff] %v6004
          %6517 = vst [vmem:[#allocation2 + $0x878] sm:$0xff] %v6005
          %6518 = vst [vmem:[#allocation2 + $0x880] sm:$0xff] %v6006
          %6519 = vst [vmem:[#allocation2 + $0x888] sm:$0xff] %v6007
          %6520 = vst [vmem:[#allocation2 + $0x890] sm:$0xff] %v6008
          %6521 = vst [vmem:[#allocation2 + $0x898] sm:$0xff] %v6009
          %6522 = vst [vmem:[#allocation2 + $0x8a0] sm:$0xff] %v6010
          %6523 = vst [vmem:[#allocation2 + $0x8a8] sm:$0xff] %v6011
          %6524 = vst [vmem:[#allocation2 + $0x8b0] sm:$0xff] %v6012
          %6525 = vst [vmem:[#allocation2 + $0x8b8] sm:$0xff] %v6013
          %6526 = vst [vmem:[#allocation2 + $0x8c0] sm:$0xff] %v6014
          %6527 = vst [vmem:[#allocation2 + $0x8c8] sm:$0xff] %v6015
          %6528 = vst [vmem:[#allocation2 + $0x8d0] sm:$0xff] %v6016
          %6529 = vst [vmem:[#allocation2 + $0x8d8] sm:$0xff] %v6017
          %6530 = vst [vmem:[#allocation2 + $0x8e0] sm:$0xff] %v6018
          %6531 = vst [vmem:[#allocation2 + $0x8e8] sm:$0xff] %v6019
          %6532 = vst [vmem:[#allocation2 + $0x8f0] sm:$0xff] %v6020
          %6533 = vst [vmem:[#allocation2 + $0x8f8] sm:$0xff] %v6021
          %6534 = vst [vmem:[#allocation2 + $0x900] sm:$0xff] %v6022
          %6535 = vst [vmem:[#allocation2 + $0x908] sm:$0xff] %v6023
          %6536 = vst [vmem:[#allocation2 + $0x910] sm:$0xff] %v6024
          %6537 = vst [vmem:[#allocation2 + $0x918] sm:$0xff] %v6025
          %6538 = vst [vmem:[#allocation2 + $0x920] sm:$0xff] %v6026
          %6539 = vst [vmem:[#allocation2 + $0x928] sm:$0xff] %v6027
          %6540 = vst [vmem:[#allocation2 + $0x930] sm:$0xff] %v6028
          %6541 = vst [vmem:[#allocation2 + $0x938] sm:$0xff] %v6029
          %6542 = vst [vmem:[#allocation2 + $0x940] sm:$0xff] %v6030
          %6543 = vst [vmem:[#allocation2 + $0x948] sm:$0xff] %v6031
          %6544 = vst [vmem:[#allocation2 + $0x950] sm:$0xff] %v6032
          %6545 = vst [vmem:[#allocation2 + $0x958] sm:$0xff] %v6033
          %6546 = vst [vmem:[#allocation2 + $0x960] sm:$0xff] %v6034
          %6547 = vst [vmem:[#allocation2 + $0x968] sm:$0xff] %v6035
          %6548 = vst [vmem:[#allocation2 + $0x970] sm:$0xff] %v6036
          %6549 = vst [vmem:[#allocation2 + $0x978] sm:$0xff] %v6037
          %6550 = vst [vmem:[#allocation2 + $0x980] sm:$0xff] %v6038
          %6551 = vst [vmem:[#allocation2 + $0x988] sm:$0xff] %v6039
          %6552 = vst [vmem:[#allocation2 + $0x990] sm:$0xff] %v6040
          %6553 = vst [vmem:[#allocation2 + $0x998] sm:$0xff] %v6041
          %6554 = vst [vmem:[#allocation2 + $0x9a0] sm:$0xff] %v6042
          %6555 = vst [vmem:[#allocation2 + $0x9a8] sm:$0xff] %v6043
          %6556 = vst [vmem:[#allocation2 + $0x9b0] sm:$0xff] %v6044
          %6557 = vst [vmem:[#allocation2 + $0x9b8] sm:$0xff] %v6045
          %6558 = vst [vmem:[#allocation2 + $0x9c0] sm:$0xff] %v6046
          %6559 = vst [vmem:[#allocation2 + $0x9c8] sm:$0xff] %v6047
          %6560 = vst [vmem:[#allocation2 + $0x9d0] sm:$0xff] %v6048
          %6561 = vst [vmem:[#allocation2 + $0x9d8] sm:$0xff] %v6049
          %6562 = vst [vmem:[#allocation2 + $0x9e0] sm:$0xff] %v6050
          %6563 = vst [vmem:[#allocation2 + $0x9e8] sm:$0xff] %v6051
          %6564 = vst [vmem:[#allocation2 + $0x9f0] sm:$0xff] %v6052
          %6565 = vst [vmem:[#allocation2 + $0x9f8] sm:$0xff] %v6053
          %6566 = vst [vmem:[#allocation2 + $0xa00] sm:$0xff] %v6054
          %6567 = vst [vmem:[#allocation2 + $0xa08] sm:$0xff] %v6055
          %6568 = vst [vmem:[#allocation2 + $0xa10] sm:$0xff] %v6056
          %6569 = vst [vmem:[#allocation2 + $0xa18] sm:$0xff] %v6057
          %6570 = vst [vmem:[#allocation2 + $0xa20] sm:$0xff] %v6058
          %6571 = vst [vmem:[#allocation2 + $0xa28] sm:$0xff] %v6059
          %6572 = vst [vmem:[#allocation2 + $0xa30] sm:$0xff] %v6060
          %6573 = vst [vmem:[#allocation2 + $0xa38] sm:$0xff] %v6061
          %6574 = vst [vmem:[#allocation2 + $0xa40] sm:$0xff] %v6062
          %6575 = vst [vmem:[#allocation2 + $0xa48] sm:$0xff] %v6063
          %6576 = vst [vmem:[#allocation2 + $0xa50] sm:$0xff] %v6064
          %6577 = vst [vmem:[#allocation2 + $0xa58] sm:$0xff] %v6065
          %6578 = vst [vmem:[#allocation2 + $0xa60] sm:$0xff] %v6066
          %6579 = vst [vmem:[#allocation2 + $0xa68] sm:$0xff] %v6067
          %6580 = vst [vmem:[#allocation2 + $0xa70] sm:$0xff] %v6068
          %6581 = vst [vmem:[#allocation2 + $0xa78] sm:$0xff] %v6069
          %6582 = vst [vmem:[#allocation2 + $0xa80] sm:$0xff] %v6070
          %6583 = vst [vmem:[#allocation2 + $0xa88] sm:$0xff] %v6071
          %6584 = vst [vmem:[#allocation2 + $0xa90] sm:$0xff] %v6072
          %6585 = vst [vmem:[#allocation2 + $0xa98] sm:$0xff] %v6073
          %6586 = vst [vmem:[#allocation2 + $0xaa0] sm:$0xff] %v6074
          %6587 = vst [vmem:[#allocation2 + $0xaa8] sm:$0xff] %v6075
          %6588 = vst [vmem:[#allocation2 + $0xab0] sm:$0xff] %v6076
          %6589 = vst [vmem:[#allocation2 + $0xab8] sm:$0xff] %v6077
          %6590 = vst [vmem:[#allocation2 + $0xac0] sm:$0xff] %v6078
          %6591 = vst [vmem:[#allocation2 + $0xac8] sm:$0xff] %v6079
          %6592 = vst [vmem:[#allocation2 + $0xad0] sm:$0xff] %v6080
          %6593 = vst [vmem:[#allocation2 + $0xad8] sm:$0xff] %v6081
          %6594 = vst [vmem:[#allocation2 + $0xae0] sm:$0xff] %v6082
          %6595 = vst [vmem:[#allocation2 + $0xae8] sm:$0xff] %v6083
          %6596 = vst [vmem:[#allocation2 + $0xaf0] sm:$0xff] %v6084
          %6597 = vst [vmem:[#allocation2 + $0xaf8] sm:$0xff] %v6085
          %6598 = vst [vmem:[#allocation2 + $0xb00] sm:$0xff] %v6086
          %6599 = vst [vmem:[#allocation2 + $0xb08] sm:$0xff] %v6087
          %6600 = vst [vmem:[#allocation2 + $0xb10] sm:$0xff] %v6088
          %6601 = vst [vmem:[#allocation2 + $0xb18] sm:$0xff] %v6089
          %6602 = vst [vmem:[#allocation2 + $0xb20] sm:$0xff] %v6090
          %6603 = vst [vmem:[#allocation2 + $0xb28] sm:$0xff] %v6091
          %6604 = vst [vmem:[#allocation2 + $0xb30] sm:$0xff] %v6092
          %6605 = vst [vmem:[#allocation2 + $0xb38] sm:$0xff] %v6093
          %6606 = vst [vmem:[#allocation2 + $0xb40] sm:$0xff] %v6094
          %6607 = vst [vmem:[#allocation2 + $0xb48] sm:$0xff] %v6095
          %6608 = vst [vmem:[#allocation2 + $0xb50] sm:$0xff] %v6096
          %6609 = vst [vmem:[#allocation2 + $0xb58] sm:$0xff] %v6097
          %6610 = vst [vmem:[#allocation2 + $0xb60] sm:$0xff] %v6098
          %6611 = vst [vmem:[#allocation2 + $0xb68] sm:$0xff] %v6099
          %6612 = vst [vmem:[#allocation2 + $0xb70] sm:$0xff] %v6100
          %6613 = vst [vmem:[#allocation2 + $0xb78] sm:$0xff] %v6101
          %6614 = vst [vmem:[#allocation2 + $0xb80] sm:$0xff] %v6102
          %6615 = vst [vmem:[#allocation2 + $0xb88] sm:$0xff] %v6103
          %6616 = vst [vmem:[#allocation2 + $0xb90] sm:$0xff] %v6104
          %6617 = vst [vmem:[#allocation2 + $0xb98] sm:$0xff] %v6105
          %6618 = vst [vmem:[#allocation2 + $0xba0] sm:$0xff] %v6106
          %6619 = vst [vmem:[#allocation2 + $0xba8] sm:$0xff] %v6107
          %6620 = vst [vmem:[#allocation2 + $0xbb0] sm:$0xff] %v6108
          %6621 = vst [vmem:[#allocation2 + $0xbb8] sm:$0xff] %v6109
          %6622 = vst [vmem:[#allocation2 + $0xbc0] sm:$0xff] %v6110
          %6623 = vst [vmem:[#allocation2 + $0xbc8] sm:$0xff] %v6111
          %6624 = vst [vmem:[#allocation2 + $0xbd0] sm:$0xff] %v6112
          %6625 = vst [vmem:[#allocation2 + $0xbd8] sm:$0xff] %v6113
          %6626 = vst [vmem:[#allocation2 + $0xbe0] sm:$0xff] %v6114
          %6627 = vst [vmem:[#allocation2 + $0xbe8] sm:$0xff] %v6115
          %6628 = vst [vmem:[#allocation2 + $0xbf0] sm:$0xff] %v6116
          %6629 = vst [vmem:[#allocation2 + $0xbf8] sm:$0xff] %v6117
          %6630 = vst [vmem:[#allocation2 + $0xc00] sm:$0xff] %v6118
          %6631 = vst [vmem:[#allocation2 + $0xc08] sm:$0xff] %v6119
          %6632 = vst [vmem:[#allocation2 + $0xc10] sm:$0xff] %v6120
          %6633 = vst [vmem:[#allocation2 + $0xc18] sm:$0xff] %v6121
          %6634 = vst [vmem:[#allocation2 + $0xc20] sm:$0xff] %v6122
          %6635 = vst [vmem:[#allocation2 + $0xc28] sm:$0xff] %v6123
          %6636 = vst [vmem:[#allocation2 + $0xc30] sm:$0xff] %v6124
          %6637 = vst [vmem:[#allocation2 + $0xc38] sm:$0xff] %v6125
          %6638 = vst [vmem:[#allocation2 + $0xc40] sm:$0xff] %v6126
          %6639 = vst [vmem:[#allocation2 + $0xc48] sm:$0xff] %v6127
          %6640 = vst [vmem:[#allocation2 + $0xc50] sm:$0xff] %v6128
          %6641 = vst [vmem:[#allocation2 + $0xc58] sm:$0xff] %v6129
          %6642 = vst [vmem:[#allocation2 + $0xc60] sm:$0xff] %v6130
          %6643 = vst [vmem:[#allocation2 + $0xc68] sm:$0xff] %v6131
          %6644 = vst [vmem:[#allocation2 + $0xc70] sm:$0xff] %v6132
          %6645 = vst [vmem:[#allocation2 + $0xc78] sm:$0xff] %v6133
          %6646 = vst [vmem:[#allocation2 + $0xc80] sm:$0xff] %v6134
          %6647 = vst [vmem:[#allocation2 + $0xc88] sm:$0xff] %v6135
          %6648 = vst [vmem:[#allocation2 + $0xc90] sm:$0xff] %v6136
          %6649 = vst [vmem:[#allocation2 + $0xc98] sm:$0xff] %v6137
          %6650 = vst [vmem:[#allocation2 + $0xca0] sm:$0xff] %v6138
          %6651 = vst [vmem:[#allocation2 + $0xca8] sm:$0xff] %v6139
          %6652 = vst [vmem:[#allocation2 + $0xcb0] sm:$0xff] %v6140
          %6653 = vst [vmem:[#allocation2 + $0xcb8] sm:$0xff] %v6141
          %6654 = vst [vmem:[#allocation2 + $0xcc0] sm:$0xff] %v6142
          %6655 = vst [vmem:[#allocation2 + $0xcc8] sm:$0xff] %v6143
          %6656 = vst [vmem:[#allocation2 + $0xcd0] sm:$0xff] %v6144
          %6657 = vst [vmem:[#allocation2 + $0xcd8] sm:$0xff] %v6145
          %6658 = vst [vmem:[#allocation2 + $0xce0] sm:$0xff] %v6146
          %6659 = vst [vmem:[#allocation2 + $0xce8] sm:$0xff] %v6147
          %6660 = vst [vmem:[#allocation2 + $0xcf0] sm:$0xff] %v6148
          %6661 = vst [vmem:[#allocation2 + $0xcf8] sm:$0xff] %v6149
          %6662 = vst [vmem:[#allocation2 + $0xd00] sm:$0xff] %v6150
          %6663 = vst [vmem:[#allocation2 + $0xd08] sm:$0xff] %v6151
          %6664 = vst [vmem:[#allocation2 + $0xd10] sm:$0xff] %v6152
          %6665 = vst [vmem:[#allocation2 + $0xd18] sm:$0xff] %v6153
          %6666 = vst [vmem:[#allocation2 + $0xd20] sm:$0xff] %v6154
          %6667 = vst [vmem:[#allocation2 + $0xd28] sm:$0xff] %v6155
          %6668 = vst [vmem:[#allocation2 + $0xd30] sm:$0xff] %v6156
          %6669 = vst [vmem:[#allocation2 + $0xd38] sm:$0xff] %v6157
          %6670 = vst [vmem:[#allocation2 + $0xd40] sm:$0xff] %v6158
          %6671 = vst [vmem:[#allocation2 + $0xd48] sm:$0xff] %v6159
          %6672 = vst [vmem:[#allocation2 + $0xd50] sm:$0xff] %v6160
          %6673 = vst [vmem:[#allocation2 + $0xd58] sm:$0xff] %v6161
          %6674 = vst [vmem:[#allocation2 + $0xd60] sm:$0xff] %v6162
          %6675 = vst [vmem:[#allocation2 + $0xd68] sm:$0xff] %v6163
          %6676 = vst [vmem:[#allocation2 + $0xd70] sm:$0xff] %v6164
          %6677 = vst [vmem:[#allocation2 + $0xd78] sm:$0xff] %v6165
          %6678 = vst [vmem:[#allocation2 + $0xd80] sm:$0xff] %v6166
          %6679 = vst [vmem:[#allocation2 + $0xd88] sm:$0xff] %v6167
          %6680 = vst [vmem:[#allocation2 + $0xd90] sm:$0xff] %v6168
          %6681 = vst [vmem:[#allocation2 + $0xd98] sm:$0xff] %v6169
          %6682 = vst [vmem:[#allocation2 + $0xda0] sm:$0xff] %v6170
          %6683 = vst [vmem:[#allocation2 + $0xda8] sm:$0xff] %v6171
          %6684 = vst [vmem:[#allocation2 + $0xdb0] sm:$0xff] %v6172
          %6685 = vst [vmem:[#allocation2 + $0xdb8] sm:$0xff] %v6173
          %6686 = vst [vmem:[#allocation2 + $0xdc0] sm:$0xff] %v6174
          %6687 = vst [vmem:[#allocation2 + $0xdc8] sm:$0xff] %v6175
          %6688 = vst [vmem:[#allocation2 + $0xdd0] sm:$0xff] %v6176
          %6689 = vst [vmem:[#allocation2 + $0xdd8] sm:$0xff] %v6177
          %6690 = vst [vmem:[#allocation2 + $0xde0] sm:$0xff] %v6178
          %6691 = vst [vmem:[#allocation2 + $0xde8] sm:$0xff] %v6179
          %6692 = vst [vmem:[#allocation2 + $0xdf0] sm:$0xff] %v6180
          %6693 = vst [vmem:[#allocation2 + $0xdf8] sm:$0xff] %v6181
          %6694 = vst [vmem:[#allocation2 + $0xe00] sm:$0xff] %v6182
          %6695 = vst [vmem:[#allocation2 + $0xe08] sm:$0xff] %v6183
          %6696 = vst [vmem:[#allocation2 + $0xe10] sm:$0xff] %v6184
          %6697 = vst [vmem:[#allocation2 + $0xe18] sm:$0xff] %v6185
          %6698 = vst [vmem:[#allocation2 + $0xe20] sm:$0xff] %v6186
          %6699 = vst [vmem:[#allocation2 + $0xe28] sm:$0xff] %v6187
          %6700 = vst [vmem:[#allocation2 + $0xe30] sm:$0xff] %v6188
          %6701 = vst [vmem:[#allocation2 + $0xe38] sm:$0xff] %v6189
          %6702 = vst [vmem:[#allocation2 + $0xe40] sm:$0xff] %v6190
          %6703 = vst [vmem:[#allocation2 + $0xe48] sm:$0xff] %v6191
          %6704 = vst [vmem:[#allocation2 + $0xe50] sm:$0xff] %v6192
          %6705 = vst [vmem:[#allocation2 + $0xe58] sm:$0xff] %v6193
          %6706 = vst [vmem:[#allocation2 + $0xe60] sm:$0xff] %v6194
          %6707 = vst [vmem:[#allocation2 + $0xe68] sm:$0xff] %v6195
          %6708 = vst [vmem:[#allocation2 + $0xe70] sm:$0xff] %v6196
          %6709 = vst [vmem:[#allocation2 + $0xe78] sm:$0xff] %v6197
          %6710 = vst [vmem:[#allocation2 + $0xe80] sm:$0xff] %v6198
          %6711 = vst [vmem:[#allocation2 + $0xe88] sm:$0xff] %v6199
          %6712 = vst [vmem:[#allocation2 + $0xe90] sm:$0xff] %v6200
          %6713 = vst [vmem:[#allocation2 + $0xe98] sm:$0xff] %v6201
          %6714 = vst [vmem:[#allocation2 + $0xea0] sm:$0xff] %v6202
          %6715 = vst [vmem:[#allocation2 + $0xea8] sm:$0xff] %v6203
          %6716 = vst [vmem:[#allocation2 + $0xeb0] sm:$0xff] %v6204
          %6717 = vst [vmem:[#allocation2 + $0xeb8] sm:$0xff] %v6205
          %6718 = vst [vmem:[#allocation2 + $0xec0] sm:$0xff] %v6206
          %6719 = vst [vmem:[#allocation2 + $0xec8] sm:$0xff] %v6207
          %6720 = vst [vmem:[#allocation2 + $0xed0] sm:$0xff] %v6208
          %6721 = vst [vmem:[#allocation2 + $0xed8] sm:$0xff] %v6209
          %6722 = vst [vmem:[#allocation2 + $0xee0] sm:$0xff] %v6210
          %6723 = vst [vmem:[#allocation2 + $0xee8] sm:$0xff] %v6211
          %6724 = vst [vmem:[#allocation2 + $0xef0] sm:$0xff] %v6212
          %6725 = vst [vmem:[#allocation2 + $0xef8] sm:$0xff] %v6213
          %6726 = vst [vmem:[#allocation2 + $0xf00] sm:$0xff] %v6214
          %6727 = vst [vmem:[#allocation2 + $0xf08] sm:$0xff] %v6215
          %6728 = vst [vmem:[#allocation2 + $0xf10] sm:$0xff] %v6216
          %6729 = vst [vmem:[#allocation2 + $0xf18] sm:$0xff] %v6217
          %6730 = vst [vmem:[#allocation2 + $0xf20] sm:$0xff] %v6218
          %6731 = vst [vmem:[#allocation2 + $0xf28] sm:$0xff] %v6219
          %6732 = vst [vmem:[#allocation2 + $0xf30] sm:$0xff] %v6220
          %6733 = vst [vmem:[#allocation2 + $0xf38] sm:$0xff] %v6221
          %6734 = vst [vmem:[#allocation2 + $0xf40] sm:$0xff] %v6222
          %6735 = vst [vmem:[#allocation2 + $0xf48] sm:$0xff] %v6223
          %6736 = vst [vmem:[#allocation2 + $0xf50] sm:$0xff] %v6224
          %6737 = vst [vmem:[#allocation2 + $0xf58] sm:$0xff] %v6225
          %6738 = vst [vmem:[#allocation2 + $0xf60] sm:$0xff] %v6226
          %6739 = vst [vmem:[#allocation2 + $0xf68] sm:$0xff] %v6227
          %6740 = vst [vmem:[#allocation2 + $0xf70] sm:$0xff] %v6228
          %6741 = vst [vmem:[#allocation2 + $0xf78] sm:$0xff] %v6229
          %6742 = vst [vmem:[#allocation2 + $0xf80] sm:$0xff] %v6230
          %6743 = vst [vmem:[#allocation2 + $0xf88] sm:$0xff] %v6231
          %6744 = vst [vmem:[#allocation2 + $0xf90] sm:$0xff] %v6232
          %6745 = vst [vmem:[#allocation2 + $0xf98] sm:$0xff] %v6233
          %6746 = vst [vmem:[#allocation2 + $0xfa0] sm:$0xff] %v6234
          %6747 = vst [vmem:[#allocation2 + $0xfa8] sm:$0xff] %v6235
          %6748 = vst [vmem:[#allocation2 + $0xfb0] sm:$0xff] %v6236
          %6749 = vst [vmem:[#allocation2 + $0xfb8] sm:$0xff] %v6237
          %6750 = vst [vmem:[#allocation2 + $0xfc0] sm:$0xff] %v6238
          %6751 = vst [vmem:[#allocation2 + $0xfc8] sm:$0xff] %v6239
          %6752 = vst [vmem:[#allocation2 + $0xfd0] sm:$0xff] %v6240
          %6753 = vst [vmem:[#allocation2 + $0xfd8] sm:$0xff] %v6241
          %6754 = vst [vmem:[#allocation2 + $0xfe0] sm:$0xff] %v6242
          %6755 = vst [vmem:[#allocation2 + $0xfe8] sm:$0xff] %v6243
          %6756 = vst [vmem:[#allocation2 + $0xff0] sm:$0xff] %v6244
          %6757 = vst [vmem:[#allocation2 + $0xff8] sm:$0xff] %v6245
        $region52: #{tpu_custom_call.1} parent=31 // pred_fallthru
          _
        %p6758 = scmp.eq.s32.totalorder %s30, 1
        // Predicated region
        $region53: #{tpu_custom_call.1} parent=31 // pred_check
          %p6759 = pneg %p6758
        $region54: #{tpu_custom_call.1} parent=31 // pred_check_branch
          %6761 = sbr.rel (%p6759) target = $region56
        $region55: #{tpu_custom_call.1} parent=31 // pred_region
          %v6762 = vld [vmem:[#allocation2] sm:$0xff]
          %v6763 = vld [vmem:[#allocation2 + $0x8] sm:$0xff]
          %v6764 = vld [vmem:[#allocation2 + $0x10] sm:$0xff]
          %v6765 = vld [vmem:[#allocation2 + $0x18] sm:$0xff]
          %v6766 = vld [vmem:[#allocation2 + $0x20] sm:$0xff]
          %v6767 = vld [vmem:[#allocation2 + $0x28] sm:$0xff]
          %v6768 = vld [vmem:[#allocation2 + $0x30] sm:$0xff]
          %v6769 = vld [vmem:[#allocation2 + $0x38] sm:$0xff]
          %v6770 = vld [vmem:[#allocation2 + $0x40] sm:$0xff]
          %v6771 = vld [vmem:[#allocation2 + $0x48] sm:$0xff]
          %v6772 = vld [vmem:[#allocation2 + $0x50] sm:$0xff]
          %v6773 = vld [vmem:[#allocation2 + $0x58] sm:$0xff]
          %v6774 = vld [vmem:[#allocation2 + $0x60] sm:$0xff]
          %v6775 = vld [vmem:[#allocation2 + $0x68] sm:$0xff]
          %v6776 = vld [vmem:[#allocation2 + $0x70] sm:$0xff]
          %v6777 = vld [vmem:[#allocation2 + $0x78] sm:$0xff]
          %v6778 = vld [vmem:[#allocation2 + $0x80] sm:$0xff]
          %v6779 = vld [vmem:[#allocation2 + $0x88] sm:$0xff]
          %v6780 = vld [vmem:[#allocation2 + $0x90] sm:$0xff]
          %v6781 = vld [vmem:[#allocation2 + $0x98] sm:$0xff]
          %v6782 = vld [vmem:[#allocation2 + $0xa0] sm:$0xff]
          %v6783 = vld [vmem:[#allocation2 + $0xa8] sm:$0xff]
          %v6784 = vld [vmem:[#allocation2 + $0xb0] sm:$0xff]
          %v6785 = vld [vmem:[#allocation2 + $0xb8] sm:$0xff]
          %v6786 = vld [vmem:[#allocation2 + $0xc0] sm:$0xff]
          %v6787 = vld [vmem:[#allocation2 + $0xc8] sm:$0xff]
          %v6788 = vld [vmem:[#allocation2 + $0xd0] sm:$0xff]
          %v6789 = vld [vmem:[#allocation2 + $0xd8] sm:$0xff]
          %v6790 = vld [vmem:[#allocation2 + $0xe0] sm:$0xff]
          %v6791 = vld [vmem:[#allocation2 + $0xe8] sm:$0xff]
          %v6792 = vld [vmem:[#allocation2 + $0xf0] sm:$0xff]
          %v6793 = vld [vmem:[#allocation2 + $0xf8] sm:$0xff]
          %v6794 = vld [vmem:[#allocation2 + $0x100] sm:$0xff]
          %v6795 = vld [vmem:[#allocation2 + $0x108] sm:$0xff]
          %v6796 = vld [vmem:[#allocation2 + $0x110] sm:$0xff]
          %v6797 = vld [vmem:[#allocation2 + $0x118] sm:$0xff]
          %v6798 = vld [vmem:[#allocation2 + $0x120] sm:$0xff]
          %v6799 = vld [vmem:[#allocation2 + $0x128] sm:$0xff]
          %v6800 = vld [vmem:[#allocation2 + $0x130] sm:$0xff]
          %v6801 = vld [vmem:[#allocation2 + $0x138] sm:$0xff]
          %v6802 = vld [vmem:[#allocation2 + $0x140] sm:$0xff]
          %v6803 = vld [vmem:[#allocation2 + $0x148] sm:$0xff]
          %v6804 = vld [vmem:[#allocation2 + $0x150] sm:$0xff]
          %v6805 = vld [vmem:[#allocation2 + $0x158] sm:$0xff]
          %v6806 = vld [vmem:[#allocation2 + $0x160] sm:$0xff]
          %v6807 = vld [vmem:[#allocation2 + $0x168] sm:$0xff]
          %v6808 = vld [vmem:[#allocation2 + $0x170] sm:$0xff]
          %v6809 = vld [vmem:[#allocation2 + $0x178] sm:$0xff]
          %v6810 = vld [vmem:[#allocation2 + $0x180] sm:$0xff]
          %v6811 = vld [vmem:[#allocation2 + $0x188] sm:$0xff]
          %v6812 = vld [vmem:[#allocation2 + $0x190] sm:$0xff]
          %v6813 = vld [vmem:[#allocation2 + $0x198] sm:$0xff]
          %v6814 = vld [vmem:[#allocation2 + $0x1a0] sm:$0xff]
          %v6815 = vld [vmem:[#allocation2 + $0x1a8] sm:$0xff]
          %v6816 = vld [vmem:[#allocation2 + $0x1b0] sm:$0xff]
          %v6817 = vld [vmem:[#allocation2 + $0x1b8] sm:$0xff]
          %v6818 = vld [vmem:[#allocation2 + $0x1c0] sm:$0xff]
          %v6819 = vld [vmem:[#allocation2 + $0x1c8] sm:$0xff]
          %v6820 = vld [vmem:[#allocation2 + $0x1d0] sm:$0xff]
          %v6821 = vld [vmem:[#allocation2 + $0x1d8] sm:$0xff]
          %v6822 = vld [vmem:[#allocation2 + $0x1e0] sm:$0xff]
          %v6823 = vld [vmem:[#allocation2 + $0x1e8] sm:$0xff]
          %v6824 = vld [vmem:[#allocation2 + $0x1f0] sm:$0xff]
          %v6825 = vld [vmem:[#allocation2 + $0x1f8] sm:$0xff]
          %v6826 = vld [vmem:[#allocation2 + $0x200] sm:$0xff]
          %v6827 = vld [vmem:[#allocation2 + $0x208] sm:$0xff]
          %v6828 = vld [vmem:[#allocation2 + $0x210] sm:$0xff]
          %v6829 = vld [vmem:[#allocation2 + $0x218] sm:$0xff]
          %v6830 = vld [vmem:[#allocation2 + $0x220] sm:$0xff]
          %v6831 = vld [vmem:[#allocation2 + $0x228] sm:$0xff]
          %v6832 = vld [vmem:[#allocation2 + $0x230] sm:$0xff]
          %v6833 = vld [vmem:[#allocation2 + $0x238] sm:$0xff]
          %v6834 = vld [vmem:[#allocation2 + $0x240] sm:$0xff]
          %v6835 = vld [vmem:[#allocation2 + $0x248] sm:$0xff]
          %v6836 = vld [vmem:[#allocation2 + $0x250] sm:$0xff]
          %v6837 = vld [vmem:[#allocation2 + $0x258] sm:$0xff]
          %v6838 = vld [vmem:[#allocation2 + $0x260] sm:$0xff]
          %v6839 = vld [vmem:[#allocation2 + $0x268] sm:$0xff]
          %v6840 = vld [vmem:[#allocation2 + $0x270] sm:$0xff]
          %v6841 = vld [vmem:[#allocation2 + $0x278] sm:$0xff]
          %v6842 = vld [vmem:[#allocation2 + $0x280] sm:$0xff]
          %v6843 = vld [vmem:[#allocation2 + $0x288] sm:$0xff]
          %v6844 = vld [vmem:[#allocation2 + $0x290] sm:$0xff]
          %v6845 = vld [vmem:[#allocation2 + $0x298] sm:$0xff]
          %v6846 = vld [vmem:[#allocation2 + $0x2a0] sm:$0xff]
          %v6847 = vld [vmem:[#allocation2 + $0x2a8] sm:$0xff]
          %v6848 = vld [vmem:[#allocation2 + $0x2b0] sm:$0xff]
          %v6849 = vld [vmem:[#allocation2 + $0x2b8] sm:$0xff]
          %v6850 = vld [vmem:[#allocation2 + $0x2c0] sm:$0xff]
          %v6851 = vld [vmem:[#allocation2 + $0x2c8] sm:$0xff]
          %v6852 = vld [vmem:[#allocation2 + $0x2d0] sm:$0xff]
          %v6853 = vld [vmem:[#allocation2 + $0x2d8] sm:$0xff]
          %v6854 = vld [vmem:[#allocation2 + $0x2e0] sm:$0xff]
          %v6855 = vld [vmem:[#allocation2 + $0x2e8] sm:$0xff]
          %v6856 = vld [vmem:[#allocation2 + $0x2f0] sm:$0xff]
          %v6857 = vld [vmem:[#allocation2 + $0x2f8] sm:$0xff]
          %v6858 = vld [vmem:[#allocation2 + $0x300] sm:$0xff]
          %v6859 = vld [vmem:[#allocation2 + $0x308] sm:$0xff]
          %v6860 = vld [vmem:[#allocation2 + $0x310] sm:$0xff]
          %v6861 = vld [vmem:[#allocation2 + $0x318] sm:$0xff]
          %v6862 = vld [vmem:[#allocation2 + $0x320] sm:$0xff]
          %v6863 = vld [vmem:[#allocation2 + $0x328] sm:$0xff]
          %v6864 = vld [vmem:[#allocation2 + $0x330] sm:$0xff]
          %v6865 = vld [vmem:[#allocation2 + $0x338] sm:$0xff]
          %v6866 = vld [vmem:[#allocation2 + $0x340] sm:$0xff]
          %v6867 = vld [vmem:[#allocation2 + $0x348] sm:$0xff]
          %v6868 = vld [vmem:[#allocation2 + $0x350] sm:$0xff]
          %v6869 = vld [vmem:[#allocation2 + $0x358] sm:$0xff]
          %v6870 = vld [vmem:[#allocation2 + $0x360] sm:$0xff]
          %v6871 = vld [vmem:[#allocation2 + $0x368] sm:$0xff]
          %v6872 = vld [vmem:[#allocation2 + $0x370] sm:$0xff]
          %v6873 = vld [vmem:[#allocation2 + $0x378] sm:$0xff]
          %v6874 = vld [vmem:[#allocation2 + $0x380] sm:$0xff]
          %v6875 = vld [vmem:[#allocation2 + $0x388] sm:$0xff]
          %v6876 = vld [vmem:[#allocation2 + $0x390] sm:$0xff]
          %v6877 = vld [vmem:[#allocation2 + $0x398] sm:$0xff]
          %v6878 = vld [vmem:[#allocation2 + $0x3a0] sm:$0xff]
          %v6879 = vld [vmem:[#allocation2 + $0x3a8] sm:$0xff]
          %v6880 = vld [vmem:[#allocation2 + $0x3b0] sm:$0xff]
          %v6881 = vld [vmem:[#allocation2 + $0x3b8] sm:$0xff]
          %v6882 = vld [vmem:[#allocation2 + $0x3c0] sm:$0xff]
          %v6883 = vld [vmem:[#allocation2 + $0x3c8] sm:$0xff]
          %v6884 = vld [vmem:[#allocation2 + $0x3d0] sm:$0xff]
          %v6885 = vld [vmem:[#allocation2 + $0x3d8] sm:$0xff]
          %v6886 = vld [vmem:[#allocation2 + $0x3e0] sm:$0xff]
          %v6887 = vld [vmem:[#allocation2 + $0x3e8] sm:$0xff]
          %v6888 = vld [vmem:[#allocation2 + $0x3f0] sm:$0xff]
          %v6889 = vld [vmem:[#allocation2 + $0x3f8] sm:$0xff]
          %v6890 = vld [vmem:[#allocation2 + $0x400] sm:$0xff]
          %v6891 = vld [vmem:[#allocation2 + $0x408] sm:$0xff]
          %v6892 = vld [vmem:[#allocation2 + $0x410] sm:$0xff]
          %v6893 = vld [vmem:[#allocation2 + $0x418] sm:$0xff]
          %v6894 = vld [vmem:[#allocation2 + $0x420] sm:$0xff]
          %v6895 = vld [vmem:[#allocation2 + $0x428] sm:$0xff]
          %v6896 = vld [vmem:[#allocation2 + $0x430] sm:$0xff]
          %v6897 = vld [vmem:[#allocation2 + $0x438] sm:$0xff]
          %v6898 = vld [vmem:[#allocation2 + $0x440] sm:$0xff]
          %v6899 = vld [vmem:[#allocation2 + $0x448] sm:$0xff]
          %v6900 = vld [vmem:[#allocation2 + $0x450] sm:$0xff]
          %v6901 = vld [vmem:[#allocation2 + $0x458] sm:$0xff]
          %v6902 = vld [vmem:[#allocation2 + $0x460] sm:$0xff]
          %v6903 = vld [vmem:[#allocation2 + $0x468] sm:$0xff]
          %v6904 = vld [vmem:[#allocation2 + $0x470] sm:$0xff]
          %v6905 = vld [vmem:[#allocation2 + $0x478] sm:$0xff]
          %v6906 = vld [vmem:[#allocation2 + $0x480] sm:$0xff]
          %v6907 = vld [vmem:[#allocation2 + $0x488] sm:$0xff]
          %v6908 = vld [vmem:[#allocation2 + $0x490] sm:$0xff]
          %v6909 = vld [vmem:[#allocation2 + $0x498] sm:$0xff]
          %v6910 = vld [vmem:[#allocation2 + $0x4a0] sm:$0xff]
          %v6911 = vld [vmem:[#allocation2 + $0x4a8] sm:$0xff]
          %v6912 = vld [vmem:[#allocation2 + $0x4b0] sm:$0xff]
          %v6913 = vld [vmem:[#allocation2 + $0x4b8] sm:$0xff]
          %v6914 = vld [vmem:[#allocation2 + $0x4c0] sm:$0xff]
          %v6915 = vld [vmem:[#allocation2 + $0x4c8] sm:$0xff]
          %v6916 = vld [vmem:[#allocation2 + $0x4d0] sm:$0xff]
          %v6917 = vld [vmem:[#allocation2 + $0x4d8] sm:$0xff]
          %v6918 = vld [vmem:[#allocation2 + $0x4e0] sm:$0xff]
          %v6919 = vld [vmem:[#allocation2 + $0x4e8] sm:$0xff]
          %v6920 = vld [vmem:[#allocation2 + $0x4f0] sm:$0xff]
          %v6921 = vld [vmem:[#allocation2 + $0x4f8] sm:$0xff]
          %v6922 = vld [vmem:[#allocation2 + $0x500] sm:$0xff]
          %v6923 = vld [vmem:[#allocation2 + $0x508] sm:$0xff]
          %v6924 = vld [vmem:[#allocation2 + $0x510] sm:$0xff]
          %v6925 = vld [vmem:[#allocation2 + $0x518] sm:$0xff]
          %v6926 = vld [vmem:[#allocation2 + $0x520] sm:$0xff]
          %v6927 = vld [vmem:[#allocation2 + $0x528] sm:$0xff]
          %v6928 = vld [vmem:[#allocation2 + $0x530] sm:$0xff]
          %v6929 = vld [vmem:[#allocation2 + $0x538] sm:$0xff]
          %v6930 = vld [vmem:[#allocation2 + $0x540] sm:$0xff]
          %v6931 = vld [vmem:[#allocation2 + $0x548] sm:$0xff]
          %v6932 = vld [vmem:[#allocation2 + $0x550] sm:$0xff]
          %v6933 = vld [vmem:[#allocation2 + $0x558] sm:$0xff]
          %v6934 = vld [vmem:[#allocation2 + $0x560] sm:$0xff]
          %v6935 = vld [vmem:[#allocation2 + $0x568] sm:$0xff]
          %v6936 = vld [vmem:[#allocation2 + $0x570] sm:$0xff]
          %v6937 = vld [vmem:[#allocation2 + $0x578] sm:$0xff]
          %v6938 = vld [vmem:[#allocation2 + $0x580] sm:$0xff]
          %v6939 = vld [vmem:[#allocation2 + $0x588] sm:$0xff]
          %v6940 = vld [vmem:[#allocation2 + $0x590] sm:$0xff]
          %v6941 = vld [vmem:[#allocation2 + $0x598] sm:$0xff]
          %v6942 = vld [vmem:[#allocation2 + $0x5a0] sm:$0xff]
          %v6943 = vld [vmem:[#allocation2 + $0x5a8] sm:$0xff]
          %v6944 = vld [vmem:[#allocation2 + $0x5b0] sm:$0xff]
          %v6945 = vld [vmem:[#allocation2 + $0x5b8] sm:$0xff]
          %v6946 = vld [vmem:[#allocation2 + $0x5c0] sm:$0xff]
          %v6947 = vld [vmem:[#allocation2 + $0x5c8] sm:$0xff]
          %v6948 = vld [vmem:[#allocation2 + $0x5d0] sm:$0xff]
          %v6949 = vld [vmem:[#allocation2 + $0x5d8] sm:$0xff]
          %v6950 = vld [vmem:[#allocation2 + $0x5e0] sm:$0xff]
          %v6951 = vld [vmem:[#allocation2 + $0x5e8] sm:$0xff]
          %v6952 = vld [vmem:[#allocation2 + $0x5f0] sm:$0xff]
          %v6953 = vld [vmem:[#allocation2 + $0x5f8] sm:$0xff]
          %v6954 = vld [vmem:[#allocation2 + $0x600] sm:$0xff]
          %v6955 = vld [vmem:[#allocation2 + $0x608] sm:$0xff]
          %v6956 = vld [vmem:[#allocation2 + $0x610] sm:$0xff]
          %v6957 = vld [vmem:[#allocation2 + $0x618] sm:$0xff]
          %v6958 = vld [vmem:[#allocation2 + $0x620] sm:$0xff]
          %v6959 = vld [vmem:[#allocation2 + $0x628] sm:$0xff]
          %v6960 = vld [vmem:[#allocation2 + $0x630] sm:$0xff]
          %v6961 = vld [vmem:[#allocation2 + $0x638] sm:$0xff]
          %v6962 = vld [vmem:[#allocation2 + $0x640] sm:$0xff]
          %v6963 = vld [vmem:[#allocation2 + $0x648] sm:$0xff]
          %v6964 = vld [vmem:[#allocation2 + $0x650] sm:$0xff]
          %v6965 = vld [vmem:[#allocation2 + $0x658] sm:$0xff]
          %v6966 = vld [vmem:[#allocation2 + $0x660] sm:$0xff]
          %v6967 = vld [vmem:[#allocation2 + $0x668] sm:$0xff]
          %v6968 = vld [vmem:[#allocation2 + $0x670] sm:$0xff]
          %v6969 = vld [vmem:[#allocation2 + $0x678] sm:$0xff]
          %v6970 = vld [vmem:[#allocation2 + $0x680] sm:$0xff]
          %v6971 = vld [vmem:[#allocation2 + $0x688] sm:$0xff]
          %v6972 = vld [vmem:[#allocation2 + $0x690] sm:$0xff]
          %v6973 = vld [vmem:[#allocation2 + $0x698] sm:$0xff]
          %v6974 = vld [vmem:[#allocation2 + $0x6a0] sm:$0xff]
          %v6975 = vld [vmem:[#allocation2 + $0x6a8] sm:$0xff]
          %v6976 = vld [vmem:[#allocation2 + $0x6b0] sm:$0xff]
          %v6977 = vld [vmem:[#allocation2 + $0x6b8] sm:$0xff]
          %v6978 = vld [vmem:[#allocation2 + $0x6c0] sm:$0xff]
          %v6979 = vld [vmem:[#allocation2 + $0x6c8] sm:$0xff]
          %v6980 = vld [vmem:[#allocation2 + $0x6d0] sm:$0xff]
          %v6981 = vld [vmem:[#allocation2 + $0x6d8] sm:$0xff]
          %v6982 = vld [vmem:[#allocation2 + $0x6e0] sm:$0xff]
          %v6983 = vld [vmem:[#allocation2 + $0x6e8] sm:$0xff]
          %v6984 = vld [vmem:[#allocation2 + $0x6f0] sm:$0xff]
          %v6985 = vld [vmem:[#allocation2 + $0x6f8] sm:$0xff]
          %v6986 = vld [vmem:[#allocation2 + $0x700] sm:$0xff]
          %v6987 = vld [vmem:[#allocation2 + $0x708] sm:$0xff]
          %v6988 = vld [vmem:[#allocation2 + $0x710] sm:$0xff]
          %v6989 = vld [vmem:[#allocation2 + $0x718] sm:$0xff]
          %v6990 = vld [vmem:[#allocation2 + $0x720] sm:$0xff]
          %v6991 = vld [vmem:[#allocation2 + $0x728] sm:$0xff]
          %v6992 = vld [vmem:[#allocation2 + $0x730] sm:$0xff]
          %v6993 = vld [vmem:[#allocation2 + $0x738] sm:$0xff]
          %v6994 = vld [vmem:[#allocation2 + $0x740] sm:$0xff]
          %v6995 = vld [vmem:[#allocation2 + $0x748] sm:$0xff]
          %v6996 = vld [vmem:[#allocation2 + $0x750] sm:$0xff]
          %v6997 = vld [vmem:[#allocation2 + $0x758] sm:$0xff]
          %v6998 = vld [vmem:[#allocation2 + $0x760] sm:$0xff]
          %v6999 = vld [vmem:[#allocation2 + $0x768] sm:$0xff]
          %v7000 = vld [vmem:[#allocation2 + $0x770] sm:$0xff]
          %v7001 = vld [vmem:[#allocation2 + $0x778] sm:$0xff]
          %v7002 = vld [vmem:[#allocation2 + $0x780] sm:$0xff]
          %v7003 = vld [vmem:[#allocation2 + $0x788] sm:$0xff]
          %v7004 = vld [vmem:[#allocation2 + $0x790] sm:$0xff]
          %v7005 = vld [vmem:[#allocation2 + $0x798] sm:$0xff]
          %v7006 = vld [vmem:[#allocation2 + $0x7a0] sm:$0xff]
          %v7007 = vld [vmem:[#allocation2 + $0x7a8] sm:$0xff]
          %v7008 = vld [vmem:[#allocation2 + $0x7b0] sm:$0xff]
          %v7009 = vld [vmem:[#allocation2 + $0x7b8] sm:$0xff]
          %v7010 = vld [vmem:[#allocation2 + $0x7c0] sm:$0xff]
          %v7011 = vld [vmem:[#allocation2 + $0x7c8] sm:$0xff]
          %v7012 = vld [vmem:[#allocation2 + $0x7d0] sm:$0xff]
          %v7013 = vld [vmem:[#allocation2 + $0x7d8] sm:$0xff]
          %v7014 = vld [vmem:[#allocation2 + $0x7e0] sm:$0xff]
          %v7015 = vld [vmem:[#allocation2 + $0x7e8] sm:$0xff]
          %v7016 = vld [vmem:[#allocation2 + $0x7f0] sm:$0xff]
          %v7017 = vld [vmem:[#allocation2 + $0x7f8] sm:$0xff]
          %v7018 = vld [vmem:[#allocation2 + $0x800] sm:$0xff]
          %v7019 = vld [vmem:[#allocation2 + $0x808] sm:$0xff]
          %v7020 = vld [vmem:[#allocation2 + $0x810] sm:$0xff]
          %v7021 = vld [vmem:[#allocation2 + $0x818] sm:$0xff]
          %v7022 = vld [vmem:[#allocation2 + $0x820] sm:$0xff]
          %v7023 = vld [vmem:[#allocation2 + $0x828] sm:$0xff]
          %v7024 = vld [vmem:[#allocation2 + $0x830] sm:$0xff]
          %v7025 = vld [vmem:[#allocation2 + $0x838] sm:$0xff]
          %v7026 = vld [vmem:[#allocation2 + $0x840] sm:$0xff]
          %v7027 = vld [vmem:[#allocation2 + $0x848] sm:$0xff]
          %v7028 = vld [vmem:[#allocation2 + $0x850] sm:$0xff]
          %v7029 = vld [vmem:[#allocation2 + $0x858] sm:$0xff]
          %v7030 = vld [vmem:[#allocation2 + $0x860] sm:$0xff]
          %v7031 = vld [vmem:[#allocation2 + $0x868] sm:$0xff]
          %v7032 = vld [vmem:[#allocation2 + $0x870] sm:$0xff]
          %v7033 = vld [vmem:[#allocation2 + $0x878] sm:$0xff]
          %v7034 = vld [vmem:[#allocation2 + $0x880] sm:$0xff]
          %v7035 = vld [vmem:[#allocation2 + $0x888] sm:$0xff]
          %v7036 = vld [vmem:[#allocation2 + $0x890] sm:$0xff]
          %v7037 = vld [vmem:[#allocation2 + $0x898] sm:$0xff]
          %v7038 = vld [vmem:[#allocation2 + $0x8a0] sm:$0xff]
          %v7039 = vld [vmem:[#allocation2 + $0x8a8] sm:$0xff]
          %v7040 = vld [vmem:[#allocation2 + $0x8b0] sm:$0xff]
          %v7041 = vld [vmem:[#allocation2 + $0x8b8] sm:$0xff]
          %v7042 = vld [vmem:[#allocation2 + $0x8c0] sm:$0xff]
          %v7043 = vld [vmem:[#allocation2 + $0x8c8] sm:$0xff]
          %v7044 = vld [vmem:[#allocation2 + $0x8d0] sm:$0xff]
          %v7045 = vld [vmem:[#allocation2 + $0x8d8] sm:$0xff]
          %v7046 = vld [vmem:[#allocation2 + $0x8e0] sm:$0xff]
          %v7047 = vld [vmem:[#allocation2 + $0x8e8] sm:$0xff]
          %v7048 = vld [vmem:[#allocation2 + $0x8f0] sm:$0xff]
          %v7049 = vld [vmem:[#allocation2 + $0x8f8] sm:$0xff]
          %v7050 = vld [vmem:[#allocation2 + $0x900] sm:$0xff]
          %v7051 = vld [vmem:[#allocation2 + $0x908] sm:$0xff]
          %v7052 = vld [vmem:[#allocation2 + $0x910] sm:$0xff]
          %v7053 = vld [vmem:[#allocation2 + $0x918] sm:$0xff]
          %v7054 = vld [vmem:[#allocation2 + $0x920] sm:$0xff]
          %v7055 = vld [vmem:[#allocation2 + $0x928] sm:$0xff]
          %v7056 = vld [vmem:[#allocation2 + $0x930] sm:$0xff]
          %v7057 = vld [vmem:[#allocation2 + $0x938] sm:$0xff]
          %v7058 = vld [vmem:[#allocation2 + $0x940] sm:$0xff]
          %v7059 = vld [vmem:[#allocation2 + $0x948] sm:$0xff]
          %v7060 = vld [vmem:[#allocation2 + $0x950] sm:$0xff]
          %v7061 = vld [vmem:[#allocation2 + $0x958] sm:$0xff]
          %v7062 = vld [vmem:[#allocation2 + $0x960] sm:$0xff]
          %v7063 = vld [vmem:[#allocation2 + $0x968] sm:$0xff]
          %v7064 = vld [vmem:[#allocation2 + $0x970] sm:$0xff]
          %v7065 = vld [vmem:[#allocation2 + $0x978] sm:$0xff]
          %v7066 = vld [vmem:[#allocation2 + $0x980] sm:$0xff]
          %v7067 = vld [vmem:[#allocation2 + $0x988] sm:$0xff]
          %v7068 = vld [vmem:[#allocation2 + $0x990] sm:$0xff]
          %v7069 = vld [vmem:[#allocation2 + $0x998] sm:$0xff]
          %v7070 = vld [vmem:[#allocation2 + $0x9a0] sm:$0xff]
          %v7071 = vld [vmem:[#allocation2 + $0x9a8] sm:$0xff]
          %v7072 = vld [vmem:[#allocation2 + $0x9b0] sm:$0xff]
          %v7073 = vld [vmem:[#allocation2 + $0x9b8] sm:$0xff]
          %v7074 = vld [vmem:[#allocation2 + $0x9c0] sm:$0xff]
          %v7075 = vld [vmem:[#allocation2 + $0x9c8] sm:$0xff]
          %v7076 = vld [vmem:[#allocation2 + $0x9d0] sm:$0xff]
          %v7077 = vld [vmem:[#allocation2 + $0x9d8] sm:$0xff]
          %v7078 = vld [vmem:[#allocation2 + $0x9e0] sm:$0xff]
          %v7079 = vld [vmem:[#allocation2 + $0x9e8] sm:$0xff]
          %v7080 = vld [vmem:[#allocation2 + $0x9f0] sm:$0xff]
          %v7081 = vld [vmem:[#allocation2 + $0x9f8] sm:$0xff]
          %v7082 = vld [vmem:[#allocation2 + $0xa00] sm:$0xff]
          %v7083 = vld [vmem:[#allocation2 + $0xa08] sm:$0xff]
          %v7084 = vld [vmem:[#allocation2 + $0xa10] sm:$0xff]
          %v7085 = vld [vmem:[#allocation2 + $0xa18] sm:$0xff]
          %v7086 = vld [vmem:[#allocation2 + $0xa20] sm:$0xff]
          %v7087 = vld [vmem:[#allocation2 + $0xa28] sm:$0xff]
          %v7088 = vld [vmem:[#allocation2 + $0xa30] sm:$0xff]
          %v7089 = vld [vmem:[#allocation2 + $0xa38] sm:$0xff]
          %v7090 = vld [vmem:[#allocation2 + $0xa40] sm:$0xff]
          %v7091 = vld [vmem:[#allocation2 + $0xa48] sm:$0xff]
          %v7092 = vld [vmem:[#allocation2 + $0xa50] sm:$0xff]
          %v7093 = vld [vmem:[#allocation2 + $0xa58] sm:$0xff]
          %v7094 = vld [vmem:[#allocation2 + $0xa60] sm:$0xff]
          %v7095 = vld [vmem:[#allocation2 + $0xa68] sm:$0xff]
          %v7096 = vld [vmem:[#allocation2 + $0xa70] sm:$0xff]
          %v7097 = vld [vmem:[#allocation2 + $0xa78] sm:$0xff]
          %v7098 = vld [vmem:[#allocation2 + $0xa80] sm:$0xff]
          %v7099 = vld [vmem:[#allocation2 + $0xa88] sm:$0xff]
          %v7100 = vld [vmem:[#allocation2 + $0xa90] sm:$0xff]
          %v7101 = vld [vmem:[#allocation2 + $0xa98] sm:$0xff]
          %v7102 = vld [vmem:[#allocation2 + $0xaa0] sm:$0xff]
          %v7103 = vld [vmem:[#allocation2 + $0xaa8] sm:$0xff]
          %v7104 = vld [vmem:[#allocation2 + $0xab0] sm:$0xff]
          %v7105 = vld [vmem:[#allocation2 + $0xab8] sm:$0xff]
          %v7106 = vld [vmem:[#allocation2 + $0xac0] sm:$0xff]
          %v7107 = vld [vmem:[#allocation2 + $0xac8] sm:$0xff]
          %v7108 = vld [vmem:[#allocation2 + $0xad0] sm:$0xff]
          %v7109 = vld [vmem:[#allocation2 + $0xad8] sm:$0xff]
          %v7110 = vld [vmem:[#allocation2 + $0xae0] sm:$0xff]
          %v7111 = vld [vmem:[#allocation2 + $0xae8] sm:$0xff]
          %v7112 = vld [vmem:[#allocation2 + $0xaf0] sm:$0xff]
          %v7113 = vld [vmem:[#allocation2 + $0xaf8] sm:$0xff]
          %v7114 = vld [vmem:[#allocation2 + $0xb00] sm:$0xff]
          %v7115 = vld [vmem:[#allocation2 + $0xb08] sm:$0xff]
          %v7116 = vld [vmem:[#allocation2 + $0xb10] sm:$0xff]
          %v7117 = vld [vmem:[#allocation2 + $0xb18] sm:$0xff]
          %v7118 = vld [vmem:[#allocation2 + $0xb20] sm:$0xff]
          %v7119 = vld [vmem:[#allocation2 + $0xb28] sm:$0xff]
          %v7120 = vld [vmem:[#allocation2 + $0xb30] sm:$0xff]
          %v7121 = vld [vmem:[#allocation2 + $0xb38] sm:$0xff]
          %v7122 = vld [vmem:[#allocation2 + $0xb40] sm:$0xff]
          %v7123 = vld [vmem:[#allocation2 + $0xb48] sm:$0xff]
          %v7124 = vld [vmem:[#allocation2 + $0xb50] sm:$0xff]
          %v7125 = vld [vmem:[#allocation2 + $0xb58] sm:$0xff]
          %v7126 = vld [vmem:[#allocation2 + $0xb60] sm:$0xff]
          %v7127 = vld [vmem:[#allocation2 + $0xb68] sm:$0xff]
          %v7128 = vld [vmem:[#allocation2 + $0xb70] sm:$0xff]
          %v7129 = vld [vmem:[#allocation2 + $0xb78] sm:$0xff]
          %v7130 = vld [vmem:[#allocation2 + $0xb80] sm:$0xff]
          %v7131 = vld [vmem:[#allocation2 + $0xb88] sm:$0xff]
          %v7132 = vld [vmem:[#allocation2 + $0xb90] sm:$0xff]
          %v7133 = vld [vmem:[#allocation2 + $0xb98] sm:$0xff]
          %v7134 = vld [vmem:[#allocation2 + $0xba0] sm:$0xff]
          %v7135 = vld [vmem:[#allocation2 + $0xba8] sm:$0xff]
          %v7136 = vld [vmem:[#allocation2 + $0xbb0] sm:$0xff]
          %v7137 = vld [vmem:[#allocation2 + $0xbb8] sm:$0xff]
          %v7138 = vld [vmem:[#allocation2 + $0xbc0] sm:$0xff]
          %v7139 = vld [vmem:[#allocation2 + $0xbc8] sm:$0xff]
          %v7140 = vld [vmem:[#allocation2 + $0xbd0] sm:$0xff]
          %v7141 = vld [vmem:[#allocation2 + $0xbd8] sm:$0xff]
          %v7142 = vld [vmem:[#allocation2 + $0xbe0] sm:$0xff]
          %v7143 = vld [vmem:[#allocation2 + $0xbe8] sm:$0xff]
          %v7144 = vld [vmem:[#allocation2 + $0xbf0] sm:$0xff]
          %v7145 = vld [vmem:[#allocation2 + $0xbf8] sm:$0xff]
          %v7146 = vld [vmem:[#allocation2 + $0xc00] sm:$0xff]
          %v7147 = vld [vmem:[#allocation2 + $0xc08] sm:$0xff]
          %v7148 = vld [vmem:[#allocation2 + $0xc10] sm:$0xff]
          %v7149 = vld [vmem:[#allocation2 + $0xc18] sm:$0xff]
          %v7150 = vld [vmem:[#allocation2 + $0xc20] sm:$0xff]
          %v7151 = vld [vmem:[#allocation2 + $0xc28] sm:$0xff]
          %v7152 = vld [vmem:[#allocation2 + $0xc30] sm:$0xff]
          %v7153 = vld [vmem:[#allocation2 + $0xc38] sm:$0xff]
          %v7154 = vld [vmem:[#allocation2 + $0xc40] sm:$0xff]
          %v7155 = vld [vmem:[#allocation2 + $0xc48] sm:$0xff]
          %v7156 = vld [vmem:[#allocation2 + $0xc50] sm:$0xff]
          %v7157 = vld [vmem:[#allocation2 + $0xc58] sm:$0xff]
          %v7158 = vld [vmem:[#allocation2 + $0xc60] sm:$0xff]
          %v7159 = vld [vmem:[#allocation2 + $0xc68] sm:$0xff]
          %v7160 = vld [vmem:[#allocation2 + $0xc70] sm:$0xff]
          %v7161 = vld [vmem:[#allocation2 + $0xc78] sm:$0xff]
          %v7162 = vld [vmem:[#allocation2 + $0xc80] sm:$0xff]
          %v7163 = vld [vmem:[#allocation2 + $0xc88] sm:$0xff]
          %v7164 = vld [vmem:[#allocation2 + $0xc90] sm:$0xff]
          %v7165 = vld [vmem:[#allocation2 + $0xc98] sm:$0xff]
          %v7166 = vld [vmem:[#allocation2 + $0xca0] sm:$0xff]
          %v7167 = vld [vmem:[#allocation2 + $0xca8] sm:$0xff]
          %v7168 = vld [vmem:[#allocation2 + $0xcb0] sm:$0xff]
          %v7169 = vld [vmem:[#allocation2 + $0xcb8] sm:$0xff]
          %v7170 = vld [vmem:[#allocation2 + $0xcc0] sm:$0xff]
          %v7171 = vld [vmem:[#allocation2 + $0xcc8] sm:$0xff]
          %v7172 = vld [vmem:[#allocation2 + $0xcd0] sm:$0xff]
          %v7173 = vld [vmem:[#allocation2 + $0xcd8] sm:$0xff]
          %v7174 = vld [vmem:[#allocation2 + $0xce0] sm:$0xff]
          %v7175 = vld [vmem:[#allocation2 + $0xce8] sm:$0xff]
          %v7176 = vld [vmem:[#allocation2 + $0xcf0] sm:$0xff]
          %v7177 = vld [vmem:[#allocation2 + $0xcf8] sm:$0xff]
          %v7178 = vld [vmem:[#allocation2 + $0xd00] sm:$0xff]
          %v7179 = vld [vmem:[#allocation2 + $0xd08] sm:$0xff]
          %v7180 = vld [vmem:[#allocation2 + $0xd10] sm:$0xff]
          %v7181 = vld [vmem:[#allocation2 + $0xd18] sm:$0xff]
          %v7182 = vld [vmem:[#allocation2 + $0xd20] sm:$0xff]
          %v7183 = vld [vmem:[#allocation2 + $0xd28] sm:$0xff]
          %v7184 = vld [vmem:[#allocation2 + $0xd30] sm:$0xff]
          %v7185 = vld [vmem:[#allocation2 + $0xd38] sm:$0xff]
          %v7186 = vld [vmem:[#allocation2 + $0xd40] sm:$0xff]
          %v7187 = vld [vmem:[#allocation2 + $0xd48] sm:$0xff]
          %v7188 = vld [vmem:[#allocation2 + $0xd50] sm:$0xff]
          %v7189 = vld [vmem:[#allocation2 + $0xd58] sm:$0xff]
          %v7190 = vld [vmem:[#allocation2 + $0xd60] sm:$0xff]
          %v7191 = vld [vmem:[#allocation2 + $0xd68] sm:$0xff]
          %v7192 = vld [vmem:[#allocation2 + $0xd70] sm:$0xff]
          %v7193 = vld [vmem:[#allocation2 + $0xd78] sm:$0xff]
          %v7194 = vld [vmem:[#allocation2 + $0xd80] sm:$0xff]
          %v7195 = vld [vmem:[#allocation2 + $0xd88] sm:$0xff]
          %v7196 = vld [vmem:[#allocation2 + $0xd90] sm:$0xff]
          %v7197 = vld [vmem:[#allocation2 + $0xd98] sm:$0xff]
          %v7198 = vld [vmem:[#allocation2 + $0xda0] sm:$0xff]
          %v7199 = vld [vmem:[#allocation2 + $0xda8] sm:$0xff]
          %v7200 = vld [vmem:[#allocation2 + $0xdb0] sm:$0xff]
          %v7201 = vld [vmem:[#allocation2 + $0xdb8] sm:$0xff]
          %v7202 = vld [vmem:[#allocation2 + $0xdc0] sm:$0xff]
          %v7203 = vld [vmem:[#allocation2 + $0xdc8] sm:$0xff]
          %v7204 = vld [vmem:[#allocation2 + $0xdd0] sm:$0xff]
          %v7205 = vld [vmem:[#allocation2 + $0xdd8] sm:$0xff]
          %v7206 = vld [vmem:[#allocation2 + $0xde0] sm:$0xff]
          %v7207 = vld [vmem:[#allocation2 + $0xde8] sm:$0xff]
          %v7208 = vld [vmem:[#allocation2 + $0xdf0] sm:$0xff]
          %v7209 = vld [vmem:[#allocation2 + $0xdf8] sm:$0xff]
          %v7210 = vld [vmem:[#allocation2 + $0xe00] sm:$0xff]
          %v7211 = vld [vmem:[#allocation2 + $0xe08] sm:$0xff]
          %v7212 = vld [vmem:[#allocation2 + $0xe10] sm:$0xff]
          %v7213 = vld [vmem:[#allocation2 + $0xe18] sm:$0xff]
          %v7214 = vld [vmem:[#allocation2 + $0xe20] sm:$0xff]
          %v7215 = vld [vmem:[#allocation2 + $0xe28] sm:$0xff]
          %v7216 = vld [vmem:[#allocation2 + $0xe30] sm:$0xff]
          %v7217 = vld [vmem:[#allocation2 + $0xe38] sm:$0xff]
          %v7218 = vld [vmem:[#allocation2 + $0xe40] sm:$0xff]
          %v7219 = vld [vmem:[#allocation2 + $0xe48] sm:$0xff]
          %v7220 = vld [vmem:[#allocation2 + $0xe50] sm:$0xff]
          %v7221 = vld [vmem:[#allocation2 + $0xe58] sm:$0xff]
          %v7222 = vld [vmem:[#allocation2 + $0xe60] sm:$0xff]
          %v7223 = vld [vmem:[#allocation2 + $0xe68] sm:$0xff]
          %v7224 = vld [vmem:[#allocation2 + $0xe70] sm:$0xff]
          %v7225 = vld [vmem:[#allocation2 + $0xe78] sm:$0xff]
          %v7226 = vld [vmem:[#allocation2 + $0xe80] sm:$0xff]
          %v7227 = vld [vmem:[#allocation2 + $0xe88] sm:$0xff]
          %v7228 = vld [vmem:[#allocation2 + $0xe90] sm:$0xff]
          %v7229 = vld [vmem:[#allocation2 + $0xe98] sm:$0xff]
          %v7230 = vld [vmem:[#allocation2 + $0xea0] sm:$0xff]
          %v7231 = vld [vmem:[#allocation2 + $0xea8] sm:$0xff]
          %v7232 = vld [vmem:[#allocation2 + $0xeb0] sm:$0xff]
          %v7233 = vld [vmem:[#allocation2 + $0xeb8] sm:$0xff]
          %v7234 = vld [vmem:[#allocation2 + $0xec0] sm:$0xff]
          %v7235 = vld [vmem:[#allocation2 + $0xec8] sm:$0xff]
          %v7236 = vld [vmem:[#allocation2 + $0xed0] sm:$0xff]
          %v7237 = vld [vmem:[#allocation2 + $0xed8] sm:$0xff]
          %v7238 = vld [vmem:[#allocation2 + $0xee0] sm:$0xff]
          %v7239 = vld [vmem:[#allocation2 + $0xee8] sm:$0xff]
          %v7240 = vld [vmem:[#allocation2 + $0xef0] sm:$0xff]
          %v7241 = vld [vmem:[#allocation2 + $0xef8] sm:$0xff]
          %v7242 = vld [vmem:[#allocation2 + $0xf00] sm:$0xff]
          %v7243 = vld [vmem:[#allocation2 + $0xf08] sm:$0xff]
          %v7244 = vld [vmem:[#allocation2 + $0xf10] sm:$0xff]
          %v7245 = vld [vmem:[#allocation2 + $0xf18] sm:$0xff]
          %v7246 = vld [vmem:[#allocation2 + $0xf20] sm:$0xff]
          %v7247 = vld [vmem:[#allocation2 + $0xf28] sm:$0xff]
          %v7248 = vld [vmem:[#allocation2 + $0xf30] sm:$0xff]
          %v7249 = vld [vmem:[#allocation2 + $0xf38] sm:$0xff]
          %v7250 = vld [vmem:[#allocation2 + $0xf40] sm:$0xff]
          %v7251 = vld [vmem:[#allocation2 + $0xf48] sm:$0xff]
          %v7252 = vld [vmem:[#allocation2 + $0xf50] sm:$0xff]
          %v7253 = vld [vmem:[#allocation2 + $0xf58] sm:$0xff]
          %v7254 = vld [vmem:[#allocation2 + $0xf60] sm:$0xff]
          %v7255 = vld [vmem:[#allocation2 + $0xf68] sm:$0xff]
          %v7256 = vld [vmem:[#allocation2 + $0xf70] sm:$0xff]
          %v7257 = vld [vmem:[#allocation2 + $0xf78] sm:$0xff]
          %v7258 = vld [vmem:[#allocation2 + $0xf80] sm:$0xff]
          %v7259 = vld [vmem:[#allocation2 + $0xf88] sm:$0xff]
          %v7260 = vld [vmem:[#allocation2 + $0xf90] sm:$0xff]
          %v7261 = vld [vmem:[#allocation2 + $0xf98] sm:$0xff]
          %v7262 = vld [vmem:[#allocation2 + $0xfa0] sm:$0xff]
          %v7263 = vld [vmem:[#allocation2 + $0xfa8] sm:$0xff]
          %v7264 = vld [vmem:[#allocation2 + $0xfb0] sm:$0xff]
          %v7265 = vld [vmem:[#allocation2 + $0xfb8] sm:$0xff]
          %v7266 = vld [vmem:[#allocation2 + $0xfc0] sm:$0xff]
          %v7267 = vld [vmem:[#allocation2 + $0xfc8] sm:$0xff]
          %v7268 = vld [vmem:[#allocation2 + $0xfd0] sm:$0xff]
          %v7269 = vld [vmem:[#allocation2 + $0xfd8] sm:$0xff]
          %v7270 = vld [vmem:[#allocation2 + $0xfe0] sm:$0xff]
          %v7271 = vld [vmem:[#allocation2 + $0xfe8] sm:$0xff]
          %v7272 = vld [vmem:[#allocation2 + $0xff0] sm:$0xff]
          %v7273 = vld [vmem:[#allocation2 + $0xff8] sm:$0xff]
          %v7274 = vld [vmem:[%s281] sm:$0xff]
          %v7276 = vlaneseq
          %v7277 = vshrl.u32 %v7276, 7
          %v7278 = vsub.s32 0, %v7277
          %v7279 = vrot.slane %v7274, %v7278
          %v7280 = vlaneseq
          %v7281 = vshrl.u32 %v7280, 7
          %v7282 = vsub.s32 1, %v7281
          %v7283 = vrot.slane %v7274, %v7282
          %v7284 = vlaneseq
          %v7285 = vshrl.u32 %v7284, 7
          %v7286 = vsub.s32 2, %v7285
          %v7287 = vrot.slane %v7274, %v7286
          %v7288 = vlaneseq
          %v7289 = vshrl.u32 %v7288, 7
          %v7290 = vsub.s32 3, %v7289
          %v7291 = vrot.slane %v7274, %v7290
          %v7292 = vlaneseq
          %v7293 = vshrl.u32 %v7292, 7
          %v7294 = vsub.s32 4, %v7293
          %v7295 = vrot.slane %v7274, %v7294
          %v7296 = vlaneseq
          %v7297 = vshrl.u32 %v7296, 7
          %v7298 = vsub.s32 5, %v7297
          %v7299 = vrot.slane %v7274, %v7298
          %v7300 = vlaneseq
          %v7301 = vshrl.u32 %v7300, 7
          %v7302 = vsub.s32 6, %v7301
          %v7303 = vrot.slane %v7274, %v7302
          %v7304 = vlaneseq
          %v7305 = vshrl.u32 %v7304, 7
          %v7306 = vsub.s32 7, %v7305
          %v7307 = vrot.slane %v7274, %v7306
          %v7316 = vadd.f32 %v6762, %v7279
          %v7317 = vadd.f32 %v6763, %v7283
          %v7318 = vadd.f32 %v6764, %v7287
          %v7319 = vadd.f32 %v6765, %v7291
          %v7320 = vadd.f32 %v6766, %v7295
          %v7321 = vadd.f32 %v6767, %v7299
          %v7322 = vadd.f32 %v6768, %v7303
          %v7323 = vadd.f32 %v6769, %v7307
          %v7324 = vadd.f32 %v6770, %v7279
          %v7325 = vadd.f32 %v6771, %v7283
          %v7326 = vadd.f32 %v6772, %v7287
          %v7327 = vadd.f32 %v6773, %v7291
          %v7328 = vadd.f32 %v6774, %v7295
          %v7329 = vadd.f32 %v6775, %v7299
          %v7330 = vadd.f32 %v6776, %v7303
          %v7331 = vadd.f32 %v6777, %v7307
          %v7332 = vadd.f32 %v6778, %v7279
          %v7333 = vadd.f32 %v6779, %v7283
          %v7334 = vadd.f32 %v6780, %v7287
          %v7335 = vadd.f32 %v6781, %v7291
          %v7336 = vadd.f32 %v6782, %v7295
          %v7337 = vadd.f32 %v6783, %v7299
          %v7338 = vadd.f32 %v6784, %v7303
          %v7339 = vadd.f32 %v6785, %v7307
          %v7340 = vadd.f32 %v6786, %v7279
          %v7341 = vadd.f32 %v6787, %v7283
          %v7342 = vadd.f32 %v6788, %v7287
          %v7343 = vadd.f32 %v6789, %v7291
          %v7344 = vadd.f32 %v6790, %v7295
          %v7345 = vadd.f32 %v6791, %v7299
          %v7346 = vadd.f32 %v6792, %v7303
          %v7347 = vadd.f32 %v6793, %v7307
          %v7348 = vadd.f32 %v6794, %v7279
          %v7349 = vadd.f32 %v6795, %v7283
          %v7350 = vadd.f32 %v6796, %v7287
          %v7351 = vadd.f32 %v6797, %v7291
          %v7352 = vadd.f32 %v6798, %v7295
          %v7353 = vadd.f32 %v6799, %v7299
          %v7354 = vadd.f32 %v6800, %v7303
          %v7355 = vadd.f32 %v6801, %v7307
          %v7356 = vadd.f32 %v6802, %v7279
          %v7357 = vadd.f32 %v6803, %v7283
          %v7358 = vadd.f32 %v6804, %v7287
          %v7359 = vadd.f32 %v6805, %v7291
          %v7360 = vadd.f32 %v6806, %v7295
          %v7361 = vadd.f32 %v6807, %v7299
          %v7362 = vadd.f32 %v6808, %v7303
          %v7363 = vadd.f32 %v6809, %v7307
          %v7364 = vadd.f32 %v6810, %v7279
          %v7365 = vadd.f32 %v6811, %v7283
          %v7366 = vadd.f32 %v6812, %v7287
          %v7367 = vadd.f32 %v6813, %v7291
          %v7368 = vadd.f32 %v6814, %v7295
          %v7369 = vadd.f32 %v6815, %v7299
          %v7370 = vadd.f32 %v6816, %v7303
          %v7371 = vadd.f32 %v6817, %v7307
          %v7372 = vadd.f32 %v6818, %v7279
          %v7373 = vadd.f32 %v6819, %v7283
          %v7374 = vadd.f32 %v6820, %v7287
          %v7375 = vadd.f32 %v6821, %v7291
          %v7376 = vadd.f32 %v6822, %v7295
          %v7377 = vadd.f32 %v6823, %v7299
          %v7378 = vadd.f32 %v6824, %v7303
          %v7379 = vadd.f32 %v6825, %v7307
          %v7380 = vadd.f32 %v6826, %v7279
          %v7381 = vadd.f32 %v6827, %v7283
          %v7382 = vadd.f32 %v6828, %v7287
          %v7383 = vadd.f32 %v6829, %v7291
          %v7384 = vadd.f32 %v6830, %v7295
          %v7385 = vadd.f32 %v6831, %v7299
          %v7386 = vadd.f32 %v6832, %v7303
          %v7387 = vadd.f32 %v6833, %v7307
          %v7388 = vadd.f32 %v6834, %v7279
          %v7389 = vadd.f32 %v6835, %v7283
          %v7390 = vadd.f32 %v6836, %v7287
          %v7391 = vadd.f32 %v6837, %v7291
          %v7392 = vadd.f32 %v6838, %v7295
          %v7393 = vadd.f32 %v6839, %v7299
          %v7394 = vadd.f32 %v6840, %v7303
          %v7395 = vadd.f32 %v6841, %v7307
          %v7396 = vadd.f32 %v6842, %v7279
          %v7397 = vadd.f32 %v6843, %v7283
          %v7398 = vadd.f32 %v6844, %v7287
          %v7399 = vadd.f32 %v6845, %v7291
          %v7400 = vadd.f32 %v6846, %v7295
          %v7401 = vadd.f32 %v6847, %v7299
          %v7402 = vadd.f32 %v6848, %v7303
          %v7403 = vadd.f32 %v6849, %v7307
          %v7404 = vadd.f32 %v6850, %v7279
          %v7405 = vadd.f32 %v6851, %v7283
          %v7406 = vadd.f32 %v6852, %v7287
          %v7407 = vadd.f32 %v6853, %v7291
          %v7408 = vadd.f32 %v6854, %v7295
          %v7409 = vadd.f32 %v6855, %v7299
          %v7410 = vadd.f32 %v6856, %v7303
          %v7411 = vadd.f32 %v6857, %v7307
          %v7412 = vadd.f32 %v6858, %v7279
          %v7413 = vadd.f32 %v6859, %v7283
          %v7414 = vadd.f32 %v6860, %v7287
          %v7415 = vadd.f32 %v6861, %v7291
          %v7416 = vadd.f32 %v6862, %v7295
          %v7417 = vadd.f32 %v6863, %v7299
          %v7418 = vadd.f32 %v6864, %v7303
          %v7419 = vadd.f32 %v6865, %v7307
          %v7420 = vadd.f32 %v6866, %v7279
          %v7421 = vadd.f32 %v6867, %v7283
          %v7422 = vadd.f32 %v6868, %v7287
          %v7423 = vadd.f32 %v6869, %v7291
          %v7424 = vadd.f32 %v6870, %v7295
          %v7425 = vadd.f32 %v6871, %v7299
          %v7426 = vadd.f32 %v6872, %v7303
          %v7427 = vadd.f32 %v6873, %v7307
          %v7428 = vadd.f32 %v6874, %v7279
          %v7429 = vadd.f32 %v6875, %v7283
          %v7430 = vadd.f32 %v6876, %v7287
          %v7431 = vadd.f32 %v6877, %v7291
          %v7432 = vadd.f32 %v6878, %v7295
          %v7433 = vadd.f32 %v6879, %v7299
          %v7434 = vadd.f32 %v6880, %v7303
          %v7435 = vadd.f32 %v6881, %v7307
          %v7436 = vadd.f32 %v6882, %v7279
          %v7437 = vadd.f32 %v6883, %v7283
          %v7438 = vadd.f32 %v6884, %v7287
          %v7439 = vadd.f32 %v6885, %v7291
          %v7440 = vadd.f32 %v6886, %v7295
          %v7441 = vadd.f32 %v6887, %v7299
          %v7442 = vadd.f32 %v6888, %v7303
          %v7443 = vadd.f32 %v6889, %v7307
          %v7444 = vadd.f32 %v6890, %v7279
          %v7445 = vadd.f32 %v6891, %v7283
          %v7446 = vadd.f32 %v6892, %v7287
          %v7447 = vadd.f32 %v6893, %v7291
          %v7448 = vadd.f32 %v6894, %v7295
          %v7449 = vadd.f32 %v6895, %v7299
          %v7450 = vadd.f32 %v6896, %v7303
          %v7451 = vadd.f32 %v6897, %v7307
          %v7452 = vadd.f32 %v6898, %v7279
          %v7453 = vadd.f32 %v6899, %v7283
          %v7454 = vadd.f32 %v6900, %v7287
          %v7455 = vadd.f32 %v6901, %v7291
          %v7456 = vadd.f32 %v6902, %v7295
          %v7457 = vadd.f32 %v6903, %v7299
          %v7458 = vadd.f32 %v6904, %v7303
          %v7459 = vadd.f32 %v6905, %v7307
          %v7460 = vadd.f32 %v6906, %v7279
          %v7461 = vadd.f32 %v6907, %v7283
          %v7462 = vadd.f32 %v6908, %v7287
          %v7463 = vadd.f32 %v6909, %v7291
          %v7464 = vadd.f32 %v6910, %v7295
          %v7465 = vadd.f32 %v6911, %v7299
          %v7466 = vadd.f32 %v6912, %v7303
          %v7467 = vadd.f32 %v6913, %v7307
          %v7468 = vadd.f32 %v6914, %v7279
          %v7469 = vadd.f32 %v6915, %v7283
          %v7470 = vadd.f32 %v6916, %v7287
          %v7471 = vadd.f32 %v6917, %v7291
          %v7472 = vadd.f32 %v6918, %v7295
          %v7473 = vadd.f32 %v6919, %v7299
          %v7474 = vadd.f32 %v6920, %v7303
          %v7475 = vadd.f32 %v6921, %v7307
          %v7476 = vadd.f32 %v6922, %v7279
          %v7477 = vadd.f32 %v6923, %v7283
          %v7478 = vadd.f32 %v6924, %v7287
          %v7479 = vadd.f32 %v6925, %v7291
          %v7480 = vadd.f32 %v6926, %v7295
          %v7481 = vadd.f32 %v6927, %v7299
          %v7482 = vadd.f32 %v6928, %v7303
          %v7483 = vadd.f32 %v6929, %v7307
          %v7484 = vadd.f32 %v6930, %v7279
          %v7485 = vadd.f32 %v6931, %v7283
          %v7486 = vadd.f32 %v6932, %v7287
          %v7487 = vadd.f32 %v6933, %v7291
          %v7488 = vadd.f32 %v6934, %v7295
          %v7489 = vadd.f32 %v6935, %v7299
          %v7490 = vadd.f32 %v6936, %v7303
          %v7491 = vadd.f32 %v6937, %v7307
          %v7492 = vadd.f32 %v6938, %v7279
          %v7493 = vadd.f32 %v6939, %v7283
          %v7494 = vadd.f32 %v6940, %v7287
          %v7495 = vadd.f32 %v6941, %v7291
          %v7496 = vadd.f32 %v6942, %v7295
          %v7497 = vadd.f32 %v6943, %v7299
          %v7498 = vadd.f32 %v6944, %v7303
          %v7499 = vadd.f32 %v6945, %v7307
          %v7500 = vadd.f32 %v6946, %v7279
          %v7501 = vadd.f32 %v6947, %v7283
          %v7502 = vadd.f32 %v6948, %v7287
          %v7503 = vadd.f32 %v6949, %v7291
          %v7504 = vadd.f32 %v6950, %v7295
          %v7505 = vadd.f32 %v6951, %v7299
          %v7506 = vadd.f32 %v6952, %v7303
          %v7507 = vadd.f32 %v6953, %v7307
          %v7508 = vadd.f32 %v6954, %v7279
          %v7509 = vadd.f32 %v6955, %v7283
          %v7510 = vadd.f32 %v6956, %v7287
          %v7511 = vadd.f32 %v6957, %v7291
          %v7512 = vadd.f32 %v6958, %v7295
          %v7513 = vadd.f32 %v6959, %v7299
          %v7514 = vadd.f32 %v6960, %v7303
          %v7515 = vadd.f32 %v6961, %v7307
          %v7516 = vadd.f32 %v6962, %v7279
          %v7517 = vadd.f32 %v6963, %v7283
          %v7518 = vadd.f32 %v6964, %v7287
          %v7519 = vadd.f32 %v6965, %v7291
          %v7520 = vadd.f32 %v6966, %v7295
          %v7521 = vadd.f32 %v6967, %v7299
          %v7522 = vadd.f32 %v6968, %v7303
          %v7523 = vadd.f32 %v6969, %v7307
          %v7524 = vadd.f32 %v6970, %v7279
          %v7525 = vadd.f32 %v6971, %v7283
          %v7526 = vadd.f32 %v6972, %v7287
          %v7527 = vadd.f32 %v6973, %v7291
          %v7528 = vadd.f32 %v6974, %v7295
          %v7529 = vadd.f32 %v6975, %v7299
          %v7530 = vadd.f32 %v6976, %v7303
          %v7531 = vadd.f32 %v6977, %v7307
          %v7532 = vadd.f32 %v6978, %v7279
          %v7533 = vadd.f32 %v6979, %v7283
          %v7534 = vadd.f32 %v6980, %v7287
          %v7535 = vadd.f32 %v6981, %v7291
          %v7536 = vadd.f32 %v6982, %v7295
          %v7537 = vadd.f32 %v6983, %v7299
          %v7538 = vadd.f32 %v6984, %v7303
          %v7539 = vadd.f32 %v6985, %v7307
          %v7540 = vadd.f32 %v6986, %v7279
          %v7541 = vadd.f32 %v6987, %v7283
          %v7542 = vadd.f32 %v6988, %v7287
          %v7543 = vadd.f32 %v6989, %v7291
          %v7544 = vadd.f32 %v6990, %v7295
          %v7545 = vadd.f32 %v6991, %v7299
          %v7546 = vadd.f32 %v6992, %v7303
          %v7547 = vadd.f32 %v6993, %v7307
          %v7548 = vadd.f32 %v6994, %v7279
          %v7549 = vadd.f32 %v6995, %v7283
          %v7550 = vadd.f32 %v6996, %v7287
          %v7551 = vadd.f32 %v6997, %v7291
          %v7552 = vadd.f32 %v6998, %v7295
          %v7553 = vadd.f32 %v6999, %v7299
          %v7554 = vadd.f32 %v7000, %v7303
          %v7555 = vadd.f32 %v7001, %v7307
          %v7556 = vadd.f32 %v7002, %v7279
          %v7557 = vadd.f32 %v7003, %v7283
          %v7558 = vadd.f32 %v7004, %v7287
          %v7559 = vadd.f32 %v7005, %v7291
          %v7560 = vadd.f32 %v7006, %v7295
          %v7561 = vadd.f32 %v7007, %v7299
          %v7562 = vadd.f32 %v7008, %v7303
          %v7563 = vadd.f32 %v7009, %v7307
          %v7564 = vadd.f32 %v7010, %v7279
          %v7565 = vadd.f32 %v7011, %v7283
          %v7566 = vadd.f32 %v7012, %v7287
          %v7567 = vadd.f32 %v7013, %v7291
          %v7568 = vadd.f32 %v7014, %v7295
          %v7569 = vadd.f32 %v7015, %v7299
          %v7570 = vadd.f32 %v7016, %v7303
          %v7571 = vadd.f32 %v7017, %v7307
          %v7572 = vadd.f32 %v7018, %v7279
          %v7573 = vadd.f32 %v7019, %v7283
          %v7574 = vadd.f32 %v7020, %v7287
          %v7575 = vadd.f32 %v7021, %v7291
          %v7576 = vadd.f32 %v7022, %v7295
          %v7577 = vadd.f32 %v7023, %v7299
          %v7578 = vadd.f32 %v7024, %v7303
          %v7579 = vadd.f32 %v7025, %v7307
          %v7580 = vadd.f32 %v7026, %v7279
          %v7581 = vadd.f32 %v7027, %v7283
          %v7582 = vadd.f32 %v7028, %v7287
          %v7583 = vadd.f32 %v7029, %v7291
          %v7584 = vadd.f32 %v7030, %v7295
          %v7585 = vadd.f32 %v7031, %v7299
          %v7586 = vadd.f32 %v7032, %v7303
          %v7587 = vadd.f32 %v7033, %v7307
          %v7588 = vadd.f32 %v7034, %v7279
          %v7589 = vadd.f32 %v7035, %v7283
          %v7590 = vadd.f32 %v7036, %v7287
          %v7591 = vadd.f32 %v7037, %v7291
          %v7592 = vadd.f32 %v7038, %v7295
          %v7593 = vadd.f32 %v7039, %v7299
          %v7594 = vadd.f32 %v7040, %v7303
          %v7595 = vadd.f32 %v7041, %v7307
          %v7596 = vadd.f32 %v7042, %v7279
          %v7597 = vadd.f32 %v7043, %v7283
          %v7598 = vadd.f32 %v7044, %v7287
          %v7599 = vadd.f32 %v7045, %v7291
          %v7600 = vadd.f32 %v7046, %v7295
          %v7601 = vadd.f32 %v7047, %v7299
          %v7602 = vadd.f32 %v7048, %v7303
          %v7603 = vadd.f32 %v7049, %v7307
          %v7604 = vadd.f32 %v7050, %v7279
          %v7605 = vadd.f32 %v7051, %v7283
          %v7606 = vadd.f32 %v7052, %v7287
          %v7607 = vadd.f32 %v7053, %v7291
          %v7608 = vadd.f32 %v7054, %v7295
          %v7609 = vadd.f32 %v7055, %v7299
          %v7610 = vadd.f32 %v7056, %v7303
          %v7611 = vadd.f32 %v7057, %v7307
          %v7612 = vadd.f32 %v7058, %v7279
          %v7613 = vadd.f32 %v7059, %v7283
          %v7614 = vadd.f32 %v7060, %v7287
          %v7615 = vadd.f32 %v7061, %v7291
          %v7616 = vadd.f32 %v7062, %v7295
          %v7617 = vadd.f32 %v7063, %v7299
          %v7618 = vadd.f32 %v7064, %v7303
          %v7619 = vadd.f32 %v7065, %v7307
          %v7620 = vadd.f32 %v7066, %v7279
          %v7621 = vadd.f32 %v7067, %v7283
          %v7622 = vadd.f32 %v7068, %v7287
          %v7623 = vadd.f32 %v7069, %v7291
          %v7624 = vadd.f32 %v7070, %v7295
          %v7625 = vadd.f32 %v7071, %v7299
          %v7626 = vadd.f32 %v7072, %v7303
          %v7627 = vadd.f32 %v7073, %v7307
          %v7628 = vadd.f32 %v7074, %v7279
          %v7629 = vadd.f32 %v7075, %v7283
          %v7630 = vadd.f32 %v7076, %v7287
          %v7631 = vadd.f32 %v7077, %v7291
          %v7632 = vadd.f32 %v7078, %v7295
          %v7633 = vadd.f32 %v7079, %v7299
          %v7634 = vadd.f32 %v7080, %v7303
          %v7635 = vadd.f32 %v7081, %v7307
          %v7636 = vadd.f32 %v7082, %v7279
          %v7637 = vadd.f32 %v7083, %v7283
          %v7638 = vadd.f32 %v7084, %v7287
          %v7639 = vadd.f32 %v7085, %v7291
          %v7640 = vadd.f32 %v7086, %v7295
          %v7641 = vadd.f32 %v7087, %v7299
          %v7642 = vadd.f32 %v7088, %v7303
          %v7643 = vadd.f32 %v7089, %v7307
          %v7644 = vadd.f32 %v7090, %v7279
          %v7645 = vadd.f32 %v7091, %v7283
          %v7646 = vadd.f32 %v7092, %v7287
          %v7647 = vadd.f32 %v7093, %v7291
          %v7648 = vadd.f32 %v7094, %v7295
          %v7649 = vadd.f32 %v7095, %v7299
          %v7650 = vadd.f32 %v7096, %v7303
          %v7651 = vadd.f32 %v7097, %v7307
          %v7652 = vadd.f32 %v7098, %v7279
          %v7653 = vadd.f32 %v7099, %v7283
          %v7654 = vadd.f32 %v7100, %v7287
          %v7655 = vadd.f32 %v7101, %v7291
          %v7656 = vadd.f32 %v7102, %v7295
          %v7657 = vadd.f32 %v7103, %v7299
          %v7658 = vadd.f32 %v7104, %v7303
          %v7659 = vadd.f32 %v7105, %v7307
          %v7660 = vadd.f32 %v7106, %v7279
          %v7661 = vadd.f32 %v7107, %v7283
          %v7662 = vadd.f32 %v7108, %v7287
          %v7663 = vadd.f32 %v7109, %v7291
          %v7664 = vadd.f32 %v7110, %v7295
          %v7665 = vadd.f32 %v7111, %v7299
          %v7666 = vadd.f32 %v7112, %v7303
          %v7667 = vadd.f32 %v7113, %v7307
          %v7668 = vadd.f32 %v7114, %v7279
          %v7669 = vadd.f32 %v7115, %v7283
          %v7670 = vadd.f32 %v7116, %v7287
          %v7671 = vadd.f32 %v7117, %v7291
          %v7672 = vadd.f32 %v7118, %v7295
          %v7673 = vadd.f32 %v7119, %v7299
          %v7674 = vadd.f32 %v7120, %v7303
          %v7675 = vadd.f32 %v7121, %v7307
          %v7676 = vadd.f32 %v7122, %v7279
          %v7677 = vadd.f32 %v7123, %v7283
          %v7678 = vadd.f32 %v7124, %v7287
          %v7679 = vadd.f32 %v7125, %v7291
          %v7680 = vadd.f32 %v7126, %v7295
          %v7681 = vadd.f32 %v7127, %v7299
          %v7682 = vadd.f32 %v7128, %v7303
          %v7683 = vadd.f32 %v7129, %v7307
          %v7684 = vadd.f32 %v7130, %v7279
          %v7685 = vadd.f32 %v7131, %v7283
          %v7686 = vadd.f32 %v7132, %v7287
          %v7687 = vadd.f32 %v7133, %v7291
          %v7688 = vadd.f32 %v7134, %v7295
          %v7689 = vadd.f32 %v7135, %v7299
          %v7690 = vadd.f32 %v7136, %v7303
          %v7691 = vadd.f32 %v7137, %v7307
          %v7692 = vadd.f32 %v7138, %v7279
          %v7693 = vadd.f32 %v7139, %v7283
          %v7694 = vadd.f32 %v7140, %v7287
          %v7695 = vadd.f32 %v7141, %v7291
          %v7696 = vadd.f32 %v7142, %v7295
          %v7697 = vadd.f32 %v7143, %v7299
          %v7698 = vadd.f32 %v7144, %v7303
          %v7699 = vadd.f32 %v7145, %v7307
          %v7700 = vadd.f32 %v7146, %v7279
          %v7701 = vadd.f32 %v7147, %v7283
          %v7702 = vadd.f32 %v7148, %v7287
          %v7703 = vadd.f32 %v7149, %v7291
          %v7704 = vadd.f32 %v7150, %v7295
          %v7705 = vadd.f32 %v7151, %v7299
          %v7706 = vadd.f32 %v7152, %v7303
          %v7707 = vadd.f32 %v7153, %v7307
          %v7708 = vadd.f32 %v7154, %v7279
          %v7709 = vadd.f32 %v7155, %v7283
          %v7710 = vadd.f32 %v7156, %v7287
          %v7711 = vadd.f32 %v7157, %v7291
          %v7712 = vadd.f32 %v7158, %v7295
          %v7713 = vadd.f32 %v7159, %v7299
          %v7714 = vadd.f32 %v7160, %v7303
          %v7715 = vadd.f32 %v7161, %v7307
          %v7716 = vadd.f32 %v7162, %v7279
          %v7717 = vadd.f32 %v7163, %v7283
          %v7718 = vadd.f32 %v7164, %v7287
          %v7719 = vadd.f32 %v7165, %v7291
          %v7720 = vadd.f32 %v7166, %v7295
          %v7721 = vadd.f32 %v7167, %v7299
          %v7722 = vadd.f32 %v7168, %v7303
          %v7723 = vadd.f32 %v7169, %v7307
          %v7724 = vadd.f32 %v7170, %v7279
          %v7725 = vadd.f32 %v7171, %v7283
          %v7726 = vadd.f32 %v7172, %v7287
          %v7727 = vadd.f32 %v7173, %v7291
          %v7728 = vadd.f32 %v7174, %v7295
          %v7729 = vadd.f32 %v7175, %v7299
          %v7730 = vadd.f32 %v7176, %v7303
          %v7731 = vadd.f32 %v7177, %v7307
          %v7732 = vadd.f32 %v7178, %v7279
          %v7733 = vadd.f32 %v7179, %v7283
          %v7734 = vadd.f32 %v7180, %v7287
          %v7735 = vadd.f32 %v7181, %v7291
          %v7736 = vadd.f32 %v7182, %v7295
          %v7737 = vadd.f32 %v7183, %v7299
          %v7738 = vadd.f32 %v7184, %v7303
          %v7739 = vadd.f32 %v7185, %v7307
          %v7740 = vadd.f32 %v7186, %v7279
          %v7741 = vadd.f32 %v7187, %v7283
          %v7742 = vadd.f32 %v7188, %v7287
          %v7743 = vadd.f32 %v7189, %v7291
          %v7744 = vadd.f32 %v7190, %v7295
          %v7745 = vadd.f32 %v7191, %v7299
          %v7746 = vadd.f32 %v7192, %v7303
          %v7747 = vadd.f32 %v7193, %v7307
          %v7748 = vadd.f32 %v7194, %v7279
          %v7749 = vadd.f32 %v7195, %v7283
          %v7750 = vadd.f32 %v7196, %v7287
          %v7751 = vadd.f32 %v7197, %v7291
          %v7752 = vadd.f32 %v7198, %v7295
          %v7753 = vadd.f32 %v7199, %v7299
          %v7754 = vadd.f32 %v7200, %v7303
          %v7755 = vadd.f32 %v7201, %v7307
          %v7756 = vadd.f32 %v7202, %v7279
          %v7757 = vadd.f32 %v7203, %v7283
          %v7758 = vadd.f32 %v7204, %v7287
          %v7759 = vadd.f32 %v7205, %v7291
          %v7760 = vadd.f32 %v7206, %v7295
          %v7761 = vadd.f32 %v7207, %v7299
          %v7762 = vadd.f32 %v7208, %v7303
          %v7763 = vadd.f32 %v7209, %v7307
          %v7764 = vadd.f32 %v7210, %v7279
          %v7765 = vadd.f32 %v7211, %v7283
          %v7766 = vadd.f32 %v7212, %v7287
          %v7767 = vadd.f32 %v7213, %v7291
          %v7768 = vadd.f32 %v7214, %v7295
          %v7769 = vadd.f32 %v7215, %v7299
          %v7770 = vadd.f32 %v7216, %v7303
          %v7771 = vadd.f32 %v7217, %v7307
          %v7772 = vadd.f32 %v7218, %v7279
          %v7773 = vadd.f32 %v7219, %v7283
          %v7774 = vadd.f32 %v7220, %v7287
          %v7775 = vadd.f32 %v7221, %v7291
          %v7776 = vadd.f32 %v7222, %v7295
          %v7777 = vadd.f32 %v7223, %v7299
          %v7778 = vadd.f32 %v7224, %v7303
          %v7779 = vadd.f32 %v7225, %v7307
          %v7780 = vadd.f32 %v7226, %v7279
          %v7781 = vadd.f32 %v7227, %v7283
          %v7782 = vadd.f32 %v7228, %v7287
          %v7783 = vadd.f32 %v7229, %v7291
          %v7784 = vadd.f32 %v7230, %v7295
          %v7785 = vadd.f32 %v7231, %v7299
          %v7786 = vadd.f32 %v7232, %v7303
          %v7787 = vadd.f32 %v7233, %v7307
          %v7788 = vadd.f32 %v7234, %v7279
          %v7789 = vadd.f32 %v7235, %v7283
          %v7790 = vadd.f32 %v7236, %v7287
          %v7791 = vadd.f32 %v7237, %v7291
          %v7792 = vadd.f32 %v7238, %v7295
          %v7793 = vadd.f32 %v7239, %v7299
          %v7794 = vadd.f32 %v7240, %v7303
          %v7795 = vadd.f32 %v7241, %v7307
          %v7796 = vadd.f32 %v7242, %v7279
          %v7797 = vadd.f32 %v7243, %v7283
          %v7798 = vadd.f32 %v7244, %v7287
          %v7799 = vadd.f32 %v7245, %v7291
          %v7800 = vadd.f32 %v7246, %v7295
          %v7801 = vadd.f32 %v7247, %v7299
          %v7802 = vadd.f32 %v7248, %v7303
          %v7803 = vadd.f32 %v7249, %v7307
          %v7804 = vadd.f32 %v7250, %v7279
          %v7805 = vadd.f32 %v7251, %v7283
          %v7806 = vadd.f32 %v7252, %v7287
          %v7807 = vadd.f32 %v7253, %v7291
          %v7808 = vadd.f32 %v7254, %v7295
          %v7809 = vadd.f32 %v7255, %v7299
          %v7810 = vadd.f32 %v7256, %v7303
          %v7811 = vadd.f32 %v7257, %v7307
          %v7812 = vadd.f32 %v7258, %v7279
          %v7813 = vadd.f32 %v7259, %v7283
          %v7814 = vadd.f32 %v7260, %v7287
          %v7815 = vadd.f32 %v7261, %v7291
          %v7816 = vadd.f32 %v7262, %v7295
          %v7817 = vadd.f32 %v7263, %v7299
          %v7818 = vadd.f32 %v7264, %v7303
          %v7819 = vadd.f32 %v7265, %v7307
          %v7820 = vadd.f32 %v7266, %v7279
          %v7821 = vadd.f32 %v7267, %v7283
          %v7822 = vadd.f32 %v7268, %v7287
          %v7823 = vadd.f32 %v7269, %v7291
          %v7824 = vadd.f32 %v7270, %v7295
          %v7825 = vadd.f32 %v7271, %v7299
          %v7826 = vadd.f32 %v7272, %v7303
          %v7827 = vadd.f32 %v7273, %v7307
          %7828 = vst [vmem:[%s313] sm:$0xff] %v7316
          %7829 = vst [vmem:[%s313 + $0x8] sm:$0xff] %v7317
          %7830 = vst [vmem:[%s313 + $0x10] sm:$0xff] %v7318
          %7831 = vst [vmem:[%s313 + $0x18] sm:$0xff] %v7319
          %7832 = vst [vmem:[%s313 + $0x20] sm:$0xff] %v7320
          %7833 = vst [vmem:[%s313 + $0x28] sm:$0xff] %v7321
          %7834 = vst [vmem:[%s313 + $0x30] sm:$0xff] %v7322
          %7835 = vst [vmem:[%s313 + $0x38] sm:$0xff] %v7323
          %7836 = vst [vmem:[%s313 + $0x40] sm:$0xff] %v7324
          %7837 = vst [vmem:[%s313 + $0x48] sm:$0xff] %v7325
          %7838 = vst [vmem:[%s313 + $0x50] sm:$0xff] %v7326
          %7839 = vst [vmem:[%s313 + $0x58] sm:$0xff] %v7327
          %7840 = vst [vmem:[%s313 + $0x60] sm:$0xff] %v7328
          %7841 = vst [vmem:[%s313 + $0x68] sm:$0xff] %v7329
          %7842 = vst [vmem:[%s313 + $0x70] sm:$0xff] %v7330
          %7843 = vst [vmem:[%s313 + $0x78] sm:$0xff] %v7331
          %7844 = vst [vmem:[%s313 + $0x80] sm:$0xff] %v7332
          %7845 = vst [vmem:[%s313 + $0x88] sm:$0xff] %v7333
          %7846 = vst [vmem:[%s313 + $0x90] sm:$0xff] %v7334
          %7847 = vst [vmem:[%s313 + $0x98] sm:$0xff] %v7335
          %7848 = vst [vmem:[%s313 + $0xa0] sm:$0xff] %v7336
          %7849 = vst [vmem:[%s313 + $0xa8] sm:$0xff] %v7337
          %7850 = vst [vmem:[%s313 + $0xb0] sm:$0xff] %v7338
          %7851 = vst [vmem:[%s313 + $0xb8] sm:$0xff] %v7339
          %7852 = vst [vmem:[%s313 + $0xc0] sm:$0xff] %v7340
          %7853 = vst [vmem:[%s313 + $0xc8] sm:$0xff] %v7341
          %7854 = vst [vmem:[%s313 + $0xd0] sm:$0xff] %v7342
          %7855 = vst [vmem:[%s313 + $0xd8] sm:$0xff] %v7343
          %7856 = vst [vmem:[%s313 + $0xe0] sm:$0xff] %v7344
          %7857 = vst [vmem:[%s313 + $0xe8] sm:$0xff] %v7345
          %7858 = vst [vmem:[%s313 + $0xf0] sm:$0xff] %v7346
          %7859 = vst [vmem:[%s313 + $0xf8] sm:$0xff] %v7347
          %7860 = vst [vmem:[%s313 + $0x100] sm:$0xff] %v7348
          %7861 = vst [vmem:[%s313 + $0x108] sm:$0xff] %v7349
          %7862 = vst [vmem:[%s313 + $0x110] sm:$0xff] %v7350
          %7863 = vst [vmem:[%s313 + $0x118] sm:$0xff] %v7351
          %7864 = vst [vmem:[%s313 + $0x120] sm:$0xff] %v7352
          %7865 = vst [vmem:[%s313 + $0x128] sm:$0xff] %v7353
          %7866 = vst [vmem:[%s313 + $0x130] sm:$0xff] %v7354
          %7867 = vst [vmem:[%s313 + $0x138] sm:$0xff] %v7355
          %7868 = vst [vmem:[%s313 + $0x140] sm:$0xff] %v7356
          %7869 = vst [vmem:[%s313 + $0x148] sm:$0xff] %v7357
          %7870 = vst [vmem:[%s313 + $0x150] sm:$0xff] %v7358
          %7871 = vst [vmem:[%s313 + $0x158] sm:$0xff] %v7359
          %7872 = vst [vmem:[%s313 + $0x160] sm:$0xff] %v7360
          %7873 = vst [vmem:[%s313 + $0x168] sm:$0xff] %v7361
          %7874 = vst [vmem:[%s313 + $0x170] sm:$0xff] %v7362
          %7875 = vst [vmem:[%s313 + $0x178] sm:$0xff] %v7363
          %7876 = vst [vmem:[%s313 + $0x180] sm:$0xff] %v7364
          %7877 = vst [vmem:[%s313 + $0x188] sm:$0xff] %v7365
          %7878 = vst [vmem:[%s313 + $0x190] sm:$0xff] %v7366
          %7879 = vst [vmem:[%s313 + $0x198] sm:$0xff] %v7367
          %7880 = vst [vmem:[%s313 + $0x1a0] sm:$0xff] %v7368
          %7881 = vst [vmem:[%s313 + $0x1a8] sm:$0xff] %v7369
          %7882 = vst [vmem:[%s313 + $0x1b0] sm:$0xff] %v7370
          %7883 = vst [vmem:[%s313 + $0x1b8] sm:$0xff] %v7371
          %7884 = vst [vmem:[%s313 + $0x1c0] sm:$0xff] %v7372
          %7885 = vst [vmem:[%s313 + $0x1c8] sm:$0xff] %v7373
          %7886 = vst [vmem:[%s313 + $0x1d0] sm:$0xff] %v7374
          %7887 = vst [vmem:[%s313 + $0x1d8] sm:$0xff] %v7375
          %7888 = vst [vmem:[%s313 + $0x1e0] sm:$0xff] %v7376
          %7889 = vst [vmem:[%s313 + $0x1e8] sm:$0xff] %v7377
          %7890 = vst [vmem:[%s313 + $0x1f0] sm:$0xff] %v7378
          %7891 = vst [vmem:[%s313 + $0x1f8] sm:$0xff] %v7379
          %7892 = vst [vmem:[%s313 + $0x200] sm:$0xff] %v7380
          %7893 = vst [vmem:[%s313 + $0x208] sm:$0xff] %v7381
          %7894 = vst [vmem:[%s313 + $0x210] sm:$0xff] %v7382
          %7895 = vst [vmem:[%s313 + $0x218] sm:$0xff] %v7383
          %7896 = vst [vmem:[%s313 + $0x220] sm:$0xff] %v7384
          %7897 = vst [vmem:[%s313 + $0x228] sm:$0xff] %v7385
          %7898 = vst [vmem:[%s313 + $0x230] sm:$0xff] %v7386
          %7899 = vst [vmem:[%s313 + $0x238] sm:$0xff] %v7387
          %7900 = vst [vmem:[%s313 + $0x240] sm:$0xff] %v7388
          %7901 = vst [vmem:[%s313 + $0x248] sm:$0xff] %v7389
          %7902 = vst [vmem:[%s313 + $0x250] sm:$0xff] %v7390
          %7903 = vst [vmem:[%s313 + $0x258] sm:$0xff] %v7391
          %7904 = vst [vmem:[%s313 + $0x260] sm:$0xff] %v7392
          %7905 = vst [vmem:[%s313 + $0x268] sm:$0xff] %v7393
          %7906 = vst [vmem:[%s313 + $0x270] sm:$0xff] %v7394
          %7907 = vst [vmem:[%s313 + $0x278] sm:$0xff] %v7395
          %7908 = vst [vmem:[%s313 + $0x280] sm:$0xff] %v7396
          %7909 = vst [vmem:[%s313 + $0x288] sm:$0xff] %v7397
          %7910 = vst [vmem:[%s313 + $0x290] sm:$0xff] %v7398
          %7911 = vst [vmem:[%s313 + $0x298] sm:$0xff] %v7399
          %7912 = vst [vmem:[%s313 + $0x2a0] sm:$0xff] %v7400
          %7913 = vst [vmem:[%s313 + $0x2a8] sm:$0xff] %v7401
          %7914 = vst [vmem:[%s313 + $0x2b0] sm:$0xff] %v7402
          %7915 = vst [vmem:[%s313 + $0x2b8] sm:$0xff] %v7403
          %7916 = vst [vmem:[%s313 + $0x2c0] sm:$0xff] %v7404
          %7917 = vst [vmem:[%s313 + $0x2c8] sm:$0xff] %v7405
          %7918 = vst [vmem:[%s313 + $0x2d0] sm:$0xff] %v7406
          %7919 = vst [vmem:[%s313 + $0x2d8] sm:$0xff] %v7407
          %7920 = vst [vmem:[%s313 + $0x2e0] sm:$0xff] %v7408
          %7921 = vst [vmem:[%s313 + $0x2e8] sm:$0xff] %v7409
          %7922 = vst [vmem:[%s313 + $0x2f0] sm:$0xff] %v7410
          %7923 = vst [vmem:[%s313 + $0x2f8] sm:$0xff] %v7411
          %7924 = vst [vmem:[%s313 + $0x300] sm:$0xff] %v7412
          %7925 = vst [vmem:[%s313 + $0x308] sm:$0xff] %v7413
          %7926 = vst [vmem:[%s313 + $0x310] sm:$0xff] %v7414
          %7927 = vst [vmem:[%s313 + $0x318] sm:$0xff] %v7415
          %7928 = vst [vmem:[%s313 + $0x320] sm:$0xff] %v7416
          %7929 = vst [vmem:[%s313 + $0x328] sm:$0xff] %v7417
          %7930 = vst [vmem:[%s313 + $0x330] sm:$0xff] %v7418
          %7931 = vst [vmem:[%s313 + $0x338] sm:$0xff] %v7419
          %7932 = vst [vmem:[%s313 + $0x340] sm:$0xff] %v7420
          %7933 = vst [vmem:[%s313 + $0x348] sm:$0xff] %v7421
          %7934 = vst [vmem:[%s313 + $0x350] sm:$0xff] %v7422
          %7935 = vst [vmem:[%s313 + $0x358] sm:$0xff] %v7423
          %7936 = vst [vmem:[%s313 + $0x360] sm:$0xff] %v7424
          %7937 = vst [vmem:[%s313 + $0x368] sm:$0xff] %v7425
          %7938 = vst [vmem:[%s313 + $0x370] sm:$0xff] %v7426
          %7939 = vst [vmem:[%s313 + $0x378] sm:$0xff] %v7427
          %7940 = vst [vmem:[%s313 + $0x380] sm:$0xff] %v7428
          %7941 = vst [vmem:[%s313 + $0x388] sm:$0xff] %v7429
          %7942 = vst [vmem:[%s313 + $0x390] sm:$0xff] %v7430
          %7943 = vst [vmem:[%s313 + $0x398] sm:$0xff] %v7431
          %7944 = vst [vmem:[%s313 + $0x3a0] sm:$0xff] %v7432
          %7945 = vst [vmem:[%s313 + $0x3a8] sm:$0xff] %v7433
          %7946 = vst [vmem:[%s313 + $0x3b0] sm:$0xff] %v7434
          %7947 = vst [vmem:[%s313 + $0x3b8] sm:$0xff] %v7435
          %7948 = vst [vmem:[%s313 + $0x3c0] sm:$0xff] %v7436
          %7949 = vst [vmem:[%s313 + $0x3c8] sm:$0xff] %v7437
          %7950 = vst [vmem:[%s313 + $0x3d0] sm:$0xff] %v7438
          %7951 = vst [vmem:[%s313 + $0x3d8] sm:$0xff] %v7439
          %7952 = vst [vmem:[%s313 + $0x3e0] sm:$0xff] %v7440
          %7953 = vst [vmem:[%s313 + $0x3e8] sm:$0xff] %v7441
          %7954 = vst [vmem:[%s313 + $0x3f0] sm:$0xff] %v7442
          %7955 = vst [vmem:[%s313 + $0x3f8] sm:$0xff] %v7443
          %7956 = vst [vmem:[%s313 + $0x400] sm:$0xff] %v7444
          %7957 = vst [vmem:[%s313 + $0x408] sm:$0xff] %v7445
          %7958 = vst [vmem:[%s313 + $0x410] sm:$0xff] %v7446
          %7959 = vst [vmem:[%s313 + $0x418] sm:$0xff] %v7447
          %7960 = vst [vmem:[%s313 + $0x420] sm:$0xff] %v7448
          %7961 = vst [vmem:[%s313 + $0x428] sm:$0xff] %v7449
          %7962 = vst [vmem:[%s313 + $0x430] sm:$0xff] %v7450
          %7963 = vst [vmem:[%s313 + $0x438] sm:$0xff] %v7451
          %7964 = vst [vmem:[%s313 + $0x440] sm:$0xff] %v7452
          %7965 = vst [vmem:[%s313 + $0x448] sm:$0xff] %v7453
          %7966 = vst [vmem:[%s313 + $0x450] sm:$0xff] %v7454
          %7967 = vst [vmem:[%s313 + $0x458] sm:$0xff] %v7455
          %7968 = vst [vmem:[%s313 + $0x460] sm:$0xff] %v7456
          %7969 = vst [vmem:[%s313 + $0x468] sm:$0xff] %v7457
          %7970 = vst [vmem:[%s313 + $0x470] sm:$0xff] %v7458
          %7971 = vst [vmem:[%s313 + $0x478] sm:$0xff] %v7459
          %7972 = vst [vmem:[%s313 + $0x480] sm:$0xff] %v7460
          %7973 = vst [vmem:[%s313 + $0x488] sm:$0xff] %v7461
          %7974 = vst [vmem:[%s313 + $0x490] sm:$0xff] %v7462
          %7975 = vst [vmem:[%s313 + $0x498] sm:$0xff] %v7463
          %7976 = vst [vmem:[%s313 + $0x4a0] sm:$0xff] %v7464
          %7977 = vst [vmem:[%s313 + $0x4a8] sm:$0xff] %v7465
          %7978 = vst [vmem:[%s313 + $0x4b0] sm:$0xff] %v7466
          %7979 = vst [vmem:[%s313 + $0x4b8] sm:$0xff] %v7467
          %7980 = vst [vmem:[%s313 + $0x4c0] sm:$0xff] %v7468
          %7981 = vst [vmem:[%s313 + $0x4c8] sm:$0xff] %v7469
          %7982 = vst [vmem:[%s313 + $0x4d0] sm:$0xff] %v7470
          %7983 = vst [vmem:[%s313 + $0x4d8] sm:$0xff] %v7471
          %7984 = vst [vmem:[%s313 + $0x4e0] sm:$0xff] %v7472
          %7985 = vst [vmem:[%s313 + $0x4e8] sm:$0xff] %v7473
          %7986 = vst [vmem:[%s313 + $0x4f0] sm:$0xff] %v7474
          %7987 = vst [vmem:[%s313 + $0x4f8] sm:$0xff] %v7475
          %7988 = vst [vmem:[%s313 + $0x500] sm:$0xff] %v7476
          %7989 = vst [vmem:[%s313 + $0x508] sm:$0xff] %v7477
          %7990 = vst [vmem:[%s313 + $0x510] sm:$0xff] %v7478
          %7991 = vst [vmem:[%s313 + $0x518] sm:$0xff] %v7479
          %7992 = vst [vmem:[%s313 + $0x520] sm:$0xff] %v7480
          %7993 = vst [vmem:[%s313 + $0x528] sm:$0xff] %v7481
          %7994 = vst [vmem:[%s313 + $0x530] sm:$0xff] %v7482
          %7995 = vst [vmem:[%s313 + $0x538] sm:$0xff] %v7483
          %7996 = vst [vmem:[%s313 + $0x540] sm:$0xff] %v7484
          %7997 = vst [vmem:[%s313 + $0x548] sm:$0xff] %v7485
          %7998 = vst [vmem:[%s313 + $0x550] sm:$0xff] %v7486
          %7999 = vst [vmem:[%s313 + $0x558] sm:$0xff] %v7487
          %8000 = vst [vmem:[%s313 + $0x560] sm:$0xff] %v7488
          %8001 = vst [vmem:[%s313 + $0x568] sm:$0xff] %v7489
          %8002 = vst [vmem:[%s313 + $0x570] sm:$0xff] %v7490
          %8003 = vst [vmem:[%s313 + $0x578] sm:$0xff] %v7491
          %8004 = vst [vmem:[%s313 + $0x580] sm:$0xff] %v7492
          %8005 = vst [vmem:[%s313 + $0x588] sm:$0xff] %v7493
          %8006 = vst [vmem:[%s313 + $0x590] sm:$0xff] %v7494
          %8007 = vst [vmem:[%s313 + $0x598] sm:$0xff] %v7495
          %8008 = vst [vmem:[%s313 + $0x5a0] sm:$0xff] %v7496
          %8009 = vst [vmem:[%s313 + $0x5a8] sm:$0xff] %v7497
          %8010 = vst [vmem:[%s313 + $0x5b0] sm:$0xff] %v7498
          %8011 = vst [vmem:[%s313 + $0x5b8] sm:$0xff] %v7499
          %8012 = vst [vmem:[%s313 + $0x5c0] sm:$0xff] %v7500
          %8013 = vst [vmem:[%s313 + $0x5c8] sm:$0xff] %v7501
          %8014 = vst [vmem:[%s313 + $0x5d0] sm:$0xff] %v7502
          %8015 = vst [vmem:[%s313 + $0x5d8] sm:$0xff] %v7503
          %8016 = vst [vmem:[%s313 + $0x5e0] sm:$0xff] %v7504
          %8017 = vst [vmem:[%s313 + $0x5e8] sm:$0xff] %v7505
          %8018 = vst [vmem:[%s313 + $0x5f0] sm:$0xff] %v7506
          %8019 = vst [vmem:[%s313 + $0x5f8] sm:$0xff] %v7507
          %8020 = vst [vmem:[%s313 + $0x600] sm:$0xff] %v7508
          %8021 = vst [vmem:[%s313 + $0x608] sm:$0xff] %v7509
          %8022 = vst [vmem:[%s313 + $0x610] sm:$0xff] %v7510
          %8023 = vst [vmem:[%s313 + $0x618] sm:$0xff] %v7511
          %8024 = vst [vmem:[%s313 + $0x620] sm:$0xff] %v7512
          %8025 = vst [vmem:[%s313 + $0x628] sm:$0xff] %v7513
          %8026 = vst [vmem:[%s313 + $0x630] sm:$0xff] %v7514
          %8027 = vst [vmem:[%s313 + $0x638] sm:$0xff] %v7515
          %8028 = vst [vmem:[%s313 + $0x640] sm:$0xff] %v7516
          %8029 = vst [vmem:[%s313 + $0x648] sm:$0xff] %v7517
          %8030 = vst [vmem:[%s313 + $0x650] sm:$0xff] %v7518
          %8031 = vst [vmem:[%s313 + $0x658] sm:$0xff] %v7519
          %8032 = vst [vmem:[%s313 + $0x660] sm:$0xff] %v7520
          %8033 = vst [vmem:[%s313 + $0x668] sm:$0xff] %v7521
          %8034 = vst [vmem:[%s313 + $0x670] sm:$0xff] %v7522
          %8035 = vst [vmem:[%s313 + $0x678] sm:$0xff] %v7523
          %8036 = vst [vmem:[%s313 + $0x680] sm:$0xff] %v7524
          %8037 = vst [vmem:[%s313 + $0x688] sm:$0xff] %v7525
          %8038 = vst [vmem:[%s313 + $0x690] sm:$0xff] %v7526
          %8039 = vst [vmem:[%s313 + $0x698] sm:$0xff] %v7527
          %8040 = vst [vmem:[%s313 + $0x6a0] sm:$0xff] %v7528
          %8041 = vst [vmem:[%s313 + $0x6a8] sm:$0xff] %v7529
          %8042 = vst [vmem:[%s313 + $0x6b0] sm:$0xff] %v7530
          %8043 = vst [vmem:[%s313 + $0x6b8] sm:$0xff] %v7531
          %8044 = vst [vmem:[%s313 + $0x6c0] sm:$0xff] %v7532
          %8045 = vst [vmem:[%s313 + $0x6c8] sm:$0xff] %v7533
          %8046 = vst [vmem:[%s313 + $0x6d0] sm:$0xff] %v7534
          %8047 = vst [vmem:[%s313 + $0x6d8] sm:$0xff] %v7535
          %8048 = vst [vmem:[%s313 + $0x6e0] sm:$0xff] %v7536
          %8049 = vst [vmem:[%s313 + $0x6e8] sm:$0xff] %v7537
          %8050 = vst [vmem:[%s313 + $0x6f0] sm:$0xff] %v7538
          %8051 = vst [vmem:[%s313 + $0x6f8] sm:$0xff] %v7539
          %8052 = vst [vmem:[%s313 + $0x700] sm:$0xff] %v7540
          %8053 = vst [vmem:[%s313 + $0x708] sm:$0xff] %v7541
          %8054 = vst [vmem:[%s313 + $0x710] sm:$0xff] %v7542
          %8055 = vst [vmem:[%s313 + $0x718] sm:$0xff] %v7543
          %8056 = vst [vmem:[%s313 + $0x720] sm:$0xff] %v7544
          %8057 = vst [vmem:[%s313 + $0x728] sm:$0xff] %v7545
          %8058 = vst [vmem:[%s313 + $0x730] sm:$0xff] %v7546
          %8059 = vst [vmem:[%s313 + $0x738] sm:$0xff] %v7547
          %8060 = vst [vmem:[%s313 + $0x740] sm:$0xff] %v7548
          %8061 = vst [vmem:[%s313 + $0x748] sm:$0xff] %v7549
          %8062 = vst [vmem:[%s313 + $0x750] sm:$0xff] %v7550
          %8063 = vst [vmem:[%s313 + $0x758] sm:$0xff] %v7551
          %8064 = vst [vmem:[%s313 + $0x760] sm:$0xff] %v7552
          %8065 = vst [vmem:[%s313 + $0x768] sm:$0xff] %v7553
          %8066 = vst [vmem:[%s313 + $0x770] sm:$0xff] %v7554
          %8067 = vst [vmem:[%s313 + $0x778] sm:$0xff] %v7555
          %8068 = vst [vmem:[%s313 + $0x780] sm:$0xff] %v7556
          %8069 = vst [vmem:[%s313 + $0x788] sm:$0xff] %v7557
          %8070 = vst [vmem:[%s313 + $0x790] sm:$0xff] %v7558
          %8071 = vst [vmem:[%s313 + $0x798] sm:$0xff] %v7559
          %8072 = vst [vmem:[%s313 + $0x7a0] sm:$0xff] %v7560
          %8073 = vst [vmem:[%s313 + $0x7a8] sm:$0xff] %v7561
          %8074 = vst [vmem:[%s313 + $0x7b0] sm:$0xff] %v7562
          %8075 = vst [vmem:[%s313 + $0x7b8] sm:$0xff] %v7563
          %8076 = vst [vmem:[%s313 + $0x7c0] sm:$0xff] %v7564
          %8077 = vst [vmem:[%s313 + $0x7c8] sm:$0xff] %v7565
          %8078 = vst [vmem:[%s313 + $0x7d0] sm:$0xff] %v7566
          %8079 = vst [vmem:[%s313 + $0x7d8] sm:$0xff] %v7567
          %8080 = vst [vmem:[%s313 + $0x7e0] sm:$0xff] %v7568
          %8081 = vst [vmem:[%s313 + $0x7e8] sm:$0xff] %v7569
          %8082 = vst [vmem:[%s313 + $0x7f0] sm:$0xff] %v7570
          %8083 = vst [vmem:[%s313 + $0x7f8] sm:$0xff] %v7571
          %8084 = vst [vmem:[%s313 + $0x800] sm:$0xff] %v7572
          %8085 = vst [vmem:[%s313 + $0x808] sm:$0xff] %v7573
          %8086 = vst [vmem:[%s313 + $0x810] sm:$0xff] %v7574
          %8087 = vst [vmem:[%s313 + $0x818] sm:$0xff] %v7575
          %8088 = vst [vmem:[%s313 + $0x820] sm:$0xff] %v7576
          %8089 = vst [vmem:[%s313 + $0x828] sm:$0xff] %v7577
          %8090 = vst [vmem:[%s313 + $0x830] sm:$0xff] %v7578
          %8091 = vst [vmem:[%s313 + $0x838] sm:$0xff] %v7579
          %8092 = vst [vmem:[%s313 + $0x840] sm:$0xff] %v7580
          %8093 = vst [vmem:[%s313 + $0x848] sm:$0xff] %v7581
          %8094 = vst [vmem:[%s313 + $0x850] sm:$0xff] %v7582
          %8095 = vst [vmem:[%s313 + $0x858] sm:$0xff] %v7583
          %8096 = vst [vmem:[%s313 + $0x860] sm:$0xff] %v7584
          %8097 = vst [vmem:[%s313 + $0x868] sm:$0xff] %v7585
          %8098 = vst [vmem:[%s313 + $0x870] sm:$0xff] %v7586
          %8099 = vst [vmem:[%s313 + $0x878] sm:$0xff] %v7587
          %8100 = vst [vmem:[%s313 + $0x880] sm:$0xff] %v7588
          %8101 = vst [vmem:[%s313 + $0x888] sm:$0xff] %v7589
          %8102 = vst [vmem:[%s313 + $0x890] sm:$0xff] %v7590
          %8103 = vst [vmem:[%s313 + $0x898] sm:$0xff] %v7591
          %8104 = vst [vmem:[%s313 + $0x8a0] sm:$0xff] %v7592
          %8105 = vst [vmem:[%s313 + $0x8a8] sm:$0xff] %v7593
          %8106 = vst [vmem:[%s313 + $0x8b0] sm:$0xff] %v7594
          %8107 = vst [vmem:[%s313 + $0x8b8] sm:$0xff] %v7595
          %8108 = vst [vmem:[%s313 + $0x8c0] sm:$0xff] %v7596
          %8109 = vst [vmem:[%s313 + $0x8c8] sm:$0xff] %v7597
          %8110 = vst [vmem:[%s313 + $0x8d0] sm:$0xff] %v7598
          %8111 = vst [vmem:[%s313 + $0x8d8] sm:$0xff] %v7599
          %8112 = vst [vmem:[%s313 + $0x8e0] sm:$0xff] %v7600
          %8113 = vst [vmem:[%s313 + $0x8e8] sm:$0xff] %v7601
          %8114 = vst [vmem:[%s313 + $0x8f0] sm:$0xff] %v7602
          %8115 = vst [vmem:[%s313 + $0x8f8] sm:$0xff] %v7603
          %8116 = vst [vmem:[%s313 + $0x900] sm:$0xff] %v7604
          %8117 = vst [vmem:[%s313 + $0x908] sm:$0xff] %v7605
          %8118 = vst [vmem:[%s313 + $0x910] sm:$0xff] %v7606
          %8119 = vst [vmem:[%s313 + $0x918] sm:$0xff] %v7607
          %8120 = vst [vmem:[%s313 + $0x920] sm:$0xff] %v7608
          %8121 = vst [vmem:[%s313 + $0x928] sm:$0xff] %v7609
          %8122 = vst [vmem:[%s313 + $0x930] sm:$0xff] %v7610
          %8123 = vst [vmem:[%s313 + $0x938] sm:$0xff] %v7611
          %8124 = vst [vmem:[%s313 + $0x940] sm:$0xff] %v7612
          %8125 = vst [vmem:[%s313 + $0x948] sm:$0xff] %v7613
          %8126 = vst [vmem:[%s313 + $0x950] sm:$0xff] %v7614
          %8127 = vst [vmem:[%s313 + $0x958] sm:$0xff] %v7615
          %8128 = vst [vmem:[%s313 + $0x960] sm:$0xff] %v7616
          %8129 = vst [vmem:[%s313 + $0x968] sm:$0xff] %v7617
          %8130 = vst [vmem:[%s313 + $0x970] sm:$0xff] %v7618
          %8131 = vst [vmem:[%s313 + $0x978] sm:$0xff] %v7619
          %8132 = vst [vmem:[%s313 + $0x980] sm:$0xff] %v7620
          %8133 = vst [vmem:[%s313 + $0x988] sm:$0xff] %v7621
          %8134 = vst [vmem:[%s313 + $0x990] sm:$0xff] %v7622
          %8135 = vst [vmem:[%s313 + $0x998] sm:$0xff] %v7623
          %8136 = vst [vmem:[%s313 + $0x9a0] sm:$0xff] %v7624
          %8137 = vst [vmem:[%s313 + $0x9a8] sm:$0xff] %v7625
          %8138 = vst [vmem:[%s313 + $0x9b0] sm:$0xff] %v7626
          %8139 = vst [vmem:[%s313 + $0x9b8] sm:$0xff] %v7627
          %8140 = vst [vmem:[%s313 + $0x9c0] sm:$0xff] %v7628
          %8141 = vst [vmem:[%s313 + $0x9c8] sm:$0xff] %v7629
          %8142 = vst [vmem:[%s313 + $0x9d0] sm:$0xff] %v7630
          %8143 = vst [vmem:[%s313 + $0x9d8] sm:$0xff] %v7631
          %8144 = vst [vmem:[%s313 + $0x9e0] sm:$0xff] %v7632
          %8145 = vst [vmem:[%s313 + $0x9e8] sm:$0xff] %v7633
          %8146 = vst [vmem:[%s313 + $0x9f0] sm:$0xff] %v7634
          %8147 = vst [vmem:[%s313 + $0x9f8] sm:$0xff] %v7635
          %8148 = vst [vmem:[%s313 + $0xa00] sm:$0xff] %v7636
          %8149 = vst [vmem:[%s313 + $0xa08] sm:$0xff] %v7637
          %8150 = vst [vmem:[%s313 + $0xa10] sm:$0xff] %v7638
          %8151 = vst [vmem:[%s313 + $0xa18] sm:$0xff] %v7639
          %8152 = vst [vmem:[%s313 + $0xa20] sm:$0xff] %v7640
          %8153 = vst [vmem:[%s313 + $0xa28] sm:$0xff] %v7641
          %8154 = vst [vmem:[%s313 + $0xa30] sm:$0xff] %v7642
          %8155 = vst [vmem:[%s313 + $0xa38] sm:$0xff] %v7643
          %8156 = vst [vmem:[%s313 + $0xa40] sm:$0xff] %v7644
          %8157 = vst [vmem:[%s313 + $0xa48] sm:$0xff] %v7645
          %8158 = vst [vmem:[%s313 + $0xa50] sm:$0xff] %v7646
          %8159 = vst [vmem:[%s313 + $0xa58] sm:$0xff] %v7647
          %8160 = vst [vmem:[%s313 + $0xa60] sm:$0xff] %v7648
          %8161 = vst [vmem:[%s313 + $0xa68] sm:$0xff] %v7649
          %8162 = vst [vmem:[%s313 + $0xa70] sm:$0xff] %v7650
          %8163 = vst [vmem:[%s313 + $0xa78] sm:$0xff] %v7651
          %8164 = vst [vmem:[%s313 + $0xa80] sm:$0xff] %v7652
          %8165 = vst [vmem:[%s313 + $0xa88] sm:$0xff] %v7653
          %8166 = vst [vmem:[%s313 + $0xa90] sm:$0xff] %v7654
          %8167 = vst [vmem:[%s313 + $0xa98] sm:$0xff] %v7655
          %8168 = vst [vmem:[%s313 + $0xaa0] sm:$0xff] %v7656
          %8169 = vst [vmem:[%s313 + $0xaa8] sm:$0xff] %v7657
          %8170 = vst [vmem:[%s313 + $0xab0] sm:$0xff] %v7658
          %8171 = vst [vmem:[%s313 + $0xab8] sm:$0xff] %v7659
          %8172 = vst [vmem:[%s313 + $0xac0] sm:$0xff] %v7660
          %8173 = vst [vmem:[%s313 + $0xac8] sm:$0xff] %v7661
          %8174 = vst [vmem:[%s313 + $0xad0] sm:$0xff] %v7662
          %8175 = vst [vmem:[%s313 + $0xad8] sm:$0xff] %v7663
          %8176 = vst [vmem:[%s313 + $0xae0] sm:$0xff] %v7664
          %8177 = vst [vmem:[%s313 + $0xae8] sm:$0xff] %v7665
          %8178 = vst [vmem:[%s313 + $0xaf0] sm:$0xff] %v7666
          %8179 = vst [vmem:[%s313 + $0xaf8] sm:$0xff] %v7667
          %8180 = vst [vmem:[%s313 + $0xb00] sm:$0xff] %v7668
          %8181 = vst [vmem:[%s313 + $0xb08] sm:$0xff] %v7669
          %8182 = vst [vmem:[%s313 + $0xb10] sm:$0xff] %v7670
          %8183 = vst [vmem:[%s313 + $0xb18] sm:$0xff] %v7671
          %8184 = vst [vmem:[%s313 + $0xb20] sm:$0xff] %v7672
          %8185 = vst [vmem:[%s313 + $0xb28] sm:$0xff] %v7673
          %8186 = vst [vmem:[%s313 + $0xb30] sm:$0xff] %v7674
          %8187 = vst [vmem:[%s313 + $0xb38] sm:$0xff] %v7675
          %8188 = vst [vmem:[%s313 + $0xb40] sm:$0xff] %v7676
          %8189 = vst [vmem:[%s313 + $0xb48] sm:$0xff] %v7677
          %8190 = vst [vmem:[%s313 + $0xb50] sm:$0xff] %v7678
          %8191 = vst [vmem:[%s313 + $0xb58] sm:$0xff] %v7679
          %8192 = vst [vmem:[%s313 + $0xb60] sm:$0xff] %v7680
          %8193 = vst [vmem:[%s313 + $0xb68] sm:$0xff] %v7681
          %8194 = vst [vmem:[%s313 + $0xb70] sm:$0xff] %v7682
          %8195 = vst [vmem:[%s313 + $0xb78] sm:$0xff] %v7683
          %8196 = vst [vmem:[%s313 + $0xb80] sm:$0xff] %v7684
          %8197 = vst [vmem:[%s313 + $0xb88] sm:$0xff] %v7685
          %8198 = vst [vmem:[%s313 + $0xb90] sm:$0xff] %v7686
          %8199 = vst [vmem:[%s313 + $0xb98] sm:$0xff] %v7687
          %8200 = vst [vmem:[%s313 + $0xba0] sm:$0xff] %v7688
          %8201 = vst [vmem:[%s313 + $0xba8] sm:$0xff] %v7689
          %8202 = vst [vmem:[%s313 + $0xbb0] sm:$0xff] %v7690
          %8203 = vst [vmem:[%s313 + $0xbb8] sm:$0xff] %v7691
          %8204 = vst [vmem:[%s313 + $0xbc0] sm:$0xff] %v7692
          %8205 = vst [vmem:[%s313 + $0xbc8] sm:$0xff] %v7693
          %8206 = vst [vmem:[%s313 + $0xbd0] sm:$0xff] %v7694
          %8207 = vst [vmem:[%s313 + $0xbd8] sm:$0xff] %v7695
          %8208 = vst [vmem:[%s313 + $0xbe0] sm:$0xff] %v7696
          %8209 = vst [vmem:[%s313 + $0xbe8] sm:$0xff] %v7697
          %8210 = vst [vmem:[%s313 + $0xbf0] sm:$0xff] %v7698
          %8211 = vst [vmem:[%s313 + $0xbf8] sm:$0xff] %v7699
          %8212 = vst [vmem:[%s313 + $0xc00] sm:$0xff] %v7700
          %8213 = vst [vmem:[%s313 + $0xc08] sm:$0xff] %v7701
          %8214 = vst [vmem:[%s313 + $0xc10] sm:$0xff] %v7702
          %8215 = vst [vmem:[%s313 + $0xc18] sm:$0xff] %v7703
          %8216 = vst [vmem:[%s313 + $0xc20] sm:$0xff] %v7704
          %8217 = vst [vmem:[%s313 + $0xc28] sm:$0xff] %v7705
          %8218 = vst [vmem:[%s313 + $0xc30] sm:$0xff] %v7706
          %8219 = vst [vmem:[%s313 + $0xc38] sm:$0xff] %v7707
          %8220 = vst [vmem:[%s313 + $0xc40] sm:$0xff] %v7708
          %8221 = vst [vmem:[%s313 + $0xc48] sm:$0xff] %v7709
          %8222 = vst [vmem:[%s313 + $0xc50] sm:$0xff] %v7710
          %8223 = vst [vmem:[%s313 + $0xc58] sm:$0xff] %v7711
          %8224 = vst [vmem:[%s313 + $0xc60] sm:$0xff] %v7712
          %8225 = vst [vmem:[%s313 + $0xc68] sm:$0xff] %v7713
          %8226 = vst [vmem:[%s313 + $0xc70] sm:$0xff] %v7714
          %8227 = vst [vmem:[%s313 + $0xc78] sm:$0xff] %v7715
          %8228 = vst [vmem:[%s313 + $0xc80] sm:$0xff] %v7716
          %8229 = vst [vmem:[%s313 + $0xc88] sm:$0xff] %v7717
          %8230 = vst [vmem:[%s313 + $0xc90] sm:$0xff] %v7718
          %8231 = vst [vmem:[%s313 + $0xc98] sm:$0xff] %v7719
          %8232 = vst [vmem:[%s313 + $0xca0] sm:$0xff] %v7720
          %8233 = vst [vmem:[%s313 + $0xca8] sm:$0xff] %v7721
          %8234 = vst [vmem:[%s313 + $0xcb0] sm:$0xff] %v7722
          %8235 = vst [vmem:[%s313 + $0xcb8] sm:$0xff] %v7723
          %8236 = vst [vmem:[%s313 + $0xcc0] sm:$0xff] %v7724
          %8237 = vst [vmem:[%s313 + $0xcc8] sm:$0xff] %v7725
          %8238 = vst [vmem:[%s313 + $0xcd0] sm:$0xff] %v7726
          %8239 = vst [vmem:[%s313 + $0xcd8] sm:$0xff] %v7727
          %8240 = vst [vmem:[%s313 + $0xce0] sm:$0xff] %v7728
          %8241 = vst [vmem:[%s313 + $0xce8] sm:$0xff] %v7729
          %8242 = vst [vmem:[%s313 + $0xcf0] sm:$0xff] %v7730
          %8243 = vst [vmem:[%s313 + $0xcf8] sm:$0xff] %v7731
          %8244 = vst [vmem:[%s313 + $0xd00] sm:$0xff] %v7732
          %8245 = vst [vmem:[%s313 + $0xd08] sm:$0xff] %v7733
          %8246 = vst [vmem:[%s313 + $0xd10] sm:$0xff] %v7734
          %8247 = vst [vmem:[%s313 + $0xd18] sm:$0xff] %v7735
          %8248 = vst [vmem:[%s313 + $0xd20] sm:$0xff] %v7736
          %8249 = vst [vmem:[%s313 + $0xd28] sm:$0xff] %v7737
          %8250 = vst [vmem:[%s313 + $0xd30] sm:$0xff] %v7738
          %8251 = vst [vmem:[%s313 + $0xd38] sm:$0xff] %v7739
          %8252 = vst [vmem:[%s313 + $0xd40] sm:$0xff] %v7740
          %8253 = vst [vmem:[%s313 + $0xd48] sm:$0xff] %v7741
          %8254 = vst [vmem:[%s313 + $0xd50] sm:$0xff] %v7742
          %8255 = vst [vmem:[%s313 + $0xd58] sm:$0xff] %v7743
          %8256 = vst [vmem:[%s313 + $0xd60] sm:$0xff] %v7744
          %8257 = vst [vmem:[%s313 + $0xd68] sm:$0xff] %v7745
          %8258 = vst [vmem:[%s313 + $0xd70] sm:$0xff] %v7746
          %8259 = vst [vmem:[%s313 + $0xd78] sm:$0xff] %v7747
          %8260 = vst [vmem:[%s313 + $0xd80] sm:$0xff] %v7748
          %8261 = vst [vmem:[%s313 + $0xd88] sm:$0xff] %v7749
          %8262 = vst [vmem:[%s313 + $0xd90] sm:$0xff] %v7750
          %8263 = vst [vmem:[%s313 + $0xd98] sm:$0xff] %v7751
          %8264 = vst [vmem:[%s313 + $0xda0] sm:$0xff] %v7752
          %8265 = vst [vmem:[%s313 + $0xda8] sm:$0xff] %v7753
          %8266 = vst [vmem:[%s313 + $0xdb0] sm:$0xff] %v7754
          %8267 = vst [vmem:[%s313 + $0xdb8] sm:$0xff] %v7755
          %8268 = vst [vmem:[%s313 + $0xdc0] sm:$0xff] %v7756
          %8269 = vst [vmem:[%s313 + $0xdc8] sm:$0xff] %v7757
          %8270 = vst [vmem:[%s313 + $0xdd0] sm:$0xff] %v7758
          %8271 = vst [vmem:[%s313 + $0xdd8] sm:$0xff] %v7759
          %8272 = vst [vmem:[%s313 + $0xde0] sm:$0xff] %v7760
          %8273 = vst [vmem:[%s313 + $0xde8] sm:$0xff] %v7761
          %8274 = vst [vmem:[%s313 + $0xdf0] sm:$0xff] %v7762
          %8275 = vst [vmem:[%s313 + $0xdf8] sm:$0xff] %v7763
          %8276 = vst [vmem:[%s313 + $0xe00] sm:$0xff] %v7764
          %8277 = vst [vmem:[%s313 + $0xe08] sm:$0xff] %v7765
          %8278 = vst [vmem:[%s313 + $0xe10] sm:$0xff] %v7766
          %8279 = vst [vmem:[%s313 + $0xe18] sm:$0xff] %v7767
          %8280 = vst [vmem:[%s313 + $0xe20] sm:$0xff] %v7768
          %8281 = vst [vmem:[%s313 + $0xe28] sm:$0xff] %v7769
          %8282 = vst [vmem:[%s313 + $0xe30] sm:$0xff] %v7770
          %8283 = vst [vmem:[%s313 + $0xe38] sm:$0xff] %v7771
          %8284 = vst [vmem:[%s313 + $0xe40] sm:$0xff] %v7772
          %8285 = vst [vmem:[%s313 + $0xe48] sm:$0xff] %v7773
          %8286 = vst [vmem:[%s313 + $0xe50] sm:$0xff] %v7774
          %8287 = vst [vmem:[%s313 + $0xe58] sm:$0xff] %v7775
          %8288 = vst [vmem:[%s313 + $0xe60] sm:$0xff] %v7776
          %8289 = vst [vmem:[%s313 + $0xe68] sm:$0xff] %v7777
          %8290 = vst [vmem:[%s313 + $0xe70] sm:$0xff] %v7778
          %8291 = vst [vmem:[%s313 + $0xe78] sm:$0xff] %v7779
          %8292 = vst [vmem:[%s313 + $0xe80] sm:$0xff] %v7780
          %8293 = vst [vmem:[%s313 + $0xe88] sm:$0xff] %v7781
          %8294 = vst [vmem:[%s313 + $0xe90] sm:$0xff] %v7782
          %8295 = vst [vmem:[%s313 + $0xe98] sm:$0xff] %v7783
          %8296 = vst [vmem:[%s313 + $0xea0] sm:$0xff] %v7784
          %8297 = vst [vmem:[%s313 + $0xea8] sm:$0xff] %v7785
          %8298 = vst [vmem:[%s313 + $0xeb0] sm:$0xff] %v7786
          %8299 = vst [vmem:[%s313 + $0xeb8] sm:$0xff] %v7787
          %8300 = vst [vmem:[%s313 + $0xec0] sm:$0xff] %v7788
          %8301 = vst [vmem:[%s313 + $0xec8] sm:$0xff] %v7789
          %8302 = vst [vmem:[%s313 + $0xed0] sm:$0xff] %v7790
          %8303 = vst [vmem:[%s313 + $0xed8] sm:$0xff] %v7791
          %8304 = vst [vmem:[%s313 + $0xee0] sm:$0xff] %v7792
          %8305 = vst [vmem:[%s313 + $0xee8] sm:$0xff] %v7793
          %8306 = vst [vmem:[%s313 + $0xef0] sm:$0xff] %v7794
          %8307 = vst [vmem:[%s313 + $0xef8] sm:$0xff] %v7795
          %8308 = vst [vmem:[%s313 + $0xf00] sm:$0xff] %v7796
          %8309 = vst [vmem:[%s313 + $0xf08] sm:$0xff] %v7797
          %8310 = vst [vmem:[%s313 + $0xf10] sm:$0xff] %v7798
          %8311 = vst [vmem:[%s313 + $0xf18] sm:$0xff] %v7799
          %8312 = vst [vmem:[%s313 + $0xf20] sm:$0xff] %v7800
          %8313 = vst [vmem:[%s313 + $0xf28] sm:$0xff] %v7801
          %8314 = vst [vmem:[%s313 + $0xf30] sm:$0xff] %v7802
          %8315 = vst [vmem:[%s313 + $0xf38] sm:$0xff] %v7803
          %8316 = vst [vmem:[%s313 + $0xf40] sm:$0xff] %v7804
          %8317 = vst [vmem:[%s313 + $0xf48] sm:$0xff] %v7805
          %8318 = vst [vmem:[%s313 + $0xf50] sm:$0xff] %v7806
          %8319 = vst [vmem:[%s313 + $0xf58] sm:$0xff] %v7807
          %8320 = vst [vmem:[%s313 + $0xf60] sm:$0xff] %v7808
          %8321 = vst [vmem:[%s313 + $0xf68] sm:$0xff] %v7809
          %8322 = vst [vmem:[%s313 + $0xf70] sm:$0xff] %v7810
          %8323 = vst [vmem:[%s313 + $0xf78] sm:$0xff] %v7811
          %8324 = vst [vmem:[%s313 + $0xf80] sm:$0xff] %v7812
          %8325 = vst [vmem:[%s313 + $0xf88] sm:$0xff] %v7813
          %8326 = vst [vmem:[%s313 + $0xf90] sm:$0xff] %v7814
          %8327 = vst [vmem:[%s313 + $0xf98] sm:$0xff] %v7815
          %8328 = vst [vmem:[%s313 + $0xfa0] sm:$0xff] %v7816
          %8329 = vst [vmem:[%s313 + $0xfa8] sm:$0xff] %v7817
          %8330 = vst [vmem:[%s313 + $0xfb0] sm:$0xff] %v7818
          %8331 = vst [vmem:[%s313 + $0xfb8] sm:$0xff] %v7819
          %8332 = vst [vmem:[%s313 + $0xfc0] sm:$0xff] %v7820
          %8333 = vst [vmem:[%s313 + $0xfc8] sm:$0xff] %v7821
          %8334 = vst [vmem:[%s313 + $0xfd0] sm:$0xff] %v7822
          %8335 = vst [vmem:[%s313 + $0xfd8] sm:$0xff] %v7823
          %8336 = vst [vmem:[%s313 + $0xfe0] sm:$0xff] %v7824
          %8337 = vst [vmem:[%s313 + $0xfe8] sm:$0xff] %v7825
          %8338 = vst [vmem:[%s313 + $0xff0] sm:$0xff] %v7826
          %8339 = vst [vmem:[%s313 + $0xff8] sm:$0xff] %v7827
        $region56: #{tpu_custom_call.1} parent=31 // pred_fallthru
          _
        %s8340 = sand.u32 %s134, 1
        %s8341 = scalar_lea.sflag [#allocation5], %s8340
        %s8342 = sand.u32 %s134, 1
        %s8343 = smul.addr %s8342, 4096
        %s8344 = scalar_lea.vmem [#allocation9], %s8343
        // Predicated region
        $region57: #{tpu_custom_call.1} parent=31 // pred_check
          %p8345 = pneg %p144
        $region58: #{tpu_custom_call.1} parent=31 // pred_check_branch
          %8347 = sbr.rel (%p8345) target = $region60
        $region59: #{tpu_custom_call.1} parent=31 // pred_region
          %s8348 = smul.u32 64, %s28
          %s8349 = smul.u32 8, %s29
          %s8350 = ssub.s32 80, %s8348
          %p8351 = scmp.lt.s32.totalorder %s8350, 64
          %s8352 = scalar_select %p8351, %s8350, 64
          %s8353 = smul.u32 128, %s8352
          %s8354 = ssub.s32 12, %s8349
          %p8355 = scmp.lt.s32.totalorder %s8354, 8
          %s8356 = scalar_select %p8355, %s8354, 8
          %s8357 = smul.u32 %s8353, %s8356
          %s8359 = ssub.s32 65536, %s8357
          %8360 = vsyncadd %s8341, %s8359
          %p8361 = scmp.ne.s32.totalorder 0, %s8357
          %s8362 = smul.addr %s8348, 12
          %s8363 = sadd.s32 %s8349, %s8362
          %s8364 = smul.addr %s8363, 128
          %s8365 = scalar_lea.hbm %s3, %s8364
          %s8366 = smul.u32 %s8356, 8
          %s8367 = smul.u32 %s8366, %s8352
          %s8368 = sshll.u32 %s8344, 4
          %s8369 = int_to_ptr.vmem [resolvable:$true] %s8368
          %s8370 = sshll.u32 %s8367, 4
          %8374 = dma.vmem_to_hbm [thread:$0]  (%p8361), %s8369, %s8370, %s8365, %s8341, 1024, 1536, %s8366
        $region60: #{tpu_custom_call.1} parent=31 // pred_fallthru
          _
      $region32: #{tpu_custom_call.1} parent=5 // pred_fallthru
        _
      %p8375 = scmp.le.s32.totalorder 2, %s18
      // Predicated region
      $region61: #{tpu_custom_call.1} parent=5 // pred_check
        %p8376 = pneg %p8375
      $region62: #{tpu_custom_call.1} parent=5 // pred_check_branch
        %8378 = sbr.rel (%p8376) target = $region64
      $region63: #{tpu_custom_call.1} parent=5 // pred_region
        %s8379 = ssub.s32 %s18, 2
        // Predicated region
        $region65: #{tpu_custom_call.1} parent=63 // pred_check
          %p8380 = pneg %p150
        $region66: #{tpu_custom_call.1} parent=63 // pred_check_branch
          %8382 = sbr.rel (%p8380) target = $region68
        $region67: #{tpu_custom_call.1} parent=63 // pred_region
          %s8383 = sand.u32 %s135, 1
          %s8384 = scalar_lea.sflag [#allocation5], %s8383
          %s8385 = sand.u32 %s135, 1
          %s8386 = smul.addr %s8385, 4096
          %s8387 = scalar_lea.vmem [#allocation9], %s8386
          %8388 = dma.done %s8384, 65536
        $region68: #{tpu_custom_call.1} parent=63 // pred_fallthru
          _
      $region64: #{tpu_custom_call.1} parent=5 // pred_fallthru
        _
    $region6: #{tpu_custom_call.1} parent=1 // loop_footer
      %s22 = sadd.s32 1, %s18
    $region7: #{tpu_custom_call.1} parent=1 // loop_footer_branch
      %17 = sbr.rel target = $region3
    $region8: #{tpu_custom_call.1} parent=1 // loop_exit
      _
    %8389 = vsyncpa [#allocation4], 1
    %s8390 = scalar_lea.sflag [#allocation4], 1
    %8391 = vsyncpa %s8390, 1
    %8392 = vsyncpa [#allocation7], 1
    %s8393 = scalar_lea.sflag [#allocation7], 1
    %8394 = vsyncpa %s8393, 1
    %8395 = vsyncpa [#allocation5], 1
    %s8396 = scalar_lea.sflag [#allocation5], 1
    %8397 = vsyncpa %s8396, 1

</llo_original>
